<compile_context>
chip_gen: v5e
topology: v5e:2x2
jax: 0.10.0
libtpu: 0.0.40
codegen_flags: <defaults>
</compile_context>

<pallas_src>
import functools

import jax
import jax.numpy as jnp
from jax import lax
from jax.experimental import pallas as pl
from jax.experimental.pallas import tpu as pltpu


# ----------------------------------------------------------------------------
# Pallas kernel: one batch block per grid step.
# ----------------------------------------------------------------------------
def _causal_lstm_kernel(layer_norm, eps, k,
                        xhm_ref, c_ref, w_ref, b_ref, wo_ref, bo_ref,
                        gamma_ref, beta_ref,
                        h_out_ref, c_out_ref, m_out_ref, dc_out_ref, dm_out_ref):
    B, H, W, C = c_ref.shape
    Cpad = xhm_ref.shape[-1]          # lane-aligned channel count of [m|h|x|pad]
    pad = k // 2
    HW = H * W
    M = B * HW                        # matmul row dimension

    xhm = xhm_ref[...]                # (B, Hp, Wp, Cpad), f32

    # ---- fused conv_x/conv_h/conv_m: one im2col + one bf16 MXU matmul -------
    taps = []
    for dy in range(k):
        for dx in range(k):
            tap = xhm[:, dy:dy + H, dx:dx + W, :]              # (B, H, W, Cpad)
            taps.append(tap.reshape(M, Cpad).astype(jnp.bfloat16))
    patch = jnp.concatenate(taps, axis=1)                      # (M, k*k*Cpad)

    gates = jnp.dot(patch, w_ref[...], preferred_element_type=jnp.float32)
    gates = gates + b_ref[...]        # conv biases + forget bias folded in (f32)

    # column order: [i, f, g, o, i_m, f_m, g_m]; h/m contributions pre-summed
    i_g  = jax.nn.sigmoid(gates[:, 0 * C:1 * C])
    f_g  = jax.nn.sigmoid(gates[:, 1 * C:2 * C])               # + forget bias
    g_g  = jnp.tanh(gates[:, 2 * C:3 * C])
    o_xh = gates[:, 3 * C:4 * C]
    i_m  = jax.nn.sigmoid(gates[:, 4 * C:5 * C])
    f_m  = jax.nn.sigmoid(gates[:, 5 * C:6 * C])               # + forget bias
    g_m  = jnp.tanh(gates[:, 6 * C:7 * C])

    c_prev = c_ref[...].reshape(M, C)
    # m_prev = centre window of the padded [m | h | x] block (channels 0:C, f32)
    m_prev = xhm[:, pad:pad + H, pad:pad + W, 0:C].reshape(M, C)

    delta_c = i_g * g_g
    c_new = f_g * c_prev + delta_c
    delta_m = i_m * g_m
    m_new = f_m * m_prev + delta_m

    # ---- output gate: 1x1 conv over [c_new | m_new] as two bf16 matmuls -----
    o_conv = (jnp.dot(c_new.astype(jnp.bfloat16), wo_ref[0:C, :],
                      preferred_element_type=jnp.float32)
              + jnp.dot(m_new.astype(jnp.bfloat16), wo_ref[C:2 * C, :],
                        preferred_element_type=jnp.float32)
              + bo_ref[...])
    o_g = jax.nn.sigmoid(o_xh + o_conv)

    # ---- per-sample LayerNorm over all H*W*C elements (matches nn.LayerNorm) -
    ln_in = c_new + m_new
    if layer_norm:
        ln3 = ln_in.reshape(B, HW, C)
        mean = jnp.mean(ln3, axis=(1, 2), keepdims=True)
        var = jnp.mean((ln3 - mean) ** 2, axis=(1, 2), keepdims=True)
        ln_out = (ln3 - mean) * lax.rsqrt(var + eps)
        ln_out = ln_out * gamma_ref[...][None] + beta_ref[...][None]
        ln_out = ln_out.reshape(M, C)
    else:
        ln_out = ln_in

    h_new = o_g * jnp.tanh(ln_out)

    # ---- lane-dense stores ---------------------------------------------------
    # (M, C) -> (M // G, G*C) with G = 128 // C: output columns [j*C:(j+1)*C]
    # hold rows [j*rows:(j+1)*rows].  Built from sublane slices + a minor-dim
    # concat only, so the final vector stores and output DMA are unmasked/dense.
    rows = h_out_ref.shape[1]
    width = h_out_ref.shape[2]
    G = width // C

    def dense(v):
        if G == 1:
            return v.reshape(1, rows, width)
        return jnp.concatenate(
            [v[j * rows:(j + 1) * rows, :] for j in range(G)], axis=1
        ).reshape(1, rows, width)

    h_out_ref[...]  = dense(h_new)
    c_out_ref[...]  = dense(c_new)
    m_out_ref[...]  = dense(m_new)
    dc_out_ref[...] = dense(delta_c)
    dm_out_ref[...] = dense(delta_m)


# ----------------------------------------------------------------------------
# One-time parameter repacking (would be done once per model, not per step).
# ----------------------------------------------------------------------------
def pack_causal_lstm_params(params, *, filter_size, forget_bias=1.0):
    k = filter_size
    wx, wh, wm = params["wx"], params["wh"], params["wm"]
    Cin = wx.shape[2]
    C = wh.shape[3] // 4
    Cc = 2 * C + Cin
    Cpad = ((Cc + 127) // 128) * 128          # lane-align per-tap channel blocks

    # new output-column order: [i, f, g, o, i_m, f_m, g_m]
    perm = (0, 1, 2, 6, 3, 4, 5)
    wx_r = jnp.concatenate([wx[..., j * C:(j + 1) * C] for j in perm], axis=-1)

    # fused weight rows follow the [m | h | x | zero-pad] input channel order
    w_f = jnp.zeros((k, k, Cpad, 7 * C), jnp.float32)
    w_f = w_f.at[:, :, 0:C, 4 * C:7 * C].set(wm)              # m rows -> m gates
    w_f = w_f.at[:, :, C:2 * C, 0:4 * C].set(wh)              # h rows -> i,f,g,o
    w_f = w_f.at[:, :, 2 * C:2 * C + Cin, :].set(wx_r)        # x rows -> all
    w_fused = w_f.reshape(k * k * Cpad, 7 * C).astype(jnp.bfloat16)

    bx = params["bx"].reshape(-1)
    bh = params["bh"].reshape(-1)
    bm = params["bm"].reshape(-1)
    bx_r = jnp.concatenate([bx[j * C:(j + 1) * C] for j in perm])
    b_f = bx_r + jnp.concatenate([bh, bm])
    b_f = b_f.at[C:2 * C].add(forget_bias).at[5 * C:6 * C].add(forget_bias)

    return {
        "w_fused": w_fused,                                   # (k*k*Cpad, 7C) bf16
        "b_fused": b_f.reshape(1, 7 * C).astype(jnp.float32),
        "wo": params["wo"].astype(jnp.bfloat16),              # (2C, C)
        "bo": params["bo"].reshape(1, -1).astype(jnp.float32),
        "gamma": params["gamma"].reshape(-1, C).astype(jnp.float32),  # (H*W, C)
        "beta": params["beta"].reshape(-1, C).astype(jnp.float32),
    }


def _undense(o, N, H, W, C):
    """Inverse of the kernel's lane-dense packing: (NB, rows, G*C) -> NHWC."""
    NB, rows, width = o.shape
    G = width // C
    parts = [o[:, :, j * C:(j + 1) * C] for j in range(G)]    # each (NB, rows, C)
    v = jnp.concatenate(parts, axis=1)                        # (NB, B*H*W, C)
    return v.reshape(N, H, W, C)


# ----------------------------------------------------------------------------
# Wrapper: single pad/concat + BlockSpecs + pallas_call
# ----------------------------------------------------------------------------
def causal_lstm_cell(x, h, c, m, packed, *, filter_size, layer_norm=True,
                     eps=1e-5, block_batch=1):
    N, H, W, Cin = x.shape
    C = packed["gamma"].shape[-1]
    k = filter_size
    pad = k // 2
    Cc = 2 * C + Cin
    Cpad = packed["w_fused"].shape[0] // (k * k)

    assert N % block_batch == 0
    B = block_batch
    NB = N // B

    # lane-dense output packing factor
    if C % 128 == 0:
        G = 1
        width = C
    else:
        assert 128 % C == 0, "lane-dense output path needs C | 128 or 128 | C"
        G = 128 // C
        width = 128
    M = B * H * W
    assert M % G == 0
    rows = M // G
    assert rows % 8 == 0, "need block_batch*H*W/G to be a multiple of 8"

    # Single channel-concat [m | h | x] and a single spatial+channel zero pad.
    # (For a recurrent rollout this would be the only per-step wrapper op.)
    xhm = jnp.concatenate([m, h, x], axis=-1)                     # (N, H, W, Cc)
    xhm_pad = jnp.pad(xhm, ((0, 0), (pad, pad), (pad, pad), (0, Cpad - Cc)))
    Hp, Wp = H + 2 * pad, W + 2 * pad

    kernel = functools.partial(_causal_lstm_kernel, layer_norm, eps, k)

    def full_spec(a):
        nd = a.ndim
        return pl.BlockSpec(a.shape, lambda n, _nd=nd: (0,) * _nd)

    in_specs = [
        pl.BlockSpec((B, Hp, Wp, Cpad), lambda n: (n, 0, 0, 0)),  # padded [m|h|x]
        pl.BlockSpec((B, H, W, C), lambda n: (n, 0, 0, 0)),       # c_prev
        full_spec(packed["w_fused"]), full_spec(packed["b_fused"]),
        full_spec(packed["wo"]), full_spec(packed["bo"]),
        full_spec(packed["gamma"]), full_spec(packed["beta"]),
    ]
    out_specs = [pl.BlockSpec((1, rows, width), lambda n: (n, 0, 0))
                 for _ in range(5)]
    out_shape = [jax.ShapeDtypeStruct((NB, rows, width), jnp.float32)
                 for _ in range(5)]

    outs = pl.pallas_call(
        kernel,
        out_shape=out_shape,
        grid_spec=pltpu.PrefetchScalarGridSpec(
            num_scalar_prefetch=0,
            grid=(NB,),
            in_specs=in_specs,
            out_specs=out_specs,
        ),
        compiler_params=pltpu.CompilerParams(
            dimension_semantics=("parallel",)),
    )(xhm_pad, c, packed["w_fused"], packed["b_fused"],
      packed["wo"], packed["bo"], packed["gamma"], packed["beta"])

    return tuple(_undense(o, N, H, W, C) for o in outs)


# ----------------------------------------------------------------------------
# Pure-JAX reference (uses the original, un-repacked parameters)
# ----------------------------------------------------------------------------
def causal_lstm_cell_ref(x, h, c, m, params, *, filter_size, layer_norm=True,
                         forget_bias=1.0, eps=1e-5):
    pad = filter_size // 2
    C = params["wh"].shape[3] // 4

    def conv(a, w, b, p):
        out = lax.conv_general_dilated(
            a, w, window_strides=(1, 1), padding=[(p, p), (p, p)],
            dimension_numbers=("NHWC", "HWIO", "NHWC"))
        return out + b.reshape(1, 1, 1, -1)

    x_cat = conv(x, params["wx"], params["bx"], pad)
    h_cat = conv(h, params["wh"], params["bh"], pad)
    m_cat = conv(m, params["wm"], params["bm"], pad)

    split = lambda a, n: [a[..., j * C:(j + 1) * C] for j in range(n)]
    i_x, f_x, g_x, i_mx, f_mx, g_mx, o_x = split(x_cat, 7)
    i_h, f_h, g_h, o_h = split(h_cat, 4)
    i_mh, f_mh, g_mh = split(m_cat, 3)

    i_g = jax.nn.sigmoid(i_x + i_h)
    f_g = jax.nn.sigmoid(f_x + f_h + forget_bias)
    g_g = jnp.tanh(g_x + g_h)
    delta_c = i_g * g_g
    c_new = f_g * c + delta_c

    i_m = jax.nn.sigmoid(i_mx + i_mh)
    f_m = jax.nn.sigmoid(f_mx + f_mh + forget_bias)
    g_m = jnp.tanh(g_mx + g_mh)
    delta_m = i_m * g_m
    m_new = f_m * m + delta_m

    mem = jnp.concatenate([c_new, m_new], axis=-1)
    o_conv = jnp.einsum("nhwc,cd->nhwd", mem, params["wo"]) \
        + params["bo"].reshape(1, 1, 1, -1)
    o_g = jax.nn.sigmoid(o_x + o_h + o_conv)

    ln_in = c_new + m_new
    if layer_norm:
        mean = jnp.mean(ln_in, axis=(1, 2, 3), keepdims=True)
        var = jnp.mean((ln_in - mean) ** 2, axis=(1, 2, 3), keepdims=True)
        ln_out = (ln_in - mean) / jnp.sqrt(var + eps)
        ln_out = ln_out * params["gamma"][None] + params["beta"][None]
    else:
        ln_out = ln_in

    h_new = o_g * jnp.tanh(ln_out)
    return h_new, c_new, m_new, delta_c, delta_m


# ----------------------------------------------------------------------------
# Main
# ----------------------------------------------------------------------------
if __name__ == "__main__":
    # small, module-consistent shapes
    N, Cin, C, Wd, K = 2, 4, 32, 16, 3     # batch, in_channel, num_hidden, width, filter
    layer_norm = True

    key = jax.random.PRNGKey(0)
    ks = jax.random.split(key, 12)

    def init(k, shape, scale):
        return (scale * jax.random.normal(k, shape)).astype(jnp.float32)

    params = {
        # HWIO conv weights; row-shaped biases (1, Cout)
        "wx": init(ks[0], (K, K, Cin, 7 * C), 0.15),
        "bx": init(ks[1], (1, 7 * C), 0.05),
        "wh": init(ks[2], (K, K, C, 4 * C), 0.06),
        "bh": init(ks[3], (1, 4 * C), 0.05),
        "wm": init(ks[4], (K, K, C, 3 * C), 0.06),
        "bm": init(ks[5], (1, 3 * C), 0.05),
        "wo": init(ks[6], (2 * C, C), 0.10),
        "bo": init(ks[7], (1, C), 0.05),
        # LayerNorm affine params, stored HWC to match the NHWC layout
        # (PyTorch nn.LayerNorm([C, H, W]) params would need a CHW->HWC transpose)
        "gamma": jnp.ones((Wd, Wd, C), jnp.float32),
        "beta": jnp.zeros((Wd, Wd, C), jnp.float32),
    }

    x = init(ks[8], (N, Wd, Wd, Cin), 1.0)
    h = init(ks[9], (N, Wd, Wd, C), 0.5)
    c = init(ks[10], (N, Wd, Wd, C), 0.5)
    m = init(ks[11], (N, Wd, Wd, C), 0.5)

    packed = pack_causal_lstm_params(params, filter_size=K, forget_bias=1.0)

    run = jax.jit(functools.partial(causal_lstm_cell, filter_size=K,
                                    layer_norm=layer_norm))
    outs = run(x, h, c, m, packed)
    outs = jax.block_until_ready(outs)

    refs = causal_lstm_cell_ref(x, h, c, m, params,
                                filter_size=K, layer_norm=layer_norm)
    names = ["h_new", "c_new", "m_new", "delta_c", "delta_m"]
    for name, got, want in zip(names, outs, refs):
        assert got.shape == want.shape, (name, got.shape, want.shape)
        # tolerance reflects bf16 MXU operands in the kernel vs the f32 XLA
        # conv reference (see review note: use precision=HIGHEST if tighter
        # agreement is ever required)
        if not jnp.allclose(got, want, atol=3e-2, rtol=3e-2):
            raise AssertionError(f"mismatch in {name}")

    print("KERNEL_OK")
</pallas_src>

<mosaic_0001>
module attributes {stable_mosaic.version = 11 : i64} {
  func.func @_causal_lstm_kernel(%arg0: i32, %arg1: memref<1x18x18x128xf32, #tpu.memory_space<vmem>>, %arg2: memref<1x16x16x32xf32, #tpu.memory_space<vmem>>, %arg3: memref<1152x224xbf16, #tpu.memory_space<vmem>>, %arg4: memref<1x224xf32, #tpu.memory_space<vmem>>, %arg5: memref<64x32xbf16, #tpu.memory_space<vmem>>, %arg6: memref<1x32xf32, #tpu.memory_space<vmem>>, %arg7: memref<256x32xf32, #tpu.memory_space<vmem>>, %arg8: memref<256x32xf32, #tpu.memory_space<vmem>>, %arg9: memref<1x64x128xf32, #tpu.memory_space<vmem>>, %arg10: memref<1x64x128xf32, #tpu.memory_space<vmem>>, %arg11: memref<1x64x128xf32, #tpu.memory_space<vmem>>, %arg12: memref<1x64x128xf32, #tpu.memory_space<vmem>>, %arg13: memref<1x64x128xf32, #tpu.memory_space<vmem>>) attributes {dimension_semantics = [#tpu.dimension_semantics<parallel>], iteration_bounds = array<i64: 2>, scalar_prefetch = 0 : i64, scratch_operands = 0 : i64, tpu.core_type = #tpu.core_type<tc>, window_params = [{transform_indices = @transform_0, window_bounds = array<i64: 1, 18, 18, 128>}, {transform_indices = @transform_1, window_bounds = array<i64: 1, 16, 16, 32>}, {pipeline_mode = #tpu.pipeline_mode<synchronous>, transform_indices = @transform_2, window_bounds = array<i64: 1152, 224>}, {pipeline_mode = #tpu.pipeline_mode<synchronous>, transform_indices = @transform_3, window_bounds = array<i64: 1, 224>}, {pipeline_mode = #tpu.pipeline_mode<synchronous>, transform_indices = @transform_4, window_bounds = array<i64: 64, 32>}, {pipeline_mode = #tpu.pipeline_mode<synchronous>, transform_indices = @transform_5, window_bounds = array<i64: 1, 32>}, {pipeline_mode = #tpu.pipeline_mode<synchronous>, transform_indices = @transform_6, window_bounds = array<i64: 256, 32>}, {pipeline_mode = #tpu.pipeline_mode<synchronous>, transform_indices = @transform_7, window_bounds = array<i64: 256, 32>}, {transform_indices = @transform_8, window_bounds = array<i64: 1, 64, 128>}, {transform_indices = @transform_9, window_bounds = array<i64: 1, 64, 128>}, {transform_indices = @transform_10, window_bounds = array<i64: 1, 64, 128>}, {transform_indices = @transform_11, window_bounds = array<i64: 1, 64, 128>}, {transform_indices = @transform_12, window_bounds = array<i64: 1, 64, 128>}]} {
    %c0 = arith.constant 0 : index
    %c0_0 = arith.constant 0 : index
    %c0_1 = arith.constant 0 : index
    %c0_2 = arith.constant 0 : index
    %0 = vector.load %arg1[%c0, %c0_0, %c0_1, %c0_2] : memref<1x18x18x128xf32, #tpu.memory_space<vmem>>, vector<1x18x18x128xf32>
    %1 = vector.extract_strided_slice %0 {offsets = [0, 0, 0, 0], sizes = [1, 16, 16, 128], strides = [1, 1, 1, 1]} : vector<1x18x18x128xf32> to vector<1x16x16x128xf32>
    %2 = vector.shape_cast %1 : vector<1x16x16x128xf32> to vector<256x128xf32>
    %3 = arith.truncf %2 : vector<256x128xf32> to vector<256x128xbf16>
    %4 = vector.extract_strided_slice %0 {offsets = [0, 0, 1, 0], sizes = [1, 16, 16, 128], strides = [1, 1, 1, 1]} : vector<1x18x18x128xf32> to vector<1x16x16x128xf32>
    %5 = vector.shape_cast %4 : vector<1x16x16x128xf32> to vector<256x128xf32>
    %6 = arith.truncf %5 : vector<256x128xf32> to vector<256x128xbf16>
    %7 = vector.extract_strided_slice %0 {offsets = [0, 0, 2, 0], sizes = [1, 16, 16, 128], strides = [1, 1, 1, 1]} : vector<1x18x18x128xf32> to vector<1x16x16x128xf32>
    %8 = vector.shape_cast %7 : vector<1x16x16x128xf32> to vector<256x128xf32>
    %9 = arith.truncf %8 : vector<256x128xf32> to vector<256x128xbf16>
    %10 = vector.extract_strided_slice %0 {offsets = [0, 1, 0, 0], sizes = [1, 16, 16, 128], strides = [1, 1, 1, 1]} : vector<1x18x18x128xf32> to vector<1x16x16x128xf32>
    %11 = vector.shape_cast %10 : vector<1x16x16x128xf32> to vector<256x128xf32>
    %12 = arith.truncf %11 : vector<256x128xf32> to vector<256x128xbf16>
    %13 = vector.extract_strided_slice %0 {offsets = [0, 1, 1, 0], sizes = [1, 16, 16, 128], strides = [1, 1, 1, 1]} : vector<1x18x18x128xf32> to vector<1x16x16x128xf32>
    %14 = vector.shape_cast %13 : vector<1x16x16x128xf32> to vector<256x128xf32>
    %15 = arith.truncf %14 : vector<256x128xf32> to vector<256x128xbf16>
    %16 = vector.extract_strided_slice %0 {offsets = [0, 1, 2, 0], sizes = [1, 16, 16, 128], strides = [1, 1, 1, 1]} : vector<1x18x18x128xf32> to vector<1x16x16x128xf32>
    %17 = vector.shape_cast %16 : vector<1x16x16x128xf32> to vector<256x128xf32>
    %18 = arith.truncf %17 : vector<256x128xf32> to vector<256x128xbf16>
    %19 = vector.extract_strided_slice %0 {offsets = [0, 2, 0, 0], sizes = [1, 16, 16, 128], strides = [1, 1, 1, 1]} : vector<1x18x18x128xf32> to vector<1x16x16x128xf32>
    %20 = vector.shape_cast %19 : vector<1x16x16x128xf32> to vector<256x128xf32>
    %21 = arith.truncf %20 : vector<256x128xf32> to vector<256x128xbf16>
    %22 = vector.extract_strided_slice %0 {offsets = [0, 2, 1, 0], sizes = [1, 16, 16, 128], strides = [1, 1, 1, 1]} : vector<1x18x18x128xf32> to vector<1x16x16x128xf32>
    %23 = vector.shape_cast %22 : vector<1x16x16x128xf32> to vector<256x128xf32>
    %24 = arith.truncf %23 : vector<256x128xf32> to vector<256x128xbf16>
    %25 = vector.extract_strided_slice %0 {offsets = [0, 2, 2, 0], sizes = [1, 16, 16, 128], strides = [1, 1, 1, 1]} : vector<1x18x18x128xf32> to vector<1x16x16x128xf32>
    %26 = vector.shape_cast %25 : vector<1x16x16x128xf32> to vector<256x128xf32>
    %27 = arith.truncf %26 : vector<256x128xf32> to vector<256x128xbf16>
    %28 = tpu.concatenate %3, %6, %9, %12, %15, %18, %21, %24, %27 in 1 : vector<256x128xbf16>, vector<256x128xbf16>, vector<256x128xbf16>, vector<256x128xbf16>, vector<256x128xbf16>, vector<256x128xbf16>, vector<256x128xbf16>, vector<256x128xbf16>, vector<256x128xbf16> -> vector<256x1152xbf16>
    %c0_3 = arith.constant 0 : index
    %c0_4 = arith.constant 0 : index
    %29 = vector.load %arg3[%c0_3, %c0_4] : memref<1152x224xbf16, #tpu.memory_space<vmem>>, vector<1152x224xbf16>
    %cst = arith.constant dense<0.000000e+00> : vector<256x224xf32>
    %30 = tpu.matmul %28, %29, %cst {dimension_numbers = #tpu.dot_dimension_numbers<[1], [0], [0], [1], [0, 0, 1, 1], [], []>} : vector<256x1152xbf16>, vector<1152x224xbf16>, vector<256x224xf32> -> vector<256x224xf32>
    %c0_5 = arith.constant 0 : index
    %c0_6 = arith.constant 0 : index
    %31 = vector.load %arg4[%c0_5, %c0_6] : memref<1x224xf32, #tpu.memory_space<vmem>>, vector<1x224xf32>
    %32 = vector.broadcast %31 : vector<1x224xf32> to vector<256x224xf32>
    %33 = arith.addf %30, %32 : vector<256x224xf32>
    %34 = vector.extract_strided_slice %33 {offsets = [0, 0], sizes = [256, 32], strides = [1, 1]} : vector<256x224xf32> to vector<256x32xf32>
    %35 = arith.negf %34 : vector<256x32xf32>
    %36 = math.exp %35 : vector<256x32xf32>
    %cst_7 = arith.constant 1.000000e+00 : f32
    %37 = vector.broadcast %cst_7 : f32 to vector<256x32xf32>
    %38 = arith.addf %37, %36 : vector<256x32xf32>
    %39 = arith.divf %37, %38 : vector<256x32xf32>
    %40 = vector.extract_strided_slice %33 {offsets = [0, 32], sizes = [256, 32], strides = [1, 1]} : vector<256x224xf32> to vector<256x32xf32>
    %41 = arith.negf %40 : vector<256x32xf32>
    %42 = math.exp %41 : vector<256x32xf32>
    %cst_8 = arith.constant 1.000000e+00 : f32
    %43 = vector.broadcast %cst_8 : f32 to vector<256x32xf32>
    %44 = arith.addf %43, %42 : vector<256x32xf32>
    %45 = arith.divf %43, %44 : vector<256x32xf32>
    %46 = vector.extract_strided_slice %33 {offsets = [0, 64], sizes = [256, 32], strides = [1, 1]} : vector<256x224xf32> to vector<256x32xf32>
    %47 = math.tanh %46 : vector<256x32xf32>
    %48 = vector.extract_strided_slice %33 {offsets = [0, 96], sizes = [256, 32], strides = [1, 1]} : vector<256x224xf32> to vector<256x32xf32>
    %49 = vector.extract_strided_slice %33 {offsets = [0, 128], sizes = [256, 32], strides = [1, 1]} : vector<256x224xf32> to vector<256x32xf32>
    %50 = arith.negf %49 : vector<256x32xf32>
    %51 = math.exp %50 : vector<256x32xf32>
    %cst_9 = arith.constant 1.000000e+00 : f32
    %52 = vector.broadcast %cst_9 : f32 to vector<256x32xf32>
    %53 = arith.addf %52, %51 : vector<256x32xf32>
    %54 = arith.divf %52, %53 : vector<256x32xf32>
    %55 = vector.extract_strided_slice %33 {offsets = [0, 160], sizes = [256, 32], strides = [1, 1]} : vector<256x224xf32> to vector<256x32xf32>
    %56 = arith.negf %55 : vector<256x32xf32>
    %57 = math.exp %56 : vector<256x32xf32>
    %cst_10 = arith.constant 1.000000e+00 : f32
    %58 = vector.broadcast %cst_10 : f32 to vector<256x32xf32>
    %59 = arith.addf %58, %57 : vector<256x32xf32>
    %60 = arith.divf %58, %59 : vector<256x32xf32>
    %61 = vector.extract_strided_slice %33 {offsets = [0, 192], sizes = [256, 32], strides = [1, 1]} : vector<256x224xf32> to vector<256x32xf32>
    %62 = math.tanh %61 : vector<256x32xf32>
    %c0_11 = arith.constant 0 : index
    %c0_12 = arith.constant 0 : index
    %c0_13 = arith.constant 0 : index
    %c0_14 = arith.constant 0 : index
    %63 = vector.load %arg2[%c0_11, %c0_12, %c0_13, %c0_14] : memref<1x16x16x32xf32, #tpu.memory_space<vmem>>, vector<1x16x16x32xf32>
    %64 = vector.shape_cast %63 : vector<1x16x16x32xf32> to vector<256x32xf32>
    %65 = vector.extract_strided_slice %0 {offsets = [0, 1, 1, 0], sizes = [1, 16, 16, 32], strides = [1, 1, 1, 1]} : vector<1x18x18x128xf32> to vector<1x16x16x32xf32>
    %66 = vector.shape_cast %65 : vector<1x16x16x32xf32> to vector<256x32xf32>
    %67 = arith.mulf %39, %47 : vector<256x32xf32>
    %68 = arith.mulf %45, %64 : vector<256x32xf32>
    %69 = arith.addf %68, %67 : vector<256x32xf32>
    %70 = arith.mulf %54, %62 : vector<256x32xf32>
    %71 = arith.mulf %60, %66 : vector<256x32xf32>
    %72 = arith.addf %71, %70 : vector<256x32xf32>
    %73 = arith.truncf %69 : vector<256x32xf32> to vector<256x32xbf16>
    %c0_15 = arith.constant 0 : index
    %c0_16 = arith.constant 0 : index
    %74 = vector.load %arg5[%c0_15, %c0_16] : memref<64x32xbf16, #tpu.memory_space<vmem>>, vector<32x32xbf16>
    %cst_17 = arith.constant dense<0.000000e+00> : vector<256x32xf32>
    %75 = tpu.matmul %73, %74, %cst_17 {dimension_numbers = #tpu.dot_dimension_numbers<[1], [0], [0], [1], [0, 0, 1, 1], [], []>} : vector<256x32xbf16>, vector<32x32xbf16>, vector<256x32xf32> -> vector<256x32xf32>
    %76 = arith.truncf %72 : vector<256x32xf32> to vector<256x32xbf16>
    %c32 = arith.constant 32 : index
    %c0_18 = arith.constant 0 : index
    %77 = vector.load %arg5[%c32, %c0_18] : memref<64x32xbf16, #tpu.memory_space<vmem>>, vector<32x32xbf16>
    %cst_19 = arith.constant dense<0.000000e+00> : vector<256x32xf32>
    %78 = tpu.matmul %76, %77, %cst_19 {dimension_numbers = #tpu.dot_dimension_numbers<[1], [0], [0], [1], [0, 0, 1, 1], [], []>} : vector<256x32xbf16>, vector<32x32xbf16>, vector<256x32xf32> -> vector<256x32xf32>
    %79 = arith.addf %75, %78 : vector<256x32xf32>
    %c0_20 = arith.constant 0 : index
    %c0_21 = arith.constant 0 : index
    %80 = vector.load %arg6[%c0_20, %c0_21] : memref<1x32xf32, #tpu.memory_space<vmem>>, vector<1x32xf32>
    %81 = vector.broadcast %80 : vector<1x32xf32> to vector<256x32xf32>
    %82 = arith.addf %79, %81 : vector<256x32xf32>
    %83 = arith.addf %48, %82 : vector<256x32xf32>
    %84 = arith.negf %83 : vector<256x32xf32>
    %85 = math.exp %84 : vector<256x32xf32>
    %cst_22 = arith.constant 1.000000e+00 : f32
    %86 = vector.broadcast %cst_22 : f32 to vector<256x32xf32>
    %87 = arith.addf %86, %85 : vector<256x32xf32>
    %88 = arith.divf %86, %87 : vector<256x32xf32>
    %89 = arith.addf %69, %72 : vector<256x32xf32>
    %90 = vector.shape_cast %89 : vector<256x32xf32> to vector<1x256x32xf32>
    %cst_23 = arith.constant dense<0.000000e+00> : vector<1xf32>
    %91 = vector.multi_reduction <add>, %90, %cst_23 [1, 2] : vector<1x256x32xf32> to vector<1xf32>
    %92 = vector.shape_cast %91 : vector<1xf32> to vector<1x1x1xf32>
    %cst_24 = arith.constant 8.192000e+03 : f32
    %93 = vector.broadcast %cst_24 : f32 to vector<1x1x1xf32>
    %94 = arith.divf %92, %93 : vector<1x1x1xf32>
    %95 = vector.broadcast %94 : vector<1x1x1xf32> to vector<1x256x32xf32>
    %96 = arith.subf %90, %95 : vector<1x256x32xf32>
    %97 = arith.mulf %96, %96 : vector<1x256x32xf32>
    %cst_25 = arith.constant dense<0.000000e+00> : vector<1xf32>
    %98 = vector.multi_reduction <add>, %97, %cst_25 [1, 2] : vector<1x256x32xf32> to vector<1xf32>
    %99 = vector.shape_cast %98 : vector<1xf32> to vector<1x1x1xf32>
    %cst_26 = arith.constant 8.192000e+03 : f32
    %100 = vector.broadcast %cst_26 : f32 to vector<1x1x1xf32>
    %101 = arith.divf %99, %100 : vector<1x1x1xf32>
    %102 = vector.broadcast %94 : vector<1x1x1xf32> to vector<1x256x32xf32>
    %103 = arith.subf %90, %102 : vector<1x256x32xf32>
    %cst_27 = arith.constant 9.99999974E-6 : f32
    %104 = vector.broadcast %cst_27 : f32 to vector<1x1x1xf32>
    %105 = arith.addf %101, %104 : vector<1x1x1xf32>
    %106 = math.rsqrt %105 : vector<1x1x1xf32>
    %107 = vector.broadcast %106 : vector<1x1x1xf32> to vector<1x256x32xf32>
    %108 = arith.mulf %103, %107 : vector<1x256x32xf32>
    %c0_28 = arith.constant 0 : index
    %c0_29 = arith.constant 0 : index
    %109 = vector.load %arg7[%c0_28, %c0_29] : memref<256x32xf32, #tpu.memory_space<vmem>>, vector<256x32xf32>
    %110 = vector.shape_cast %109 : vector<256x32xf32> to vector<1x256x32xf32>
    %111 = arith.mulf %108, %110 : vector<1x256x32xf32>
    %c0_30 = arith.constant 0 : index
    %c0_31 = arith.constant 0 : index
    %112 = vector.load %arg8[%c0_30, %c0_31] : memref<256x32xf32, #tpu.memory_space<vmem>>, vector<256x32xf32>
    %113 = vector.shape_cast %112 : vector<256x32xf32> to vector<1x256x32xf32>
    %114 = arith.addf %111, %113 : vector<1x256x32xf32>
    %115 = vector.shape_cast %114 : vector<1x256x32xf32> to vector<256x32xf32>
    %116 = math.tanh %115 : vector<256x32xf32>
    %117 = arith.mulf %88, %116 : vector<256x32xf32>
    %118 = vector.extract_strided_slice %117 {offsets = [0, 0], sizes = [64, 32], strides = [1, 1]} : vector<256x32xf32> to vector<64x32xf32>
    %119 = vector.extract_strided_slice %117 {offsets = [64, 0], sizes = [64, 32], strides = [1, 1]} : vector<256x32xf32> to vector<64x32xf32>
    %120 = vector.extract_strided_slice %117 {offsets = [128, 0], sizes = [64, 32], strides = [1, 1]} : vector<256x32xf32> to vector<64x32xf32>
    %121 = vector.extract_strided_slice %117 {offsets = [192, 0], sizes = [64, 32], strides = [1, 1]} : vector<256x32xf32> to vector<64x32xf32>
    %122 = tpu.concatenate %118, %119, %120, %121 in 1 : vector<64x32xf32>, vector<64x32xf32>, vector<64x32xf32>, vector<64x32xf32> -> vector<64x128xf32>
    %123 = vector.shape_cast %122 : vector<64x128xf32> to vector<1x64x128xf32>
    %c0_32 = arith.constant 0 : index
    %c0_33 = arith.constant 0 : index
    %c0_34 = arith.constant 0 : index
    %124 = vector.load %arg9[%c0_32, %c0_33, %c0_34] : memref<1x64x128xf32, #tpu.memory_space<vmem>>, vector<1x64x128xf32>
    tpu.vector_store %arg9[%c0_32, %c0_33, %c0_34], %123 {strides = array<i32>} : memref<1x64x128xf32, #tpu.memory_space<vmem>>, vector<1x64x128xf32>,
    %125 = vector.extract_strided_slice %69 {offsets = [0, 0], sizes = [64, 32], strides = [1, 1]} : vector<256x32xf32> to vector<64x32xf32>
    %126 = vector.extract_strided_slice %69 {offsets = [64, 0], sizes = [64, 32], strides = [1, 1]} : vector<256x32xf32> to vector<64x32xf32>
    %127 = vector.extract_strided_slice %69 {offsets = [128, 0], sizes = [64, 32], strides = [1, 1]} : vector<256x32xf32> to vector<64x32xf32>
    %128 = vector.extract_strided_slice %69 {offsets = [192, 0], sizes = [64, 32], strides = [1, 1]} : vector<256x32xf32> to vector<64x32xf32>
    %129 = tpu.concatenate %125, %126, %127, %128 in 1 : vector<64x32xf32>, vector<64x32xf32>, vector<64x32xf32>, vector<64x32xf32> -> vector<64x128xf32>
    %130 = vector.shape_cast %129 : vector<64x128xf32> to vector<1x64x128xf32>
    %c0_35 = arith.constant 0 : index
    %c0_36 = arith.constant 0 : index
    %c0_37 = arith.constant 0 : index
    %131 = vector.load %arg10[%c0_35, %c0_36, %c0_37] : memref<1x64x128xf32, #tpu.memory_space<vmem>>, vector<1x64x128xf32>
    tpu.vector_store %arg10[%c0_35, %c0_36, %c0_37], %130 {strides = array<i32>} : memref<1x64x128xf32, #tpu.memory_space<vmem>>, vector<1x64x128xf32>,
    %132 = vector.extract_strided_slice %72 {offsets = [0, 0], sizes = [64, 32], strides = [1, 1]} : vector<256x32xf32> to vector<64x32xf32>
    %133 = vector.extract_strided_slice %72 {offsets = [64, 0], sizes = [64, 32], strides = [1, 1]} : vector<256x32xf32> to vector<64x32xf32>
    %134 = vector.extract_strided_slice %72 {offsets = [128, 0], sizes = [64, 32], strides = [1, 1]} : vector<256x32xf32> to vector<64x32xf32>
    %135 = vector.extract_strided_slice %72 {offsets = [192, 0], sizes = [64, 32], strides = [1, 1]} : vector<256x32xf32> to vector<64x32xf32>
    %136 = tpu.concatenate %132, %133, %134, %135 in 1 : vector<64x32xf32>, vector<64x32xf32>, vector<64x32xf32>, vector<64x32xf32> -> vector<64x128xf32>
    %137 = vector.shape_cast %136 : vector<64x128xf32> to vector<1x64x128xf32>
    %c0_38 = arith.constant 0 : index
    %c0_39 = arith.constant 0 : index
    %c0_40 = arith.constant 0 : index
    %138 = vector.load %arg11[%c0_38, %c0_39, %c0_40] : memref<1x64x128xf32, #tpu.memory_space<vmem>>, vector<1x64x128xf32>
    tpu.vector_store %arg11[%c0_38, %c0_39, %c0_40], %137 {strides = array<i32>} : memref<1x64x128xf32, #tpu.memory_space<vmem>>, vector<1x64x128xf32>,
    %139 = vector.extract_strided_slice %67 {offsets = [0, 0], sizes = [64, 32], strides = [1, 1]} : vector<256x32xf32> to vector<64x32xf32>
    %140 = vector.extract_strided_slice %67 {offsets = [64, 0], sizes = [64, 32], strides = [1, 1]} : vector<256x32xf32> to vector<64x32xf32>
    %141 = vector.extract_strided_slice %67 {offsets = [128, 0], sizes = [64, 32], strides = [1, 1]} : vector<256x32xf32> to vector<64x32xf32>
    %142 = vector.extract_strided_slice %67 {offsets = [192, 0], sizes = [64, 32], strides = [1, 1]} : vector<256x32xf32> to vector<64x32xf32>
    %143 = tpu.concatenate %139, %140, %141, %142 in 1 : vector<64x32xf32>, vector<64x32xf32>, vector<64x32xf32>, vector<64x32xf32> -> vector<64x128xf32>
    %144 = vector.shape_cast %143 : vector<64x128xf32> to vector<1x64x128xf32>
    %c0_41 = arith.constant 0 : index
    %c0_42 = arith.constant 0 : index
    %c0_43 = arith.constant 0 : index
    %145 = vector.load %arg12[%c0_41, %c0_42, %c0_43] : memref<1x64x128xf32, #tpu.memory_space<vmem>>, vector<1x64x128xf32>
    tpu.vector_store %arg12[%c0_41, %c0_42, %c0_43], %144 {strides = array<i32>} : memref<1x64x128xf32, #tpu.memory_space<vmem>>, vector<1x64x128xf32>,
    %146 = vector.extract_strided_slice %70 {offsets = [0, 0], sizes = [64, 32], strides = [1, 1]} : vector<256x32xf32> to vector<64x32xf32>
    %147 = vector.extract_strided_slice %70 {offsets = [64, 0], sizes = [64, 32], strides = [1, 1]} : vector<256x32xf32> to vector<64x32xf32>
    %148 = vector.extract_strided_slice %70 {offsets = [128, 0], sizes = [64, 32], strides = [1, 1]} : vector<256x32xf32> to vector<64x32xf32>
    %149 = vector.extract_strided_slice %70 {offsets = [192, 0], sizes = [64, 32], strides = [1, 1]} : vector<256x32xf32> to vector<64x32xf32>
    %150 = tpu.concatenate %146, %147, %148, %149 in 1 : vector<64x32xf32>, vector<64x32xf32>, vector<64x32xf32>, vector<64x32xf32> -> vector<64x128xf32>
    %151 = vector.shape_cast %150 : vector<64x128xf32> to vector<1x64x128xf32>
    %c0_44 = arith.constant 0 : index
    %c0_45 = arith.constant 0 : index
    %c0_46 = arith.constant 0 : index
    %152 = vector.load %arg13[%c0_44, %c0_45, %c0_46] : memref<1x64x128xf32, #tpu.memory_space<vmem>>, vector<1x64x128xf32>
    tpu.vector_store %arg13[%c0_44, %c0_45, %c0_46], %151 {strides = array<i32>} : memref<1x64x128xf32, #tpu.memory_space<vmem>>, vector<1x64x128xf32>,
    return
  }
  func.func @transform_0(%arg0: i32) -> (i32, i32, i32, i32) {
    %c0_i32 = arith.constant 0 : i32
    %c0_i32_0 = arith.constant 0 : i32
    %c0_i32_1 = arith.constant 0 : i32
    %c0_i32_2 = arith.constant 0 : i32
    return %arg0, %c0_i32, %c0_i32_0, %c0_i32_1 : i32, i32, i32, i32
  }
  func.func @transform_1(%arg0: i32) -> (i32, i32, i32, i32) {
    %c0_i32 = arith.constant 0 : i32
    %c0_i32_0 = arith.constant 0 : i32
    %c0_i32_1 = arith.constant 0 : i32
    %c0_i32_2 = arith.constant 0 : i32
    return %arg0, %c0_i32, %c0_i32_0, %c0_i32_1 : i32, i32, i32, i32
  }
  func.func @transform_2(%arg0: i32) -> (i32, i32) {
    %c0_i32 = arith.constant 0 : i32
    %c0_i32_0 = arith.constant 0 : i32
    %c0_i32_1 = arith.constant 0 : i32
    return %c0_i32, %c0_i32_0 : i32, i32
  }
  func.func @transform_3(%arg0: i32) -> (i32, i32) {
    %c0_i32 = arith.constant 0 : i32
    %c0_i32_0 = arith.constant 0 : i32
    %c0_i32_1 = arith.constant 0 : i32
    return %c0_i32, %c0_i32_0 : i32, i32
  }
  func.func @transform_4(%arg0: i32) -> (i32, i32) {
    %c0_i32 = arith.constant 0 : i32
    %c0_i32_0 = arith.constant 0 : i32
    %c0_i32_1 = arith.constant 0 : i32
    return %c0_i32, %c0_i32_0 : i32, i32
  }
  func.func @transform_5(%arg0: i32) -> (i32, i32) {
    %c0_i32 = arith.constant 0 : i32
    %c0_i32_0 = arith.constant 0 : i32
    %c0_i32_1 = arith.constant 0 : i32
    return %c0_i32, %c0_i32_0 : i32, i32
  }
  func.func @transform_6(%arg0: i32) -> (i32, i32) {
    %c0_i32 = arith.constant 0 : i32
    %c0_i32_0 = arith.constant 0 : i32
    %c0_i32_1 = arith.constant 0 : i32
    return %c0_i32, %c0_i32_0 : i32, i32
  }
  func.func @transform_7(%arg0: i32) -> (i32, i32) {
    %c0_i32 = arith.constant 0 : i32
    %c0_i32_0 = arith.constant 0 : i32
    %c0_i32_1 = arith.constant 0 : i32
    return %c0_i32, %c0_i32_0 : i32, i32
  }
  func.func @transform_8(%arg0: i32) -> (i32, i32, i32) {
    %c0_i32 = arith.constant 0 : i32
    %c0_i32_0 = arith.constant 0 : i32
    %c0_i32_1 = arith.constant 0 : i32
    return %arg0, %c0_i32, %c0_i32_0 : i32, i32, i32
  }
  func.func @transform_9(%arg0: i32) -> (i32, i32, i32) {
    %c0_i32 = arith.constant 0 : i32
    %c0_i32_0 = arith.constant 0 : i32
    %c0_i32_1 = arith.constant 0 : i32
    return %arg0, %c0_i32, %c0_i32_0 : i32, i32, i32
  }
  func.func @transform_10(%arg0: i32) -> (i32, i32, i32) {
    %c0_i32 = arith.constant 0 : i32
    %c0_i32_0 = arith.constant 0 : i32
    %c0_i32_1 = arith.constant 0 : i32
    return %arg0, %c0_i32, %c0_i32_0 : i32, i32, i32
  }
  func.func @transform_11(%arg0: i32) -> (i32, i32, i32) {
    %c0_i32 = arith.constant 0 : i32
    %c0_i32_0 = arith.constant 0 : i32
    %c0_i32_1 = arith.constant 0 : i32
    return %arg0, %c0_i32, %c0_i32_0 : i32, i32, i32
  }
  func.func @transform_12(%arg0: i32) -> (i32, i32, i32) {
    %c0_i32 = arith.constant 0 : i32
    %c0_i32_0 = arith.constant 0 : i32
    %c0_i32_1 = arith.constant 0 : i32
    return %arg0, %c0_i32, %c0_i32_0 : i32, i32, i32
  }
}

</mosaic_0001>

<llo_original>
// kernel: causal_lstm_cell.1
$region0: #{causal_lstm_cell.1}
  #allocation0 [shape = 'u32[]', space=smem, size = 0x4, offset = 0x4, fixed_abs, tag = 'smem constant byte address 0x4 - core index']
  #allocation1 [shape = 'u32[72,128]{1,0:T(1,128)}', space=vmem, size = 0x9000, scoped, tag = 'internal scratch']
  %s0 = inlined_call_operand.vmem [shape: f32[2,18,18,128], index: 0, kind: input, shape index: {}]
  %s1 = inlined_call_operand.vmem [shape: f32[2,16,16,32], index: 1, kind: input, shape index: {}]
  %s2 = inlined_call_operand.vmem [shape: bf16[1152,224], index: 2, kind: input, shape index: {}]
  %s3 = inlined_call_operand.vmem [shape: f32[1,224], index: 3, kind: input, shape index: {}]
  %s4 = inlined_call_operand.vmem [shape: bf16[64,32], index: 4, kind: input, shape index: {}]
  %s5 = inlined_call_operand.vmem [shape: f32[1,32], index: 5, kind: input, shape index: {}]
  %s6 = inlined_call_operand.vmem [shape: f32[256,32], index: 6, kind: input, shape index: {}]
  %s7 = inlined_call_operand.vmem [shape: f32[256,32], index: 7, kind: input, shape index: {}]
  %s8 = inlined_call_operand.vmem [shape: f32[2,64,128], index: 8, kind: output, shape index: {0}]
  %s9 = inlined_call_operand.vmem [shape: f32[2,64,128], index: 9, kind: output, shape index: {1}]
  %s10 = inlined_call_operand.vmem [shape: f32[2,64,128], index: 10, kind: output, shape index: {2}]
  %s11 = inlined_call_operand.vmem [shape: f32[2,64,128], index: 11, kind: output, shape index: {3}]
  %s12 = inlined_call_operand.vmem [shape: f32[2,64,128], index: 12, kind: output, shape index: {4}]
  %13 = xla_tuple %s8, %s9, %s10, %s11, %s12
  %s14 = sld [smem:[#allocation0]]
  $region97: #{causal_lstm_cell.1} parent=0
    _
  %s16 = ssub.s32 1, %s14
  %s17 = scalar_select 0, %s16, %s14
  loop: start=0, step=1, limit=4
  $region2: #{causal_lstm_cell.1} parent=0 // loop_pre_header
    _
  $region3: #{causal_lstm_cell.1} parent=0 // loop_header
    %s19 = sphi 0, %s23
    %p20 = scmp.ge.s32.totalorder %s19, 4
    %s29 = sphi 0, %s31
    %s32 = sphi 0, %s29
    %s33 = sphi 0, %s32
    %s49 = sphi 0, %s33
    %s55 = sphi 0, %s57
    %s58 = sphi 0, %s55
    %s59 = sphi 0, %s58
    %s75 = sphi 0, %s59
    %s79 = sphi 0, %s79
    %s81 = sphi 0, %s79
    %s82 = sphi 0, %s81
    %s96 = sphi 0, %s82
    %s100 = sphi 0, %s100
    %s102 = sphi 0, %s100
    %s103 = sphi 0, %s102
    %s117 = sphi 0, %s103
    %s121 = sphi 0, %s121
    %s123 = sphi 0, %s121
    %s124 = sphi 0, %s123
    %s138 = sphi 0, %s124
    %s142 = sphi 0, %s142
    %s144 = sphi 0, %s142
    %s145 = sphi 0, %s144
    %s159 = sphi 0, %s145
    %s163 = sphi 0, %s163
    %s165 = sphi 0, %s163
    %s166 = sphi 0, %s165
    %s180 = sphi 0, %s166
    %s184 = sphi 0, %s184
    %s186 = sphi 0, %s184
    %s187 = sphi 0, %s186
    %s201 = sphi 0, %s187
    %s207 = sphi 0, %s209
    %s210 = sphi 0, %s207
    %s211 = sphi 0, %s210
    %s227 = sphi 0, %s211
    %s233 = sphi 0, %s235
    %s236 = sphi 0, %s233
    %s237 = sphi 0, %s236
    %s253 = sphi 0, %s237
    %s259 = sphi 0, %s261
    %s262 = sphi 0, %s259
    %s263 = sphi 0, %s262
    %s279 = sphi 0, %s263
    %s285 = sphi 0, %s287
    %s288 = sphi 0, %s285
    %s289 = sphi 0, %s288
    %s305 = sphi 0, %s289
    %s311 = sphi 0, %s313
    %s314 = sphi 0, %s311
    %s315 = sphi 0, %s314
    %s331 = sphi 0, %s315
  $region4: #{causal_lstm_cell.1} parent=0 // loop_header_branch
    %22 = sbr.rel (%p20) target = $region8
  $region5: #{causal_lstm_cell.1} parent=0 // loop_body
    %s24 = ssub.s32 %s19, 1
    %s25 = ssub.s32 %s19, 2
    %s26 = sadd.s32 %s19, 1
    %s27 = ssub.s32 %s19, %s26
    %p28 = scmp.eq.s32.totalorder %s27, 0
    %s30 = sadd.s32 %s29, 1
    %s31 = scalar_select %p28, %s29, %s30
    %p34 = pneg %p28
    %p35 = scmp.eq.s32.totalorder %s19, 1
    %p36 = por %p34, %p35
    %p37 = scmp.ne.s32.totalorder %s29, %s32
    %p38 = scmp.eq.s32.totalorder %s19, 0
    %p39 = por %p37, %p38
    %p40 = scmp.ne.s32.totalorder %s29, %s32
    %p41 = scmp.eq.s32.totalorder %s24, 1
    %p42 = por %p40, %p41
    %p43 = scmp.ne.s32.totalorder %s32, %s33
    %p44 = scmp.eq.s32.totalorder %s24, 0
    %p45 = por %p43, %p44
    %p46 = scmp.ne.s32.totalorder %s32, %s33
    %p47 = scmp.eq.s32.totalorder %s25, 1
    %p48 = por %p46, %p47
    %p50 = scmp.ne.s32.totalorder %s33, %s49
    %p51 = scmp.eq.s32.totalorder %s25, 0
    %p52 = por %p50, %p51
    %s53 = ssub.s32 %s19, %s26
    %p54 = scmp.eq.s32.totalorder %s53, 0
    %s56 = sadd.s32 %s55, 1
    %s57 = scalar_select %p54, %s55, %s56
    %p60 = pneg %p54
    %p61 = scmp.eq.s32.totalorder %s19, 1
    %p62 = por %p60, %p61
    %p63 = scmp.ne.s32.totalorder %s55, %s58
    %p64 = scmp.eq.s32.totalorder %s19, 0
    %p65 = por %p63, %p64
    %p66 = scmp.ne.s32.totalorder %s55, %s58
    %p67 = scmp.eq.s32.totalorder %s24, 1
    %p68 = por %p66, %p67
    %p69 = scmp.ne.s32.totalorder %s58, %s59
    %p70 = scmp.eq.s32.totalorder %s24, 0
    %p71 = por %p69, %p70
    %p72 = scmp.ne.s32.totalorder %s58, %s59
    %p73 = scmp.eq.s32.totalorder %s25, 1
    %p74 = por %p72, %p73
    %p76 = scmp.ne.s32.totalorder %s59, %s75
    %p77 = scmp.eq.s32.totalorder %s25, 0
    %p78 = por %p76, %p77
    %s80 = sadd.s32 %s79, 1
    %p83 = scmp.eq.s32.totalorder %s19, 1
    %p84 = scmp.ne.s32.totalorder %s79, %s81
    %p85 = scmp.eq.s32.totalorder %s19, 0
    %p86 = por %p84, %p85
    %p87 = scmp.ne.s32.totalorder %s79, %s81
    %p88 = scmp.eq.s32.totalorder %s24, 1
    %p89 = por %p87, %p88
    %p90 = scmp.ne.s32.totalorder %s81, %s82
    %p91 = scmp.eq.s32.totalorder %s24, 0
    %p92 = por %p90, %p91
    %p93 = scmp.ne.s32.totalorder %s81, %s82
    %p94 = scmp.eq.s32.totalorder %s25, 1
    %p95 = por %p93, %p94
    %p97 = scmp.ne.s32.totalorder %s82, %s96
    %p98 = scmp.eq.s32.totalorder %s25, 0
    %p99 = por %p97, %p98
    %s101 = sadd.s32 %s100, 1
    %p104 = scmp.eq.s32.totalorder %s19, 1
    %p105 = scmp.ne.s32.totalorder %s100, %s102
    %p106 = scmp.eq.s32.totalorder %s19, 0
    %p107 = por %p105, %p106
    %p108 = scmp.ne.s32.totalorder %s100, %s102
    %p109 = scmp.eq.s32.totalorder %s24, 1
    %p110 = por %p108, %p109
    %p111 = scmp.ne.s32.totalorder %s102, %s103
    %p112 = scmp.eq.s32.totalorder %s24, 0
    %p113 = por %p111, %p112
    %p114 = scmp.ne.s32.totalorder %s102, %s103
    %p115 = scmp.eq.s32.totalorder %s25, 1
    %p116 = por %p114, %p115
    %p118 = scmp.ne.s32.totalorder %s103, %s117
    %p119 = scmp.eq.s32.totalorder %s25, 0
    %p120 = por %p118, %p119
    %s122 = sadd.s32 %s121, 1
    %p125 = scmp.eq.s32.totalorder %s19, 1
    %p126 = scmp.ne.s32.totalorder %s121, %s123
    %p127 = scmp.eq.s32.totalorder %s19, 0
    %p128 = por %p126, %p127
    %p129 = scmp.ne.s32.totalorder %s121, %s123
    %p130 = scmp.eq.s32.totalorder %s24, 1
    %p131 = por %p129, %p130
    %p132 = scmp.ne.s32.totalorder %s123, %s124
    %p133 = scmp.eq.s32.totalorder %s24, 0
    %p134 = por %p132, %p133
    %p135 = scmp.ne.s32.totalorder %s123, %s124
    %p136 = scmp.eq.s32.totalorder %s25, 1
    %p137 = por %p135, %p136
    %p139 = scmp.ne.s32.totalorder %s124, %s138
    %p140 = scmp.eq.s32.totalorder %s25, 0
    %p141 = por %p139, %p140
    %s143 = sadd.s32 %s142, 1
    %p146 = scmp.eq.s32.totalorder %s19, 1
    %p147 = scmp.ne.s32.totalorder %s142, %s144
    %p148 = scmp.eq.s32.totalorder %s19, 0
    %p149 = por %p147, %p148
    %p150 = scmp.ne.s32.totalorder %s142, %s144
    %p151 = scmp.eq.s32.totalorder %s24, 1
    %p152 = por %p150, %p151
    %p153 = scmp.ne.s32.totalorder %s144, %s145
    %p154 = scmp.eq.s32.totalorder %s24, 0
    %p155 = por %p153, %p154
    %p156 = scmp.ne.s32.totalorder %s144, %s145
    %p157 = scmp.eq.s32.totalorder %s25, 1
    %p158 = por %p156, %p157
    %p160 = scmp.ne.s32.totalorder %s145, %s159
    %p161 = scmp.eq.s32.totalorder %s25, 0
    %p162 = por %p160, %p161
    %s164 = sadd.s32 %s163, 1
    %p167 = scmp.eq.s32.totalorder %s19, 1
    %p168 = scmp.ne.s32.totalorder %s163, %s165
    %p169 = scmp.eq.s32.totalorder %s19, 0
    %p170 = por %p168, %p169
    %p171 = scmp.ne.s32.totalorder %s163, %s165
    %p172 = scmp.eq.s32.totalorder %s24, 1
    %p173 = por %p171, %p172
    %p174 = scmp.ne.s32.totalorder %s165, %s166
    %p175 = scmp.eq.s32.totalorder %s24, 0
    %p176 = por %p174, %p175
    %p177 = scmp.ne.s32.totalorder %s165, %s166
    %p178 = scmp.eq.s32.totalorder %s25, 1
    %p179 = por %p177, %p178
    %p181 = scmp.ne.s32.totalorder %s166, %s180
    %p182 = scmp.eq.s32.totalorder %s25, 0
    %p183 = por %p181, %p182
    %s185 = sadd.s32 %s184, 1
    %p188 = scmp.eq.s32.totalorder %s19, 1
    %p189 = scmp.ne.s32.totalorder %s184, %s186
    %p190 = scmp.eq.s32.totalorder %s19, 0
    %p191 = por %p189, %p190
    %p192 = scmp.ne.s32.totalorder %s184, %s186
    %p193 = scmp.eq.s32.totalorder %s24, 1
    %p194 = por %p192, %p193
    %p195 = scmp.ne.s32.totalorder %s186, %s187
    %p196 = scmp.eq.s32.totalorder %s24, 0
    %p197 = por %p195, %p196
    %p198 = scmp.ne.s32.totalorder %s186, %s187
    %p199 = scmp.eq.s32.totalorder %s25, 1
    %p200 = por %p198, %p199
    %p202 = scmp.ne.s32.totalorder %s187, %s201
    %p203 = scmp.eq.s32.totalorder %s25, 0
    %p204 = por %p202, %p203
    %s205 = ssub.s32 %s19, %s26
    %p206 = scmp.eq.s32.totalorder %s205, 0
    %s208 = sadd.s32 %s207, 1
    %s209 = scalar_select %p206, %s207, %s208
    %p212 = pneg %p206
    %p213 = scmp.eq.s32.totalorder %s19, 1
    %p214 = por %p212, %p213
    %p215 = scmp.ne.s32.totalorder %s207, %s210
    %p216 = scmp.eq.s32.totalorder %s19, 0
    %p217 = por %p215, %p216
    %p218 = scmp.ne.s32.totalorder %s207, %s210
    %p219 = scmp.eq.s32.totalorder %s24, 1
    %p220 = por %p218, %p219
    %p221 = scmp.ne.s32.totalorder %s210, %s211
    %p222 = scmp.eq.s32.totalorder %s24, 0
    %p223 = por %p221, %p222
    %p224 = scmp.ne.s32.totalorder %s210, %s211
    %p225 = scmp.eq.s32.totalorder %s25, 1
    %p226 = por %p224, %p225
    %p228 = scmp.ne.s32.totalorder %s211, %s227
    %p229 = scmp.eq.s32.totalorder %s25, 0
    %p230 = por %p228, %p229
    %s231 = ssub.s32 %s19, %s26
    %p232 = scmp.eq.s32.totalorder %s231, 0
    %s234 = sadd.s32 %s233, 1
    %s235 = scalar_select %p232, %s233, %s234
    %p238 = pneg %p232
    %p239 = scmp.eq.s32.totalorder %s19, 1
    %p240 = por %p238, %p239
    %p241 = scmp.ne.s32.totalorder %s233, %s236
    %p242 = scmp.eq.s32.totalorder %s19, 0
    %p243 = por %p241, %p242
    %p244 = scmp.ne.s32.totalorder %s233, %s236
    %p245 = scmp.eq.s32.totalorder %s24, 1
    %p246 = por %p244, %p245
    %p247 = scmp.ne.s32.totalorder %s236, %s237
    %p248 = scmp.eq.s32.totalorder %s24, 0
    %p249 = por %p247, %p248
    %p250 = scmp.ne.s32.totalorder %s236, %s237
    %p251 = scmp.eq.s32.totalorder %s25, 1
    %p252 = por %p250, %p251
    %p254 = scmp.ne.s32.totalorder %s237, %s253
    %p255 = scmp.eq.s32.totalorder %s25, 0
    %p256 = por %p254, %p255
    %s257 = ssub.s32 %s19, %s26
    %p258 = scmp.eq.s32.totalorder %s257, 0
    %s260 = sadd.s32 %s259, 1
    %s261 = scalar_select %p258, %s259, %s260
    %p264 = pneg %p258
    %p265 = scmp.eq.s32.totalorder %s19, 1
    %p266 = por %p264, %p265
    %p267 = scmp.ne.s32.totalorder %s259, %s262
    %p268 = scmp.eq.s32.totalorder %s19, 0
    %p269 = por %p267, %p268
    %p270 = scmp.ne.s32.totalorder %s259, %s262
    %p271 = scmp.eq.s32.totalorder %s24, 1
    %p272 = por %p270, %p271
    %p273 = scmp.ne.s32.totalorder %s262, %s263
    %p274 = scmp.eq.s32.totalorder %s24, 0
    %p275 = por %p273, %p274
    %p276 = scmp.ne.s32.totalorder %s262, %s263
    %p277 = scmp.eq.s32.totalorder %s25, 1
    %p278 = por %p276, %p277
    %p280 = scmp.ne.s32.totalorder %s263, %s279
    %p281 = scmp.eq.s32.totalorder %s25, 0
    %p282 = por %p280, %p281
    %s283 = ssub.s32 %s19, %s26
    %p284 = scmp.eq.s32.totalorder %s283, 0
    %s286 = sadd.s32 %s285, 1
    %s287 = scalar_select %p284, %s285, %s286
    %p290 = pneg %p284
    %p291 = scmp.eq.s32.totalorder %s19, 1
    %p292 = por %p290, %p291
    %p293 = scmp.ne.s32.totalorder %s285, %s288
    %p294 = scmp.eq.s32.totalorder %s19, 0
    %p295 = por %p293, %p294
    %p296 = scmp.ne.s32.totalorder %s285, %s288
    %p297 = scmp.eq.s32.totalorder %s24, 1
    %p298 = por %p296, %p297
    %p299 = scmp.ne.s32.totalorder %s288, %s289
    %p300 = scmp.eq.s32.totalorder %s24, 0
    %p301 = por %p299, %p300
    %p302 = scmp.ne.s32.totalorder %s288, %s289
    %p303 = scmp.eq.s32.totalorder %s25, 1
    %p304 = por %p302, %p303
    %p306 = scmp.ne.s32.totalorder %s289, %s305
    %p307 = scmp.eq.s32.totalorder %s25, 0
    %p308 = por %p306, %p307
    %s309 = ssub.s32 %s19, %s26
    %p310 = scmp.eq.s32.totalorder %s309, 0
    %s312 = sadd.s32 %s311, 1
    %s313 = scalar_select %p310, %s311, %s312
    %p316 = pneg %p310
    %p317 = scmp.eq.s32.totalorder %s19, 1
    %p318 = por %p316, %p317
    %p319 = scmp.ne.s32.totalorder %s311, %s314
    %p320 = scmp.eq.s32.totalorder %s19, 0
    %p321 = por %p319, %p320
    %p322 = scmp.ne.s32.totalorder %s311, %s314
    %p323 = scmp.eq.s32.totalorder %s24, 1
    %p324 = por %p322, %p323
    %p325 = scmp.ne.s32.totalorder %s314, %s315
    %p326 = scmp.eq.s32.totalorder %s24, 0
    %p327 = por %p325, %p326
    %p328 = scmp.ne.s32.totalorder %s314, %s315
    %p329 = scmp.eq.s32.totalorder %s25, 1
    %p330 = por %p328, %p329
    %p332 = scmp.ne.s32.totalorder %s315, %s331
    %p333 = scmp.eq.s32.totalorder %s25, 0
    %p334 = por %p332, %p333
    %p335 = scmp.le.s32.totalorder 1, %s19
    %p336 = scmp.lt.s32.totalorder %s19, 3
    %p337 = pnand %p335, %p336
    %p338 = pneg %p337
    // Predicated region
    $region9: #{causal_lstm_cell.1} parent=5 // pred_check
      _
    $region10: #{causal_lstm_cell.1} parent=5 // pred_check_branch
      %340 = sbr.rel (%p337) target = $region12
    $region11: #{causal_lstm_cell.1} parent=5 // pred_region
      %s341 = ssub.s32 %s19, 1
      // Predicated region
      $region13: #{causal_lstm_cell.1} parent=11 // pred_check
        %p342 = pneg %p92
      $region14: #{causal_lstm_cell.1} parent=11 // pred_check_branch
        %344 = sbr.rel (%p342) target = $region16
      $region15: #{causal_lstm_cell.1} parent=11 // pred_region
        _
      $region16: #{causal_lstm_cell.1} parent=11 // pred_fallthru
        _
      // Predicated region
      $region17: #{causal_lstm_cell.1} parent=11 // pred_check
        %p345 = pneg %p113
      $region18: #{causal_lstm_cell.1} parent=11 // pred_check_branch
        %347 = sbr.rel (%p345) target = $region20
      $region19: #{causal_lstm_cell.1} parent=11 // pred_region
        _
      $region20: #{causal_lstm_cell.1} parent=11 // pred_fallthru
        _
      // Predicated region
      $region21: #{causal_lstm_cell.1} parent=11 // pred_check
        %p348 = pneg %p134
      $region22: #{causal_lstm_cell.1} parent=11 // pred_check_branch
        %350 = sbr.rel (%p348) target = $region24
      $region23: #{causal_lstm_cell.1} parent=11 // pred_region
        _
      $region24: #{causal_lstm_cell.1} parent=11 // pred_fallthru
        _
      // Predicated region
      $region25: #{causal_lstm_cell.1} parent=11 // pred_check
        %p351 = pneg %p155
      $region26: #{causal_lstm_cell.1} parent=11 // pred_check_branch
        %353 = sbr.rel (%p351) target = $region28
      $region27: #{causal_lstm_cell.1} parent=11 // pred_region
        _
      $region28: #{causal_lstm_cell.1} parent=11 // pred_fallthru
        _
      // Predicated region
      $region29: #{causal_lstm_cell.1} parent=11 // pred_check
        %p354 = pneg %p176
      $region30: #{causal_lstm_cell.1} parent=11 // pred_check_branch
        %356 = sbr.rel (%p354) target = $region32
      $region31: #{causal_lstm_cell.1} parent=11 // pred_region
        _
      $region32: #{causal_lstm_cell.1} parent=11 // pred_fallthru
        _
      // Predicated region
      $region33: #{causal_lstm_cell.1} parent=11 // pred_check
        %p357 = pneg %p197
      $region34: #{causal_lstm_cell.1} parent=11 // pred_check_branch
        %359 = sbr.rel (%p357) target = $region36
      $region35: #{causal_lstm_cell.1} parent=11 // pred_region
        _
      $region36: #{causal_lstm_cell.1} parent=11 // pred_fallthru
        _
    $region12: #{causal_lstm_cell.1} parent=5 // pred_fallthru
      _
    %p360 = scmp.lt.s32.totalorder %s19, 2
    // Predicated region
    $region37: #{causal_lstm_cell.1} parent=5 // pred_check
      %p361 = pneg %p360
    $region38: #{causal_lstm_cell.1} parent=5 // pred_check_branch
      %363 = sbr.rel (%p361) target = $region40
    $region39: #{causal_lstm_cell.1} parent=5 // pred_region
      // Predicated region
      $region41: #{causal_lstm_cell.1} parent=39 // pred_check
        %p364 = pneg %p39
      $region42: #{causal_lstm_cell.1} parent=39 // pred_check_branch
        %366 = sbr.rel (%p364) target = $region44
      $region43: #{causal_lstm_cell.1} parent=39 // pred_region
        %p367 = scmp.lt.s32.totalorder %s19, 1
        %s368 = scalar_select %p367, %s19, 1
        %s369 = smul.addr %s368, 54
        %s370 = smul.addr %s369, 8
        %s371 = scalar_lea.vmem %s0, %s370
      $region44: #{causal_lstm_cell.1} parent=39 // pred_fallthru
        _
      // Predicated region
      $region45: #{causal_lstm_cell.1} parent=39 // pred_check
        %p372 = pneg %p65
      $region46: #{causal_lstm_cell.1} parent=39 // pred_check_branch
        %374 = sbr.rel (%p372) target = $region48
      $region47: #{causal_lstm_cell.1} parent=39 // pred_region
        %p375 = scmp.lt.s32.totalorder %s19, 1
        %s376 = scalar_select %p375, %s19, 1
        %s377 = smul.addr %s376, 32
        %s378 = smul.addr %s377, 8
        %s379 = scalar_lea.vmem %s1, %s378
      $region48: #{causal_lstm_cell.1} parent=39 // pred_fallthru
        _
    $region40: #{causal_lstm_cell.1} parent=5 // pred_fallthru
      _
    %p380 = scmp.le.s32.totalorder 1, %s19
    %p381 = scmp.lt.s32.totalorder %s19, 3
    %p382 = pnand %p380, %p381
    %p383 = pneg %p382
    // Predicated region
    $region49: #{causal_lstm_cell.1} parent=5 // pred_check
      _
    $region50: #{causal_lstm_cell.1} parent=5 // pred_check_branch
      %385 = sbr.rel (%p382) target = $region52
    $region51: #{causal_lstm_cell.1} parent=5 // pred_region
      %s386 = ssub.s32 %s19, 1
      %p387 = scmp.lt.s32.totalorder %s24, 1
      %s388 = scalar_select %p387, %s24, 1
      %s389 = smul.addr %s388, 54
      %s390 = smul.addr %s389, 8
      %s391 = scalar_lea.vmem %s0, %s390
      %p392 = pneg %p45
      %p393 = pneg %p42
      %p394 = scmp.lt.s32.totalorder %s24, 1
      %s395 = scalar_select %p394, %s24, 1
      %s396 = smul.addr %s395, 32
      %s397 = smul.addr %s396, 8
      %s398 = scalar_lea.vmem %s1, %s397
      %p399 = pneg %p71
      %p400 = pneg %p68
      %p401 = pneg %p92
      %p402 = pneg %p89
      %p403 = pneg %p113
      %p404 = pneg %p110
      %p405 = pneg %p134
      %p406 = pneg %p131
      %p407 = pneg %p155
      %p408 = pneg %p152
      %p409 = pneg %p176
      %p410 = pneg %p173
      %p411 = pneg %p197
      %p412 = pneg %p194
      %p413 = pneg %p223
      %p414 = pneg %p220
      %p415 = scmp.lt.s32.totalorder %s24, 1
      %s416 = scalar_select %p415, %s24, 1
      %s417 = smul.addr %s416, 8
      %s418 = smul.addr %s417, 8
      %s419 = scalar_lea.vmem %s8, %s418
      %p420 = pneg %p249
      %p421 = pneg %p246
      %p422 = scmp.lt.s32.totalorder %s24, 1
      %s423 = scalar_select %p422, %s24, 1
      %s424 = smul.addr %s423, 8
      %s425 = smul.addr %s424, 8
      %s426 = scalar_lea.vmem %s9, %s425
      %p427 = pneg %p275
      %p428 = pneg %p272
      %p429 = scmp.lt.s32.totalorder %s24, 1
      %s430 = scalar_select %p429, %s24, 1
      %s431 = smul.addr %s430, 8
      %s432 = smul.addr %s431, 8
      %s433 = scalar_lea.vmem %s10, %s432
      %p434 = pneg %p301
      %p435 = pneg %p298
      %p436 = scmp.lt.s32.totalorder %s24, 1
      %s437 = scalar_select %p436, %s24, 1
      %s438 = smul.addr %s437, 8
      %s439 = smul.addr %s438, 8
      %s440 = scalar_lea.vmem %s11, %s439
      %p441 = pneg %p327
      %p442 = pneg %p324
      %p443 = scmp.lt.s32.totalorder %s24, 1
      %s444 = scalar_select %p443, %s24, 1
      %s445 = smul.addr %s444, 8
      %s446 = smul.addr %s445, 8
      %s447 = scalar_lea.vmem %s12, %s446
      %p448 = scmp.lt.s32.totalorder %s24, 1
      %s449 = scalar_select %p448, %s24, 1
      %s450 = smul.addr %s449, 54
      %s451 = smul.addr %s450, 8
      %s452 = scalar_lea.vmem %s0, %s451
      %p453 = scmp.lt.s32.totalorder %s24, 1
      %s454 = scalar_select %p453, %s24, 1
      %s455 = smul.addr %s454, 32
      %s456 = smul.addr %s455, 8
      %s457 = scalar_lea.vmem %s1, %s456
      %p458 = scmp.lt.s32.totalorder %s24, 1
      %s459 = scalar_select %p458, %s24, 1
      %s460 = smul.addr %s459, 8
      %s461 = smul.addr %s460, 8
      %s462 = scalar_lea.vmem %s8, %s461
      %p463 = scmp.lt.s32.totalorder %s24, 1
      %s464 = scalar_select %p463, %s24, 1
      %s465 = smul.addr %s464, 8
      %s466 = smul.addr %s465, 8
      %s467 = scalar_lea.vmem %s9, %s466
      %p468 = scmp.lt.s32.totalorder %s24, 1
      %s469 = scalar_select %p468, %s24, 1
      %s470 = smul.addr %s469, 8
      %s471 = smul.addr %s470, 8
      %s472 = scalar_lea.vmem %s10, %s471
      %p473 = scmp.lt.s32.totalorder %s24, 1
      %s474 = scalar_select %p473, %s24, 1
      %s475 = smul.addr %s474, 8
      %s476 = smul.addr %s475, 8
      %s477 = scalar_lea.vmem %s11, %s476
      %p478 = scmp.lt.s32.totalorder %s24, 1
      %s479 = scalar_select %p478, %s24, 1
      %s480 = smul.addr %s479, 8
      %s481 = smul.addr %s480, 8
      %s482 = scalar_lea.vmem %s12, %s481
      %v484 = vld [vmem:[%s452] sm:$0xff]
      %v485 = vld [vmem:[%s452 + $0x8] sm:$0xff]
      %v486 = vld [vmem:[%s452 + $0x10] sm:$0x3]
      %v487 = vld [vmem:[%s452 + $0x18] sm:$0xff]
      %v488 = vld [vmem:[%s452 + $0x20] sm:$0xff]
      %v489 = vld [vmem:[%s452 + $0x28] sm:$0x3]
      %v490 = vld [vmem:[%s452 + $0x30] sm:$0xff]
      %v491 = vld [vmem:[%s452 + $0x38] sm:$0xff]
      %v492 = vld [vmem:[%s452 + $0x40] sm:$0x3]
      %v493 = vld [vmem:[%s452 + $0x48] sm:$0xff]
      %v494 = vld [vmem:[%s452 + $0x50] sm:$0xff]
      %v495 = vld [vmem:[%s452 + $0x58] sm:$0x3]
      %v496 = vld [vmem:[%s452 + $0x60] sm:$0xff]
      %v497 = vld [vmem:[%s452 + $0x68] sm:$0xff]
      %v498 = vld [vmem:[%s452 + $0x70] sm:$0x3]
      %v499 = vld [vmem:[%s452 + $0x78] sm:$0xff]
      %v500 = vld [vmem:[%s452 + $0x80] sm:$0xff]
      %v501 = vld [vmem:[%s452 + $0x88] sm:$0x3]
      %v502 = vld [vmem:[%s452 + $0x90] sm:$0xff]
      %v503 = vld [vmem:[%s452 + $0x98] sm:$0xff]
      %v504 = vld [vmem:[%s452 + $0xa0] sm:$0x3]
      %v505 = vld [vmem:[%s452 + $0xa8] sm:$0xff]
      %v506 = vld [vmem:[%s452 + $0xb0] sm:$0xff]
      %v507 = vld [vmem:[%s452 + $0xb8] sm:$0x3]
      %v508 = vld [vmem:[%s452 + $0xc0] sm:$0xff]
      %v509 = vld [vmem:[%s452 + $0xc8] sm:$0xff]
      %v510 = vld [vmem:[%s452 + $0xd0] sm:$0x3]
      %v511 = vld [vmem:[%s452 + $0xd8] sm:$0xff]
      %v512 = vld [vmem:[%s452 + $0xe0] sm:$0xff]
      %v513 = vld [vmem:[%s452 + $0xe8] sm:$0x3]
      %v514 = vld [vmem:[%s452 + $0xf0] sm:$0xff]
      %v515 = vld [vmem:[%s452 + $0xf8] sm:$0xff]
      %v516 = vld [vmem:[%s452 + $0x100] sm:$0x3]
      %v517 = vld [vmem:[%s452 + $0x108] sm:$0xff]
      %v518 = vld [vmem:[%s452 + $0x110] sm:$0xff]
      %v519 = vld [vmem:[%s452 + $0x118] sm:$0x3]
      %v520 = vld [vmem:[%s452 + $0x120] sm:$0xff]
      %v521 = vld [vmem:[%s452 + $0x128] sm:$0xff]
      %v522 = vld [vmem:[%s452 + $0x130] sm:$0x3]
      %v523 = vld [vmem:[%s452 + $0x138] sm:$0xff]
      %v524 = vld [vmem:[%s452 + $0x140] sm:$0xff]
      %v525 = vld [vmem:[%s452 + $0x148] sm:$0x3]
      %v526 = vld [vmem:[%s452 + $0x150] sm:$0xff]
      %v527 = vld [vmem:[%s452 + $0x158] sm:$0xff]
      %v528 = vld [vmem:[%s452 + $0x160] sm:$0x3]
      %v529 = vld [vmem:[%s452 + $0x168] sm:$0xff]
      %v530 = vld [vmem:[%s452 + $0x170] sm:$0xff]
      %v531 = vld [vmem:[%s452 + $0x178] sm:$0x3]
      %v532 = vld [vmem:[%s452 + $0x180] sm:$0xff]
      %v533 = vld [vmem:[%s452 + $0x188] sm:$0xff]
      %v534 = vld [vmem:[%s452 + $0x190] sm:$0x3]
      %v535 = vld [vmem:[%s452 + $0x198] sm:$0xff]
      %v536 = vld [vmem:[%s452 + $0x1a0] sm:$0xff]
      %v537 = vld [vmem:[%s452 + $0x1a8] sm:$0x3]
      %v538 = vpack.c.bf16 %v484, %v484
      %v539 = vpack.c.bf16 %v485, %v485
      %v540 = vpack.c.bf16 %v487, %v487
      %v541 = vpack.c.bf16 %v488, %v488
      %v542 = vpack.c.bf16 %v490, %v490
      %v543 = vpack.c.bf16 %v491, %v491
      %v544 = vpack.c.bf16 %v493, %v493
      %v545 = vpack.c.bf16 %v494, %v494
      %v546 = vpack.c.bf16 %v496, %v496
      %v547 = vpack.c.bf16 %v497, %v497
      %v548 = vpack.c.bf16 %v499, %v499
      %v549 = vpack.c.bf16 %v500, %v500
      %v550 = vpack.c.bf16 %v502, %v502
      %v551 = vpack.c.bf16 %v503, %v503
      %v552 = vpack.c.bf16 %v505, %v505
      %v553 = vpack.c.bf16 %v506, %v506
      %v554 = vpack.c.bf16 %v508, %v508
      %v555 = vpack.c.bf16 %v509, %v509
      %v556 = vpack.c.bf16 %v511, %v511
      %v557 = vpack.c.bf16 %v512, %v512
      %v558 = vpack.c.bf16 %v514, %v514
      %v559 = vpack.c.bf16 %v515, %v515
      %v560 = vpack.c.bf16 %v517, %v517
      %v561 = vpack.c.bf16 %v518, %v518
      %v562 = vpack.c.bf16 %v520, %v520
      %v563 = vpack.c.bf16 %v521, %v521
      %v564 = vpack.c.bf16 %v523, %v523
      %v565 = vpack.c.bf16 %v524, %v524
      %v566 = vpack.c.bf16 %v526, %v526
      %v567 = vpack.c.bf16 %v527, %v527
      %v568 = vpack.c.bf16 %v529, %v529
      %v569 = vpack.c.bf16 %v530, %v530
      %vm618 = vcmask 1046528
      %v619 = vrot.slane %v484, 1
      %v620 = vrot.slane %v485, 1
      %v621 = vsel %vm618, %v619, %v620
      %v622 = vrot.slane %v486, 1
      %v623 = vsel %vm618, %v620, %v622
      %v624 = vrot.slane %v487, 1
      %v625 = vrot.slane %v488, 1
      %v626 = vsel %vm618, %v624, %v625
      %v627 = vrot.slane %v489, 1
      %v628 = vsel %vm618, %v625, %v627
      %v629 = vrot.slane %v490, 1
      %v630 = vrot.slane %v491, 1
      %v631 = vsel %vm618, %v629, %v630
      %v632 = vrot.slane %v492, 1
      %v633 = vsel %vm618, %v630, %v632
      %v634 = vrot.slane %v493, 1
      %v635 = vrot.slane %v494, 1
      %v636 = vsel %vm618, %v634, %v635
      %v637 = vrot.slane %v495, 1
      %v638 = vsel %vm618, %v635, %v637
      %v639 = vrot.slane %v496, 1
      %v640 = vrot.slane %v497, 1
      %v641 = vsel %vm618, %v639, %v640
      %v642 = vrot.slane %v498, 1
      %v643 = vsel %vm618, %v640, %v642
      %v644 = vrot.slane %v499, 1
      %v645 = vrot.slane %v500, 1
      %v646 = vsel %vm618, %v644, %v645
      %v647 = vrot.slane %v501, 1
      %v648 = vsel %vm618, %v645, %v647
      %v649 = vrot.slane %v502, 1
      %v650 = vrot.slane %v503, 1
      %v651 = vsel %vm618, %v649, %v650
      %v652 = vrot.slane %v504, 1
      %v653 = vsel %vm618, %v650, %v652
      %v654 = vrot.slane %v505, 1
      %v655 = vrot.slane %v506, 1
      %v656 = vsel %vm618, %v654, %v655
      %v657 = vrot.slane %v507, 1
      %v658 = vsel %vm618, %v655, %v657
      %v659 = vrot.slane %v508, 1
      %v660 = vrot.slane %v509, 1
      %v661 = vsel %vm618, %v659, %v660
      %v662 = vrot.slane %v510, 1
      %v663 = vsel %vm618, %v660, %v662
      %v664 = vrot.slane %v511, 1
      %v665 = vrot.slane %v512, 1
      %v666 = vsel %vm618, %v664, %v665
      %v667 = vrot.slane %v513, 1
      %v668 = vsel %vm618, %v665, %v667
      %v669 = vrot.slane %v514, 1
      %v670 = vrot.slane %v515, 1
      %v671 = vsel %vm618, %v669, %v670
      %v672 = vrot.slane %v516, 1
      %v673 = vsel %vm618, %v670, %v672
      %v674 = vrot.slane %v517, 1
      %v675 = vrot.slane %v518, 1
      %v676 = vsel %vm618, %v674, %v675
      %v677 = vrot.slane %v519, 1
      %v678 = vsel %vm618, %v675, %v677
      %v679 = vrot.slane %v520, 1
      %v680 = vrot.slane %v521, 1
      %v681 = vsel %vm618, %v679, %v680
      %v682 = vrot.slane %v522, 1
      %v683 = vsel %vm618, %v680, %v682
      %v684 = vrot.slane %v523, 1
      %v685 = vrot.slane %v524, 1
      %v686 = vsel %vm618, %v684, %v685
      %v687 = vrot.slane %v525, 1
      %v688 = vsel %vm618, %v685, %v687
      %v689 = vrot.slane %v526, 1
      %v690 = vrot.slane %v527, 1
      %v691 = vsel %vm618, %v689, %v690
      %v692 = vrot.slane %v528, 1
      %v693 = vsel %vm618, %v690, %v692
      %v694 = vrot.slane %v529, 1
      %v695 = vrot.slane %v530, 1
      %v696 = vsel %vm618, %v694, %v695
      %v697 = vrot.slane %v531, 1
      %v698 = vsel %vm618, %v695, %v697
      %v731 = vpack.c.bf16 %v621, %v621
      %v732 = vpack.c.bf16 %v623, %v623
      %v733 = vpack.c.bf16 %v626, %v626
      %v734 = vpack.c.bf16 %v628, %v628
      %v735 = vpack.c.bf16 %v631, %v631
      %v736 = vpack.c.bf16 %v633, %v633
      %v737 = vpack.c.bf16 %v636, %v636
      %v738 = vpack.c.bf16 %v638, %v638
      %v739 = vpack.c.bf16 %v641, %v641
      %v740 = vpack.c.bf16 %v643, %v643
      %v741 = vpack.c.bf16 %v646, %v646
      %v742 = vpack.c.bf16 %v648, %v648
      %v743 = vpack.c.bf16 %v651, %v651
      %v744 = vpack.c.bf16 %v653, %v653
      %v745 = vpack.c.bf16 %v656, %v656
      %v746 = vpack.c.bf16 %v658, %v658
      %v747 = vpack.c.bf16 %v661, %v661
      %v748 = vpack.c.bf16 %v663, %v663
      %v749 = vpack.c.bf16 %v666, %v666
      %v750 = vpack.c.bf16 %v668, %v668
      %v751 = vpack.c.bf16 %v671, %v671
      %v752 = vpack.c.bf16 %v673, %v673
      %v753 = vpack.c.bf16 %v676, %v676
      %v754 = vpack.c.bf16 %v678, %v678
      %v755 = vpack.c.bf16 %v681, %v681
      %v756 = vpack.c.bf16 %v683, %v683
      %v757 = vpack.c.bf16 %v686, %v686
      %v758 = vpack.c.bf16 %v688, %v688
      %v759 = vpack.c.bf16 %v691, %v691
      %v760 = vpack.c.bf16 %v693, %v693
      %v761 = vpack.c.bf16 %v696, %v696
      %v762 = vpack.c.bf16 %v698, %v698
      %vm763 = vcmask 1045504
      %v764 = vrot.slane %v484, 2
      %v765 = vrot.slane %v485, 2
      %v766 = vsel %vm763, %v764, %v765
      %v767 = vrot.slane %v486, 2
      %v768 = vsel %vm763, %v765, %v767
      %v769 = vrot.slane %v487, 2
      %v770 = vrot.slane %v488, 2
      %v771 = vsel %vm763, %v769, %v770
      %v772 = vrot.slane %v489, 2
      %v773 = vsel %vm763, %v770, %v772
      %v774 = vrot.slane %v490, 2
      %v775 = vrot.slane %v491, 2
      %v776 = vsel %vm763, %v774, %v775
      %v777 = vrot.slane %v492, 2
      %v778 = vsel %vm763, %v775, %v777
      %v779 = vrot.slane %v493, 2
      %v780 = vrot.slane %v494, 2
      %v781 = vsel %vm763, %v779, %v780
      %v782 = vrot.slane %v495, 2
      %v783 = vsel %vm763, %v780, %v782
      %v784 = vrot.slane %v496, 2
      %v785 = vrot.slane %v497, 2
      %v786 = vsel %vm763, %v784, %v785
      %v787 = vrot.slane %v498, 2
      %v788 = vsel %vm763, %v785, %v787
      %v789 = vrot.slane %v499, 2
      %v790 = vrot.slane %v500, 2
      %v791 = vsel %vm763, %v789, %v790
      %v792 = vrot.slane %v501, 2
      %v793 = vsel %vm763, %v790, %v792
      %v794 = vrot.slane %v502, 2
      %v795 = vrot.slane %v503, 2
      %v796 = vsel %vm763, %v794, %v795
      %v797 = vrot.slane %v504, 2
      %v798 = vsel %vm763, %v795, %v797
      %v799 = vrot.slane %v505, 2
      %v800 = vrot.slane %v506, 2
      %v801 = vsel %vm763, %v799, %v800
      %v802 = vrot.slane %v507, 2
      %v803 = vsel %vm763, %v800, %v802
      %v804 = vrot.slane %v508, 2
      %v805 = vrot.slane %v509, 2
      %v806 = vsel %vm763, %v804, %v805
      %v807 = vrot.slane %v510, 2
      %v808 = vsel %vm763, %v805, %v807
      %v809 = vrot.slane %v511, 2
      %v810 = vrot.slane %v512, 2
      %v811 = vsel %vm763, %v809, %v810
      %v812 = vrot.slane %v513, 2
      %v813 = vsel %vm763, %v810, %v812
      %v814 = vrot.slane %v514, 2
      %v815 = vrot.slane %v515, 2
      %v816 = vsel %vm763, %v814, %v815
      %v817 = vrot.slane %v516, 2
      %v818 = vsel %vm763, %v815, %v817
      %v819 = vrot.slane %v517, 2
      %v820 = vrot.slane %v518, 2
      %v821 = vsel %vm763, %v819, %v820
      %v822 = vrot.slane %v519, 2
      %v823 = vsel %vm763, %v820, %v822
      %v824 = vrot.slane %v520, 2
      %v825 = vrot.slane %v521, 2
      %v826 = vsel %vm763, %v824, %v825
      %v827 = vrot.slane %v522, 2
      %v828 = vsel %vm763, %v825, %v827
      %v829 = vrot.slane %v523, 2
      %v830 = vrot.slane %v524, 2
      %v831 = vsel %vm763, %v829, %v830
      %v832 = vrot.slane %v525, 2
      %v833 = vsel %vm763, %v830, %v832
      %v834 = vrot.slane %v526, 2
      %v835 = vrot.slane %v527, 2
      %v836 = vsel %vm763, %v834, %v835
      %v837 = vrot.slane %v528, 2
      %v838 = vsel %vm763, %v835, %v837
      %v839 = vrot.slane %v529, 2
      %v840 = vrot.slane %v530, 2
      %v841 = vsel %vm763, %v839, %v840
      %v842 = vrot.slane %v531, 2
      %v843 = vsel %vm763, %v840, %v842
      %v876 = vpack.c.bf16 %v766, %v766
      %v877 = vpack.c.bf16 %v768, %v768
      %v878 = vpack.c.bf16 %v771, %v771
      %v879 = vpack.c.bf16 %v773, %v773
      %v880 = vpack.c.bf16 %v776, %v776
      %v881 = vpack.c.bf16 %v778, %v778
      %v882 = vpack.c.bf16 %v781, %v781
      %v883 = vpack.c.bf16 %v783, %v783
      %v884 = vpack.c.bf16 %v786, %v786
      %v885 = vpack.c.bf16 %v788, %v788
      %v886 = vpack.c.bf16 %v791, %v791
      %v887 = vpack.c.bf16 %v793, %v793
      %v888 = vpack.c.bf16 %v796, %v796
      %v889 = vpack.c.bf16 %v798, %v798
      %v890 = vpack.c.bf16 %v801, %v801
      %v891 = vpack.c.bf16 %v803, %v803
      %v892 = vpack.c.bf16 %v806, %v806
      %v893 = vpack.c.bf16 %v808, %v808
      %v894 = vpack.c.bf16 %v811, %v811
      %v895 = vpack.c.bf16 %v813, %v813
      %v896 = vpack.c.bf16 %v816, %v816
      %v897 = vpack.c.bf16 %v818, %v818
      %v898 = vpack.c.bf16 %v821, %v821
      %v899 = vpack.c.bf16 %v823, %v823
      %v900 = vpack.c.bf16 %v826, %v826
      %v901 = vpack.c.bf16 %v828, %v828
      %v902 = vpack.c.bf16 %v831, %v831
      %v903 = vpack.c.bf16 %v833, %v833
      %v904 = vpack.c.bf16 %v836, %v836
      %v905 = vpack.c.bf16 %v838, %v838
      %v906 = vpack.c.bf16 %v841, %v841
      %v907 = vpack.c.bf16 %v843, %v843
      %v908 = vpack.c.bf16 %v532, %v532
      %v909 = vpack.c.bf16 %v533, %v533
      %v913 = vrot.slane %v532, 1
      %v914 = vrot.slane %v533, 1
      %v915 = vsel %vm618, %v913, %v914
      %v916 = vrot.slane %v534, 1
      %v917 = vsel %vm618, %v914, %v916
      %v920 = vpack.c.bf16 %v915, %v915
      %v921 = vpack.c.bf16 %v917, %v917
      %v922 = vrot.slane %v532, 2
      %v923 = vrot.slane %v533, 2
      %v924 = vsel %vm763, %v922, %v923
      %v925 = vrot.slane %v534, 2
      %v926 = vsel %vm763, %v923, %v925
      %v929 = vpack.c.bf16 %v924, %v924
      %v930 = vpack.c.bf16 %v926, %v926
      %v931 = vpack.c.bf16 %v535, %v535
      %v932 = vpack.c.bf16 %v536, %v536
      %v936 = vrot.slane %v535, 1
      %v937 = vrot.slane %v536, 1
      %v938 = vsel %vm618, %v936, %v937
      %v939 = vrot.slane %v537, 1
      %v940 = vsel %vm618, %v937, %v939
      %v943 = vpack.c.bf16 %v938, %v938
      %v944 = vpack.c.bf16 %v940, %v940
      %v945 = vrot.slane %v535, 2
      %v946 = vrot.slane %v536, 2
      %v947 = vsel %vm763, %v945, %v946
      %v948 = vrot.slane %v537, 2
      %v949 = vsel %vm763, %v946, %v948
      %v952 = vpack.c.bf16 %v947, %v947
      %v953 = vpack.c.bf16 %v949, %v949
      %v986 = vunpack.c.l.b16 %v538
      %v987 = vunpack.c.l.b16 %v539
      %v988 = vunpack.c.l.b16 %v540
      %v989 = vunpack.c.l.b16 %v541
      %v990 = vunpack.c.l.b16 %v542
      %v991 = vunpack.c.l.b16 %v543
      %v992 = vunpack.c.l.b16 %v544
      %v993 = vunpack.c.l.b16 %v545
      %v994 = vunpack.c.l.b16 %v546
      %v995 = vunpack.c.l.b16 %v547
      %v996 = vunpack.c.l.b16 %v548
      %v997 = vunpack.c.l.b16 %v549
      %v998 = vunpack.c.l.b16 %v550
      %v999 = vunpack.c.l.b16 %v551
      %v1000 = vunpack.c.l.b16 %v552
      %v1001 = vunpack.c.l.b16 %v553
      %v1002 = vunpack.c.l.b16 %v554
      %v1003 = vunpack.c.l.b16 %v555
      %v1004 = vunpack.c.l.b16 %v556
      %v1005 = vunpack.c.l.b16 %v557
      %v1006 = vunpack.c.l.b16 %v558
      %v1007 = vunpack.c.l.b16 %v559
      %v1008 = vunpack.c.l.b16 %v560
      %v1009 = vunpack.c.l.b16 %v561
      %v1010 = vunpack.c.l.b16 %v562
      %v1011 = vunpack.c.l.b16 %v563
      %v1012 = vunpack.c.l.b16 %v564
      %v1013 = vunpack.c.l.b16 %v565
      %v1014 = vunpack.c.l.b16 %v566
      %v1015 = vunpack.c.l.b16 %v567
      %v1016 = vunpack.c.l.b16 %v568
      %v1017 = vunpack.c.l.b16 %v569
      %v1018 = vpack.c.b16 %v987, %v986
      %v1019 = vpack.c.b16 %v989, %v988
      %v1020 = vpack.c.b16 %v991, %v990
      %v1021 = vpack.c.b16 %v993, %v992
      %v1022 = vpack.c.b16 %v995, %v994
      %v1023 = vpack.c.b16 %v997, %v996
      %v1024 = vpack.c.b16 %v999, %v998
      %v1025 = vpack.c.b16 %v1001, %v1000
      %v1026 = vpack.c.b16 %v1003, %v1002
      %v1027 = vpack.c.b16 %v1005, %v1004
      %v1028 = vpack.c.b16 %v1007, %v1006
      %v1029 = vpack.c.b16 %v1009, %v1008
      %v1030 = vpack.c.b16 %v1011, %v1010
      %v1031 = vpack.c.b16 %v1013, %v1012
      %v1032 = vpack.c.b16 %v1015, %v1014
      %v1033 = vpack.c.b16 %v1017, %v1016
      %v1082 = vunpack.c.l.b16 %v731
      %v1083 = vunpack.c.l.b16 %v732
      %v1084 = vunpack.c.l.b16 %v733
      %v1085 = vunpack.c.l.b16 %v734
      %v1086 = vunpack.c.l.b16 %v735
      %v1087 = vunpack.c.l.b16 %v736
      %v1088 = vunpack.c.l.b16 %v737
      %v1089 = vunpack.c.l.b16 %v738
      %v1090 = vunpack.c.l.b16 %v739
      %v1091 = vunpack.c.l.b16 %v740
      %v1092 = vunpack.c.l.b16 %v741
      %v1093 = vunpack.c.l.b16 %v742
      %v1094 = vunpack.c.l.b16 %v743
      %v1095 = vunpack.c.l.b16 %v744
      %v1096 = vunpack.c.l.b16 %v745
      %v1097 = vunpack.c.l.b16 %v746
      %v1098 = vunpack.c.l.b16 %v747
      %v1099 = vunpack.c.l.b16 %v748
      %v1100 = vunpack.c.l.b16 %v749
      %v1101 = vunpack.c.l.b16 %v750
      %v1102 = vunpack.c.l.b16 %v751
      %v1103 = vunpack.c.l.b16 %v752
      %v1104 = vunpack.c.l.b16 %v753
      %v1105 = vunpack.c.l.b16 %v754
      %v1106 = vunpack.c.l.b16 %v755
      %v1107 = vunpack.c.l.b16 %v756
      %v1108 = vunpack.c.l.b16 %v757
      %v1109 = vunpack.c.l.b16 %v758
      %v1110 = vunpack.c.l.b16 %v759
      %v1111 = vunpack.c.l.b16 %v760
      %v1112 = vunpack.c.l.b16 %v761
      %v1113 = vunpack.c.l.b16 %v762
      %v1114 = vpack.c.b16 %v1083, %v1082
      %v1115 = vpack.c.b16 %v1085, %v1084
      %v1116 = vpack.c.b16 %v1087, %v1086
      %v1117 = vpack.c.b16 %v1089, %v1088
      %v1118 = vpack.c.b16 %v1091, %v1090
      %v1119 = vpack.c.b16 %v1093, %v1092
      %v1120 = vpack.c.b16 %v1095, %v1094
      %v1121 = vpack.c.b16 %v1097, %v1096
      %v1122 = vpack.c.b16 %v1099, %v1098
      %v1123 = vpack.c.b16 %v1101, %v1100
      %v1124 = vpack.c.b16 %v1103, %v1102
      %v1125 = vpack.c.b16 %v1105, %v1104
      %v1126 = vpack.c.b16 %v1107, %v1106
      %v1127 = vpack.c.b16 %v1109, %v1108
      %v1128 = vpack.c.b16 %v1111, %v1110
      %v1129 = vpack.c.b16 %v1113, %v1112
      %v1178 = vunpack.c.l.b16 %v876
      %v1179 = vunpack.c.l.b16 %v877
      %v1180 = vunpack.c.l.b16 %v878
      %v1181 = vunpack.c.l.b16 %v879
      %v1182 = vunpack.c.l.b16 %v880
      %v1183 = vunpack.c.l.b16 %v881
      %v1184 = vunpack.c.l.b16 %v882
      %v1185 = vunpack.c.l.b16 %v883
      %v1186 = vunpack.c.l.b16 %v884
      %v1187 = vunpack.c.l.b16 %v885
      %v1188 = vunpack.c.l.b16 %v886
      %v1189 = vunpack.c.l.b16 %v887
      %v1190 = vunpack.c.l.b16 %v888
      %v1191 = vunpack.c.l.b16 %v889
      %v1192 = vunpack.c.l.b16 %v890
      %v1193 = vunpack.c.l.b16 %v891
      %v1194 = vunpack.c.l.b16 %v892
      %v1195 = vunpack.c.l.b16 %v893
      %v1196 = vunpack.c.l.b16 %v894
      %v1197 = vunpack.c.l.b16 %v895
      %v1198 = vunpack.c.l.b16 %v896
      %v1199 = vunpack.c.l.b16 %v897
      %v1200 = vunpack.c.l.b16 %v898
      %v1201 = vunpack.c.l.b16 %v899
      %v1202 = vunpack.c.l.b16 %v900
      %v1203 = vunpack.c.l.b16 %v901
      %v1204 = vunpack.c.l.b16 %v902
      %v1205 = vunpack.c.l.b16 %v903
      %v1206 = vunpack.c.l.b16 %v904
      %v1207 = vunpack.c.l.b16 %v905
      %v1208 = vunpack.c.l.b16 %v906
      %v1209 = vunpack.c.l.b16 %v907
      %v1210 = vpack.c.b16 %v1179, %v1178
      %v1211 = vpack.c.b16 %v1181, %v1180
      %v1212 = vpack.c.b16 %v1183, %v1182
      %v1213 = vpack.c.b16 %v1185, %v1184
      %v1214 = vpack.c.b16 %v1187, %v1186
      %v1215 = vpack.c.b16 %v1189, %v1188
      %v1216 = vpack.c.b16 %v1191, %v1190
      %v1217 = vpack.c.b16 %v1193, %v1192
      %v1218 = vpack.c.b16 %v1195, %v1194
      %v1219 = vpack.c.b16 %v1197, %v1196
      %v1220 = vpack.c.b16 %v1199, %v1198
      %v1221 = vpack.c.b16 %v1201, %v1200
      %v1222 = vpack.c.b16 %v1203, %v1202
      %v1223 = vpack.c.b16 %v1205, %v1204
      %v1224 = vpack.c.b16 %v1207, %v1206
      %v1225 = vpack.c.b16 %v1209, %v1208
      %v1244 = vunpack.c.l.b16 %v908
      %v1245 = vunpack.c.l.b16 %v909
      %v1246 = vpack.c.b16 %v1245, %v1244
      %v1250 = vunpack.c.l.b16 %v920
      %v1251 = vunpack.c.l.b16 %v921
      %v1252 = vpack.c.b16 %v1251, %v1250
      %v1256 = vunpack.c.l.b16 %v929
      %v1257 = vunpack.c.l.b16 %v930
      %v1258 = vpack.c.b16 %v1257, %v1256
      %v1262 = vunpack.c.l.b16 %v931
      %v1263 = vunpack.c.l.b16 %v932
      %v1264 = vpack.c.b16 %v1263, %v1262
      %v1268 = vunpack.c.l.b16 %v943
      %v1269 = vunpack.c.l.b16 %v944
      %v1270 = vpack.c.b16 %v1269, %v1268
      %v1274 = vunpack.c.l.b16 %v952
      %v1275 = vunpack.c.l.b16 %v953
      %v1276 = vpack.c.b16 %v1275, %v1274
      %v1278 = vld [vmem:[%s2] sm:$0xff]
      %v1279 = vld [vmem:[%s2 + $0x8] sm:$0xff]
      %v1280 = vld [vmem:[%s2 + $0x10] sm:$0xff]
      %v1281 = vld [vmem:[%s2 + $0x18] sm:$0xff]
      %v1282 = vld [vmem:[%s2 + $0x20] sm:$0xff]
      %v1283 = vld [vmem:[%s2 + $0x28] sm:$0xff]
      %v1284 = vld [vmem:[%s2 + $0x30] sm:$0xff]
      %v1285 = vld [vmem:[%s2 + $0x38] sm:$0xff]
      %v1286 = vld [vmem:[%s2 + $0x40] sm:$0xff]
      %v1287 = vld [vmem:[%s2 + $0x48] sm:$0xff]
      %v1288 = vld [vmem:[%s2 + $0x50] sm:$0xff]
      %v1289 = vld [vmem:[%s2 + $0x58] sm:$0xff]
      %v1290 = vld [vmem:[%s2 + $0x60] sm:$0xff]
      %v1291 = vld [vmem:[%s2 + $0x68] sm:$0xff]
      %v1292 = vld [vmem:[%s2 + $0x70] sm:$0xff]
      %v1293 = vld [vmem:[%s2 + $0x78] sm:$0xff]
      %v1294 = vld [vmem:[%s2 + $0x80] sm:$0xff]
      %v1295 = vld [vmem:[%s2 + $0x88] sm:$0xff]
      %v1296 = vld [vmem:[%s2 + $0x90] sm:$0xff]
      %v1297 = vld [vmem:[%s2 + $0x98] sm:$0xff]
      %v1298 = vld [vmem:[%s2 + $0xa0] sm:$0xff]
      %v1299 = vld [vmem:[%s2 + $0xa8] sm:$0xff]
      %v1300 = vld [vmem:[%s2 + $0xb0] sm:$0xff]
      %v1301 = vld [vmem:[%s2 + $0xb8] sm:$0xff]
      %v1302 = vld [vmem:[%s2 + $0xc0] sm:$0xff]
      %v1303 = vld [vmem:[%s2 + $0xc8] sm:$0xff]
      %v1304 = vld [vmem:[%s2 + $0xd0] sm:$0xff]
      %v1305 = vld [vmem:[%s2 + $0xd8] sm:$0xff]
      %v1306 = vld [vmem:[%s2 + $0xe0] sm:$0xff]
      %v1307 = vld [vmem:[%s2 + $0xe8] sm:$0xff]
      %v1308 = vld [vmem:[%s2 + $0xf0] sm:$0xff]
      %v1309 = vld [vmem:[%s2 + $0xf8] sm:$0xff]
      %v1310 = vld [vmem:[%s2 + $0x100] sm:$0xff]
      %v1311 = vld [vmem:[%s2 + $0x108] sm:$0xff]
      %v1312 = vld [vmem:[%s2 + $0x110] sm:$0xff]
      %v1313 = vld [vmem:[%s2 + $0x118] sm:$0xff]
      %v1314 = vld [vmem:[%s2 + $0x120] sm:$0xff]
      %v1315 = vld [vmem:[%s2 + $0x128] sm:$0xff]
      %v1316 = vld [vmem:[%s2 + $0x130] sm:$0xff]
      %v1317 = vld [vmem:[%s2 + $0x138] sm:$0xff]
      %v1318 = vld [vmem:[%s2 + $0x140] sm:$0xff]
      %v1319 = vld [vmem:[%s2 + $0x148] sm:$0xff]
      %v1320 = vld [vmem:[%s2 + $0x150] sm:$0xff]
      %v1321 = vld [vmem:[%s2 + $0x158] sm:$0xff]
      %v1322 = vld [vmem:[%s2 + $0x160] sm:$0xff]
      %v1323 = vld [vmem:[%s2 + $0x168] sm:$0xff]
      %v1324 = vld [vmem:[%s2 + $0x170] sm:$0xff]
      %v1325 = vld [vmem:[%s2 + $0x178] sm:$0xff]
      %v1326 = vld [vmem:[%s2 + $0x180] sm:$0xff]
      %v1327 = vld [vmem:[%s2 + $0x188] sm:$0xff]
      %v1328 = vld [vmem:[%s2 + $0x190] sm:$0xff]
      %v1329 = vld [vmem:[%s2 + $0x198] sm:$0xff]
      %v1330 = vld [vmem:[%s2 + $0x1a0] sm:$0xff]
      %v1331 = vld [vmem:[%s2 + $0x1a8] sm:$0xff]
      %v1332 = vld [vmem:[%s2 + $0x1b0] sm:$0xff]
      %v1333 = vld [vmem:[%s2 + $0x1b8] sm:$0xff]
      %v1334 = vld [vmem:[%s2 + $0x1c0] sm:$0xff]
      %v1335 = vld [vmem:[%s2 + $0x1c8] sm:$0xff]
      %v1336 = vld [vmem:[%s2 + $0x1d0] sm:$0xff]
      %v1337 = vld [vmem:[%s2 + $0x1d8] sm:$0xff]
      %v1338 = vld [vmem:[%s2 + $0x1e0] sm:$0xff]
      %v1339 = vld [vmem:[%s2 + $0x1e8] sm:$0xff]
      %v1340 = vld [vmem:[%s2 + $0x1f0] sm:$0xff]
      %v1341 = vld [vmem:[%s2 + $0x1f8] sm:$0xff]
      %v1342 = vld [vmem:[%s2 + $0x200] sm:$0xff]
      %v1343 = vld [vmem:[%s2 + $0x208] sm:$0xff]
      %v1344 = vld [vmem:[%s2 + $0x210] sm:$0xff]
      %v1345 = vld [vmem:[%s2 + $0x218] sm:$0xff]
      %v1346 = vld [vmem:[%s2 + $0x220] sm:$0xff]
      %v1347 = vld [vmem:[%s2 + $0x228] sm:$0xff]
      %v1348 = vld [vmem:[%s2 + $0x230] sm:$0xff]
      %v1349 = vld [vmem:[%s2 + $0x238] sm:$0xff]
      %v1350 = vld [vmem:[%s2 + $0x240] sm:$0xff]
      %v1351 = vld [vmem:[%s2 + $0x248] sm:$0xff]
      %v1352 = vld [vmem:[%s2 + $0x250] sm:$0xff]
      %v1353 = vld [vmem:[%s2 + $0x258] sm:$0xff]
      %v1354 = vld [vmem:[%s2 + $0x260] sm:$0xff]
      %v1355 = vld [vmem:[%s2 + $0x268] sm:$0xff]
      %v1356 = vld [vmem:[%s2 + $0x270] sm:$0xff]
      %v1357 = vld [vmem:[%s2 + $0x278] sm:$0xff]
      %v1358 = vld [vmem:[%s2 + $0x280] sm:$0xff]
      %v1359 = vld [vmem:[%s2 + $0x288] sm:$0xff]
      %v1360 = vld [vmem:[%s2 + $0x290] sm:$0xff]
      %v1361 = vld [vmem:[%s2 + $0x298] sm:$0xff]
      %v1362 = vld [vmem:[%s2 + $0x2a0] sm:$0xff]
      %v1363 = vld [vmem:[%s2 + $0x2a8] sm:$0xff]
      %v1364 = vld [vmem:[%s2 + $0x2b0] sm:$0xff]
      %v1365 = vld [vmem:[%s2 + $0x2b8] sm:$0xff]
      %v1366 = vld [vmem:[%s2 + $0x2c0] sm:$0xff]
      %v1367 = vld [vmem:[%s2 + $0x2c8] sm:$0xff]
      %v1368 = vld [vmem:[%s2 + $0x2d0] sm:$0xff]
      %v1369 = vld [vmem:[%s2 + $0x2d8] sm:$0xff]
      %v1370 = vld [vmem:[%s2 + $0x2e0] sm:$0xff]
      %v1371 = vld [vmem:[%s2 + $0x2e8] sm:$0xff]
      %v1372 = vld [vmem:[%s2 + $0x2f0] sm:$0xff]
      %v1373 = vld [vmem:[%s2 + $0x2f8] sm:$0xff]
      %v1374 = vld [vmem:[%s2 + $0x300] sm:$0xff]
      %v1375 = vld [vmem:[%s2 + $0x308] sm:$0xff]
      %v1376 = vld [vmem:[%s2 + $0x310] sm:$0xff]
      %v1377 = vld [vmem:[%s2 + $0x318] sm:$0xff]
      %v1378 = vld [vmem:[%s2 + $0x320] sm:$0xff]
      %v1379 = vld [vmem:[%s2 + $0x328] sm:$0xff]
      %v1380 = vld [vmem:[%s2 + $0x330] sm:$0xff]
      %v1381 = vld [vmem:[%s2 + $0x338] sm:$0xff]
      %v1382 = vld [vmem:[%s2 + $0x340] sm:$0xff]
      %v1383 = vld [vmem:[%s2 + $0x348] sm:$0xff]
      %v1384 = vld [vmem:[%s2 + $0x350] sm:$0xff]
      %v1385 = vld [vmem:[%s2 + $0x358] sm:$0xff]
      %v1386 = vld [vmem:[%s2 + $0x360] sm:$0xff]
      %v1387 = vld [vmem:[%s2 + $0x368] sm:$0xff]
      %v1388 = vld [vmem:[%s2 + $0x370] sm:$0xff]
      %v1389 = vld [vmem:[%s2 + $0x378] sm:$0xff]
      %v1390 = vld [vmem:[%s2 + $0x380] sm:$0xff]
      %v1391 = vld [vmem:[%s2 + $0x388] sm:$0xff]
      %v1392 = vld [vmem:[%s2 + $0x390] sm:$0xff]
      %v1393 = vld [vmem:[%s2 + $0x398] sm:$0xff]
      %v1394 = vld [vmem:[%s2 + $0x3a0] sm:$0xff]
      %v1395 = vld [vmem:[%s2 + $0x3a8] sm:$0xff]
      %v1396 = vld [vmem:[%s2 + $0x3b0] sm:$0xff]
      %v1397 = vld [vmem:[%s2 + $0x3b8] sm:$0xff]
      %v1398 = vld [vmem:[%s2 + $0x3c0] sm:$0xff]
      %v1399 = vld [vmem:[%s2 + $0x3c8] sm:$0xff]
      %v1400 = vld [vmem:[%s2 + $0x3d0] sm:$0xff]
      %v1401 = vld [vmem:[%s2 + $0x3d8] sm:$0xff]
      %v1402 = vld [vmem:[%s2 + $0x3e0] sm:$0xff]
      %v1403 = vld [vmem:[%s2 + $0x3e8] sm:$0xff]
      %v1404 = vld [vmem:[%s2 + $0x3f0] sm:$0xff]
      %v1405 = vld [vmem:[%s2 + $0x3f8] sm:$0xff]
      %v1406 = vld [vmem:[%s2 + $0x400] sm:$0xff]
      %v1407 = vld [vmem:[%s2 + $0x408] sm:$0xff]
      %v1408 = vld [vmem:[%s2 + $0x410] sm:$0xff]
      %v1409 = vld [vmem:[%s2 + $0x418] sm:$0xff]
      %v1410 = vld [vmem:[%s2 + $0x420] sm:$0xff]
      %v1411 = vld [vmem:[%s2 + $0x428] sm:$0xff]
      %v1412 = vld [vmem:[%s2 + $0x430] sm:$0xff]
      %v1413 = vld [vmem:[%s2 + $0x438] sm:$0xff]
      %v1414 = vld [vmem:[%s2 + $0x440] sm:$0xff]
      %v1415 = vld [vmem:[%s2 + $0x448] sm:$0xff]
      %v1416 = vld [vmem:[%s2 + $0x450] sm:$0xff]
      %v1417 = vld [vmem:[%s2 + $0x458] sm:$0xff]
      %v1418 = vld [vmem:[%s2 + $0x460] sm:$0xff]
      %v1419 = vld [vmem:[%s2 + $0x468] sm:$0xff]
      %v1420 = vld [vmem:[%s2 + $0x470] sm:$0xff]
      %v1421 = vld [vmem:[%s2 + $0x478] sm:$0xff]
      %v1422 = vld [vmem:[%s3] sm:$0x3]
      %v1424 = vperm.slane %v1422, 0
      %v1425 = vperm.slane %v1422, 1
      %v1572 = vunpack.c.l.b16 %v1278
      %v1573 = vunpack.c.h.b16 %v1278
      %v1574 = vunpack.c.l.b16 %v1279
      %v1575 = vunpack.c.h.b16 %v1279
      %v1576 = vunpack.c.l.b16 %v1280
      %v1577 = vunpack.c.h.b16 %v1280
      %v1578 = vunpack.c.l.b16 %v1281
      %v1579 = vunpack.c.h.b16 %v1281
      %v1580 = vunpack.c.l.b16 %v1282
      %v1581 = vunpack.c.h.b16 %v1282
      %v1582 = vunpack.c.l.b16 %v1283
      %v1583 = vunpack.c.h.b16 %v1283
      %v1584 = vunpack.c.l.b16 %v1284
      %v1585 = vunpack.c.h.b16 %v1284
      %v1586 = vunpack.c.l.b16 %v1285
      %v1587 = vunpack.c.h.b16 %v1285
      %v1588 = vunpack.c.l.b16 %v1286
      %v1589 = vunpack.c.h.b16 %v1286
      %v1590 = vunpack.c.l.b16 %v1287
      %v1591 = vunpack.c.h.b16 %v1287
      %v1592 = vunpack.c.l.b16 %v1288
      %v1593 = vunpack.c.h.b16 %v1288
      %v1594 = vunpack.c.l.b16 %v1289
      %v1595 = vunpack.c.h.b16 %v1289
      %v1596 = vunpack.c.l.b16 %v1290
      %v1597 = vunpack.c.h.b16 %v1290
      %v1598 = vunpack.c.l.b16 %v1291
      %v1599 = vunpack.c.h.b16 %v1291
      %v1600 = vunpack.c.l.b16 %v1292
      %v1601 = vunpack.c.h.b16 %v1292
      %v1602 = vunpack.c.l.b16 %v1293
      %v1603 = vunpack.c.h.b16 %v1293
      %v1604 = vunpack.c.l.b16 %v1294
      %v1605 = vunpack.c.h.b16 %v1294
      %v1606 = vunpack.c.l.b16 %v1295
      %v1607 = vunpack.c.h.b16 %v1295
      %v1608 = vunpack.c.l.b16 %v1296
      %v1609 = vunpack.c.h.b16 %v1296
      %v1610 = vunpack.c.l.b16 %v1297
      %v1611 = vunpack.c.h.b16 %v1297
      %v1612 = vunpack.c.l.b16 %v1298
      %v1613 = vunpack.c.h.b16 %v1298
      %v1614 = vunpack.c.l.b16 %v1299
      %v1615 = vunpack.c.h.b16 %v1299
      %v1616 = vunpack.c.l.b16 %v1300
      %v1617 = vunpack.c.h.b16 %v1300
      %v1618 = vunpack.c.l.b16 %v1301
      %v1619 = vunpack.c.h.b16 %v1301
      %v1620 = vunpack.c.l.b16 %v1302
      %v1621 = vunpack.c.h.b16 %v1302
      %v1622 = vunpack.c.l.b16 %v1303
      %v1623 = vunpack.c.h.b16 %v1303
      %v1624 = vunpack.c.l.b16 %v1304
      %v1625 = vunpack.c.h.b16 %v1304
      %v1626 = vunpack.c.l.b16 %v1305
      %v1627 = vunpack.c.h.b16 %v1305
      %v1628 = vunpack.c.l.b16 %v1306
      %v1629 = vunpack.c.h.b16 %v1306
      %v1630 = vunpack.c.l.b16 %v1307
      %v1631 = vunpack.c.h.b16 %v1307
      %v1632 = vunpack.c.l.b16 %v1308
      %v1633 = vunpack.c.h.b16 %v1308
      %v1634 = vunpack.c.l.b16 %v1309
      %v1635 = vunpack.c.h.b16 %v1309
      %v1636 = vunpack.c.l.b16 %v1310
      %v1637 = vunpack.c.h.b16 %v1310
      %v1638 = vunpack.c.l.b16 %v1311
      %v1639 = vunpack.c.h.b16 %v1311
      %v1640 = vunpack.c.l.b16 %v1312
      %v1641 = vunpack.c.h.b16 %v1312
      %v1642 = vunpack.c.l.b16 %v1313
      %v1643 = vunpack.c.h.b16 %v1313
      %v1644 = vunpack.c.l.b16 %v1314
      %v1645 = vunpack.c.h.b16 %v1314
      %v1646 = vunpack.c.l.b16 %v1315
      %v1647 = vunpack.c.h.b16 %v1315
      %v1648 = vunpack.c.l.b16 %v1316
      %v1649 = vunpack.c.h.b16 %v1316
      %v1650 = vunpack.c.l.b16 %v1317
      %v1651 = vunpack.c.h.b16 %v1317
      %v1652 = vunpack.c.l.b16 %v1318
      %v1653 = vunpack.c.h.b16 %v1318
      %v1654 = vunpack.c.l.b16 %v1319
      %v1655 = vunpack.c.h.b16 %v1319
      %v1656 = vunpack.c.l.b16 %v1320
      %v1657 = vunpack.c.h.b16 %v1320
      %v1658 = vunpack.c.l.b16 %v1321
      %v1659 = vunpack.c.h.b16 %v1321
      %v1660 = vunpack.c.l.b16 %v1322
      %v1661 = vunpack.c.h.b16 %v1322
      %v1662 = vunpack.c.l.b16 %v1323
      %v1663 = vunpack.c.h.b16 %v1323
      %v1664 = vunpack.c.l.b16 %v1324
      %v1665 = vunpack.c.h.b16 %v1324
      %v1666 = vunpack.c.l.b16 %v1325
      %v1667 = vunpack.c.h.b16 %v1325
      %v1668 = vunpack.c.l.b16 %v1326
      %v1669 = vunpack.c.h.b16 %v1326
      %v1670 = vunpack.c.l.b16 %v1327
      %v1671 = vunpack.c.h.b16 %v1327
      %v1672 = vunpack.c.l.b16 %v1328
      %v1673 = vunpack.c.h.b16 %v1328
      %v1674 = vunpack.c.l.b16 %v1329
      %v1675 = vunpack.c.h.b16 %v1329
      %v1676 = vunpack.c.l.b16 %v1330
      %v1677 = vunpack.c.h.b16 %v1330
      %v1678 = vunpack.c.l.b16 %v1331
      %v1679 = vunpack.c.h.b16 %v1331
      %v1680 = vunpack.c.l.b16 %v1332
      %v1681 = vunpack.c.h.b16 %v1332
      %v1682 = vunpack.c.l.b16 %v1333
      %v1683 = vunpack.c.h.b16 %v1333
      %v1684 = vunpack.c.l.b16 %v1334
      %v1685 = vunpack.c.h.b16 %v1334
      %v1686 = vunpack.c.l.b16 %v1335
      %v1687 = vunpack.c.h.b16 %v1335
      %v1688 = vunpack.c.l.b16 %v1336
      %v1689 = vunpack.c.h.b16 %v1336
      %v1690 = vunpack.c.l.b16 %v1337
      %v1691 = vunpack.c.h.b16 %v1337
      %v1692 = vunpack.c.l.b16 %v1338
      %v1693 = vunpack.c.h.b16 %v1338
      %v1694 = vunpack.c.l.b16 %v1339
      %v1695 = vunpack.c.h.b16 %v1339
      %v1696 = vunpack.c.l.b16 %v1340
      %v1697 = vunpack.c.h.b16 %v1340
      %v1698 = vunpack.c.l.b16 %v1341
      %v1699 = vunpack.c.h.b16 %v1341
      %v1700 = vunpack.c.l.b16 %v1342
      %v1701 = vunpack.c.h.b16 %v1342
      %v1702 = vunpack.c.l.b16 %v1343
      %v1703 = vunpack.c.h.b16 %v1343
      %v1704 = vunpack.c.l.b16 %v1344
      %v1705 = vunpack.c.h.b16 %v1344
      %v1706 = vunpack.c.l.b16 %v1345
      %v1707 = vunpack.c.h.b16 %v1345
      %v1708 = vunpack.c.l.b16 %v1346
      %v1709 = vunpack.c.h.b16 %v1346
      %v1710 = vunpack.c.l.b16 %v1347
      %v1711 = vunpack.c.h.b16 %v1347
      %v1712 = vunpack.c.l.b16 %v1348
      %v1713 = vunpack.c.h.b16 %v1348
      %v1714 = vunpack.c.l.b16 %v1349
      %v1715 = vunpack.c.h.b16 %v1349
      %v1716 = vunpack.c.l.b16 %v1350
      %v1717 = vunpack.c.h.b16 %v1350
      %v1718 = vunpack.c.l.b16 %v1351
      %v1719 = vunpack.c.h.b16 %v1351
      %v1720 = vunpack.c.l.b16 %v1352
      %v1721 = vunpack.c.h.b16 %v1352
      %v1722 = vunpack.c.l.b16 %v1353
      %v1723 = vunpack.c.h.b16 %v1353
      %v1724 = vunpack.c.l.b16 %v1354
      %v1725 = vunpack.c.h.b16 %v1354
      %v1726 = vunpack.c.l.b16 %v1355
      %v1727 = vunpack.c.h.b16 %v1355
      %v1728 = vunpack.c.l.b16 %v1356
      %v1729 = vunpack.c.h.b16 %v1356
      %v1730 = vunpack.c.l.b16 %v1357
      %v1731 = vunpack.c.h.b16 %v1357
      %v1732 = vunpack.c.l.b16 %v1358
      %v1733 = vunpack.c.h.b16 %v1358
      %v1734 = vunpack.c.l.b16 %v1359
      %v1735 = vunpack.c.h.b16 %v1359
      %v1736 = vunpack.c.l.b16 %v1360
      %v1737 = vunpack.c.h.b16 %v1360
      %v1738 = vunpack.c.l.b16 %v1361
      %v1739 = vunpack.c.h.b16 %v1361
      %v1740 = vunpack.c.l.b16 %v1362
      %v1741 = vunpack.c.h.b16 %v1362
      %v1742 = vunpack.c.l.b16 %v1363
      %v1743 = vunpack.c.h.b16 %v1363
      %v1744 = vunpack.c.l.b16 %v1364
      %v1745 = vunpack.c.h.b16 %v1364
      %v1746 = vunpack.c.l.b16 %v1365
      %v1747 = vunpack.c.h.b16 %v1365
      %v1748 = vunpack.c.l.b16 %v1366
      %v1749 = vunpack.c.h.b16 %v1366
      %v1750 = vunpack.c.l.b16 %v1367
      %v1751 = vunpack.c.h.b16 %v1367
      %v1752 = vunpack.c.l.b16 %v1368
      %v1753 = vunpack.c.h.b16 %v1368
      %v1754 = vunpack.c.l.b16 %v1369
      %v1755 = vunpack.c.h.b16 %v1369
      %v1756 = vunpack.c.l.b16 %v1370
      %v1757 = vunpack.c.h.b16 %v1370
      %v1758 = vunpack.c.l.b16 %v1371
      %v1759 = vunpack.c.h.b16 %v1371
      %v1760 = vunpack.c.l.b16 %v1372
      %v1761 = vunpack.c.h.b16 %v1372
      %v1762 = vunpack.c.l.b16 %v1373
      %v1763 = vunpack.c.h.b16 %v1373
      %v1764 = vunpack.c.l.b16 %v1374
      %v1765 = vunpack.c.h.b16 %v1374
      %v1766 = vunpack.c.l.b16 %v1375
      %v1767 = vunpack.c.h.b16 %v1375
      %v1768 = vunpack.c.l.b16 %v1376
      %v1769 = vunpack.c.h.b16 %v1376
      %v1770 = vunpack.c.l.b16 %v1377
      %v1771 = vunpack.c.h.b16 %v1377
      %v1772 = vunpack.c.l.b16 %v1378
      %v1773 = vunpack.c.h.b16 %v1378
      %v1774 = vunpack.c.l.b16 %v1379
      %v1775 = vunpack.c.h.b16 %v1379
      %v1776 = vunpack.c.l.b16 %v1380
      %v1777 = vunpack.c.h.b16 %v1380
      %v1778 = vunpack.c.l.b16 %v1381
      %v1779 = vunpack.c.h.b16 %v1381
      %v1780 = vunpack.c.l.b16 %v1382
      %v1781 = vunpack.c.h.b16 %v1382
      %v1782 = vunpack.c.l.b16 %v1383
      %v1783 = vunpack.c.h.b16 %v1383
      %v1784 = vunpack.c.l.b16 %v1384
      %v1785 = vunpack.c.h.b16 %v1384
      %v1786 = vunpack.c.l.b16 %v1385
      %v1787 = vunpack.c.h.b16 %v1385
      %v1788 = vunpack.c.l.b16 %v1386
      %v1789 = vunpack.c.h.b16 %v1386
      %v1790 = vunpack.c.l.b16 %v1387
      %v1791 = vunpack.c.h.b16 %v1387
      %v1792 = vunpack.c.l.b16 %v1388
      %v1793 = vunpack.c.h.b16 %v1388
      %v1794 = vunpack.c.l.b16 %v1389
      %v1795 = vunpack.c.h.b16 %v1389
      %v1796 = vunpack.c.l.b16 %v1390
      %v1797 = vunpack.c.h.b16 %v1390
      %v1798 = vunpack.c.l.b16 %v1391
      %v1799 = vunpack.c.h.b16 %v1391
      %v1800 = vunpack.c.l.b16 %v1392
      %v1801 = vunpack.c.h.b16 %v1392
      %v1802 = vunpack.c.l.b16 %v1393
      %v1803 = vunpack.c.h.b16 %v1393
      %v1804 = vunpack.c.l.b16 %v1394
      %v1805 = vunpack.c.h.b16 %v1394
      %v1806 = vunpack.c.l.b16 %v1395
      %v1807 = vunpack.c.h.b16 %v1395
      %v1808 = vunpack.c.l.b16 %v1396
      %v1809 = vunpack.c.h.b16 %v1396
      %v1810 = vunpack.c.l.b16 %v1397
      %v1811 = vunpack.c.h.b16 %v1397
      %v1812 = vunpack.c.l.b16 %v1398
      %v1813 = vunpack.c.h.b16 %v1398
      %v1814 = vunpack.c.l.b16 %v1399
      %v1815 = vunpack.c.h.b16 %v1399
      %v1816 = vunpack.c.l.b16 %v1400
      %v1817 = vunpack.c.h.b16 %v1400
      %v1818 = vunpack.c.l.b16 %v1401
      %v1819 = vunpack.c.h.b16 %v1401
      %v1820 = vunpack.c.l.b16 %v1402
      %v1821 = vunpack.c.h.b16 %v1402
      %v1822 = vunpack.c.l.b16 %v1403
      %v1823 = vunpack.c.h.b16 %v1403
      %v1824 = vunpack.c.l.b16 %v1404
      %v1825 = vunpack.c.h.b16 %v1404
      %v1826 = vunpack.c.l.b16 %v1405
      %v1827 = vunpack.c.h.b16 %v1405
      %v1828 = vunpack.c.l.b16 %v1406
      %v1829 = vunpack.c.h.b16 %v1406
      %v1830 = vunpack.c.l.b16 %v1407
      %v1831 = vunpack.c.h.b16 %v1407
      %v1832 = vunpack.c.l.b16 %v1408
      %v1833 = vunpack.c.h.b16 %v1408
      %v1834 = vunpack.c.l.b16 %v1409
      %v1835 = vunpack.c.h.b16 %v1409
      %v1836 = vunpack.c.l.b16 %v1410
      %v1837 = vunpack.c.h.b16 %v1410
      %v1838 = vunpack.c.l.b16 %v1411
      %v1839 = vunpack.c.h.b16 %v1411
      %v1840 = vunpack.c.l.b16 %v1412
      %v1841 = vunpack.c.h.b16 %v1412
      %v1842 = vunpack.c.l.b16 %v1413
      %v1843 = vunpack.c.h.b16 %v1413
      %v1844 = vunpack.c.l.b16 %v1414
      %v1845 = vunpack.c.h.b16 %v1414
      %v1846 = vunpack.c.l.b16 %v1415
      %v1847 = vunpack.c.h.b16 %v1415
      %v1848 = vunpack.c.l.b16 %v1416
      %v1849 = vunpack.c.h.b16 %v1416
      %v1850 = vunpack.c.l.b16 %v1417
      %v1851 = vunpack.c.h.b16 %v1417
      %v1852 = vunpack.c.l.b16 %v1418
      %v1853 = vunpack.c.h.b16 %v1418
      %v1854 = vunpack.c.l.b16 %v1419
      %v1855 = vunpack.c.h.b16 %v1419
      %v1856 = vunpack.c.l.b16 %v1420
      %v1857 = vunpack.c.h.b16 %v1420
      %v1858 = vunpack.c.l.b16 %v1421
      %v1859 = vunpack.c.h.b16 %v1421
      %v1860 = vpack.c.b16 %v1574, %v1572
      %v1861 = vpack.c.b16 %v1575, %v1573
      %v1862 = vpack.c.b16 %v1578, %v1576
      %v1863 = vpack.c.b16 %v1579, %v1577
      %v1864 = vpack.c.b16 %v1582, %v1580
      %v1865 = vpack.c.b16 %v1583, %v1581
      %v1866 = vpack.c.b16 %v1586, %v1584
      %v1867 = vpack.c.b16 %v1587, %v1585
      %v1868 = vpack.c.b16 %v1590, %v1588
      %v1869 = vpack.c.b16 %v1591, %v1589
      %v1870 = vpack.c.b16 %v1594, %v1592
      %v1871 = vpack.c.b16 %v1595, %v1593
      %v1872 = vpack.c.b16 %v1598, %v1596
      %v1873 = vpack.c.b16 %v1599, %v1597
      %v1874 = vpack.c.b16 %v1602, %v1600
      %v1875 = vpack.c.b16 %v1603, %v1601
      %v1876 = vpack.c.b16 %v1606, %v1604
      %v1877 = vpack.c.b16 %v1607, %v1605
      %v1878 = vpack.c.b16 %v1610, %v1608
      %v1879 = vpack.c.b16 %v1611, %v1609
      %v1880 = vpack.c.b16 %v1614, %v1612
      %v1881 = vpack.c.b16 %v1615, %v1613
      %v1882 = vpack.c.b16 %v1618, %v1616
      %v1883 = vpack.c.b16 %v1619, %v1617
      %v1884 = vpack.c.b16 %v1622, %v1620
      %v1885 = vpack.c.b16 %v1623, %v1621
      %v1886 = vpack.c.b16 %v1626, %v1624
      %v1887 = vpack.c.b16 %v1627, %v1625
      %v1888 = vpack.c.b16 %v1630, %v1628
      %v1889 = vpack.c.b16 %v1631, %v1629
      %v1890 = vpack.c.b16 %v1634, %v1632
      %v1891 = vpack.c.b16 %v1635, %v1633
      %v1892 = vpack.c.b16 %v1638, %v1636
      %v1893 = vpack.c.b16 %v1639, %v1637
      %v1894 = vpack.c.b16 %v1642, %v1640
      %v1895 = vpack.c.b16 %v1643, %v1641
      %v1896 = vpack.c.b16 %v1646, %v1644
      %v1897 = vpack.c.b16 %v1647, %v1645
      %v1898 = vpack.c.b16 %v1650, %v1648
      %v1899 = vpack.c.b16 %v1651, %v1649
      %v1900 = vpack.c.b16 %v1654, %v1652
      %v1901 = vpack.c.b16 %v1655, %v1653
      %v1902 = vpack.c.b16 %v1658, %v1656
      %v1903 = vpack.c.b16 %v1659, %v1657
      %v1904 = vpack.c.b16 %v1662, %v1660
      %v1905 = vpack.c.b16 %v1663, %v1661
      %v1906 = vpack.c.b16 %v1666, %v1664
      %v1907 = vpack.c.b16 %v1667, %v1665
      %v1908 = vpack.c.b16 %v1670, %v1668
      %v1909 = vpack.c.b16 %v1671, %v1669
      %v1910 = vpack.c.b16 %v1674, %v1672
      %v1911 = vpack.c.b16 %v1675, %v1673
      %v1912 = vpack.c.b16 %v1678, %v1676
      %v1913 = vpack.c.b16 %v1679, %v1677
      %v1914 = vpack.c.b16 %v1682, %v1680
      %v1915 = vpack.c.b16 %v1683, %v1681
      %v1916 = vpack.c.b16 %v1686, %v1684
      %v1917 = vpack.c.b16 %v1687, %v1685
      %v1918 = vpack.c.b16 %v1690, %v1688
      %v1919 = vpack.c.b16 %v1691, %v1689
      %v1920 = vpack.c.b16 %v1694, %v1692
      %v1921 = vpack.c.b16 %v1695, %v1693
      %v1922 = vpack.c.b16 %v1698, %v1696
      %v1923 = vpack.c.b16 %v1699, %v1697
      %v1924 = vpack.c.b16 %v1702, %v1700
      %v1925 = vpack.c.b16 %v1703, %v1701
      %v1926 = vpack.c.b16 %v1706, %v1704
      %v1927 = vpack.c.b16 %v1707, %v1705
      %v1928 = vpack.c.b16 %v1710, %v1708
      %v1929 = vpack.c.b16 %v1711, %v1709
      %v1930 = vpack.c.b16 %v1714, %v1712
      %v1931 = vpack.c.b16 %v1715, %v1713
      %v1932 = vpack.c.b16 %v1718, %v1716
      %v1933 = vpack.c.b16 %v1719, %v1717
      %v1934 = vpack.c.b16 %v1722, %v1720
      %v1935 = vpack.c.b16 %v1723, %v1721
      %v1936 = vpack.c.b16 %v1726, %v1724
      %v1937 = vpack.c.b16 %v1727, %v1725
      %v1938 = vpack.c.b16 %v1730, %v1728
      %v1939 = vpack.c.b16 %v1731, %v1729
      %v1940 = vpack.c.b16 %v1734, %v1732
      %v1941 = vpack.c.b16 %v1735, %v1733
      %v1942 = vpack.c.b16 %v1738, %v1736
      %v1943 = vpack.c.b16 %v1739, %v1737
      %v1944 = vpack.c.b16 %v1742, %v1740
      %v1945 = vpack.c.b16 %v1743, %v1741
      %v1946 = vpack.c.b16 %v1746, %v1744
      %v1947 = vpack.c.b16 %v1747, %v1745
      %v1948 = vpack.c.b16 %v1750, %v1748
      %v1949 = vpack.c.b16 %v1751, %v1749
      %v1950 = vpack.c.b16 %v1754, %v1752
      %v1951 = vpack.c.b16 %v1755, %v1753
      %v1952 = vpack.c.b16 %v1758, %v1756
      %v1953 = vpack.c.b16 %v1759, %v1757
      %v1954 = vpack.c.b16 %v1762, %v1760
      %v1955 = vpack.c.b16 %v1763, %v1761
      %v1956 = vpack.c.b16 %v1766, %v1764
      %v1957 = vpack.c.b16 %v1767, %v1765
      %v1958 = vpack.c.b16 %v1770, %v1768
      %v1959 = vpack.c.b16 %v1771, %v1769
      %v1960 = vpack.c.b16 %v1774, %v1772
      %v1961 = vpack.c.b16 %v1775, %v1773
      %v1962 = vpack.c.b16 %v1778, %v1776
      %v1963 = vpack.c.b16 %v1779, %v1777
      %v1964 = vpack.c.b16 %v1782, %v1780
      %v1965 = vpack.c.b16 %v1783, %v1781
      %v1966 = vpack.c.b16 %v1786, %v1784
      %v1967 = vpack.c.b16 %v1787, %v1785
      %v1968 = vpack.c.b16 %v1790, %v1788
      %v1969 = vpack.c.b16 %v1791, %v1789
      %v1970 = vpack.c.b16 %v1794, %v1792
      %v1971 = vpack.c.b16 %v1795, %v1793
      %v1972 = vpack.c.b16 %v1798, %v1796
      %v1973 = vpack.c.b16 %v1799, %v1797
      %v1974 = vpack.c.b16 %v1802, %v1800
      %v1975 = vpack.c.b16 %v1803, %v1801
      %v1976 = vpack.c.b16 %v1806, %v1804
      %v1977 = vpack.c.b16 %v1807, %v1805
      %v1978 = vpack.c.b16 %v1810, %v1808
      %v1979 = vpack.c.b16 %v1811, %v1809
      %v1980 = vpack.c.b16 %v1814, %v1812
      %v1981 = vpack.c.b16 %v1815, %v1813
      %v1982 = vpack.c.b16 %v1818, %v1816
      %v1983 = vpack.c.b16 %v1819, %v1817
      %v1984 = vpack.c.b16 %v1822, %v1820
      %v1985 = vpack.c.b16 %v1823, %v1821
      %v1986 = vpack.c.b16 %v1826, %v1824
      %v1987 = vpack.c.b16 %v1827, %v1825
      %v1988 = vpack.c.b16 %v1830, %v1828
      %v1989 = vpack.c.b16 %v1831, %v1829
      %v1990 = vpack.c.b16 %v1834, %v1832
      %v1991 = vpack.c.b16 %v1835, %v1833
      %v1992 = vpack.c.b16 %v1838, %v1836
      %v1993 = vpack.c.b16 %v1839, %v1837
      %v1994 = vpack.c.b16 %v1842, %v1840
      %v1995 = vpack.c.b16 %v1843, %v1841
      %v1996 = vpack.c.b16 %v1846, %v1844
      %v1997 = vpack.c.b16 %v1847, %v1845
      %v1998 = vpack.c.b16 %v1850, %v1848
      %v1999 = vpack.c.b16 %v1851, %v1849
      %v2000 = vpack.c.b16 %v1854, %v1852
      %v2001 = vpack.c.b16 %v1855, %v1853
      %v2002 = vpack.c.b16 %v1858, %v1856
      %v2003 = vpack.c.b16 %v1859, %v1857
      %2148 = vmatpush.bf16.msra.mxu0 %v1874
      %2149 = vmatpush.bf16.msra.mxu0 %v1872
      %2150 = vmatpush.bf16.msra.mxu0 %v1870
      %2151 = vmatpush.bf16.msra.mxu0 %v1868
      %2152 = vmatpush.bf16.msra.mxu0 %v1866
      %2153 = vmatpush.bf16.msra.mxu0 %v1864
      %2154 = vmatpush.bf16.msra.mxu0 %v1862
      %2155 = vmatpush.bf16.msra.mxu0 %v1860
      %2156 = vmatmul.bf16.gmra.mxu0 %v1018
      %v2157 = vpop.f32.mrf.mxu0
      %v2158 = vadd.f32 %v1424, %v2157
      %v2159 = vpop.f32.mrf.mxu0
      %v2160 = vadd.f32 %v1424, %v2159
      %2161 = vmatmul.bf16.gmra.mxu0 %v1019
      %v2162 = vpop.f32.mrf.mxu0
      %v2163 = vadd.f32 %v1424, %v2162
      %v2164 = vpop.f32.mrf.mxu0
      %v2165 = vadd.f32 %v1424, %v2164
      %2166 = vmatmul.bf16.gmra.mxu0 %v1020
      %v2167 = vpop.f32.mrf.mxu0
      %v2168 = vadd.f32 %v1424, %v2167
      %v2169 = vpop.f32.mrf.mxu0
      %v2170 = vadd.f32 %v1424, %v2169
      %2171 = vmatmul.bf16.gmra.mxu0 %v1021
      %v2172 = vpop.f32.mrf.mxu0
      %v2173 = vadd.f32 %v1424, %v2172
      %v2174 = vpop.f32.mrf.mxu0
      %v2175 = vadd.f32 %v1424, %v2174
      %2176 = vmatmul.bf16.gmra.mxu0 %v1022
      %v2177 = vpop.f32.mrf.mxu0
      %v2178 = vadd.f32 %v1424, %v2177
      %v2179 = vpop.f32.mrf.mxu0
      %v2180 = vadd.f32 %v1424, %v2179
      %2181 = vmatmul.bf16.gmra.mxu0 %v1023
      %v2182 = vpop.f32.mrf.mxu0
      %v2183 = vadd.f32 %v1424, %v2182
      %v2184 = vpop.f32.mrf.mxu0
      %v2185 = vadd.f32 %v1424, %v2184
      %2186 = vmatmul.bf16.gmra.mxu0 %v1024
      %v2187 = vpop.f32.mrf.mxu0
      %v2188 = vadd.f32 %v1424, %v2187
      %v2189 = vpop.f32.mrf.mxu0
      %v2190 = vadd.f32 %v1424, %v2189
      %2191 = vmatmul.bf16.gmra.mxu0 %v1025
      %v2192 = vpop.f32.mrf.mxu0
      %v2193 = vadd.f32 %v1424, %v2192
      %v2194 = vpop.f32.mrf.mxu0
      %v2195 = vadd.f32 %v1424, %v2194
      %2196 = vmatmul.bf16.gmra.mxu0 %v1026
      %v2197 = vpop.f32.mrf.mxu0
      %v2198 = vadd.f32 %v1424, %v2197
      %v2199 = vpop.f32.mrf.mxu0
      %v2200 = vadd.f32 %v1424, %v2199
      %2201 = vmatmul.bf16.gmra.mxu0 %v1027
      %v2202 = vpop.f32.mrf.mxu0
      %v2203 = vadd.f32 %v1424, %v2202
      %v2204 = vpop.f32.mrf.mxu0
      %v2205 = vadd.f32 %v1424, %v2204
      %2206 = vmatmul.bf16.gmra.mxu0 %v1028
      %v2207 = vpop.f32.mrf.mxu0
      %v2208 = vadd.f32 %v1424, %v2207
      %v2209 = vpop.f32.mrf.mxu0
      %v2210 = vadd.f32 %v1424, %v2209
      %2211 = vmatmul.bf16.gmra.mxu0 %v1029
      %v2212 = vpop.f32.mrf.mxu0
      %v2213 = vadd.f32 %v1424, %v2212
      %v2214 = vpop.f32.mrf.mxu0
      %v2215 = vadd.f32 %v1424, %v2214
      %2216 = vmatmul.bf16.gmra.mxu0 %v1030
      %v2217 = vpop.f32.mrf.mxu0
      %v2218 = vadd.f32 %v1424, %v2217
      %v2219 = vpop.f32.mrf.mxu0
      %v2220 = vadd.f32 %v1424, %v2219
      %2221 = vmatmul.bf16.gmra.mxu0 %v1031
      %v2222 = vpop.f32.mrf.mxu0
      %v2223 = vadd.f32 %v1424, %v2222
      %v2224 = vpop.f32.mrf.mxu0
      %v2225 = vadd.f32 %v1424, %v2224
      %2226 = vmatmul.bf16.gmra.mxu0 %v1032
      %v2227 = vpop.f32.mrf.mxu0
      %v2228 = vadd.f32 %v1424, %v2227
      %v2229 = vpop.f32.mrf.mxu0
      %v2230 = vadd.f32 %v1424, %v2229
      %2231 = vmatmul.bf16.gmra.mxu0 %v1033
      %v2232 = vpop.f32.mrf.mxu0
      %v2233 = vadd.f32 %v1424, %v2232
      %v2234 = vpop.f32.mrf.mxu0
      %v2235 = vadd.f32 %v1424, %v2234
      %2236 = vdwg.mxu0
      %2237 = vmatpush.bf16.msra.mxu0 %v1890
      %2238 = vmatpush.bf16.msra.mxu0 %v1888
      %2239 = vmatpush.bf16.msra.mxu0 %v1886
      %2240 = vmatpush.bf16.msra.mxu0 %v1884
      %2241 = vmatpush.bf16.msra.mxu0 %v1882
      %2242 = vmatpush.bf16.msra.mxu0 %v1880
      %2243 = vmatpush.bf16.msra.mxu0 %v1878
      %2244 = vmatpush.bf16.msra.mxu0 %v1876
      %2245 = vmatmul.bf16.gmra.mxu0 %v1114
      %v2246 = vpop.f32.mrf.mxu0
      %v2247 = vadd.f32 %v2158, %v2246
      %v2248 = vpop.f32.mrf.mxu0
      %v2249 = vadd.f32 %v2160, %v2248
      %2250 = vmatmul.bf16.gmra.mxu0 %v1115
      %v2251 = vpop.f32.mrf.mxu0
      %v2252 = vadd.f32 %v2163, %v2251
      %v2253 = vpop.f32.mrf.mxu0
      %v2254 = vadd.f32 %v2165, %v2253
      %2255 = vmatmul.bf16.gmra.mxu0 %v1116
      %v2256 = vpop.f32.mrf.mxu0
      %v2257 = vadd.f32 %v2168, %v2256
      %v2258 = vpop.f32.mrf.mxu0
      %v2259 = vadd.f32 %v2170, %v2258
      %2260 = vmatmul.bf16.gmra.mxu0 %v1117
      %v2261 = vpop.f32.mrf.mxu0
      %v2262 = vadd.f32 %v2173, %v2261
      %v2263 = vpop.f32.mrf.mxu0
      %v2264 = vadd.f32 %v2175, %v2263
      %2265 = vmatmul.bf16.gmra.mxu0 %v1118
      %v2266 = vpop.f32.mrf.mxu0
      %v2267 = vadd.f32 %v2178, %v2266
      %v2268 = vpop.f32.mrf.mxu0
      %v2269 = vadd.f32 %v2180, %v2268
      %2270 = vmatmul.bf16.gmra.mxu0 %v1119
      %v2271 = vpop.f32.mrf.mxu0
      %v2272 = vadd.f32 %v2183, %v2271
      %v2273 = vpop.f32.mrf.mxu0
      %v2274 = vadd.f32 %v2185, %v2273
      %2275 = vmatmul.bf16.gmra.mxu0 %v1120
      %v2276 = vpop.f32.mrf.mxu0
      %v2277 = vadd.f32 %v2188, %v2276
      %v2278 = vpop.f32.mrf.mxu0
      %v2279 = vadd.f32 %v2190, %v2278
      %2280 = vmatmul.bf16.gmra.mxu0 %v1121
      %v2281 = vpop.f32.mrf.mxu0
      %v2282 = vadd.f32 %v2193, %v2281
      %v2283 = vpop.f32.mrf.mxu0
      %v2284 = vadd.f32 %v2195, %v2283
      %2285 = vmatmul.bf16.gmra.mxu0 %v1122
      %v2286 = vpop.f32.mrf.mxu0
      %v2287 = vadd.f32 %v2198, %v2286
      %v2288 = vpop.f32.mrf.mxu0
      %v2289 = vadd.f32 %v2200, %v2288
      %2290 = vmatmul.bf16.gmra.mxu0 %v1123
      %v2291 = vpop.f32.mrf.mxu0
      %v2292 = vadd.f32 %v2203, %v2291
      %v2293 = vpop.f32.mrf.mxu0
      %v2294 = vadd.f32 %v2205, %v2293
      %2295 = vmatmul.bf16.gmra.mxu0 %v1124
      %v2296 = vpop.f32.mrf.mxu0
      %v2297 = vadd.f32 %v2208, %v2296
      %v2298 = vpop.f32.mrf.mxu0
      %v2299 = vadd.f32 %v2210, %v2298
      %2300 = vmatmul.bf16.gmra.mxu0 %v1125
      %v2301 = vpop.f32.mrf.mxu0
      %v2302 = vadd.f32 %v2213, %v2301
      %v2303 = vpop.f32.mrf.mxu0
      %v2304 = vadd.f32 %v2215, %v2303
      %2305 = vmatmul.bf16.gmra.mxu0 %v1126
      %v2306 = vpop.f32.mrf.mxu0
      %v2307 = vadd.f32 %v2218, %v2306
      %v2308 = vpop.f32.mrf.mxu0
      %v2309 = vadd.f32 %v2220, %v2308
      %2310 = vmatmul.bf16.gmra.mxu0 %v1127
      %v2311 = vpop.f32.mrf.mxu0
      %v2312 = vadd.f32 %v2223, %v2311
      %v2313 = vpop.f32.mrf.mxu0
      %v2314 = vadd.f32 %v2225, %v2313
      %2315 = vmatmul.bf16.gmra.mxu0 %v1128
      %v2316 = vpop.f32.mrf.mxu0
      %v2317 = vadd.f32 %v2228, %v2316
      %v2318 = vpop.f32.mrf.mxu0
      %v2319 = vadd.f32 %v2230, %v2318
      %2320 = vmatmul.bf16.gmra.mxu0 %v1129
      %v2321 = vpop.f32.mrf.mxu0
      %v2322 = vadd.f32 %v2233, %v2321
      %v2323 = vpop.f32.mrf.mxu0
      %v2324 = vadd.f32 %v2235, %v2323
      %2325 = vdwg.mxu0
      %2326 = vmatpush.bf16.msra.mxu0 %v1906
      %2327 = vmatpush.bf16.msra.mxu0 %v1904
      %2328 = vmatpush.bf16.msra.mxu0 %v1902
      %2329 = vmatpush.bf16.msra.mxu0 %v1900
      %2330 = vmatpush.bf16.msra.mxu0 %v1898
      %2331 = vmatpush.bf16.msra.mxu0 %v1896
      %2332 = vmatpush.bf16.msra.mxu0 %v1894
      %2333 = vmatpush.bf16.msra.mxu0 %v1892
      %2334 = vmatmul.bf16.gmra.mxu0 %v1210
      %v2335 = vpop.f32.mrf.mxu0
      %v2336 = vadd.f32 %v2247, %v2335
      %v2337 = vpop.f32.mrf.mxu0
      %v2338 = vadd.f32 %v2249, %v2337
      %2339 = vmatmul.bf16.gmra.mxu0 %v1211
      %v2340 = vpop.f32.mrf.mxu0
      %v2341 = vadd.f32 %v2252, %v2340
      %v2342 = vpop.f32.mrf.mxu0
      %v2343 = vadd.f32 %v2254, %v2342
      %2344 = vmatmul.bf16.gmra.mxu0 %v1212
      %v2345 = vpop.f32.mrf.mxu0
      %v2346 = vadd.f32 %v2257, %v2345
      %v2347 = vpop.f32.mrf.mxu0
      %v2348 = vadd.f32 %v2259, %v2347
      %2349 = vmatmul.bf16.gmra.mxu0 %v1213
      %v2350 = vpop.f32.mrf.mxu0
      %v2351 = vadd.f32 %v2262, %v2350
      %v2352 = vpop.f32.mrf.mxu0
      %v2353 = vadd.f32 %v2264, %v2352
      %2354 = vmatmul.bf16.gmra.mxu0 %v1214
      %v2355 = vpop.f32.mrf.mxu0
      %v2356 = vadd.f32 %v2267, %v2355
      %v2357 = vpop.f32.mrf.mxu0
      %v2358 = vadd.f32 %v2269, %v2357
      %2359 = vmatmul.bf16.gmra.mxu0 %v1215
      %v2360 = vpop.f32.mrf.mxu0
      %v2361 = vadd.f32 %v2272, %v2360
      %v2362 = vpop.f32.mrf.mxu0
      %v2363 = vadd.f32 %v2274, %v2362
      %2364 = vmatmul.bf16.gmra.mxu0 %v1216
      %v2365 = vpop.f32.mrf.mxu0
      %v2366 = vadd.f32 %v2277, %v2365
      %v2367 = vpop.f32.mrf.mxu0
      %v2368 = vadd.f32 %v2279, %v2367
      %2369 = vmatmul.bf16.gmra.mxu0 %v1217
      %v2370 = vpop.f32.mrf.mxu0
      %v2371 = vadd.f32 %v2282, %v2370
      %v2372 = vpop.f32.mrf.mxu0
      %v2373 = vadd.f32 %v2284, %v2372
      %2374 = vmatmul.bf16.gmra.mxu0 %v1218
      %v2375 = vpop.f32.mrf.mxu0
      %v2376 = vadd.f32 %v2287, %v2375
      %v2377 = vpop.f32.mrf.mxu0
      %v2378 = vadd.f32 %v2289, %v2377
      %2379 = vmatmul.bf16.gmra.mxu0 %v1219
      %v2380 = vpop.f32.mrf.mxu0
      %v2381 = vadd.f32 %v2292, %v2380
      %v2382 = vpop.f32.mrf.mxu0
      %v2383 = vadd.f32 %v2294, %v2382
      %2384 = vmatmul.bf16.gmra.mxu0 %v1220
      %v2385 = vpop.f32.mrf.mxu0
      %v2386 = vadd.f32 %v2297, %v2385
      %v2387 = vpop.f32.mrf.mxu0
      %v2388 = vadd.f32 %v2299, %v2387
      %2389 = vmatmul.bf16.gmra.mxu0 %v1221
      %v2390 = vpop.f32.mrf.mxu0
      %v2391 = vadd.f32 %v2302, %v2390
      %v2392 = vpop.f32.mrf.mxu0
      %v2393 = vadd.f32 %v2304, %v2392
      %2394 = vmatmul.bf16.gmra.mxu0 %v1222
      %v2395 = vpop.f32.mrf.mxu0
      %v2396 = vadd.f32 %v2307, %v2395
      %v2397 = vpop.f32.mrf.mxu0
      %v2398 = vadd.f32 %v2309, %v2397
      %2399 = vmatmul.bf16.gmra.mxu0 %v1223
      %v2400 = vpop.f32.mrf.mxu0
      %v2401 = vadd.f32 %v2312, %v2400
      %v2402 = vpop.f32.mrf.mxu0
      %v2403 = vadd.f32 %v2314, %v2402
      %2404 = vmatmul.bf16.gmra.mxu0 %v1224
      %v2405 = vpop.f32.mrf.mxu0
      %v2406 = vadd.f32 %v2317, %v2405
      %v2407 = vpop.f32.mrf.mxu0
      %v2408 = vadd.f32 %v2319, %v2407
      %2409 = vmatmul.bf16.gmra.mxu0 %v1225
      %v2410 = vpop.f32.mrf.mxu0
      %v2411 = vadd.f32 %v2322, %v2410
      %v2412 = vpop.f32.mrf.mxu0
      %v2413 = vadd.f32 %v2324, %v2412
      %2414 = vdwg.mxu0
      %2415 = vmatpush.bf16.msra.mxu0 %v1922
      %2416 = vmatpush.bf16.msra.mxu0 %v1920
      %2417 = vmatpush.bf16.msra.mxu0 %v1918
      %2418 = vmatpush.bf16.msra.mxu0 %v1916
      %2419 = vmatpush.bf16.msra.mxu0 %v1914
      %2420 = vmatpush.bf16.msra.mxu0 %v1912
      %2421 = vmatpush.bf16.msra.mxu0 %v1910
      %2422 = vmatpush.bf16.msra.mxu0 %v1908
      %2423 = vmatmul.bf16.gmra.mxu0 %v1019
      %v2424 = vpop.f32.mrf.mxu0
      %v2425 = vadd.f32 %v2336, %v2424
      %v2426 = vpop.f32.mrf.mxu0
      %v2427 = vadd.f32 %v2338, %v2426
      %2428 = vmatmul.bf16.gmra.mxu0 %v1020
      %v2429 = vpop.f32.mrf.mxu0
      %v2430 = vadd.f32 %v2341, %v2429
      %v2431 = vpop.f32.mrf.mxu0
      %v2432 = vadd.f32 %v2343, %v2431
      %2433 = vmatmul.bf16.gmra.mxu0 %v1021
      %v2434 = vpop.f32.mrf.mxu0
      %v2435 = vadd.f32 %v2346, %v2434
      %v2436 = vpop.f32.mrf.mxu0
      %v2437 = vadd.f32 %v2348, %v2436
      %2438 = vmatmul.bf16.gmra.mxu0 %v1022
      %v2439 = vpop.f32.mrf.mxu0
      %v2440 = vadd.f32 %v2351, %v2439
      %v2441 = vpop.f32.mrf.mxu0
      %v2442 = vadd.f32 %v2353, %v2441
      %2443 = vmatmul.bf16.gmra.mxu0 %v1023
      %v2444 = vpop.f32.mrf.mxu0
      %v2445 = vadd.f32 %v2356, %v2444
      %v2446 = vpop.f32.mrf.mxu0
      %v2447 = vadd.f32 %v2358, %v2446
      %2448 = vmatmul.bf16.gmra.mxu0 %v1024
      %v2449 = vpop.f32.mrf.mxu0
      %v2450 = vadd.f32 %v2361, %v2449
      %v2451 = vpop.f32.mrf.mxu0
      %v2452 = vadd.f32 %v2363, %v2451
      %2453 = vmatmul.bf16.gmra.mxu0 %v1025
      %v2454 = vpop.f32.mrf.mxu0
      %v2455 = vadd.f32 %v2366, %v2454
      %v2456 = vpop.f32.mrf.mxu0
      %v2457 = vadd.f32 %v2368, %v2456
      %2458 = vmatmul.bf16.gmra.mxu0 %v1026
      %v2459 = vpop.f32.mrf.mxu0
      %v2460 = vadd.f32 %v2371, %v2459
      %v2461 = vpop.f32.mrf.mxu0
      %v2462 = vadd.f32 %v2373, %v2461
      %2463 = vmatmul.bf16.gmra.mxu0 %v1027
      %v2464 = vpop.f32.mrf.mxu0
      %v2465 = vadd.f32 %v2376, %v2464
      %v2466 = vpop.f32.mrf.mxu0
      %v2467 = vadd.f32 %v2378, %v2466
      %2468 = vmatmul.bf16.gmra.mxu0 %v1028
      %v2469 = vpop.f32.mrf.mxu0
      %v2470 = vadd.f32 %v2381, %v2469
      %v2471 = vpop.f32.mrf.mxu0
      %v2472 = vadd.f32 %v2383, %v2471
      %2473 = vmatmul.bf16.gmra.mxu0 %v1029
      %v2474 = vpop.f32.mrf.mxu0
      %v2475 = vadd.f32 %v2386, %v2474
      %v2476 = vpop.f32.mrf.mxu0
      %v2477 = vadd.f32 %v2388, %v2476
      %2478 = vmatmul.bf16.gmra.mxu0 %v1030
      %v2479 = vpop.f32.mrf.mxu0
      %v2480 = vadd.f32 %v2391, %v2479
      %v2481 = vpop.f32.mrf.mxu0
      %v2482 = vadd.f32 %v2393, %v2481
      %2483 = vmatmul.bf16.gmra.mxu0 %v1031
      %v2484 = vpop.f32.mrf.mxu0
      %v2485 = vadd.f32 %v2396, %v2484
      %v2486 = vpop.f32.mrf.mxu0
      %v2487 = vadd.f32 %v2398, %v2486
      %2488 = vmatmul.bf16.gmra.mxu0 %v1032
      %v2489 = vpop.f32.mrf.mxu0
      %v2490 = vadd.f32 %v2401, %v2489
      %v2491 = vpop.f32.mrf.mxu0
      %v2492 = vadd.f32 %v2403, %v2491
      %2493 = vmatmul.bf16.gmra.mxu0 %v1033
      %v2494 = vpop.f32.mrf.mxu0
      %v2495 = vadd.f32 %v2406, %v2494
      %v2496 = vpop.f32.mrf.mxu0
      %v2497 = vadd.f32 %v2408, %v2496
      %2498 = vmatmul.bf16.gmra.mxu0 %v1246
      %v2499 = vpop.f32.mrf.mxu0
      %v2500 = vadd.f32 %v2411, %v2499
      %v2501 = vpop.f32.mrf.mxu0
      %v2502 = vadd.f32 %v2413, %v2501
      %2503 = vdwg.mxu0
      %2504 = vmatpush.bf16.msra.mxu0 %v1938
      %2505 = vmatpush.bf16.msra.mxu0 %v1936
      %2506 = vmatpush.bf16.msra.mxu0 %v1934
      %2507 = vmatpush.bf16.msra.mxu0 %v1932
      %2508 = vmatpush.bf16.msra.mxu0 %v1930
      %2509 = vmatpush.bf16.msra.mxu0 %v1928
      %2510 = vmatpush.bf16.msra.mxu0 %v1926
      %2511 = vmatpush.bf16.msra.mxu0 %v1924
      %2512 = vmatmul.bf16.gmra.mxu0 %v1115
      %v2513 = vpop.f32.mrf.mxu0
      %v2514 = vadd.f32 %v2425, %v2513
      %v2515 = vpop.f32.mrf.mxu0
      %v2516 = vadd.f32 %v2427, %v2515
      %2517 = vmatmul.bf16.gmra.mxu0 %v1116
      %v2518 = vpop.f32.mrf.mxu0
      %v2519 = vadd.f32 %v2430, %v2518
      %v2520 = vpop.f32.mrf.mxu0
      %v2521 = vadd.f32 %v2432, %v2520
      %2522 = vmatmul.bf16.gmra.mxu0 %v1117
      %v2523 = vpop.f32.mrf.mxu0
      %v2524 = vadd.f32 %v2435, %v2523
      %v2525 = vpop.f32.mrf.mxu0
      %v2526 = vadd.f32 %v2437, %v2525
      %2527 = vmatmul.bf16.gmra.mxu0 %v1118
      %v2528 = vpop.f32.mrf.mxu0
      %v2529 = vadd.f32 %v2440, %v2528
      %v2530 = vpop.f32.mrf.mxu0
      %v2531 = vadd.f32 %v2442, %v2530
      %2532 = vmatmul.bf16.gmra.mxu0 %v1119
      %v2533 = vpop.f32.mrf.mxu0
      %v2534 = vadd.f32 %v2445, %v2533
      %v2535 = vpop.f32.mrf.mxu0
      %v2536 = vadd.f32 %v2447, %v2535
      %2537 = vmatmul.bf16.gmra.mxu0 %v1120
      %v2538 = vpop.f32.mrf.mxu0
      %v2539 = vadd.f32 %v2450, %v2538
      %v2540 = vpop.f32.mrf.mxu0
      %v2541 = vadd.f32 %v2452, %v2540
      %2542 = vmatmul.bf16.gmra.mxu0 %v1121
      %v2543 = vpop.f32.mrf.mxu0
      %v2544 = vadd.f32 %v2455, %v2543
      %v2545 = vpop.f32.mrf.mxu0
      %v2546 = vadd.f32 %v2457, %v2545
      %2547 = vmatmul.bf16.gmra.mxu0 %v1122
      %v2548 = vpop.f32.mrf.mxu0
      %v2549 = vadd.f32 %v2460, %v2548
      %v2550 = vpop.f32.mrf.mxu0
      %v2551 = vadd.f32 %v2462, %v2550
      %2552 = vmatmul.bf16.gmra.mxu0 %v1123
      %v2553 = vpop.f32.mrf.mxu0
      %v2554 = vadd.f32 %v2465, %v2553
      %v2555 = vpop.f32.mrf.mxu0
      %v2556 = vadd.f32 %v2467, %v2555
      %2557 = vmatmul.bf16.gmra.mxu0 %v1124
      %v2558 = vpop.f32.mrf.mxu0
      %v2559 = vadd.f32 %v2470, %v2558
      %v2560 = vpop.f32.mrf.mxu0
      %v2561 = vadd.f32 %v2472, %v2560
      %2562 = vmatmul.bf16.gmra.mxu0 %v1125
      %v2563 = vpop.f32.mrf.mxu0
      %v2564 = vadd.f32 %v2475, %v2563
      %v2565 = vpop.f32.mrf.mxu0
      %v2566 = vadd.f32 %v2477, %v2565
      %2567 = vmatmul.bf16.gmra.mxu0 %v1126
      %v2568 = vpop.f32.mrf.mxu0
      %v2569 = vadd.f32 %v2480, %v2568
      %v2570 = vpop.f32.mrf.mxu0
      %v2571 = vadd.f32 %v2482, %v2570
      %2572 = vmatmul.bf16.gmra.mxu0 %v1127
      %v2573 = vpop.f32.mrf.mxu0
      %v2574 = vadd.f32 %v2485, %v2573
      %v2575 = vpop.f32.mrf.mxu0
      %v2576 = vadd.f32 %v2487, %v2575
      %2577 = vmatmul.bf16.gmra.mxu0 %v1128
      %v2578 = vpop.f32.mrf.mxu0
      %v2579 = vadd.f32 %v2490, %v2578
      %v2580 = vpop.f32.mrf.mxu0
      %v2581 = vadd.f32 %v2492, %v2580
      %2582 = vmatmul.bf16.gmra.mxu0 %v1129
      %v2583 = vpop.f32.mrf.mxu0
      %v2584 = vadd.f32 %v2495, %v2583
      %v2585 = vpop.f32.mrf.mxu0
      %v2586 = vadd.f32 %v2497, %v2585
      %2587 = vmatmul.bf16.gmra.mxu0 %v1252
      %v2588 = vpop.f32.mrf.mxu0
      %v2589 = vadd.f32 %v2500, %v2588
      %v2590 = vpop.f32.mrf.mxu0
      %v2591 = vadd.f32 %v2502, %v2590
      %2592 = vdwg.mxu0
      %2593 = vmatpush.bf16.msra.mxu0 %v1954
      %2594 = vmatpush.bf16.msra.mxu0 %v1952
      %2595 = vmatpush.bf16.msra.mxu0 %v1950
      %2596 = vmatpush.bf16.msra.mxu0 %v1948
      %2597 = vmatpush.bf16.msra.mxu0 %v1946
      %2598 = vmatpush.bf16.msra.mxu0 %v1944
      %2599 = vmatpush.bf16.msra.mxu0 %v1942
      %2600 = vmatpush.bf16.msra.mxu0 %v1940
      %2601 = vmatmul.bf16.gmra.mxu0 %v1211
      %v2602 = vpop.f32.mrf.mxu0
      %v2603 = vadd.f32 %v2514, %v2602
      %v2604 = vpop.f32.mrf.mxu0
      %v2605 = vadd.f32 %v2516, %v2604
      %2606 = vmatmul.bf16.gmra.mxu0 %v1212
      %v2607 = vpop.f32.mrf.mxu0
      %v2608 = vadd.f32 %v2519, %v2607
      %v2609 = vpop.f32.mrf.mxu0
      %v2610 = vadd.f32 %v2521, %v2609
      %2611 = vmatmul.bf16.gmra.mxu0 %v1213
      %v2612 = vpop.f32.mrf.mxu0
      %v2613 = vadd.f32 %v2524, %v2612
      %v2614 = vpop.f32.mrf.mxu0
      %v2615 = vadd.f32 %v2526, %v2614
      %2616 = vmatmul.bf16.gmra.mxu0 %v1214
      %v2617 = vpop.f32.mrf.mxu0
      %v2618 = vadd.f32 %v2529, %v2617
      %v2619 = vpop.f32.mrf.mxu0
      %v2620 = vadd.f32 %v2531, %v2619
      %2621 = vmatmul.bf16.gmra.mxu0 %v1215
      %v2622 = vpop.f32.mrf.mxu0
      %v2623 = vadd.f32 %v2534, %v2622
      %v2624 = vpop.f32.mrf.mxu0
      %v2625 = vadd.f32 %v2536, %v2624
      %2626 = vmatmul.bf16.gmra.mxu0 %v1216
      %v2627 = vpop.f32.mrf.mxu0
      %v2628 = vadd.f32 %v2539, %v2627
      %v2629 = vpop.f32.mrf.mxu0
      %v2630 = vadd.f32 %v2541, %v2629
      %2631 = vmatmul.bf16.gmra.mxu0 %v1217
      %v2632 = vpop.f32.mrf.mxu0
      %v2633 = vadd.f32 %v2544, %v2632
      %v2634 = vpop.f32.mrf.mxu0
      %v2635 = vadd.f32 %v2546, %v2634
      %2636 = vmatmul.bf16.gmra.mxu0 %v1218
      %v2637 = vpop.f32.mrf.mxu0
      %v2638 = vadd.f32 %v2549, %v2637
      %v2639 = vpop.f32.mrf.mxu0
      %v2640 = vadd.f32 %v2551, %v2639
      %2641 = vmatmul.bf16.gmra.mxu0 %v1219
      %v2642 = vpop.f32.mrf.mxu0
      %v2643 = vadd.f32 %v2554, %v2642
      %v2644 = vpop.f32.mrf.mxu0
      %v2645 = vadd.f32 %v2556, %v2644
      %2646 = vmatmul.bf16.gmra.mxu0 %v1220
      %v2647 = vpop.f32.mrf.mxu0
      %v2648 = vadd.f32 %v2559, %v2647
      %v2649 = vpop.f32.mrf.mxu0
      %v2650 = vadd.f32 %v2561, %v2649
      %2651 = vmatmul.bf16.gmra.mxu0 %v1221
      %v2652 = vpop.f32.mrf.mxu0
      %v2653 = vadd.f32 %v2564, %v2652
      %v2654 = vpop.f32.mrf.mxu0
      %v2655 = vadd.f32 %v2566, %v2654
      %2656 = vmatmul.bf16.gmra.mxu0 %v1222
      %v2657 = vpop.f32.mrf.mxu0
      %v2658 = vadd.f32 %v2569, %v2657
      %v2659 = vpop.f32.mrf.mxu0
      %v2660 = vadd.f32 %v2571, %v2659
      %2661 = vmatmul.bf16.gmra.mxu0 %v1223
      %v2662 = vpop.f32.mrf.mxu0
      %v2663 = vadd.f32 %v2574, %v2662
      %v2664 = vpop.f32.mrf.mxu0
      %v2665 = vadd.f32 %v2576, %v2664
      %2666 = vmatmul.bf16.gmra.mxu0 %v1224
      %v2667 = vpop.f32.mrf.mxu0
      %v2668 = vadd.f32 %v2579, %v2667
      %v2669 = vpop.f32.mrf.mxu0
      %v2670 = vadd.f32 %v2581, %v2669
      %2671 = vmatmul.bf16.gmra.mxu0 %v1225
      %v2672 = vpop.f32.mrf.mxu0
      %v2673 = vadd.f32 %v2584, %v2672
      %v2674 = vpop.f32.mrf.mxu0
      %v2675 = vadd.f32 %v2586, %v2674
      %2676 = vmatmul.bf16.gmra.mxu0 %v1258
      %v2677 = vpop.f32.mrf.mxu0
      %v2678 = vadd.f32 %v2589, %v2677
      %v2679 = vpop.f32.mrf.mxu0
      %v2680 = vadd.f32 %v2591, %v2679
      %2681 = vdwg.mxu0
      %2682 = vmatpush.bf16.msra.mxu0 %v1970
      %2683 = vmatpush.bf16.msra.mxu0 %v1968
      %2684 = vmatpush.bf16.msra.mxu0 %v1966
      %2685 = vmatpush.bf16.msra.mxu0 %v1964
      %2686 = vmatpush.bf16.msra.mxu0 %v1962
      %2687 = vmatpush.bf16.msra.mxu0 %v1960
      %2688 = vmatpush.bf16.msra.mxu0 %v1958
      %2689 = vmatpush.bf16.msra.mxu0 %v1956
      %2690 = vmatmul.bf16.gmra.mxu0 %v1020
      %v2691 = vpop.f32.mrf.mxu0
      %v2692 = vadd.f32 %v2603, %v2691
      %v2693 = vpop.f32.mrf.mxu0
      %v2694 = vadd.f32 %v2605, %v2693
      %2695 = vmatmul.bf16.gmra.mxu0 %v1021
      %v2696 = vpop.f32.mrf.mxu0
      %v2697 = vadd.f32 %v2608, %v2696
      %v2698 = vpop.f32.mrf.mxu0
      %v2699 = vadd.f32 %v2610, %v2698
      %2700 = vmatmul.bf16.gmra.mxu0 %v1022
      %v2701 = vpop.f32.mrf.mxu0
      %v2702 = vadd.f32 %v2613, %v2701
      %v2703 = vpop.f32.mrf.mxu0
      %v2704 = vadd.f32 %v2615, %v2703
      %2705 = vmatmul.bf16.gmra.mxu0 %v1023
      %v2706 = vpop.f32.mrf.mxu0
      %v2707 = vadd.f32 %v2618, %v2706
      %v2708 = vpop.f32.mrf.mxu0
      %v2709 = vadd.f32 %v2620, %v2708
      %2710 = vmatmul.bf16.gmra.mxu0 %v1024
      %v2711 = vpop.f32.mrf.mxu0
      %v2712 = vadd.f32 %v2623, %v2711
      %v2713 = vpop.f32.mrf.mxu0
      %v2714 = vadd.f32 %v2625, %v2713
      %2715 = vmatmul.bf16.gmra.mxu0 %v1025
      %v2716 = vpop.f32.mrf.mxu0
      %v2717 = vadd.f32 %v2628, %v2716
      %v2718 = vpop.f32.mrf.mxu0
      %v2719 = vadd.f32 %v2630, %v2718
      %2720 = vmatmul.bf16.gmra.mxu0 %v1026
      %v2721 = vpop.f32.mrf.mxu0
      %v2722 = vadd.f32 %v2633, %v2721
      %v2723 = vpop.f32.mrf.mxu0
      %v2724 = vadd.f32 %v2635, %v2723
      %2725 = vmatmul.bf16.gmra.mxu0 %v1027
      %v2726 = vpop.f32.mrf.mxu0
      %v2727 = vadd.f32 %v2638, %v2726
      %v2728 = vpop.f32.mrf.mxu0
      %v2729 = vadd.f32 %v2640, %v2728
      %2730 = vmatmul.bf16.gmra.mxu0 %v1028
      %v2731 = vpop.f32.mrf.mxu0
      %v2732 = vadd.f32 %v2643, %v2731
      %v2733 = vpop.f32.mrf.mxu0
      %v2734 = vadd.f32 %v2645, %v2733
      %2735 = vmatmul.bf16.gmra.mxu0 %v1029
      %v2736 = vpop.f32.mrf.mxu0
      %v2737 = vadd.f32 %v2648, %v2736
      %v2738 = vpop.f32.mrf.mxu0
      %v2739 = vadd.f32 %v2650, %v2738
      %2740 = vmatmul.bf16.gmra.mxu0 %v1030
      %v2741 = vpop.f32.mrf.mxu0
      %v2742 = vadd.f32 %v2653, %v2741
      %v2743 = vpop.f32.mrf.mxu0
      %v2744 = vadd.f32 %v2655, %v2743
      %2745 = vmatmul.bf16.gmra.mxu0 %v1031
      %v2746 = vpop.f32.mrf.mxu0
      %v2747 = vadd.f32 %v2658, %v2746
      %v2748 = vpop.f32.mrf.mxu0
      %v2749 = vadd.f32 %v2660, %v2748
      %2750 = vmatmul.bf16.gmra.mxu0 %v1032
      %v2751 = vpop.f32.mrf.mxu0
      %v2752 = vadd.f32 %v2663, %v2751
      %v2753 = vpop.f32.mrf.mxu0
      %v2754 = vadd.f32 %v2665, %v2753
      %2755 = vmatmul.bf16.gmra.mxu0 %v1033
      %v2756 = vpop.f32.mrf.mxu0
      %v2757 = vadd.f32 %v2668, %v2756
      %v2758 = vpop.f32.mrf.mxu0
      %v2759 = vadd.f32 %v2670, %v2758
      %2760 = vmatmul.bf16.gmra.mxu0 %v1246
      %v2761 = vpop.f32.mrf.mxu0
      %v2762 = vadd.f32 %v2673, %v2761
      %v2763 = vpop.f32.mrf.mxu0
      %v2764 = vadd.f32 %v2675, %v2763
      %2765 = vmatmul.bf16.gmra.mxu0 %v1264
      %v2766 = vpop.f32.mrf.mxu0
      %v2767 = vadd.f32 %v2678, %v2766
      %v2768 = vpop.f32.mrf.mxu0
      %v2769 = vadd.f32 %v2680, %v2768
      %2770 = vdwg.mxu0
      %2771 = vmatpush.bf16.msra.mxu0 %v1986
      %2772 = vmatpush.bf16.msra.mxu0 %v1984
      %2773 = vmatpush.bf16.msra.mxu0 %v1982
      %2774 = vmatpush.bf16.msra.mxu0 %v1980
      %2775 = vmatpush.bf16.msra.mxu0 %v1978
      %2776 = vmatpush.bf16.msra.mxu0 %v1976
      %2777 = vmatpush.bf16.msra.mxu0 %v1974
      %2778 = vmatpush.bf16.msra.mxu0 %v1972
      %2779 = vmatmul.bf16.gmra.mxu0 %v1116
      %v2780 = vpop.f32.mrf.mxu0
      %v2781 = vadd.f32 %v2692, %v2780
      %v2782 = vpop.f32.mrf.mxu0
      %v2783 = vadd.f32 %v2694, %v2782
      %2784 = vmatmul.bf16.gmra.mxu0 %v1117
      %v2785 = vpop.f32.mrf.mxu0
      %v2786 = vadd.f32 %v2697, %v2785
      %v2787 = vpop.f32.mrf.mxu0
      %v2788 = vadd.f32 %v2699, %v2787
      %2789 = vmatmul.bf16.gmra.mxu0 %v1118
      %v2790 = vpop.f32.mrf.mxu0
      %v2791 = vadd.f32 %v2702, %v2790
      %v2792 = vpop.f32.mrf.mxu0
      %v2793 = vadd.f32 %v2704, %v2792
      %2794 = vmatmul.bf16.gmra.mxu0 %v1119
      %v2795 = vpop.f32.mrf.mxu0
      %v2796 = vadd.f32 %v2707, %v2795
      %v2797 = vpop.f32.mrf.mxu0
      %v2798 = vadd.f32 %v2709, %v2797
      %2799 = vmatmul.bf16.gmra.mxu0 %v1120
      %v2800 = vpop.f32.mrf.mxu0
      %v2801 = vadd.f32 %v2712, %v2800
      %v2802 = vpop.f32.mrf.mxu0
      %v2803 = vadd.f32 %v2714, %v2802
      %2804 = vmatmul.bf16.gmra.mxu0 %v1121
      %v2805 = vpop.f32.mrf.mxu0
      %v2806 = vadd.f32 %v2717, %v2805
      %v2807 = vpop.f32.mrf.mxu0
      %v2808 = vadd.f32 %v2719, %v2807
      %2809 = vmatmul.bf16.gmra.mxu0 %v1122
      %v2810 = vpop.f32.mrf.mxu0
      %v2811 = vadd.f32 %v2722, %v2810
      %v2812 = vpop.f32.mrf.mxu0
      %v2813 = vadd.f32 %v2724, %v2812
      %2814 = vmatmul.bf16.gmra.mxu0 %v1123
      %v2815 = vpop.f32.mrf.mxu0
      %v2816 = vadd.f32 %v2727, %v2815
      %v2817 = vpop.f32.mrf.mxu0
      %v2818 = vadd.f32 %v2729, %v2817
      %2819 = vmatmul.bf16.gmra.mxu0 %v1124
      %v2820 = vpop.f32.mrf.mxu0
      %v2821 = vadd.f32 %v2732, %v2820
      %v2822 = vpop.f32.mrf.mxu0
      %v2823 = vadd.f32 %v2734, %v2822
      %2824 = vmatmul.bf16.gmra.mxu0 %v1125
      %v2825 = vpop.f32.mrf.mxu0
      %v2826 = vadd.f32 %v2737, %v2825
      %v2827 = vpop.f32.mrf.mxu0
      %v2828 = vadd.f32 %v2739, %v2827
      %2829 = vmatmul.bf16.gmra.mxu0 %v1126
      %v2830 = vpop.f32.mrf.mxu0
      %v2831 = vadd.f32 %v2742, %v2830
      %v2832 = vpop.f32.mrf.mxu0
      %v2833 = vadd.f32 %v2744, %v2832
      %2834 = vmatmul.bf16.gmra.mxu0 %v1127
      %v2835 = vpop.f32.mrf.mxu0
      %v2836 = vadd.f32 %v2747, %v2835
      %v2837 = vpop.f32.mrf.mxu0
      %v2838 = vadd.f32 %v2749, %v2837
      %2839 = vmatmul.bf16.gmra.mxu0 %v1128
      %v2840 = vpop.f32.mrf.mxu0
      %v2841 = vadd.f32 %v2752, %v2840
      %v2842 = vpop.f32.mrf.mxu0
      %v2843 = vadd.f32 %v2754, %v2842
      %2844 = vmatmul.bf16.gmra.mxu0 %v1129
      %v2845 = vpop.f32.mrf.mxu0
      %v2846 = vadd.f32 %v2757, %v2845
      %v2847 = vpop.f32.mrf.mxu0
      %v2848 = vadd.f32 %v2759, %v2847
      %2849 = vmatmul.bf16.gmra.mxu0 %v1252
      %v2850 = vpop.f32.mrf.mxu0
      %v2851 = vadd.f32 %v2762, %v2850
      %v2852 = vpop.f32.mrf.mxu0
      %v2853 = vadd.f32 %v2764, %v2852
      %2854 = vmatmul.bf16.gmra.mxu0 %v1270
      %v2855 = vpop.f32.mrf.mxu0
      %v2856 = vadd.f32 %v2767, %v2855
      %v2857 = vpop.f32.mrf.mxu0
      %v2858 = vadd.f32 %v2769, %v2857
      %2859 = vdwg.mxu0
      %2860 = vmatpush.bf16.msra.mxu0 %v2002
      %2861 = vmatpush.bf16.msra.mxu0 %v2000
      %2862 = vmatpush.bf16.msra.mxu0 %v1998
      %2863 = vmatpush.bf16.msra.mxu0 %v1996
      %2864 = vmatpush.bf16.msra.mxu0 %v1994
      %2865 = vmatpush.bf16.msra.mxu0 %v1992
      %2866 = vmatpush.bf16.msra.mxu0 %v1990
      %2867 = vmatpush.bf16.msra.mxu0 %v1988
      %2868 = vmatmul.bf16.gmra.mxu0 %v1212
      %v2869 = vpop.f32.mrf.mxu0
      %v2870 = vadd.f32 %v2781, %v2869
      %v2871 = vpop.f32.mrf.mxu0
      %v2872 = vadd.f32 %v2783, %v2871
      %2873 = vmatmul.bf16.gmra.mxu0 %v1213
      %v2874 = vpop.f32.mrf.mxu0
      %v2875 = vadd.f32 %v2786, %v2874
      %v2876 = vpop.f32.mrf.mxu0
      %v2877 = vadd.f32 %v2788, %v2876
      %2878 = vmatmul.bf16.gmra.mxu0 %v1214
      %v2879 = vpop.f32.mrf.mxu0
      %v2880 = vadd.f32 %v2791, %v2879
      %v2881 = vpop.f32.mrf.mxu0
      %v2882 = vadd.f32 %v2793, %v2881
      %2883 = vmatmul.bf16.gmra.mxu0 %v1215
      %v2884 = vpop.f32.mrf.mxu0
      %v2885 = vadd.f32 %v2796, %v2884
      %v2886 = vpop.f32.mrf.mxu0
      %v2887 = vadd.f32 %v2798, %v2886
      %2888 = vmatmul.bf16.gmra.mxu0 %v1216
      %v2889 = vpop.f32.mrf.mxu0
      %v2890 = vadd.f32 %v2801, %v2889
      %v2891 = vpop.f32.mrf.mxu0
      %v2892 = vadd.f32 %v2803, %v2891
      %2893 = vmatmul.bf16.gmra.mxu0 %v1217
      %v2894 = vpop.f32.mrf.mxu0
      %v2895 = vadd.f32 %v2806, %v2894
      %v2896 = vpop.f32.mrf.mxu0
      %v2897 = vadd.f32 %v2808, %v2896
      %2898 = vmatmul.bf16.gmra.mxu0 %v1218
      %v2899 = vpop.f32.mrf.mxu0
      %v2900 = vadd.f32 %v2811, %v2899
      %v2901 = vpop.f32.mrf.mxu0
      %v2902 = vadd.f32 %v2813, %v2901
      %2903 = vmatmul.bf16.gmra.mxu0 %v1219
      %v2904 = vpop.f32.mrf.mxu0
      %v2905 = vadd.f32 %v2816, %v2904
      %v2906 = vpop.f32.mrf.mxu0
      %v2907 = vadd.f32 %v2818, %v2906
      %2908 = vmatmul.bf16.gmra.mxu0 %v1220
      %v2909 = vpop.f32.mrf.mxu0
      %v2910 = vadd.f32 %v2821, %v2909
      %v2911 = vpop.f32.mrf.mxu0
      %v2912 = vadd.f32 %v2823, %v2911
      %2913 = vmatmul.bf16.gmra.mxu0 %v1221
      %v2914 = vpop.f32.mrf.mxu0
      %v2915 = vadd.f32 %v2826, %v2914
      %v2916 = vpop.f32.mrf.mxu0
      %v2917 = vadd.f32 %v2828, %v2916
      %2918 = vmatmul.bf16.gmra.mxu0 %v1222
      %v2919 = vpop.f32.mrf.mxu0
      %v2920 = vadd.f32 %v2831, %v2919
      %v2921 = vpop.f32.mrf.mxu0
      %v2922 = vadd.f32 %v2833, %v2921
      %2923 = vmatmul.bf16.gmra.mxu0 %v1223
      %v2924 = vpop.f32.mrf.mxu0
      %v2925 = vadd.f32 %v2836, %v2924
      %v2926 = vpop.f32.mrf.mxu0
      %v2927 = vadd.f32 %v2838, %v2926
      %2928 = vmatmul.bf16.gmra.mxu0 %v1224
      %v2929 = vpop.f32.mrf.mxu0
      %v2930 = vadd.f32 %v2841, %v2929
      %v2931 = vpop.f32.mrf.mxu0
      %v2932 = vadd.f32 %v2843, %v2931
      %2933 = vmatmul.bf16.gmra.mxu0 %v1225
      %v2934 = vpop.f32.mrf.mxu0
      %v2935 = vadd.f32 %v2846, %v2934
      %v2936 = vpop.f32.mrf.mxu0
      %v2937 = vadd.f32 %v2848, %v2936
      %2938 = vmatmul.bf16.gmra.mxu0 %v1258
      %v2939 = vpop.f32.mrf.mxu0
      %v2940 = vadd.f32 %v2851, %v2939
      %v2941 = vpop.f32.mrf.mxu0
      %v2942 = vadd.f32 %v2853, %v2941
      %2943 = vmatmul.bf16.gmra.mxu0 %v1276
      %v2944 = vpop.f32.mrf.mxu0
      %v2945 = vadd.f32 %v2856, %v2944
      %v2946 = vpop.f32.mrf.mxu0
      %v2947 = vadd.f32 %v2858, %v2946
      %2948 = vdwg.mxu0
      %2949 = vmatpush.bf16.msra.mxu0 %v1875
      %2950 = vmatpush.bf16.msra.mxu0 %v1873
      %2951 = vmatpush.bf16.msra.mxu0 %v1871
      %2952 = vmatpush.bf16.msra.mxu0 %v1869
      %2953 = vmatpush.bf16.msra.mxu0 %v1867
      %2954 = vmatpush.bf16.msra.mxu0 %v1865
      %2955 = vmatpush.bf16.msra.mxu0 %v1863
      %2956 = vmatpush.bf16.msra.mxu0 %v1861
      %2957 = vmatmul.bf16.gmra.mxu0 %v1018
      %v2958 = vpop.f32.mrf.mxu0
      %v2959 = vadd.f32 %v1425, %v2958
      %v2960 = vpop.f32.mrf.mxu0
      %v2961 = vadd.f32 %v1425, %v2960
      %2962 = vmatmul.bf16.gmra.mxu0 %v1019
      %v2963 = vpop.f32.mrf.mxu0
      %v2964 = vadd.f32 %v1425, %v2963
      %v2965 = vpop.f32.mrf.mxu0
      %v2966 = vadd.f32 %v1425, %v2965
      %2967 = vmatmul.bf16.gmra.mxu0 %v1020
      %v2968 = vpop.f32.mrf.mxu0
      %v2969 = vadd.f32 %v1425, %v2968
      %v2970 = vpop.f32.mrf.mxu0
      %v2971 = vadd.f32 %v1425, %v2970
      %2972 = vmatmul.bf16.gmra.mxu0 %v1021
      %v2973 = vpop.f32.mrf.mxu0
      %v2974 = vadd.f32 %v1425, %v2973
      %v2975 = vpop.f32.mrf.mxu0
      %v2976 = vadd.f32 %v1425, %v2975
      %2977 = vmatmul.bf16.gmra.mxu0 %v1022
      %v2978 = vpop.f32.mrf.mxu0
      %v2979 = vadd.f32 %v1425, %v2978
      %v2980 = vpop.f32.mrf.mxu0
      %v2981 = vadd.f32 %v1425, %v2980
      %2982 = vmatmul.bf16.gmra.mxu0 %v1023
      %v2983 = vpop.f32.mrf.mxu0
      %v2984 = vadd.f32 %v1425, %v2983
      %v2985 = vpop.f32.mrf.mxu0
      %v2986 = vadd.f32 %v1425, %v2985
      %2987 = vmatmul.bf16.gmra.mxu0 %v1024
      %v2988 = vpop.f32.mrf.mxu0
      %v2989 = vadd.f32 %v1425, %v2988
      %v2990 = vpop.f32.mrf.mxu0
      %v2991 = vadd.f32 %v1425, %v2990
      %2992 = vmatmul.bf16.gmra.mxu0 %v1025
      %v2993 = vpop.f32.mrf.mxu0
      %v2994 = vadd.f32 %v1425, %v2993
      %v2995 = vpop.f32.mrf.mxu0
      %v2996 = vadd.f32 %v1425, %v2995
      %2997 = vmatmul.bf16.gmra.mxu0 %v1026
      %v2998 = vpop.f32.mrf.mxu0
      %v2999 = vadd.f32 %v1425, %v2998
      %v3000 = vpop.f32.mrf.mxu0
      %v3001 = vadd.f32 %v1425, %v3000
      %3002 = vmatmul.bf16.gmra.mxu0 %v1027
      %v3003 = vpop.f32.mrf.mxu0
      %v3004 = vadd.f32 %v1425, %v3003
      %v3005 = vpop.f32.mrf.mxu0
      %v3006 = vadd.f32 %v1425, %v3005
      %3007 = vmatmul.bf16.gmra.mxu0 %v1028
      %v3008 = vpop.f32.mrf.mxu0
      %v3009 = vadd.f32 %v1425, %v3008
      %v3010 = vpop.f32.mrf.mxu0
      %v3011 = vadd.f32 %v1425, %v3010
      %3012 = vmatmul.bf16.gmra.mxu0 %v1029
      %v3013 = vpop.f32.mrf.mxu0
      %v3014 = vadd.f32 %v1425, %v3013
      %v3015 = vpop.f32.mrf.mxu0
      %v3016 = vadd.f32 %v1425, %v3015
      %3017 = vmatmul.bf16.gmra.mxu0 %v1030
      %v3018 = vpop.f32.mrf.mxu0
      %v3019 = vadd.f32 %v1425, %v3018
      %v3020 = vpop.f32.mrf.mxu0
      %v3021 = vadd.f32 %v1425, %v3020
      %3022 = vmatmul.bf16.gmra.mxu0 %v1031
      %v3023 = vpop.f32.mrf.mxu0
      %v3024 = vadd.f32 %v1425, %v3023
      %v3025 = vpop.f32.mrf.mxu0
      %v3026 = vadd.f32 %v1425, %v3025
      %3027 = vmatmul.bf16.gmra.mxu0 %v1032
      %v3028 = vpop.f32.mrf.mxu0
      %v3029 = vadd.f32 %v1425, %v3028
      %v3030 = vpop.f32.mrf.mxu0
      %v3031 = vadd.f32 %v1425, %v3030
      %3032 = vmatmul.bf16.gmra.mxu0 %v1033
      %v3033 = vpop.f32.mrf.mxu0
      %v3034 = vadd.f32 %v1425, %v3033
      %v3035 = vpop.f32.mrf.mxu0
      %v3036 = vadd.f32 %v1425, %v3035
      %3037 = vdwg.mxu0
      %3038 = vmatpush.bf16.msra.mxu0 %v1891
      %3039 = vmatpush.bf16.msra.mxu0 %v1889
      %3040 = vmatpush.bf16.msra.mxu0 %v1887
      %3041 = vmatpush.bf16.msra.mxu0 %v1885
      %3042 = vmatpush.bf16.msra.mxu0 %v1883
      %3043 = vmatpush.bf16.msra.mxu0 %v1881
      %3044 = vmatpush.bf16.msra.mxu0 %v1879
      %3045 = vmatpush.bf16.msra.mxu0 %v1877
      %3046 = vmatmul.bf16.gmra.mxu0 %v1114
      %v3047 = vpop.f32.mrf.mxu0
      %v3048 = vadd.f32 %v2959, %v3047
      %v3049 = vpop.f32.mrf.mxu0
      %v3050 = vadd.f32 %v2961, %v3049
      %3051 = vmatmul.bf16.gmra.mxu0 %v1115
      %v3052 = vpop.f32.mrf.mxu0
      %v3053 = vadd.f32 %v2964, %v3052
      %v3054 = vpop.f32.mrf.mxu0
      %v3055 = vadd.f32 %v2966, %v3054
      %3056 = vmatmul.bf16.gmra.mxu0 %v1116
      %v3057 = vpop.f32.mrf.mxu0
      %v3058 = vadd.f32 %v2969, %v3057
      %v3059 = vpop.f32.mrf.mxu0
      %v3060 = vadd.f32 %v2971, %v3059
      %3061 = vmatmul.bf16.gmra.mxu0 %v1117
      %v3062 = vpop.f32.mrf.mxu0
      %v3063 = vadd.f32 %v2974, %v3062
      %v3064 = vpop.f32.mrf.mxu0
      %v3065 = vadd.f32 %v2976, %v3064
      %3066 = vmatmul.bf16.gmra.mxu0 %v1118
      %v3067 = vpop.f32.mrf.mxu0
      %v3068 = vadd.f32 %v2979, %v3067
      %v3069 = vpop.f32.mrf.mxu0
      %v3070 = vadd.f32 %v2981, %v3069
      %3071 = vmatmul.bf16.gmra.mxu0 %v1119
      %v3072 = vpop.f32.mrf.mxu0
      %v3073 = vadd.f32 %v2984, %v3072
      %v3074 = vpop.f32.mrf.mxu0
      %v3075 = vadd.f32 %v2986, %v3074
      %3076 = vmatmul.bf16.gmra.mxu0 %v1120
      %v3077 = vpop.f32.mrf.mxu0
      %v3078 = vadd.f32 %v2989, %v3077
      %v3079 = vpop.f32.mrf.mxu0
      %v3080 = vadd.f32 %v2991, %v3079
      %3081 = vmatmul.bf16.gmra.mxu0 %v1121
      %v3082 = vpop.f32.mrf.mxu0
      %v3083 = vadd.f32 %v2994, %v3082
      %v3084 = vpop.f32.mrf.mxu0
      %v3085 = vadd.f32 %v2996, %v3084
      %3086 = vmatmul.bf16.gmra.mxu0 %v1122
      %v3087 = vpop.f32.mrf.mxu0
      %v3088 = vadd.f32 %v2999, %v3087
      %v3089 = vpop.f32.mrf.mxu0
      %v3090 = vadd.f32 %v3001, %v3089
      %3091 = vmatmul.bf16.gmra.mxu0 %v1123
      %v3092 = vpop.f32.mrf.mxu0
      %v3093 = vadd.f32 %v3004, %v3092
      %v3094 = vpop.f32.mrf.mxu0
      %v3095 = vadd.f32 %v3006, %v3094
      %3096 = vmatmul.bf16.gmra.mxu0 %v1124
      %v3097 = vpop.f32.mrf.mxu0
      %v3098 = vadd.f32 %v3009, %v3097
      %v3099 = vpop.f32.mrf.mxu0
      %v3100 = vadd.f32 %v3011, %v3099
      %3101 = vmatmul.bf16.gmra.mxu0 %v1125
      %v3102 = vpop.f32.mrf.mxu0
      %v3103 = vadd.f32 %v3014, %v3102
      %v3104 = vpop.f32.mrf.mxu0
      %v3105 = vadd.f32 %v3016, %v3104
      %3106 = vmatmul.bf16.gmra.mxu0 %v1126
      %v3107 = vpop.f32.mrf.mxu0
      %v3108 = vadd.f32 %v3019, %v3107
      %v3109 = vpop.f32.mrf.mxu0
      %v3110 = vadd.f32 %v3021, %v3109
      %3111 = vmatmul.bf16.gmra.mxu0 %v1127
      %v3112 = vpop.f32.mrf.mxu0
      %v3113 = vadd.f32 %v3024, %v3112
      %v3114 = vpop.f32.mrf.mxu0
      %v3115 = vadd.f32 %v3026, %v3114
      %3116 = vmatmul.bf16.gmra.mxu0 %v1128
      %v3117 = vpop.f32.mrf.mxu0
      %v3118 = vadd.f32 %v3029, %v3117
      %v3119 = vpop.f32.mrf.mxu0
      %v3120 = vadd.f32 %v3031, %v3119
      %3121 = vmatmul.bf16.gmra.mxu0 %v1129
      %v3122 = vpop.f32.mrf.mxu0
      %v3123 = vadd.f32 %v3034, %v3122
      %v3124 = vpop.f32.mrf.mxu0
      %v3125 = vadd.f32 %v3036, %v3124
      %3126 = vdwg.mxu0
      %3127 = vmatpush.bf16.msra.mxu0 %v1907
      %3128 = vmatpush.bf16.msra.mxu0 %v1905
      %3129 = vmatpush.bf16.msra.mxu0 %v1903
      %3130 = vmatpush.bf16.msra.mxu0 %v1901
      %3131 = vmatpush.bf16.msra.mxu0 %v1899
      %3132 = vmatpush.bf16.msra.mxu0 %v1897
      %3133 = vmatpush.bf16.msra.mxu0 %v1895
      %3134 = vmatpush.bf16.msra.mxu0 %v1893
      %3135 = vmatmul.bf16.gmra.mxu0 %v1210
      %v3136 = vpop.f32.mrf.mxu0
      %v3137 = vadd.f32 %v3048, %v3136
      %v3138 = vpop.f32.mrf.mxu0
      %v3139 = vadd.f32 %v3050, %v3138
      %3140 = vmatmul.bf16.gmra.mxu0 %v1211
      %v3141 = vpop.f32.mrf.mxu0
      %v3142 = vadd.f32 %v3053, %v3141
      %v3143 = vpop.f32.mrf.mxu0
      %v3144 = vadd.f32 %v3055, %v3143
      %3145 = vmatmul.bf16.gmra.mxu0 %v1212
      %v3146 = vpop.f32.mrf.mxu0
      %v3147 = vadd.f32 %v3058, %v3146
      %v3148 = vpop.f32.mrf.mxu0
      %v3149 = vadd.f32 %v3060, %v3148
      %3150 = vmatmul.bf16.gmra.mxu0 %v1213
      %v3151 = vpop.f32.mrf.mxu0
      %v3152 = vadd.f32 %v3063, %v3151
      %v3153 = vpop.f32.mrf.mxu0
      %v3154 = vadd.f32 %v3065, %v3153
      %3155 = vmatmul.bf16.gmra.mxu0 %v1214
      %v3156 = vpop.f32.mrf.mxu0
      %v3157 = vadd.f32 %v3068, %v3156
      %v3158 = vpop.f32.mrf.mxu0
      %v3159 = vadd.f32 %v3070, %v3158
      %3160 = vmatmul.bf16.gmra.mxu0 %v1215
      %v3161 = vpop.f32.mrf.mxu0
      %v3162 = vadd.f32 %v3073, %v3161
      %v3163 = vpop.f32.mrf.mxu0
      %v3164 = vadd.f32 %v3075, %v3163
      %3165 = vmatmul.bf16.gmra.mxu0 %v1216
      %v3166 = vpop.f32.mrf.mxu0
      %v3167 = vadd.f32 %v3078, %v3166
      %v3168 = vpop.f32.mrf.mxu0
      %v3169 = vadd.f32 %v3080, %v3168
      %3170 = vmatmul.bf16.gmra.mxu0 %v1217
      %v3171 = vpop.f32.mrf.mxu0
      %v3172 = vadd.f32 %v3083, %v3171
      %v3173 = vpop.f32.mrf.mxu0
      %v3174 = vadd.f32 %v3085, %v3173
      %3175 = vmatmul.bf16.gmra.mxu0 %v1218
      %v3176 = vpop.f32.mrf.mxu0
      %v3177 = vadd.f32 %v3088, %v3176
      %v3178 = vpop.f32.mrf.mxu0
      %v3179 = vadd.f32 %v3090, %v3178
      %3180 = vmatmul.bf16.gmra.mxu0 %v1219
      %v3181 = vpop.f32.mrf.mxu0
      %v3182 = vadd.f32 %v3093, %v3181
      %v3183 = vpop.f32.mrf.mxu0
      %v3184 = vadd.f32 %v3095, %v3183
      %3185 = vmatmul.bf16.gmra.mxu0 %v1220
      %v3186 = vpop.f32.mrf.mxu0
      %v3187 = vadd.f32 %v3098, %v3186
      %v3188 = vpop.f32.mrf.mxu0
      %v3189 = vadd.f32 %v3100, %v3188
      %3190 = vmatmul.bf16.gmra.mxu0 %v1221
      %v3191 = vpop.f32.mrf.mxu0
      %v3192 = vadd.f32 %v3103, %v3191
      %v3193 = vpop.f32.mrf.mxu0
      %v3194 = vadd.f32 %v3105, %v3193
      %3195 = vmatmul.bf16.gmra.mxu0 %v1222
      %v3196 = vpop.f32.mrf.mxu0
      %v3197 = vadd.f32 %v3108, %v3196
      %v3198 = vpop.f32.mrf.mxu0
      %v3199 = vadd.f32 %v3110, %v3198
      %3200 = vmatmul.bf16.gmra.mxu0 %v1223
      %v3201 = vpop.f32.mrf.mxu0
      %v3202 = vadd.f32 %v3113, %v3201
      %v3203 = vpop.f32.mrf.mxu0
      %v3204 = vadd.f32 %v3115, %v3203
      %3205 = vmatmul.bf16.gmra.mxu0 %v1224
      %v3206 = vpop.f32.mrf.mxu0
      %v3207 = vadd.f32 %v3118, %v3206
      %v3208 = vpop.f32.mrf.mxu0
      %v3209 = vadd.f32 %v3120, %v3208
      %3210 = vmatmul.bf16.gmra.mxu0 %v1225
      %v3211 = vpop.f32.mrf.mxu0
      %v3212 = vadd.f32 %v3123, %v3211
      %v3213 = vpop.f32.mrf.mxu0
      %v3214 = vadd.f32 %v3125, %v3213
      %3215 = vdwg.mxu0
      %3216 = vmatpush.bf16.msra.mxu0 %v1923
      %3217 = vmatpush.bf16.msra.mxu0 %v1921
      %3218 = vmatpush.bf16.msra.mxu0 %v1919
      %3219 = vmatpush.bf16.msra.mxu0 %v1917
      %3220 = vmatpush.bf16.msra.mxu0 %v1915
      %3221 = vmatpush.bf16.msra.mxu0 %v1913
      %3222 = vmatpush.bf16.msra.mxu0 %v1911
      %3223 = vmatpush.bf16.msra.mxu0 %v1909
      %3224 = vmatmul.bf16.gmra.mxu0 %v1019
      %v3225 = vpop.f32.mrf.mxu0
      %v3226 = vadd.f32 %v3137, %v3225
      %v3227 = vpop.f32.mrf.mxu0
      %v3228 = vadd.f32 %v3139, %v3227
      %3229 = vmatmul.bf16.gmra.mxu0 %v1020
      %v3230 = vpop.f32.mrf.mxu0
      %v3231 = vadd.f32 %v3142, %v3230
      %v3232 = vpop.f32.mrf.mxu0
      %v3233 = vadd.f32 %v3144, %v3232
      %3234 = vmatmul.bf16.gmra.mxu0 %v1021
      %v3235 = vpop.f32.mrf.mxu0
      %v3236 = vadd.f32 %v3147, %v3235
      %v3237 = vpop.f32.mrf.mxu0
      %v3238 = vadd.f32 %v3149, %v3237
      %3239 = vmatmul.bf16.gmra.mxu0 %v1022
      %v3240 = vpop.f32.mrf.mxu0
      %v3241 = vadd.f32 %v3152, %v3240
      %v3242 = vpop.f32.mrf.mxu0
      %v3243 = vadd.f32 %v3154, %v3242
      %3244 = vmatmul.bf16.gmra.mxu0 %v1023
      %v3245 = vpop.f32.mrf.mxu0
      %v3246 = vadd.f32 %v3157, %v3245
      %v3247 = vpop.f32.mrf.mxu0
      %v3248 = vadd.f32 %v3159, %v3247
      %3249 = vmatmul.bf16.gmra.mxu0 %v1024
      %v3250 = vpop.f32.mrf.mxu0
      %v3251 = vadd.f32 %v3162, %v3250
      %v3252 = vpop.f32.mrf.mxu0
      %v3253 = vadd.f32 %v3164, %v3252
      %3254 = vmatmul.bf16.gmra.mxu0 %v1025
      %v3255 = vpop.f32.mrf.mxu0
      %v3256 = vadd.f32 %v3167, %v3255
      %v3257 = vpop.f32.mrf.mxu0
      %v3258 = vadd.f32 %v3169, %v3257
      %3259 = vmatmul.bf16.gmra.mxu0 %v1026
      %v3260 = vpop.f32.mrf.mxu0
      %v3261 = vadd.f32 %v3172, %v3260
      %v3262 = vpop.f32.mrf.mxu0
      %v3263 = vadd.f32 %v3174, %v3262
      %3264 = vmatmul.bf16.gmra.mxu0 %v1027
      %v3265 = vpop.f32.mrf.mxu0
      %v3266 = vadd.f32 %v3177, %v3265
      %v3267 = vpop.f32.mrf.mxu0
      %v3268 = vadd.f32 %v3179, %v3267
      %3269 = vmatmul.bf16.gmra.mxu0 %v1028
      %v3270 = vpop.f32.mrf.mxu0
      %v3271 = vadd.f32 %v3182, %v3270
      %v3272 = vpop.f32.mrf.mxu0
      %v3273 = vadd.f32 %v3184, %v3272
      %3274 = vmatmul.bf16.gmra.mxu0 %v1029
      %v3275 = vpop.f32.mrf.mxu0
      %v3276 = vadd.f32 %v3187, %v3275
      %v3277 = vpop.f32.mrf.mxu0
      %v3278 = vadd.f32 %v3189, %v3277
      %3279 = vmatmul.bf16.gmra.mxu0 %v1030
      %v3280 = vpop.f32.mrf.mxu0
      %v3281 = vadd.f32 %v3192, %v3280
      %v3282 = vpop.f32.mrf.mxu0
      %v3283 = vadd.f32 %v3194, %v3282
      %3284 = vmatmul.bf16.gmra.mxu0 %v1031
      %v3285 = vpop.f32.mrf.mxu0
      %v3286 = vadd.f32 %v3197, %v3285
      %v3287 = vpop.f32.mrf.mxu0
      %v3288 = vadd.f32 %v3199, %v3287
      %3289 = vmatmul.bf16.gmra.mxu0 %v1032
      %v3290 = vpop.f32.mrf.mxu0
      %v3291 = vadd.f32 %v3202, %v3290
      %v3292 = vpop.f32.mrf.mxu0
      %v3293 = vadd.f32 %v3204, %v3292
      %3294 = vmatmul.bf16.gmra.mxu0 %v1033
      %v3295 = vpop.f32.mrf.mxu0
      %v3296 = vadd.f32 %v3207, %v3295
      %v3297 = vpop.f32.mrf.mxu0
      %v3298 = vadd.f32 %v3209, %v3297
      %3299 = vmatmul.bf16.gmra.mxu0 %v1246
      %v3300 = vpop.f32.mrf.mxu0
      %v3301 = vadd.f32 %v3212, %v3300
      %v3302 = vpop.f32.mrf.mxu0
      %v3303 = vadd.f32 %v3214, %v3302
      %3304 = vdwg.mxu0
      %3305 = vmatpush.bf16.msra.mxu0 %v1939
      %3306 = vmatpush.bf16.msra.mxu0 %v1937
      %3307 = vmatpush.bf16.msra.mxu0 %v1935
      %3308 = vmatpush.bf16.msra.mxu0 %v1933
      %3309 = vmatpush.bf16.msra.mxu0 %v1931
      %3310 = vmatpush.bf16.msra.mxu0 %v1929
      %3311 = vmatpush.bf16.msra.mxu0 %v1927
      %3312 = vmatpush.bf16.msra.mxu0 %v1925
      %3313 = vmatmul.bf16.gmra.mxu0 %v1115
      %v3314 = vpop.f32.mrf.mxu0
      %v3315 = vadd.f32 %v3226, %v3314
      %v3316 = vpop.f32.mrf.mxu0
      %v3317 = vadd.f32 %v3228, %v3316
      %3318 = vmatmul.bf16.gmra.mxu0 %v1116
      %v3319 = vpop.f32.mrf.mxu0
      %v3320 = vadd.f32 %v3231, %v3319
      %v3321 = vpop.f32.mrf.mxu0
      %v3322 = vadd.f32 %v3233, %v3321
      %3323 = vmatmul.bf16.gmra.mxu0 %v1117
      %v3324 = vpop.f32.mrf.mxu0
      %v3325 = vadd.f32 %v3236, %v3324
      %v3326 = vpop.f32.mrf.mxu0
      %v3327 = vadd.f32 %v3238, %v3326
      %3328 = vmatmul.bf16.gmra.mxu0 %v1118
      %v3329 = vpop.f32.mrf.mxu0
      %v3330 = vadd.f32 %v3241, %v3329
      %v3331 = vpop.f32.mrf.mxu0
      %v3332 = vadd.f32 %v3243, %v3331
      %3333 = vmatmul.bf16.gmra.mxu0 %v1119
      %v3334 = vpop.f32.mrf.mxu0
      %v3335 = vadd.f32 %v3246, %v3334
      %v3336 = vpop.f32.mrf.mxu0
      %v3337 = vadd.f32 %v3248, %v3336
      %3338 = vmatmul.bf16.gmra.mxu0 %v1120
      %v3339 = vpop.f32.mrf.mxu0
      %v3340 = vadd.f32 %v3251, %v3339
      %v3341 = vpop.f32.mrf.mxu0
      %v3342 = vadd.f32 %v3253, %v3341
      %3343 = vmatmul.bf16.gmra.mxu0 %v1121
      %v3344 = vpop.f32.mrf.mxu0
      %v3345 = vadd.f32 %v3256, %v3344
      %v3346 = vpop.f32.mrf.mxu0
      %v3347 = vadd.f32 %v3258, %v3346
      %3348 = vmatmul.bf16.gmra.mxu0 %v1122
      %v3349 = vpop.f32.mrf.mxu0
      %v3350 = vadd.f32 %v3261, %v3349
      %v3351 = vpop.f32.mrf.mxu0
      %v3352 = vadd.f32 %v3263, %v3351
      %3353 = vmatmul.bf16.gmra.mxu0 %v1123
      %v3354 = vpop.f32.mrf.mxu0
      %v3355 = vadd.f32 %v3266, %v3354
      %v3356 = vpop.f32.mrf.mxu0
      %v3357 = vadd.f32 %v3268, %v3356
      %3358 = vmatmul.bf16.gmra.mxu0 %v1124
      %v3359 = vpop.f32.mrf.mxu0
      %v3360 = vadd.f32 %v3271, %v3359
      %v3361 = vpop.f32.mrf.mxu0
      %v3362 = vadd.f32 %v3273, %v3361
      %3363 = vmatmul.bf16.gmra.mxu0 %v1125
      %v3364 = vpop.f32.mrf.mxu0
      %v3365 = vadd.f32 %v3276, %v3364
      %v3366 = vpop.f32.mrf.mxu0
      %v3367 = vadd.f32 %v3278, %v3366
      %3368 = vmatmul.bf16.gmra.mxu0 %v1126
      %v3369 = vpop.f32.mrf.mxu0
      %v3370 = vadd.f32 %v3281, %v3369
      %v3371 = vpop.f32.mrf.mxu0
      %v3372 = vadd.f32 %v3283, %v3371
      %3373 = vmatmul.bf16.gmra.mxu0 %v1127
      %v3374 = vpop.f32.mrf.mxu0
      %v3375 = vadd.f32 %v3286, %v3374
      %v3376 = vpop.f32.mrf.mxu0
      %v3377 = vadd.f32 %v3288, %v3376
      %3378 = vmatmul.bf16.gmra.mxu0 %v1128
      %v3379 = vpop.f32.mrf.mxu0
      %v3380 = vadd.f32 %v3291, %v3379
      %v3381 = vpop.f32.mrf.mxu0
      %v3382 = vadd.f32 %v3293, %v3381
      %3383 = vmatmul.bf16.gmra.mxu0 %v1129
      %v3384 = vpop.f32.mrf.mxu0
      %v3385 = vadd.f32 %v3296, %v3384
      %v3386 = vpop.f32.mrf.mxu0
      %v3387 = vadd.f32 %v3298, %v3386
      %3388 = vmatmul.bf16.gmra.mxu0 %v1252
      %v3389 = vpop.f32.mrf.mxu0
      %v3390 = vadd.f32 %v3301, %v3389
      %v3391 = vpop.f32.mrf.mxu0
      %v3392 = vadd.f32 %v3303, %v3391
      %3393 = vdwg.mxu0
      %3394 = vmatpush.bf16.msra.mxu0 %v1955
      %3395 = vmatpush.bf16.msra.mxu0 %v1953
      %3396 = vmatpush.bf16.msra.mxu0 %v1951
      %3397 = vmatpush.bf16.msra.mxu0 %v1949
      %3398 = vmatpush.bf16.msra.mxu0 %v1947
      %3399 = vmatpush.bf16.msra.mxu0 %v1945
      %3400 = vmatpush.bf16.msra.mxu0 %v1943
      %3401 = vmatpush.bf16.msra.mxu0 %v1941
      %3402 = vmatmul.bf16.gmra.mxu0 %v1211
      %v3403 = vpop.f32.mrf.mxu0
      %v3404 = vadd.f32 %v3315, %v3403
      %v3405 = vpop.f32.mrf.mxu0
      %v3406 = vadd.f32 %v3317, %v3405
      %3407 = vmatmul.bf16.gmra.mxu0 %v1212
      %v3408 = vpop.f32.mrf.mxu0
      %v3409 = vadd.f32 %v3320, %v3408
      %v3410 = vpop.f32.mrf.mxu0
      %v3411 = vadd.f32 %v3322, %v3410
      %3412 = vmatmul.bf16.gmra.mxu0 %v1213
      %v3413 = vpop.f32.mrf.mxu0
      %v3414 = vadd.f32 %v3325, %v3413
      %v3415 = vpop.f32.mrf.mxu0
      %v3416 = vadd.f32 %v3327, %v3415
      %3417 = vmatmul.bf16.gmra.mxu0 %v1214
      %v3418 = vpop.f32.mrf.mxu0
      %v3419 = vadd.f32 %v3330, %v3418
      %v3420 = vpop.f32.mrf.mxu0
      %v3421 = vadd.f32 %v3332, %v3420
      %3422 = vmatmul.bf16.gmra.mxu0 %v1215
      %v3423 = vpop.f32.mrf.mxu0
      %v3424 = vadd.f32 %v3335, %v3423
      %v3425 = vpop.f32.mrf.mxu0
      %v3426 = vadd.f32 %v3337, %v3425
      %3427 = vmatmul.bf16.gmra.mxu0 %v1216
      %v3428 = vpop.f32.mrf.mxu0
      %v3429 = vadd.f32 %v3340, %v3428
      %v3430 = vpop.f32.mrf.mxu0
      %v3431 = vadd.f32 %v3342, %v3430
      %3432 = vmatmul.bf16.gmra.mxu0 %v1217
      %v3433 = vpop.f32.mrf.mxu0
      %v3434 = vadd.f32 %v3345, %v3433
      %v3435 = vpop.f32.mrf.mxu0
      %v3436 = vadd.f32 %v3347, %v3435
      %3437 = vmatmul.bf16.gmra.mxu0 %v1218
      %v3438 = vpop.f32.mrf.mxu0
      %v3439 = vadd.f32 %v3350, %v3438
      %v3440 = vpop.f32.mrf.mxu0
      %v3441 = vadd.f32 %v3352, %v3440
      %3442 = vmatmul.bf16.gmra.mxu0 %v1219
      %v3443 = vpop.f32.mrf.mxu0
      %v3444 = vadd.f32 %v3355, %v3443
      %v3445 = vpop.f32.mrf.mxu0
      %v3446 = vadd.f32 %v3357, %v3445
      %3447 = vmatmul.bf16.gmra.mxu0 %v1220
      %v3448 = vpop.f32.mrf.mxu0
      %v3449 = vadd.f32 %v3360, %v3448
      %v3450 = vpop.f32.mrf.mxu0
      %v3451 = vadd.f32 %v3362, %v3450
      %3452 = vmatmul.bf16.gmra.mxu0 %v1221
      %v3453 = vpop.f32.mrf.mxu0
      %v3454 = vadd.f32 %v3365, %v3453
      %v3455 = vpop.f32.mrf.mxu0
      %v3456 = vadd.f32 %v3367, %v3455
      %3457 = vmatmul.bf16.gmra.mxu0 %v1222
      %v3458 = vpop.f32.mrf.mxu0
      %v3459 = vadd.f32 %v3370, %v3458
      %v3460 = vpop.f32.mrf.mxu0
      %v3461 = vadd.f32 %v3372, %v3460
      %3462 = vmatmul.bf16.gmra.mxu0 %v1223
      %v3463 = vpop.f32.mrf.mxu0
      %v3464 = vadd.f32 %v3375, %v3463
      %v3465 = vpop.f32.mrf.mxu0
      %v3466 = vadd.f32 %v3377, %v3465
      %3467 = vmatmul.bf16.gmra.mxu0 %v1224
      %v3468 = vpop.f32.mrf.mxu0
      %v3469 = vadd.f32 %v3380, %v3468
      %v3470 = vpop.f32.mrf.mxu0
      %v3471 = vadd.f32 %v3382, %v3470
      %3472 = vmatmul.bf16.gmra.mxu0 %v1225
      %v3473 = vpop.f32.mrf.mxu0
      %v3474 = vadd.f32 %v3385, %v3473
      %v3475 = vpop.f32.mrf.mxu0
      %v3476 = vadd.f32 %v3387, %v3475
      %3477 = vmatmul.bf16.gmra.mxu0 %v1258
      %v3478 = vpop.f32.mrf.mxu0
      %v3479 = vadd.f32 %v3390, %v3478
      %v3480 = vpop.f32.mrf.mxu0
      %v3481 = vadd.f32 %v3392, %v3480
      %3482 = vdwg.mxu0
      %3483 = vmatpush.bf16.msra.mxu0 %v1971
      %3484 = vmatpush.bf16.msra.mxu0 %v1969
      %3485 = vmatpush.bf16.msra.mxu0 %v1967
      %3486 = vmatpush.bf16.msra.mxu0 %v1965
      %3487 = vmatpush.bf16.msra.mxu0 %v1963
      %3488 = vmatpush.bf16.msra.mxu0 %v1961
      %3489 = vmatpush.bf16.msra.mxu0 %v1959
      %3490 = vmatpush.bf16.msra.mxu0 %v1957
      %3491 = vmatmul.bf16.gmra.mxu0 %v1020
      %v3492 = vpop.f32.mrf.mxu0
      %v3493 = vadd.f32 %v3404, %v3492
      %v3494 = vpop.f32.mrf.mxu0
      %v3495 = vadd.f32 %v3406, %v3494
      %3496 = vmatmul.bf16.gmra.mxu0 %v1021
      %v3497 = vpop.f32.mrf.mxu0
      %v3498 = vadd.f32 %v3409, %v3497
      %v3499 = vpop.f32.mrf.mxu0
      %v3500 = vadd.f32 %v3411, %v3499
      %3501 = vmatmul.bf16.gmra.mxu0 %v1022
      %v3502 = vpop.f32.mrf.mxu0
      %v3503 = vadd.f32 %v3414, %v3502
      %v3504 = vpop.f32.mrf.mxu0
      %v3505 = vadd.f32 %v3416, %v3504
      %3506 = vmatmul.bf16.gmra.mxu0 %v1023
      %v3507 = vpop.f32.mrf.mxu0
      %v3508 = vadd.f32 %v3419, %v3507
      %v3509 = vpop.f32.mrf.mxu0
      %v3510 = vadd.f32 %v3421, %v3509
      %3511 = vmatmul.bf16.gmra.mxu0 %v1024
      %v3512 = vpop.f32.mrf.mxu0
      %v3513 = vadd.f32 %v3424, %v3512
      %v3514 = vpop.f32.mrf.mxu0
      %v3515 = vadd.f32 %v3426, %v3514
      %3516 = vmatmul.bf16.gmra.mxu0 %v1025
      %v3517 = vpop.f32.mrf.mxu0
      %v3518 = vadd.f32 %v3429, %v3517
      %v3519 = vpop.f32.mrf.mxu0
      %v3520 = vadd.f32 %v3431, %v3519
      %3521 = vmatmul.bf16.gmra.mxu0 %v1026
      %v3522 = vpop.f32.mrf.mxu0
      %v3523 = vadd.f32 %v3434, %v3522
      %v3524 = vpop.f32.mrf.mxu0
      %v3525 = vadd.f32 %v3436, %v3524
      %3526 = vmatmul.bf16.gmra.mxu0 %v1027
      %v3527 = vpop.f32.mrf.mxu0
      %v3528 = vadd.f32 %v3439, %v3527
      %v3529 = vpop.f32.mrf.mxu0
      %v3530 = vadd.f32 %v3441, %v3529
      %3531 = vmatmul.bf16.gmra.mxu0 %v1028
      %v3532 = vpop.f32.mrf.mxu0
      %v3533 = vadd.f32 %v3444, %v3532
      %v3534 = vpop.f32.mrf.mxu0
      %v3535 = vadd.f32 %v3446, %v3534
      %3536 = vmatmul.bf16.gmra.mxu0 %v1029
      %v3537 = vpop.f32.mrf.mxu0
      %v3538 = vadd.f32 %v3449, %v3537
      %v3539 = vpop.f32.mrf.mxu0
      %v3540 = vadd.f32 %v3451, %v3539
      %3541 = vmatmul.bf16.gmra.mxu0 %v1030
      %v3542 = vpop.f32.mrf.mxu0
      %v3543 = vadd.f32 %v3454, %v3542
      %v3544 = vpop.f32.mrf.mxu0
      %v3545 = vadd.f32 %v3456, %v3544
      %3546 = vmatmul.bf16.gmra.mxu0 %v1031
      %v3547 = vpop.f32.mrf.mxu0
      %v3548 = vadd.f32 %v3459, %v3547
      %v3549 = vpop.f32.mrf.mxu0
      %v3550 = vadd.f32 %v3461, %v3549
      %3551 = vmatmul.bf16.gmra.mxu0 %v1032
      %v3552 = vpop.f32.mrf.mxu0
      %v3553 = vadd.f32 %v3464, %v3552
      %v3554 = vpop.f32.mrf.mxu0
      %v3555 = vadd.f32 %v3466, %v3554
      %3556 = vmatmul.bf16.gmra.mxu0 %v1033
      %v3557 = vpop.f32.mrf.mxu0
      %v3558 = vadd.f32 %v3469, %v3557
      %v3559 = vpop.f32.mrf.mxu0
      %v3560 = vadd.f32 %v3471, %v3559
      %3561 = vmatmul.bf16.gmra.mxu0 %v1246
      %v3562 = vpop.f32.mrf.mxu0
      %v3563 = vadd.f32 %v3474, %v3562
      %v3564 = vpop.f32.mrf.mxu0
      %v3565 = vadd.f32 %v3476, %v3564
      %3566 = vmatmul.bf16.gmra.mxu0 %v1264
      %v3567 = vpop.f32.mrf.mxu0
      %v3568 = vadd.f32 %v3479, %v3567
      %v3569 = vpop.f32.mrf.mxu0
      %v3570 = vadd.f32 %v3481, %v3569
      %3571 = vdwg.mxu0
      %3572 = vmatpush.bf16.msra.mxu0 %v1987
      %3573 = vmatpush.bf16.msra.mxu0 %v1985
      %3574 = vmatpush.bf16.msra.mxu0 %v1983
      %3575 = vmatpush.bf16.msra.mxu0 %v1981
      %3576 = vmatpush.bf16.msra.mxu0 %v1979
      %3577 = vmatpush.bf16.msra.mxu0 %v1977
      %3578 = vmatpush.bf16.msra.mxu0 %v1975
      %3579 = vmatpush.bf16.msra.mxu0 %v1973
      %3580 = vmatmul.bf16.gmra.mxu0 %v1116
      %v3581 = vpop.f32.mrf.mxu0
      %v3582 = vadd.f32 %v3493, %v3581
      %v3583 = vpop.f32.mrf.mxu0
      %v3584 = vadd.f32 %v3495, %v3583
      %3585 = vmatmul.bf16.gmra.mxu0 %v1117
      %v3586 = vpop.f32.mrf.mxu0
      %v3587 = vadd.f32 %v3498, %v3586
      %v3588 = vpop.f32.mrf.mxu0
      %v3589 = vadd.f32 %v3500, %v3588
      %3590 = vmatmul.bf16.gmra.mxu0 %v1118
      %v3591 = vpop.f32.mrf.mxu0
      %v3592 = vadd.f32 %v3503, %v3591
      %v3593 = vpop.f32.mrf.mxu0
      %v3594 = vadd.f32 %v3505, %v3593
      %3595 = vmatmul.bf16.gmra.mxu0 %v1119
      %v3596 = vpop.f32.mrf.mxu0
      %v3597 = vadd.f32 %v3508, %v3596
      %v3598 = vpop.f32.mrf.mxu0
      %v3599 = vadd.f32 %v3510, %v3598
      %3600 = vmatmul.bf16.gmra.mxu0 %v1120
      %v3601 = vpop.f32.mrf.mxu0
      %v3602 = vadd.f32 %v3513, %v3601
      %v3603 = vpop.f32.mrf.mxu0
      %v3604 = vadd.f32 %v3515, %v3603
      %3605 = vmatmul.bf16.gmra.mxu0 %v1121
      %v3606 = vpop.f32.mrf.mxu0
      %v3607 = vadd.f32 %v3518, %v3606
      %v3608 = vpop.f32.mrf.mxu0
      %v3609 = vadd.f32 %v3520, %v3608
      %3610 = vmatmul.bf16.gmra.mxu0 %v1122
      %v3611 = vpop.f32.mrf.mxu0
      %v3612 = vadd.f32 %v3523, %v3611
      %v3613 = vpop.f32.mrf.mxu0
      %v3614 = vadd.f32 %v3525, %v3613
      %3615 = vmatmul.bf16.gmra.mxu0 %v1123
      %v3616 = vpop.f32.mrf.mxu0
      %v3617 = vadd.f32 %v3528, %v3616
      %v3618 = vpop.f32.mrf.mxu0
      %v3619 = vadd.f32 %v3530, %v3618
      %3620 = vmatmul.bf16.gmra.mxu0 %v1124
      %v3621 = vpop.f32.mrf.mxu0
      %v3622 = vadd.f32 %v3533, %v3621
      %v3623 = vpop.f32.mrf.mxu0
      %v3624 = vadd.f32 %v3535, %v3623
      %3625 = vmatmul.bf16.gmra.mxu0 %v1125
      %v3626 = vpop.f32.mrf.mxu0
      %v3627 = vadd.f32 %v3538, %v3626
      %v3628 = vpop.f32.mrf.mxu0
      %v3629 = vadd.f32 %v3540, %v3628
      %3630 = vmatmul.bf16.gmra.mxu0 %v1126
      %v3631 = vpop.f32.mrf.mxu0
      %v3632 = vadd.f32 %v3543, %v3631
      %v3633 = vpop.f32.mrf.mxu0
      %v3634 = vadd.f32 %v3545, %v3633
      %3635 = vmatmul.bf16.gmra.mxu0 %v1127
      %v3636 = vpop.f32.mrf.mxu0
      %v3637 = vadd.f32 %v3548, %v3636
      %v3638 = vpop.f32.mrf.mxu0
      %v3639 = vadd.f32 %v3550, %v3638
      %3640 = vmatmul.bf16.gmra.mxu0 %v1128
      %v3641 = vpop.f32.mrf.mxu0
      %v3642 = vadd.f32 %v3553, %v3641
      %v3643 = vpop.f32.mrf.mxu0
      %v3644 = vadd.f32 %v3555, %v3643
      %3645 = vmatmul.bf16.gmra.mxu0 %v1129
      %v3646 = vpop.f32.mrf.mxu0
      %v3647 = vadd.f32 %v3558, %v3646
      %v3648 = vpop.f32.mrf.mxu0
      %v3649 = vadd.f32 %v3560, %v3648
      %3650 = vmatmul.bf16.gmra.mxu0 %v1252
      %v3651 = vpop.f32.mrf.mxu0
      %v3652 = vadd.f32 %v3563, %v3651
      %v3653 = vpop.f32.mrf.mxu0
      %v3654 = vadd.f32 %v3565, %v3653
      %3655 = vmatmul.bf16.gmra.mxu0 %v1270
      %v3656 = vpop.f32.mrf.mxu0
      %v3657 = vadd.f32 %v3568, %v3656
      %v3658 = vpop.f32.mrf.mxu0
      %v3659 = vadd.f32 %v3570, %v3658
      %3660 = vdwg.mxu0
      %3661 = vmatpush.bf16.msra.mxu0 %v2003
      %3662 = vmatpush.bf16.msra.mxu0 %v2001
      %3663 = vmatpush.bf16.msra.mxu0 %v1999
      %3664 = vmatpush.bf16.msra.mxu0 %v1997
      %3665 = vmatpush.bf16.msra.mxu0 %v1995
      %3666 = vmatpush.bf16.msra.mxu0 %v1993
      %3667 = vmatpush.bf16.msra.mxu0 %v1991
      %3668 = vmatpush.bf16.msra.mxu0 %v1989
      %3669 = vmatmul.bf16.gmra.mxu0 %v1212
      %v3670 = vpop.f32.mrf.mxu0
      %v3671 = vadd.f32 %v3582, %v3670
      %v3672 = vpop.f32.mrf.mxu0
      %v3673 = vadd.f32 %v3584, %v3672
      %3674 = vmatmul.bf16.gmra.mxu0 %v1213
      %v3675 = vpop.f32.mrf.mxu0
      %v3676 = vadd.f32 %v3587, %v3675
      %v3677 = vpop.f32.mrf.mxu0
      %v3678 = vadd.f32 %v3589, %v3677
      %3679 = vmatmul.bf16.gmra.mxu0 %v1214
      %v3680 = vpop.f32.mrf.mxu0
      %v3681 = vadd.f32 %v3592, %v3680
      %v3682 = vpop.f32.mrf.mxu0
      %v3683 = vadd.f32 %v3594, %v3682
      %3684 = vmatmul.bf16.gmra.mxu0 %v1215
      %v3685 = vpop.f32.mrf.mxu0
      %v3686 = vadd.f32 %v3597, %v3685
      %v3687 = vpop.f32.mrf.mxu0
      %v3688 = vadd.f32 %v3599, %v3687
      %3689 = vmatmul.bf16.gmra.mxu0 %v1216
      %v3690 = vpop.f32.mrf.mxu0
      %v3691 = vadd.f32 %v3602, %v3690
      %v3692 = vpop.f32.mrf.mxu0
      %v3693 = vadd.f32 %v3604, %v3692
      %3694 = vmatmul.bf16.gmra.mxu0 %v1217
      %v3695 = vpop.f32.mrf.mxu0
      %v3696 = vadd.f32 %v3607, %v3695
      %v3697 = vpop.f32.mrf.mxu0
      %v3698 = vadd.f32 %v3609, %v3697
      %3699 = vmatmul.bf16.gmra.mxu0 %v1218
      %v3700 = vpop.f32.mrf.mxu0
      %v3701 = vadd.f32 %v3612, %v3700
      %v3702 = vpop.f32.mrf.mxu0
      %v3703 = vadd.f32 %v3614, %v3702
      %3704 = vmatmul.bf16.gmra.mxu0 %v1219
      %v3705 = vpop.f32.mrf.mxu0
      %v3706 = vadd.f32 %v3617, %v3705
      %v3707 = vpop.f32.mrf.mxu0
      %v3708 = vadd.f32 %v3619, %v3707
      %3709 = vmatmul.bf16.gmra.mxu0 %v1220
      %v3710 = vpop.f32.mrf.mxu0
      %v3711 = vadd.f32 %v3622, %v3710
      %v3712 = vpop.f32.mrf.mxu0
      %v3713 = vadd.f32 %v3624, %v3712
      %3714 = vmatmul.bf16.gmra.mxu0 %v1221
      %v3715 = vpop.f32.mrf.mxu0
      %v3716 = vadd.f32 %v3627, %v3715
      %v3717 = vpop.f32.mrf.mxu0
      %v3718 = vadd.f32 %v3629, %v3717
      %3719 = vmatmul.bf16.gmra.mxu0 %v1222
      %v3720 = vpop.f32.mrf.mxu0
      %v3721 = vadd.f32 %v3632, %v3720
      %v3722 = vpop.f32.mrf.mxu0
      %v3723 = vadd.f32 %v3634, %v3722
      %3724 = vmatmul.bf16.gmra.mxu0 %v1223
      %v3725 = vpop.f32.mrf.mxu0
      %v3726 = vadd.f32 %v3637, %v3725
      %v3727 = vpop.f32.mrf.mxu0
      %v3728 = vadd.f32 %v3639, %v3727
      %3729 = vmatmul.bf16.gmra.mxu0 %v1224
      %v3730 = vpop.f32.mrf.mxu0
      %v3731 = vadd.f32 %v3642, %v3730
      %v3732 = vpop.f32.mrf.mxu0
      %v3733 = vadd.f32 %v3644, %v3732
      %3734 = vmatmul.bf16.gmra.mxu0 %v1225
      %v3735 = vpop.f32.mrf.mxu0
      %v3736 = vadd.f32 %v3647, %v3735
      %v3737 = vpop.f32.mrf.mxu0
      %v3738 = vadd.f32 %v3649, %v3737
      %3739 = vmatmul.bf16.gmra.mxu0 %v1258
      %v3740 = vpop.f32.mrf.mxu0
      %v3741 = vadd.f32 %v3652, %v3740
      %v3742 = vpop.f32.mrf.mxu0
      %v3743 = vadd.f32 %v3654, %v3742
      %3744 = vmatmul.bf16.gmra.mxu0 %v1276
      %v3745 = vpop.f32.mrf.mxu0
      %v3746 = vadd.f32 %v3657, %v3745
      %v3747 = vpop.f32.mrf.mxu0
      %v3748 = vadd.f32 %v3659, %v3747
      %3749 = vdwg.mxu0
      %v3750 = vxor.u32 %v2870, 2147483648
      %v3751 = vxor.u32 %v2872, 2147483648
      %v3752 = vxor.u32 %v2875, 2147483648
      %v3753 = vxor.u32 %v2877, 2147483648
      %v3754 = vxor.u32 %v2880, 2147483648
      %v3755 = vxor.u32 %v2882, 2147483648
      %v3756 = vxor.u32 %v2885, 2147483648
      %v3757 = vxor.u32 %v2887, 2147483648
      %v3758 = vxor.u32 %v2890, 2147483648
      %v3759 = vxor.u32 %v2892, 2147483648
      %v3760 = vxor.u32 %v2895, 2147483648
      %v3761 = vxor.u32 %v2897, 2147483648
      %v3762 = vxor.u32 %v2900, 2147483648
      %v3763 = vxor.u32 %v2902, 2147483648
      %v3764 = vxor.u32 %v2905, 2147483648
      %v3765 = vxor.u32 %v2907, 2147483648
      %v3766 = vxor.u32 %v2910, 2147483648
      %v3767 = vxor.u32 %v2912, 2147483648
      %v3768 = vxor.u32 %v2915, 2147483648
      %v3769 = vxor.u32 %v2917, 2147483648
      %v3770 = vxor.u32 %v2920, 2147483648
      %v3771 = vxor.u32 %v2922, 2147483648
      %v3772 = vxor.u32 %v2925, 2147483648
      %v3773 = vxor.u32 %v2927, 2147483648
      %v3774 = vxor.u32 %v2930, 2147483648
      %v3775 = vxor.u32 %v2932, 2147483648
      %v3776 = vxor.u32 %v2935, 2147483648
      %v3777 = vxor.u32 %v2937, 2147483648
      %v3778 = vxor.u32 %v2940, 2147483648
      %v3779 = vxor.u32 %v2942, 2147483648
      %v3780 = vxor.u32 %v2945, 2147483648
      %v3781 = vxor.u32 %v2947, 2147483648
      %v3782 = vmul.f32 %v3750, 1.442695
      %v3783 = vpow.pop %v3782
      %v3784 = vmul.f32 %v3751, 1.442695
      %v3785 = vpow.pop %v3784
      %v3786 = vmul.f32 %v3752, 1.442695
      %v3787 = vpow.pop %v3786
      %v3788 = vmul.f32 %v3753, 1.442695
      %v3789 = vpow.pop %v3788
      %v3790 = vmul.f32 %v3754, 1.442695
      %v3791 = vpow.pop %v3790
      %v3792 = vmul.f32 %v3755, 1.442695
      %v3793 = vpow.pop %v3792
      %v3794 = vmul.f32 %v3756, 1.442695
      %v3795 = vpow.pop %v3794
      %v3796 = vmul.f32 %v3757, 1.442695
      %v3797 = vpow.pop %v3796
      %v3798 = vmul.f32 %v3758, 1.442695
      %v3799 = vpow.pop %v3798
      %v3800 = vmul.f32 %v3759, 1.442695
      %v3801 = vpow.pop %v3800
      %v3802 = vmul.f32 %v3760, 1.442695
      %v3803 = vpow.pop %v3802
      %v3804 = vmul.f32 %v3761, 1.442695
      %v3805 = vpow.pop %v3804
      %v3806 = vmul.f32 %v3762, 1.442695
      %v3807 = vpow.pop %v3806
      %v3808 = vmul.f32 %v3763, 1.442695
      %v3809 = vpow.pop %v3808
      %v3810 = vmul.f32 %v3764, 1.442695
      %v3811 = vpow.pop %v3810
      %v3812 = vmul.f32 %v3765, 1.442695
      %v3813 = vpow.pop %v3812
      %v3814 = vmul.f32 %v3766, 1.442695
      %v3815 = vpow.pop %v3814
      %v3816 = vmul.f32 %v3767, 1.442695
      %v3817 = vpow.pop %v3816
      %v3818 = vmul.f32 %v3768, 1.442695
      %v3819 = vpow.pop %v3818
      %v3820 = vmul.f32 %v3769, 1.442695
      %v3821 = vpow.pop %v3820
      %v3822 = vmul.f32 %v3770, 1.442695
      %v3823 = vpow.pop %v3822
      %v3824 = vmul.f32 %v3771, 1.442695
      %v3825 = vpow.pop %v3824
      %v3826 = vmul.f32 %v3772, 1.442695
      %v3827 = vpow.pop %v3826
      %v3828 = vmul.f32 %v3773, 1.442695
      %v3829 = vpow.pop %v3828
      %v3830 = vmul.f32 %v3774, 1.442695
      %v3831 = vpow.pop %v3830
      %v3832 = vmul.f32 %v3775, 1.442695
      %v3833 = vpow.pop %v3832
      %v3834 = vmul.f32 %v3776, 1.442695
      %v3835 = vpow.pop %v3834
      %v3836 = vmul.f32 %v3777, 1.442695
      %v3837 = vpow.pop %v3836
      %v3838 = vmul.f32 %v3778, 1.442695
      %v3839 = vpow.pop %v3838
      %v3840 = vmul.f32 %v3779, 1.442695
      %v3841 = vpow.pop %v3840
      %v3842 = vmul.f32 %v3780, 1.442695
      %v3843 = vpow.pop %v3842
      %v3844 = vmul.f32 %v3781, 1.442695
      %v3845 = vpow.pop %v3844
      %v3846 = vadd.f32 %v3783, 1.0
      %v3847 = vadd.f32 %v3785, 1.0
      %v3848 = vadd.f32 %v3787, 1.0
      %v3849 = vadd.f32 %v3789, 1.0
      %v3850 = vadd.f32 %v3791, 1.0
      %v3851 = vadd.f32 %v3793, 1.0
      %v3852 = vadd.f32 %v3795, 1.0
      %v3853 = vadd.f32 %v3797, 1.0
      %v3854 = vadd.f32 %v3799, 1.0
      %v3855 = vadd.f32 %v3801, 1.0
      %v3856 = vadd.f32 %v3803, 1.0
      %v3857 = vadd.f32 %v3805, 1.0
      %v3858 = vadd.f32 %v3807, 1.0
      %v3859 = vadd.f32 %v3809, 1.0
      %v3860 = vadd.f32 %v3811, 1.0
      %v3861 = vadd.f32 %v3813, 1.0
      %v3862 = vadd.f32 %v3815, 1.0
      %v3863 = vadd.f32 %v3817, 1.0
      %v3864 = vadd.f32 %v3819, 1.0
      %v3865 = vadd.f32 %v3821, 1.0
      %v3866 = vadd.f32 %v3823, 1.0
      %v3867 = vadd.f32 %v3825, 1.0
      %v3868 = vadd.f32 %v3827, 1.0
      %v3869 = vadd.f32 %v3829, 1.0
      %v3870 = vadd.f32 %v3831, 1.0
      %v3871 = vadd.f32 %v3833, 1.0
      %v3872 = vadd.f32 %v3835, 1.0
      %v3873 = vadd.f32 %v3837, 1.0
      %v3874 = vadd.f32 %v3839, 1.0
      %v3875 = vadd.f32 %v3841, 1.0
      %v3876 = vadd.f32 %v3843, 1.0
      %v3877 = vadd.f32 %v3845, 1.0
      %v3878 = vrcp.pop %v3846
      %v3879 = vmul.f32 %v3846, %v3878
      %v3880 = vsub.f32 1.0, %v3879
      %v3881 = vmul.f32 %v3878, %v3880
      %v3882 = vadd.f32 %v3878, %v3881
      %vm3883 = vweird.f32 %v3846
      %vm3884 = vweird.f32 %v3878
      %vm3885 = vmor %vm3883, %vm3884
      %v3886 = vsel %vm3885, %v3878, %v3882
      %v3887 = vand.u32 2147483647, %v3846
      %vm3888 = vcmp.eq.f32.partialorder %v3887, 8.507059e+37
      %v3889 = vand.u32 %v3846, 2147483648
      %v3890 = vor.u32 1.1754944e-38, %v3889
      %v3891 = vsel %vm3888, %v3890, %v3886
      %v3892 = vmul.f32 1.0, %v3891
      %v3893 = vrcp.pop %v3847
      %v3894 = vmul.f32 %v3847, %v3893
      %v3895 = vsub.f32 1.0, %v3894
      %v3896 = vmul.f32 %v3893, %v3895
      %v3897 = vadd.f32 %v3893, %v3896
      %vm3898 = vweird.f32 %v3847
      %vm3899 = vweird.f32 %v3893
      %vm3900 = vmor %vm3898, %vm3899
      %v3901 = vsel %vm3900, %v3893, %v3897
      %v3902 = vand.u32 2147483647, %v3847
      %vm3903 = vcmp.eq.f32.partialorder %v3902, 8.507059e+37
      %v3904 = vand.u32 %v3847, 2147483648
      %v3905 = vor.u32 1.1754944e-38, %v3904
      %v3906 = vsel %vm3903, %v3905, %v3901
      %v3907 = vmul.f32 1.0, %v3906
      %v3908 = vrcp.pop %v3848
      %v3909 = vmul.f32 %v3848, %v3908
      %v3910 = vsub.f32 1.0, %v3909
      %v3911 = vmul.f32 %v3908, %v3910
      %v3912 = vadd.f32 %v3908, %v3911
      %vm3913 = vweird.f32 %v3848
      %vm3914 = vweird.f32 %v3908
      %vm3915 = vmor %vm3913, %vm3914
      %v3916 = vsel %vm3915, %v3908, %v3912
      %v3917 = vand.u32 2147483647, %v3848
      %vm3918 = vcmp.eq.f32.partialorder %v3917, 8.507059e+37
      %v3919 = vand.u32 %v3848, 2147483648
      %v3920 = vor.u32 1.1754944e-38, %v3919
      %v3921 = vsel %vm3918, %v3920, %v3916
      %v3922 = vmul.f32 1.0, %v3921
      %v3923 = vrcp.pop %v3849
      %v3924 = vmul.f32 %v3849, %v3923
      %v3925 = vsub.f32 1.0, %v3924
      %v3926 = vmul.f32 %v3923, %v3925
      %v3927 = vadd.f32 %v3923, %v3926
      %vm3928 = vweird.f32 %v3849
      %vm3929 = vweird.f32 %v3923
      %vm3930 = vmor %vm3928, %vm3929
      %v3931 = vsel %vm3930, %v3923, %v3927
      %v3932 = vand.u32 2147483647, %v3849
      %vm3933 = vcmp.eq.f32.partialorder %v3932, 8.507059e+37
      %v3934 = vand.u32 %v3849, 2147483648
      %v3935 = vor.u32 1.1754944e-38, %v3934
      %v3936 = vsel %vm3933, %v3935, %v3931
      %v3937 = vmul.f32 1.0, %v3936
      %v3938 = vrcp.pop %v3850
      %v3939 = vmul.f32 %v3850, %v3938
      %v3940 = vsub.f32 1.0, %v3939
      %v3941 = vmul.f32 %v3938, %v3940
      %v3942 = vadd.f32 %v3938, %v3941
      %vm3943 = vweird.f32 %v3850
      %vm3944 = vweird.f32 %v3938
      %vm3945 = vmor %vm3943, %vm3944
      %v3946 = vsel %vm3945, %v3938, %v3942
      %v3947 = vand.u32 2147483647, %v3850
      %vm3948 = vcmp.eq.f32.partialorder %v3947, 8.507059e+37
      %v3949 = vand.u32 %v3850, 2147483648
      %v3950 = vor.u32 1.1754944e-38, %v3949
      %v3951 = vsel %vm3948, %v3950, %v3946
      %v3952 = vmul.f32 1.0, %v3951
      %v3953 = vrcp.pop %v3851
      %v3954 = vmul.f32 %v3851, %v3953
      %v3955 = vsub.f32 1.0, %v3954
      %v3956 = vmul.f32 %v3953, %v3955
      %v3957 = vadd.f32 %v3953, %v3956
      %vm3958 = vweird.f32 %v3851
      %vm3959 = vweird.f32 %v3953
      %vm3960 = vmor %vm3958, %vm3959
      %v3961 = vsel %vm3960, %v3953, %v3957
      %v3962 = vand.u32 2147483647, %v3851
      %vm3963 = vcmp.eq.f32.partialorder %v3962, 8.507059e+37
      %v3964 = vand.u32 %v3851, 2147483648
      %v3965 = vor.u32 1.1754944e-38, %v3964
      %v3966 = vsel %vm3963, %v3965, %v3961
      %v3967 = vmul.f32 1.0, %v3966
      %v3968 = vrcp.pop %v3852
      %v3969 = vmul.f32 %v3852, %v3968
      %v3970 = vsub.f32 1.0, %v3969
      %v3971 = vmul.f32 %v3968, %v3970
      %v3972 = vadd.f32 %v3968, %v3971
      %vm3973 = vweird.f32 %v3852
      %vm3974 = vweird.f32 %v3968
      %vm3975 = vmor %vm3973, %vm3974
      %v3976 = vsel %vm3975, %v3968, %v3972
      %v3977 = vand.u32 2147483647, %v3852
      %vm3978 = vcmp.eq.f32.partialorder %v3977, 8.507059e+37
      %v3979 = vand.u32 %v3852, 2147483648
      %v3980 = vor.u32 1.1754944e-38, %v3979
      %v3981 = vsel %vm3978, %v3980, %v3976
      %v3982 = vmul.f32 1.0, %v3981
      %v3983 = vrcp.pop %v3853
      %v3984 = vmul.f32 %v3853, %v3983
      %v3985 = vsub.f32 1.0, %v3984
      %v3986 = vmul.f32 %v3983, %v3985
      %v3987 = vadd.f32 %v3983, %v3986
      %vm3988 = vweird.f32 %v3853
      %vm3989 = vweird.f32 %v3983
      %vm3990 = vmor %vm3988, %vm3989
      %v3991 = vsel %vm3990, %v3983, %v3987
      %v3992 = vand.u32 2147483647, %v3853
      %vm3993 = vcmp.eq.f32.partialorder %v3992, 8.507059e+37
      %v3994 = vand.u32 %v3853, 2147483648
      %v3995 = vor.u32 1.1754944e-38, %v3994
      %v3996 = vsel %vm3993, %v3995, %v3991
      %v3997 = vmul.f32 1.0, %v3996
      %v3998 = vrcp.pop %v3854
      %v3999 = vmul.f32 %v3854, %v3998
      %v4000 = vsub.f32 1.0, %v3999
      %v4001 = vmul.f32 %v3998, %v4000
      %v4002 = vadd.f32 %v3998, %v4001
      %vm4003 = vweird.f32 %v3854
      %vm4004 = vweird.f32 %v3998
      %vm4005 = vmor %vm4003, %vm4004
      %v4006 = vsel %vm4005, %v3998, %v4002
      %v4007 = vand.u32 2147483647, %v3854
      %vm4008 = vcmp.eq.f32.partialorder %v4007, 8.507059e+37
      %v4009 = vand.u32 %v3854, 2147483648
      %v4010 = vor.u32 1.1754944e-38, %v4009
      %v4011 = vsel %vm4008, %v4010, %v4006
      %v4012 = vmul.f32 1.0, %v4011
      %v4013 = vrcp.pop %v3855
      %v4014 = vmul.f32 %v3855, %v4013
      %v4015 = vsub.f32 1.0, %v4014
      %v4016 = vmul.f32 %v4013, %v4015
      %v4017 = vadd.f32 %v4013, %v4016
      %vm4018 = vweird.f32 %v3855
      %vm4019 = vweird.f32 %v4013
      %vm4020 = vmor %vm4018, %vm4019
      %v4021 = vsel %vm4020, %v4013, %v4017
      %v4022 = vand.u32 2147483647, %v3855
      %vm4023 = vcmp.eq.f32.partialorder %v4022, 8.507059e+37
      %v4024 = vand.u32 %v3855, 2147483648
      %v4025 = vor.u32 1.1754944e-38, %v4024
      %v4026 = vsel %vm4023, %v4025, %v4021
      %v4027 = vmul.f32 1.0, %v4026
      %v4028 = vrcp.pop %v3856
      %v4029 = vmul.f32 %v3856, %v4028
      %v4030 = vsub.f32 1.0, %v4029
      %v4031 = vmul.f32 %v4028, %v4030
      %v4032 = vadd.f32 %v4028, %v4031
      %vm4033 = vweird.f32 %v3856
      %vm4034 = vweird.f32 %v4028
      %vm4035 = vmor %vm4033, %vm4034
      %v4036 = vsel %vm4035, %v4028, %v4032
      %v4037 = vand.u32 2147483647, %v3856
      %vm4038 = vcmp.eq.f32.partialorder %v4037, 8.507059e+37
      %v4039 = vand.u32 %v3856, 2147483648
      %v4040 = vor.u32 1.1754944e-38, %v4039
      %v4041 = vsel %vm4038, %v4040, %v4036
      %v4042 = vmul.f32 1.0, %v4041
      %v4043 = vrcp.pop %v3857
      %v4044 = vmul.f32 %v3857, %v4043
      %v4045 = vsub.f32 1.0, %v4044
      %v4046 = vmul.f32 %v4043, %v4045
      %v4047 = vadd.f32 %v4043, %v4046
      %vm4048 = vweird.f32 %v3857
      %vm4049 = vweird.f32 %v4043
      %vm4050 = vmor %vm4048, %vm4049
      %v4051 = vsel %vm4050, %v4043, %v4047
      %v4052 = vand.u32 2147483647, %v3857
      %vm4053 = vcmp.eq.f32.partialorder %v4052, 8.507059e+37
      %v4054 = vand.u32 %v3857, 2147483648
      %v4055 = vor.u32 1.1754944e-38, %v4054
      %v4056 = vsel %vm4053, %v4055, %v4051
      %v4057 = vmul.f32 1.0, %v4056
      %v4058 = vrcp.pop %v3858
      %v4059 = vmul.f32 %v3858, %v4058
      %v4060 = vsub.f32 1.0, %v4059
      %v4061 = vmul.f32 %v4058, %v4060
      %v4062 = vadd.f32 %v4058, %v4061
      %vm4063 = vweird.f32 %v3858
      %vm4064 = vweird.f32 %v4058
      %vm4065 = vmor %vm4063, %vm4064
      %v4066 = vsel %vm4065, %v4058, %v4062
      %v4067 = vand.u32 2147483647, %v3858
      %vm4068 = vcmp.eq.f32.partialorder %v4067, 8.507059e+37
      %v4069 = vand.u32 %v3858, 2147483648
      %v4070 = vor.u32 1.1754944e-38, %v4069
      %v4071 = vsel %vm4068, %v4070, %v4066
      %v4072 = vmul.f32 1.0, %v4071
      %v4073 = vrcp.pop %v3859
      %v4074 = vmul.f32 %v3859, %v4073
      %v4075 = vsub.f32 1.0, %v4074
      %v4076 = vmul.f32 %v4073, %v4075
      %v4077 = vadd.f32 %v4073, %v4076
      %vm4078 = vweird.f32 %v3859
      %vm4079 = vweird.f32 %v4073
      %vm4080 = vmor %vm4078, %vm4079
      %v4081 = vsel %vm4080, %v4073, %v4077
      %v4082 = vand.u32 2147483647, %v3859
      %vm4083 = vcmp.eq.f32.partialorder %v4082, 8.507059e+37
      %v4084 = vand.u32 %v3859, 2147483648
      %v4085 = vor.u32 1.1754944e-38, %v4084
      %v4086 = vsel %vm4083, %v4085, %v4081
      %v4087 = vmul.f32 1.0, %v4086
      %v4088 = vrcp.pop %v3860
      %v4089 = vmul.f32 %v3860, %v4088
      %v4090 = vsub.f32 1.0, %v4089
      %v4091 = vmul.f32 %v4088, %v4090
      %v4092 = vadd.f32 %v4088, %v4091
      %vm4093 = vweird.f32 %v3860
      %vm4094 = vweird.f32 %v4088
      %vm4095 = vmor %vm4093, %vm4094
      %v4096 = vsel %vm4095, %v4088, %v4092
      %v4097 = vand.u32 2147483647, %v3860
      %vm4098 = vcmp.eq.f32.partialorder %v4097, 8.507059e+37
      %v4099 = vand.u32 %v3860, 2147483648
      %v4100 = vor.u32 1.1754944e-38, %v4099
      %v4101 = vsel %vm4098, %v4100, %v4096
      %v4102 = vmul.f32 1.0, %v4101
      %v4103 = vrcp.pop %v3861
      %v4104 = vmul.f32 %v3861, %v4103
      %v4105 = vsub.f32 1.0, %v4104
      %v4106 = vmul.f32 %v4103, %v4105
      %v4107 = vadd.f32 %v4103, %v4106
      %vm4108 = vweird.f32 %v3861
      %vm4109 = vweird.f32 %v4103
      %vm4110 = vmor %vm4108, %vm4109
      %v4111 = vsel %vm4110, %v4103, %v4107
      %v4112 = vand.u32 2147483647, %v3861
      %vm4113 = vcmp.eq.f32.partialorder %v4112, 8.507059e+37
      %v4114 = vand.u32 %v3861, 2147483648
      %v4115 = vor.u32 1.1754944e-38, %v4114
      %v4116 = vsel %vm4113, %v4115, %v4111
      %v4117 = vmul.f32 1.0, %v4116
      %v4118 = vrcp.pop %v3862
      %v4119 = vmul.f32 %v3862, %v4118
      %v4120 = vsub.f32 1.0, %v4119
      %v4121 = vmul.f32 %v4118, %v4120
      %v4122 = vadd.f32 %v4118, %v4121
      %vm4123 = vweird.f32 %v3862
      %vm4124 = vweird.f32 %v4118
      %vm4125 = vmor %vm4123, %vm4124
      %v4126 = vsel %vm4125, %v4118, %v4122
      %v4127 = vand.u32 2147483647, %v3862
      %vm4128 = vcmp.eq.f32.partialorder %v4127, 8.507059e+37
      %v4129 = vand.u32 %v3862, 2147483648
      %v4130 = vor.u32 1.1754944e-38, %v4129
      %v4131 = vsel %vm4128, %v4130, %v4126
      %v4132 = vmul.f32 1.0, %v4131
      %v4133 = vrcp.pop %v3863
      %v4134 = vmul.f32 %v3863, %v4133
      %v4135 = vsub.f32 1.0, %v4134
      %v4136 = vmul.f32 %v4133, %v4135
      %v4137 = vadd.f32 %v4133, %v4136
      %vm4138 = vweird.f32 %v3863
      %vm4139 = vweird.f32 %v4133
      %vm4140 = vmor %vm4138, %vm4139
      %v4141 = vsel %vm4140, %v4133, %v4137
      %v4142 = vand.u32 2147483647, %v3863
      %vm4143 = vcmp.eq.f32.partialorder %v4142, 8.507059e+37
      %v4144 = vand.u32 %v3863, 2147483648
      %v4145 = vor.u32 1.1754944e-38, %v4144
      %v4146 = vsel %vm4143, %v4145, %v4141
      %v4147 = vmul.f32 1.0, %v4146
      %v4148 = vrcp.pop %v3864
      %v4149 = vmul.f32 %v3864, %v4148
      %v4150 = vsub.f32 1.0, %v4149
      %v4151 = vmul.f32 %v4148, %v4150
      %v4152 = vadd.f32 %v4148, %v4151
      %vm4153 = vweird.f32 %v3864
      %vm4154 = vweird.f32 %v4148
      %vm4155 = vmor %vm4153, %vm4154
      %v4156 = vsel %vm4155, %v4148, %v4152
      %v4157 = vand.u32 2147483647, %v3864
      %vm4158 = vcmp.eq.f32.partialorder %v4157, 8.507059e+37
      %v4159 = vand.u32 %v3864, 2147483648
      %v4160 = vor.u32 1.1754944e-38, %v4159
      %v4161 = vsel %vm4158, %v4160, %v4156
      %v4162 = vmul.f32 1.0, %v4161
      %v4163 = vrcp.pop %v3865
      %v4164 = vmul.f32 %v3865, %v4163
      %v4165 = vsub.f32 1.0, %v4164
      %v4166 = vmul.f32 %v4163, %v4165
      %v4167 = vadd.f32 %v4163, %v4166
      %vm4168 = vweird.f32 %v3865
      %vm4169 = vweird.f32 %v4163
      %vm4170 = vmor %vm4168, %vm4169
      %v4171 = vsel %vm4170, %v4163, %v4167
      %v4172 = vand.u32 2147483647, %v3865
      %vm4173 = vcmp.eq.f32.partialorder %v4172, 8.507059e+37
      %v4174 = vand.u32 %v3865, 2147483648
      %v4175 = vor.u32 1.1754944e-38, %v4174
      %v4176 = vsel %vm4173, %v4175, %v4171
      %v4177 = vmul.f32 1.0, %v4176
      %v4178 = vrcp.pop %v3866
      %v4179 = vmul.f32 %v3866, %v4178
      %v4180 = vsub.f32 1.0, %v4179
      %v4181 = vmul.f32 %v4178, %v4180
      %v4182 = vadd.f32 %v4178, %v4181
      %vm4183 = vweird.f32 %v3866
      %vm4184 = vweird.f32 %v4178
      %vm4185 = vmor %vm4183, %vm4184
      %v4186 = vsel %vm4185, %v4178, %v4182
      %v4187 = vand.u32 2147483647, %v3866
      %vm4188 = vcmp.eq.f32.partialorder %v4187, 8.507059e+37
      %v4189 = vand.u32 %v3866, 2147483648
      %v4190 = vor.u32 1.1754944e-38, %v4189
      %v4191 = vsel %vm4188, %v4190, %v4186
      %v4192 = vmul.f32 1.0, %v4191
      %v4193 = vrcp.pop %v3867
      %v4194 = vmul.f32 %v3867, %v4193
      %v4195 = vsub.f32 1.0, %v4194
      %v4196 = vmul.f32 %v4193, %v4195
      %v4197 = vadd.f32 %v4193, %v4196
      %vm4198 = vweird.f32 %v3867
      %vm4199 = vweird.f32 %v4193
      %vm4200 = vmor %vm4198, %vm4199
      %v4201 = vsel %vm4200, %v4193, %v4197
      %v4202 = vand.u32 2147483647, %v3867
      %vm4203 = vcmp.eq.f32.partialorder %v4202, 8.507059e+37
      %v4204 = vand.u32 %v3867, 2147483648
      %v4205 = vor.u32 1.1754944e-38, %v4204
      %v4206 = vsel %vm4203, %v4205, %v4201
      %v4207 = vmul.f32 1.0, %v4206
      %v4208 = vrcp.pop %v3868
      %v4209 = vmul.f32 %v3868, %v4208
      %v4210 = vsub.f32 1.0, %v4209
      %v4211 = vmul.f32 %v4208, %v4210
      %v4212 = vadd.f32 %v4208, %v4211
      %vm4213 = vweird.f32 %v3868
      %vm4214 = vweird.f32 %v4208
      %vm4215 = vmor %vm4213, %vm4214
      %v4216 = vsel %vm4215, %v4208, %v4212
      %v4217 = vand.u32 2147483647, %v3868
      %vm4218 = vcmp.eq.f32.partialorder %v4217, 8.507059e+37
      %v4219 = vand.u32 %v3868, 2147483648
      %v4220 = vor.u32 1.1754944e-38, %v4219
      %v4221 = vsel %vm4218, %v4220, %v4216
      %v4222 = vmul.f32 1.0, %v4221
      %v4223 = vrcp.pop %v3869
      %v4224 = vmul.f32 %v3869, %v4223
      %v4225 = vsub.f32 1.0, %v4224
      %v4226 = vmul.f32 %v4223, %v4225
      %v4227 = vadd.f32 %v4223, %v4226
      %vm4228 = vweird.f32 %v3869
      %vm4229 = vweird.f32 %v4223
      %vm4230 = vmor %vm4228, %vm4229
      %v4231 = vsel %vm4230, %v4223, %v4227
      %v4232 = vand.u32 2147483647, %v3869
      %vm4233 = vcmp.eq.f32.partialorder %v4232, 8.507059e+37
      %v4234 = vand.u32 %v3869, 2147483648
      %v4235 = vor.u32 1.1754944e-38, %v4234
      %v4236 = vsel %vm4233, %v4235, %v4231
      %v4237 = vmul.f32 1.0, %v4236
      %v4238 = vrcp.pop %v3870
      %v4239 = vmul.f32 %v3870, %v4238
      %v4240 = vsub.f32 1.0, %v4239
      %v4241 = vmul.f32 %v4238, %v4240
      %v4242 = vadd.f32 %v4238, %v4241
      %vm4243 = vweird.f32 %v3870
      %vm4244 = vweird.f32 %v4238
      %vm4245 = vmor %vm4243, %vm4244
      %v4246 = vsel %vm4245, %v4238, %v4242
      %v4247 = vand.u32 2147483647, %v3870
      %vm4248 = vcmp.eq.f32.partialorder %v4247, 8.507059e+37
      %v4249 = vand.u32 %v3870, 2147483648
      %v4250 = vor.u32 1.1754944e-38, %v4249
      %v4251 = vsel %vm4248, %v4250, %v4246
      %v4252 = vmul.f32 1.0, %v4251
      %v4253 = vrcp.pop %v3871
      %v4254 = vmul.f32 %v3871, %v4253
      %v4255 = vsub.f32 1.0, %v4254
      %v4256 = vmul.f32 %v4253, %v4255
      %v4257 = vadd.f32 %v4253, %v4256
      %vm4258 = vweird.f32 %v3871
      %vm4259 = vweird.f32 %v4253
      %vm4260 = vmor %vm4258, %vm4259
      %v4261 = vsel %vm4260, %v4253, %v4257
      %v4262 = vand.u32 2147483647, %v3871
      %vm4263 = vcmp.eq.f32.partialorder %v4262, 8.507059e+37
      %v4264 = vand.u32 %v3871, 2147483648
      %v4265 = vor.u32 1.1754944e-38, %v4264
      %v4266 = vsel %vm4263, %v4265, %v4261
      %v4267 = vmul.f32 1.0, %v4266
      %v4268 = vrcp.pop %v3872
      %v4269 = vmul.f32 %v3872, %v4268
      %v4270 = vsub.f32 1.0, %v4269
      %v4271 = vmul.f32 %v4268, %v4270
      %v4272 = vadd.f32 %v4268, %v4271
      %vm4273 = vweird.f32 %v3872
      %vm4274 = vweird.f32 %v4268
      %vm4275 = vmor %vm4273, %vm4274
      %v4276 = vsel %vm4275, %v4268, %v4272
      %v4277 = vand.u32 2147483647, %v3872
      %vm4278 = vcmp.eq.f32.partialorder %v4277, 8.507059e+37
      %v4279 = vand.u32 %v3872, 2147483648
      %v4280 = vor.u32 1.1754944e-38, %v4279
      %v4281 = vsel %vm4278, %v4280, %v4276
      %v4282 = vmul.f32 1.0, %v4281
      %v4283 = vrcp.pop %v3873
      %v4284 = vmul.f32 %v3873, %v4283
      %v4285 = vsub.f32 1.0, %v4284
      %v4286 = vmul.f32 %v4283, %v4285
      %v4287 = vadd.f32 %v4283, %v4286
      %vm4288 = vweird.f32 %v3873
      %vm4289 = vweird.f32 %v4283
      %vm4290 = vmor %vm4288, %vm4289
      %v4291 = vsel %vm4290, %v4283, %v4287
      %v4292 = vand.u32 2147483647, %v3873
      %vm4293 = vcmp.eq.f32.partialorder %v4292, 8.507059e+37
      %v4294 = vand.u32 %v3873, 2147483648
      %v4295 = vor.u32 1.1754944e-38, %v4294
      %v4296 = vsel %vm4293, %v4295, %v4291
      %v4297 = vmul.f32 1.0, %v4296
      %v4298 = vrcp.pop %v3874
      %v4299 = vmul.f32 %v3874, %v4298
      %v4300 = vsub.f32 1.0, %v4299
      %v4301 = vmul.f32 %v4298, %v4300
      %v4302 = vadd.f32 %v4298, %v4301
      %vm4303 = vweird.f32 %v3874
      %vm4304 = vweird.f32 %v4298
      %vm4305 = vmor %vm4303, %vm4304
      %v4306 = vsel %vm4305, %v4298, %v4302
      %v4307 = vand.u32 2147483647, %v3874
      %vm4308 = vcmp.eq.f32.partialorder %v4307, 8.507059e+37
      %v4309 = vand.u32 %v3874, 2147483648
      %v4310 = vor.u32 1.1754944e-38, %v4309
      %v4311 = vsel %vm4308, %v4310, %v4306
      %v4312 = vmul.f32 1.0, %v4311
      %v4313 = vrcp.pop %v3875
      %v4314 = vmul.f32 %v3875, %v4313
      %v4315 = vsub.f32 1.0, %v4314
      %v4316 = vmul.f32 %v4313, %v4315
      %v4317 = vadd.f32 %v4313, %v4316
      %vm4318 = vweird.f32 %v3875
      %vm4319 = vweird.f32 %v4313
      %vm4320 = vmor %vm4318, %vm4319
      %v4321 = vsel %vm4320, %v4313, %v4317
      %v4322 = vand.u32 2147483647, %v3875
      %vm4323 = vcmp.eq.f32.partialorder %v4322, 8.507059e+37
      %v4324 = vand.u32 %v3875, 2147483648
      %v4325 = vor.u32 1.1754944e-38, %v4324
      %v4326 = vsel %vm4323, %v4325, %v4321
      %v4327 = vmul.f32 1.0, %v4326
      %v4328 = vrcp.pop %v3876
      %v4329 = vmul.f32 %v3876, %v4328
      %v4330 = vsub.f32 1.0, %v4329
      %v4331 = vmul.f32 %v4328, %v4330
      %v4332 = vadd.f32 %v4328, %v4331
      %vm4333 = vweird.f32 %v3876
      %vm4334 = vweird.f32 %v4328
      %vm4335 = vmor %vm4333, %vm4334
      %v4336 = vsel %vm4335, %v4328, %v4332
      %v4337 = vand.u32 2147483647, %v3876
      %vm4338 = vcmp.eq.f32.partialorder %v4337, 8.507059e+37
      %v4339 = vand.u32 %v3876, 2147483648
      %v4340 = vor.u32 1.1754944e-38, %v4339
      %v4341 = vsel %vm4338, %v4340, %v4336
      %v4342 = vmul.f32 1.0, %v4341
      %v4343 = vrcp.pop %v3877
      %v4344 = vmul.f32 %v3877, %v4343
      %v4345 = vsub.f32 1.0, %v4344
      %v4346 = vmul.f32 %v4343, %v4345
      %v4347 = vadd.f32 %v4343, %v4346
      %vm4348 = vweird.f32 %v3877
      %vm4349 = vweird.f32 %v4343
      %vm4350 = vmor %vm4348, %vm4349
      %v4351 = vsel %vm4350, %v4343, %v4347
      %v4352 = vand.u32 2147483647, %v3877
      %vm4353 = vcmp.eq.f32.partialorder %v4352, 8.507059e+37
      %v4354 = vand.u32 %v3877, 2147483648
      %v4355 = vor.u32 1.1754944e-38, %v4354
      %v4356 = vsel %vm4353, %v4355, %v4351
      %v4357 = vmul.f32 1.0, %v4356
      %v4358 = vtanh.pop %v2870
      %v4359 = vtanh.pop %v2872
      %v4360 = vtanh.pop %v2875
      %v4361 = vtanh.pop %v2877
      %v4362 = vtanh.pop %v2880
      %v4363 = vtanh.pop %v2882
      %v4364 = vtanh.pop %v2885
      %v4365 = vtanh.pop %v2887
      %v4366 = vtanh.pop %v2890
      %v4367 = vtanh.pop %v2892
      %v4368 = vtanh.pop %v2895
      %v4369 = vtanh.pop %v2897
      %v4370 = vtanh.pop %v2900
      %v4371 = vtanh.pop %v2902
      %v4372 = vtanh.pop %v2905
      %v4373 = vtanh.pop %v2907
      %v4374 = vtanh.pop %v2910
      %v4375 = vtanh.pop %v2912
      %v4376 = vtanh.pop %v2915
      %v4377 = vtanh.pop %v2917
      %v4378 = vtanh.pop %v2920
      %v4379 = vtanh.pop %v2922
      %v4380 = vtanh.pop %v2925
      %v4381 = vtanh.pop %v2927
      %v4382 = vtanh.pop %v2930
      %v4383 = vtanh.pop %v2932
      %v4384 = vtanh.pop %v2935
      %v4385 = vtanh.pop %v2937
      %v4386 = vtanh.pop %v2940
      %v4387 = vtanh.pop %v2942
      %v4388 = vtanh.pop %v2945
      %v4389 = vtanh.pop %v2947
      %v4390 = vxor.u32 %v3671, 2147483648
      %v4391 = vxor.u32 %v3673, 2147483648
      %v4392 = vxor.u32 %v3676, 2147483648
      %v4393 = vxor.u32 %v3678, 2147483648
      %v4394 = vxor.u32 %v3681, 2147483648
      %v4395 = vxor.u32 %v3683, 2147483648
      %v4396 = vxor.u32 %v3686, 2147483648
      %v4397 = vxor.u32 %v3688, 2147483648
      %v4398 = vxor.u32 %v3691, 2147483648
      %v4399 = vxor.u32 %v3693, 2147483648
      %v4400 = vxor.u32 %v3696, 2147483648
      %v4401 = vxor.u32 %v3698, 2147483648
      %v4402 = vxor.u32 %v3701, 2147483648
      %v4403 = vxor.u32 %v3703, 2147483648
      %v4404 = vxor.u32 %v3706, 2147483648
      %v4405 = vxor.u32 %v3708, 2147483648
      %v4406 = vxor.u32 %v3711, 2147483648
      %v4407 = vxor.u32 %v3713, 2147483648
      %v4408 = vxor.u32 %v3716, 2147483648
      %v4409 = vxor.u32 %v3718, 2147483648
      %v4410 = vxor.u32 %v3721, 2147483648
      %v4411 = vxor.u32 %v3723, 2147483648
      %v4412 = vxor.u32 %v3726, 2147483648
      %v4413 = vxor.u32 %v3728, 2147483648
      %v4414 = vxor.u32 %v3731, 2147483648
      %v4415 = vxor.u32 %v3733, 2147483648
      %v4416 = vxor.u32 %v3736, 2147483648
      %v4417 = vxor.u32 %v3738, 2147483648
      %v4418 = vxor.u32 %v3741, 2147483648
      %v4419 = vxor.u32 %v3743, 2147483648
      %v4420 = vxor.u32 %v3746, 2147483648
      %v4421 = vxor.u32 %v3748, 2147483648
      %v4422 = vmul.f32 %v4390, 1.442695
      %v4423 = vpow.pop %v4422
      %v4424 = vmul.f32 %v4391, 1.442695
      %v4425 = vpow.pop %v4424
      %v4426 = vmul.f32 %v4392, 1.442695
      %v4427 = vpow.pop %v4426
      %v4428 = vmul.f32 %v4393, 1.442695
      %v4429 = vpow.pop %v4428
      %v4430 = vmul.f32 %v4394, 1.442695
      %v4431 = vpow.pop %v4430
      %v4432 = vmul.f32 %v4395, 1.442695
      %v4433 = vpow.pop %v4432
      %v4434 = vmul.f32 %v4396, 1.442695
      %v4435 = vpow.pop %v4434
      %v4436 = vmul.f32 %v4397, 1.442695
      %v4437 = vpow.pop %v4436
      %v4438 = vmul.f32 %v4398, 1.442695
      %v4439 = vpow.pop %v4438
      %v4440 = vmul.f32 %v4399, 1.442695
      %v4441 = vpow.pop %v4440
      %v4442 = vmul.f32 %v4400, 1.442695
      %v4443 = vpow.pop %v4442
      %v4444 = vmul.f32 %v4401, 1.442695
      %v4445 = vpow.pop %v4444
      %v4446 = vmul.f32 %v4402, 1.442695
      %v4447 = vpow.pop %v4446
      %v4448 = vmul.f32 %v4403, 1.442695
      %v4449 = vpow.pop %v4448
      %v4450 = vmul.f32 %v4404, 1.442695
      %v4451 = vpow.pop %v4450
      %v4452 = vmul.f32 %v4405, 1.442695
      %v4453 = vpow.pop %v4452
      %v4454 = vmul.f32 %v4406, 1.442695
      %v4455 = vpow.pop %v4454
      %v4456 = vmul.f32 %v4407, 1.442695
      %v4457 = vpow.pop %v4456
      %v4458 = vmul.f32 %v4408, 1.442695
      %v4459 = vpow.pop %v4458
      %v4460 = vmul.f32 %v4409, 1.442695
      %v4461 = vpow.pop %v4460
      %v4462 = vmul.f32 %v4410, 1.442695
      %v4463 = vpow.pop %v4462
      %v4464 = vmul.f32 %v4411, 1.442695
      %v4465 = vpow.pop %v4464
      %v4466 = vmul.f32 %v4412, 1.442695
      %v4467 = vpow.pop %v4466
      %v4468 = vmul.f32 %v4413, 1.442695
      %v4469 = vpow.pop %v4468
      %v4470 = vmul.f32 %v4414, 1.442695
      %v4471 = vpow.pop %v4470
      %v4472 = vmul.f32 %v4415, 1.442695
      %v4473 = vpow.pop %v4472
      %v4474 = vmul.f32 %v4416, 1.442695
      %v4475 = vpow.pop %v4474
      %v4476 = vmul.f32 %v4417, 1.442695
      %v4477 = vpow.pop %v4476
      %v4478 = vmul.f32 %v4418, 1.442695
      %v4479 = vpow.pop %v4478
      %v4480 = vmul.f32 %v4419, 1.442695
      %v4481 = vpow.pop %v4480
      %v4482 = vmul.f32 %v4420, 1.442695
      %v4483 = vpow.pop %v4482
      %v4484 = vmul.f32 %v4421, 1.442695
      %v4485 = vpow.pop %v4484
      %v4486 = vadd.f32 %v4423, 1.0
      %v4487 = vadd.f32 %v4425, 1.0
      %v4488 = vadd.f32 %v4427, 1.0
      %v4489 = vadd.f32 %v4429, 1.0
      %v4490 = vadd.f32 %v4431, 1.0
      %v4491 = vadd.f32 %v4433, 1.0
      %v4492 = vadd.f32 %v4435, 1.0
      %v4493 = vadd.f32 %v4437, 1.0
      %v4494 = vadd.f32 %v4439, 1.0
      %v4495 = vadd.f32 %v4441, 1.0
      %v4496 = vadd.f32 %v4443, 1.0
      %v4497 = vadd.f32 %v4445, 1.0
      %v4498 = vadd.f32 %v4447, 1.0
      %v4499 = vadd.f32 %v4449, 1.0
      %v4500 = vadd.f32 %v4451, 1.0
      %v4501 = vadd.f32 %v4453, 1.0
      %v4502 = vadd.f32 %v4455, 1.0
      %v4503 = vadd.f32 %v4457, 1.0
      %v4504 = vadd.f32 %v4459, 1.0
      %v4505 = vadd.f32 %v4461, 1.0
      %v4506 = vadd.f32 %v4463, 1.0
      %v4507 = vadd.f32 %v4465, 1.0
      %v4508 = vadd.f32 %v4467, 1.0
      %v4509 = vadd.f32 %v4469, 1.0
      %v4510 = vadd.f32 %v4471, 1.0
      %v4511 = vadd.f32 %v4473, 1.0
      %v4512 = vadd.f32 %v4475, 1.0
      %v4513 = vadd.f32 %v4477, 1.0
      %v4514 = vadd.f32 %v4479, 1.0
      %v4515 = vadd.f32 %v4481, 1.0
      %v4516 = vadd.f32 %v4483, 1.0
      %v4517 = vadd.f32 %v4485, 1.0
      %v4518 = vrcp.pop %v4486
      %v4519 = vmul.f32 %v4486, %v4518
      %v4520 = vsub.f32 1.0, %v4519
      %v4521 = vmul.f32 %v4518, %v4520
      %v4522 = vadd.f32 %v4518, %v4521
      %vm4523 = vweird.f32 %v4486
      %vm4524 = vweird.f32 %v4518
      %vm4525 = vmor %vm4523, %vm4524
      %v4526 = vsel %vm4525, %v4518, %v4522
      %v4527 = vand.u32 2147483647, %v4486
      %vm4528 = vcmp.eq.f32.partialorder %v4527, 8.507059e+37
      %v4529 = vand.u32 %v4486, 2147483648
      %v4530 = vor.u32 1.1754944e-38, %v4529
      %v4531 = vsel %vm4528, %v4530, %v4526
      %v4532 = vmul.f32 1.0, %v4531
      %v4533 = vrcp.pop %v4487
      %v4534 = vmul.f32 %v4487, %v4533
      %v4535 = vsub.f32 1.0, %v4534
      %v4536 = vmul.f32 %v4533, %v4535
      %v4537 = vadd.f32 %v4533, %v4536
      %vm4538 = vweird.f32 %v4487
      %vm4539 = vweird.f32 %v4533
      %vm4540 = vmor %vm4538, %vm4539
      %v4541 = vsel %vm4540, %v4533, %v4537
      %v4542 = vand.u32 2147483647, %v4487
      %vm4543 = vcmp.eq.f32.partialorder %v4542, 8.507059e+37
      %v4544 = vand.u32 %v4487, 2147483648
      %v4545 = vor.u32 1.1754944e-38, %v4544
      %v4546 = vsel %vm4543, %v4545, %v4541
      %v4547 = vmul.f32 1.0, %v4546
      %v4548 = vrcp.pop %v4488
      %v4549 = vmul.f32 %v4488, %v4548
      %v4550 = vsub.f32 1.0, %v4549
      %v4551 = vmul.f32 %v4548, %v4550
      %v4552 = vadd.f32 %v4548, %v4551
      %vm4553 = vweird.f32 %v4488
      %vm4554 = vweird.f32 %v4548
      %vm4555 = vmor %vm4553, %vm4554
      %v4556 = vsel %vm4555, %v4548, %v4552
      %v4557 = vand.u32 2147483647, %v4488
      %vm4558 = vcmp.eq.f32.partialorder %v4557, 8.507059e+37
      %v4559 = vand.u32 %v4488, 2147483648
      %v4560 = vor.u32 1.1754944e-38, %v4559
      %v4561 = vsel %vm4558, %v4560, %v4556
      %v4562 = vmul.f32 1.0, %v4561
      %v4563 = vrcp.pop %v4489
      %v4564 = vmul.f32 %v4489, %v4563
      %v4565 = vsub.f32 1.0, %v4564
      %v4566 = vmul.f32 %v4563, %v4565
      %v4567 = vadd.f32 %v4563, %v4566
      %vm4568 = vweird.f32 %v4489
      %vm4569 = vweird.f32 %v4563
      %vm4570 = vmor %vm4568, %vm4569
      %v4571 = vsel %vm4570, %v4563, %v4567
      %v4572 = vand.u32 2147483647, %v4489
      %vm4573 = vcmp.eq.f32.partialorder %v4572, 8.507059e+37
      %v4574 = vand.u32 %v4489, 2147483648
      %v4575 = vor.u32 1.1754944e-38, %v4574
      %v4576 = vsel %vm4573, %v4575, %v4571
      %v4577 = vmul.f32 1.0, %v4576
      %v4578 = vrcp.pop %v4490
      %v4579 = vmul.f32 %v4490, %v4578
      %v4580 = vsub.f32 1.0, %v4579
      %v4581 = vmul.f32 %v4578, %v4580
      %v4582 = vadd.f32 %v4578, %v4581
      %vm4583 = vweird.f32 %v4490
      %vm4584 = vweird.f32 %v4578
      %vm4585 = vmor %vm4583, %vm4584
      %v4586 = vsel %vm4585, %v4578, %v4582
      %v4587 = vand.u32 2147483647, %v4490
      %vm4588 = vcmp.eq.f32.partialorder %v4587, 8.507059e+37
      %v4589 = vand.u32 %v4490, 2147483648
      %v4590 = vor.u32 1.1754944e-38, %v4589
      %v4591 = vsel %vm4588, %v4590, %v4586
      %v4592 = vmul.f32 1.0, %v4591
      %v4593 = vrcp.pop %v4491
      %v4594 = vmul.f32 %v4491, %v4593
      %v4595 = vsub.f32 1.0, %v4594
      %v4596 = vmul.f32 %v4593, %v4595
      %v4597 = vadd.f32 %v4593, %v4596
      %vm4598 = vweird.f32 %v4491
      %vm4599 = vweird.f32 %v4593
      %vm4600 = vmor %vm4598, %vm4599
      %v4601 = vsel %vm4600, %v4593, %v4597
      %v4602 = vand.u32 2147483647, %v4491
      %vm4603 = vcmp.eq.f32.partialorder %v4602, 8.507059e+37
      %v4604 = vand.u32 %v4491, 2147483648
      %v4605 = vor.u32 1.1754944e-38, %v4604
      %v4606 = vsel %vm4603, %v4605, %v4601
      %v4607 = vmul.f32 1.0, %v4606
      %v4608 = vrcp.pop %v4492
      %v4609 = vmul.f32 %v4492, %v4608
      %v4610 = vsub.f32 1.0, %v4609
      %v4611 = vmul.f32 %v4608, %v4610
      %v4612 = vadd.f32 %v4608, %v4611
      %vm4613 = vweird.f32 %v4492
      %vm4614 = vweird.f32 %v4608
      %vm4615 = vmor %vm4613, %vm4614
      %v4616 = vsel %vm4615, %v4608, %v4612
      %v4617 = vand.u32 2147483647, %v4492
      %vm4618 = vcmp.eq.f32.partialorder %v4617, 8.507059e+37
      %v4619 = vand.u32 %v4492, 2147483648
      %v4620 = vor.u32 1.1754944e-38, %v4619
      %v4621 = vsel %vm4618, %v4620, %v4616
      %v4622 = vmul.f32 1.0, %v4621
      %v4623 = vrcp.pop %v4493
      %v4624 = vmul.f32 %v4493, %v4623
      %v4625 = vsub.f32 1.0, %v4624
      %v4626 = vmul.f32 %v4623, %v4625
      %v4627 = vadd.f32 %v4623, %v4626
      %vm4628 = vweird.f32 %v4493
      %vm4629 = vweird.f32 %v4623
      %vm4630 = vmor %vm4628, %vm4629
      %v4631 = vsel %vm4630, %v4623, %v4627
      %v4632 = vand.u32 2147483647, %v4493
      %vm4633 = vcmp.eq.f32.partialorder %v4632, 8.507059e+37
      %v4634 = vand.u32 %v4493, 2147483648
      %v4635 = vor.u32 1.1754944e-38, %v4634
      %v4636 = vsel %vm4633, %v4635, %v4631
      %v4637 = vmul.f32 1.0, %v4636
      %v4638 = vrcp.pop %v4494
      %v4639 = vmul.f32 %v4494, %v4638
      %v4640 = vsub.f32 1.0, %v4639
      %v4641 = vmul.f32 %v4638, %v4640
      %v4642 = vadd.f32 %v4638, %v4641
      %vm4643 = vweird.f32 %v4494
      %vm4644 = vweird.f32 %v4638
      %vm4645 = vmor %vm4643, %vm4644
      %v4646 = vsel %vm4645, %v4638, %v4642
      %v4647 = vand.u32 2147483647, %v4494
      %vm4648 = vcmp.eq.f32.partialorder %v4647, 8.507059e+37
      %v4649 = vand.u32 %v4494, 2147483648
      %v4650 = vor.u32 1.1754944e-38, %v4649
      %v4651 = vsel %vm4648, %v4650, %v4646
      %v4652 = vmul.f32 1.0, %v4651
      %v4653 = vrcp.pop %v4495
      %v4654 = vmul.f32 %v4495, %v4653
      %v4655 = vsub.f32 1.0, %v4654
      %v4656 = vmul.f32 %v4653, %v4655
      %v4657 = vadd.f32 %v4653, %v4656
      %vm4658 = vweird.f32 %v4495
      %vm4659 = vweird.f32 %v4653
      %vm4660 = vmor %vm4658, %vm4659
      %v4661 = vsel %vm4660, %v4653, %v4657
      %v4662 = vand.u32 2147483647, %v4495
      %vm4663 = vcmp.eq.f32.partialorder %v4662, 8.507059e+37
      %v4664 = vand.u32 %v4495, 2147483648
      %v4665 = vor.u32 1.1754944e-38, %v4664
      %v4666 = vsel %vm4663, %v4665, %v4661
      %v4667 = vmul.f32 1.0, %v4666
      %v4668 = vrcp.pop %v4496
      %v4669 = vmul.f32 %v4496, %v4668
      %v4670 = vsub.f32 1.0, %v4669
      %v4671 = vmul.f32 %v4668, %v4670
      %v4672 = vadd.f32 %v4668, %v4671
      %vm4673 = vweird.f32 %v4496
      %vm4674 = vweird.f32 %v4668
      %vm4675 = vmor %vm4673, %vm4674
      %v4676 = vsel %vm4675, %v4668, %v4672
      %v4677 = vand.u32 2147483647, %v4496
      %vm4678 = vcmp.eq.f32.partialorder %v4677, 8.507059e+37
      %v4679 = vand.u32 %v4496, 2147483648
      %v4680 = vor.u32 1.1754944e-38, %v4679
      %v4681 = vsel %vm4678, %v4680, %v4676
      %v4682 = vmul.f32 1.0, %v4681
      %v4683 = vrcp.pop %v4497
      %v4684 = vmul.f32 %v4497, %v4683
      %v4685 = vsub.f32 1.0, %v4684
      %v4686 = vmul.f32 %v4683, %v4685
      %v4687 = vadd.f32 %v4683, %v4686
      %vm4688 = vweird.f32 %v4497
      %vm4689 = vweird.f32 %v4683
      %vm4690 = vmor %vm4688, %vm4689
      %v4691 = vsel %vm4690, %v4683, %v4687
      %v4692 = vand.u32 2147483647, %v4497
      %vm4693 = vcmp.eq.f32.partialorder %v4692, 8.507059e+37
      %v4694 = vand.u32 %v4497, 2147483648
      %v4695 = vor.u32 1.1754944e-38, %v4694
      %v4696 = vsel %vm4693, %v4695, %v4691
      %v4697 = vmul.f32 1.0, %v4696
      %v4698 = vrcp.pop %v4498
      %v4699 = vmul.f32 %v4498, %v4698
      %v4700 = vsub.f32 1.0, %v4699
      %v4701 = vmul.f32 %v4698, %v4700
      %v4702 = vadd.f32 %v4698, %v4701
      %vm4703 = vweird.f32 %v4498
      %vm4704 = vweird.f32 %v4698
      %vm4705 = vmor %vm4703, %vm4704
      %v4706 = vsel %vm4705, %v4698, %v4702
      %v4707 = vand.u32 2147483647, %v4498
      %vm4708 = vcmp.eq.f32.partialorder %v4707, 8.507059e+37
      %v4709 = vand.u32 %v4498, 2147483648
      %v4710 = vor.u32 1.1754944e-38, %v4709
      %v4711 = vsel %vm4708, %v4710, %v4706
      %v4712 = vmul.f32 1.0, %v4711
      %v4713 = vrcp.pop %v4499
      %v4714 = vmul.f32 %v4499, %v4713
      %v4715 = vsub.f32 1.0, %v4714
      %v4716 = vmul.f32 %v4713, %v4715
      %v4717 = vadd.f32 %v4713, %v4716
      %vm4718 = vweird.f32 %v4499
      %vm4719 = vweird.f32 %v4713
      %vm4720 = vmor %vm4718, %vm4719
      %v4721 = vsel %vm4720, %v4713, %v4717
      %v4722 = vand.u32 2147483647, %v4499
      %vm4723 = vcmp.eq.f32.partialorder %v4722, 8.507059e+37
      %v4724 = vand.u32 %v4499, 2147483648
      %v4725 = vor.u32 1.1754944e-38, %v4724
      %v4726 = vsel %vm4723, %v4725, %v4721
      %v4727 = vmul.f32 1.0, %v4726
      %v4728 = vrcp.pop %v4500
      %v4729 = vmul.f32 %v4500, %v4728
      %v4730 = vsub.f32 1.0, %v4729
      %v4731 = vmul.f32 %v4728, %v4730
      %v4732 = vadd.f32 %v4728, %v4731
      %vm4733 = vweird.f32 %v4500
      %vm4734 = vweird.f32 %v4728
      %vm4735 = vmor %vm4733, %vm4734
      %v4736 = vsel %vm4735, %v4728, %v4732
      %v4737 = vand.u32 2147483647, %v4500
      %vm4738 = vcmp.eq.f32.partialorder %v4737, 8.507059e+37
      %v4739 = vand.u32 %v4500, 2147483648
      %v4740 = vor.u32 1.1754944e-38, %v4739
      %v4741 = vsel %vm4738, %v4740, %v4736
      %v4742 = vmul.f32 1.0, %v4741
      %v4743 = vrcp.pop %v4501
      %v4744 = vmul.f32 %v4501, %v4743
      %v4745 = vsub.f32 1.0, %v4744
      %v4746 = vmul.f32 %v4743, %v4745
      %v4747 = vadd.f32 %v4743, %v4746
      %vm4748 = vweird.f32 %v4501
      %vm4749 = vweird.f32 %v4743
      %vm4750 = vmor %vm4748, %vm4749
      %v4751 = vsel %vm4750, %v4743, %v4747
      %v4752 = vand.u32 2147483647, %v4501
      %vm4753 = vcmp.eq.f32.partialorder %v4752, 8.507059e+37
      %v4754 = vand.u32 %v4501, 2147483648
      %v4755 = vor.u32 1.1754944e-38, %v4754
      %v4756 = vsel %vm4753, %v4755, %v4751
      %v4757 = vmul.f32 1.0, %v4756
      %v4758 = vrcp.pop %v4502
      %v4759 = vmul.f32 %v4502, %v4758
      %v4760 = vsub.f32 1.0, %v4759
      %v4761 = vmul.f32 %v4758, %v4760
      %v4762 = vadd.f32 %v4758, %v4761
      %vm4763 = vweird.f32 %v4502
      %vm4764 = vweird.f32 %v4758
      %vm4765 = vmor %vm4763, %vm4764
      %v4766 = vsel %vm4765, %v4758, %v4762
      %v4767 = vand.u32 2147483647, %v4502
      %vm4768 = vcmp.eq.f32.partialorder %v4767, 8.507059e+37
      %v4769 = vand.u32 %v4502, 2147483648
      %v4770 = vor.u32 1.1754944e-38, %v4769
      %v4771 = vsel %vm4768, %v4770, %v4766
      %v4772 = vmul.f32 1.0, %v4771
      %v4773 = vrcp.pop %v4503
      %v4774 = vmul.f32 %v4503, %v4773
      %v4775 = vsub.f32 1.0, %v4774
      %v4776 = vmul.f32 %v4773, %v4775
      %v4777 = vadd.f32 %v4773, %v4776
      %vm4778 = vweird.f32 %v4503
      %vm4779 = vweird.f32 %v4773
      %vm4780 = vmor %vm4778, %vm4779
      %v4781 = vsel %vm4780, %v4773, %v4777
      %v4782 = vand.u32 2147483647, %v4503
      %vm4783 = vcmp.eq.f32.partialorder %v4782, 8.507059e+37
      %v4784 = vand.u32 %v4503, 2147483648
      %v4785 = vor.u32 1.1754944e-38, %v4784
      %v4786 = vsel %vm4783, %v4785, %v4781
      %v4787 = vmul.f32 1.0, %v4786
      %v4788 = vrcp.pop %v4504
      %v4789 = vmul.f32 %v4504, %v4788
      %v4790 = vsub.f32 1.0, %v4789
      %v4791 = vmul.f32 %v4788, %v4790
      %v4792 = vadd.f32 %v4788, %v4791
      %vm4793 = vweird.f32 %v4504
      %vm4794 = vweird.f32 %v4788
      %vm4795 = vmor %vm4793, %vm4794
      %v4796 = vsel %vm4795, %v4788, %v4792
      %v4797 = vand.u32 2147483647, %v4504
      %vm4798 = vcmp.eq.f32.partialorder %v4797, 8.507059e+37
      %v4799 = vand.u32 %v4504, 2147483648
      %v4800 = vor.u32 1.1754944e-38, %v4799
      %v4801 = vsel %vm4798, %v4800, %v4796
      %v4802 = vmul.f32 1.0, %v4801
      %v4803 = vrcp.pop %v4505
      %v4804 = vmul.f32 %v4505, %v4803
      %v4805 = vsub.f32 1.0, %v4804
      %v4806 = vmul.f32 %v4803, %v4805
      %v4807 = vadd.f32 %v4803, %v4806
      %vm4808 = vweird.f32 %v4505
      %vm4809 = vweird.f32 %v4803
      %vm4810 = vmor %vm4808, %vm4809
      %v4811 = vsel %vm4810, %v4803, %v4807
      %v4812 = vand.u32 2147483647, %v4505
      %vm4813 = vcmp.eq.f32.partialorder %v4812, 8.507059e+37
      %v4814 = vand.u32 %v4505, 2147483648
      %v4815 = vor.u32 1.1754944e-38, %v4814
      %v4816 = vsel %vm4813, %v4815, %v4811
      %v4817 = vmul.f32 1.0, %v4816
      %v4818 = vrcp.pop %v4506
      %v4819 = vmul.f32 %v4506, %v4818
      %v4820 = vsub.f32 1.0, %v4819
      %v4821 = vmul.f32 %v4818, %v4820
      %v4822 = vadd.f32 %v4818, %v4821
      %vm4823 = vweird.f32 %v4506
      %vm4824 = vweird.f32 %v4818
      %vm4825 = vmor %vm4823, %vm4824
      %v4826 = vsel %vm4825, %v4818, %v4822
      %v4827 = vand.u32 2147483647, %v4506
      %vm4828 = vcmp.eq.f32.partialorder %v4827, 8.507059e+37
      %v4829 = vand.u32 %v4506, 2147483648
      %v4830 = vor.u32 1.1754944e-38, %v4829
      %v4831 = vsel %vm4828, %v4830, %v4826
      %v4832 = vmul.f32 1.0, %v4831
      %v4833 = vrcp.pop %v4507
      %v4834 = vmul.f32 %v4507, %v4833
      %v4835 = vsub.f32 1.0, %v4834
      %v4836 = vmul.f32 %v4833, %v4835
      %v4837 = vadd.f32 %v4833, %v4836
      %vm4838 = vweird.f32 %v4507
      %vm4839 = vweird.f32 %v4833
      %vm4840 = vmor %vm4838, %vm4839
      %v4841 = vsel %vm4840, %v4833, %v4837
      %v4842 = vand.u32 2147483647, %v4507
      %vm4843 = vcmp.eq.f32.partialorder %v4842, 8.507059e+37
      %v4844 = vand.u32 %v4507, 2147483648
      %v4845 = vor.u32 1.1754944e-38, %v4844
      %v4846 = vsel %vm4843, %v4845, %v4841
      %v4847 = vmul.f32 1.0, %v4846
      %v4848 = vrcp.pop %v4508
      %v4849 = vmul.f32 %v4508, %v4848
      %v4850 = vsub.f32 1.0, %v4849
      %v4851 = vmul.f32 %v4848, %v4850
      %v4852 = vadd.f32 %v4848, %v4851
      %vm4853 = vweird.f32 %v4508
      %vm4854 = vweird.f32 %v4848
      %vm4855 = vmor %vm4853, %vm4854
      %v4856 = vsel %vm4855, %v4848, %v4852
      %v4857 = vand.u32 2147483647, %v4508
      %vm4858 = vcmp.eq.f32.partialorder %v4857, 8.507059e+37
      %v4859 = vand.u32 %v4508, 2147483648
      %v4860 = vor.u32 1.1754944e-38, %v4859
      %v4861 = vsel %vm4858, %v4860, %v4856
      %v4862 = vmul.f32 1.0, %v4861
      %v4863 = vrcp.pop %v4509
      %v4864 = vmul.f32 %v4509, %v4863
      %v4865 = vsub.f32 1.0, %v4864
      %v4866 = vmul.f32 %v4863, %v4865
      %v4867 = vadd.f32 %v4863, %v4866
      %vm4868 = vweird.f32 %v4509
      %vm4869 = vweird.f32 %v4863
      %vm4870 = vmor %vm4868, %vm4869
      %v4871 = vsel %vm4870, %v4863, %v4867
      %v4872 = vand.u32 2147483647, %v4509
      %vm4873 = vcmp.eq.f32.partialorder %v4872, 8.507059e+37
      %v4874 = vand.u32 %v4509, 2147483648
      %v4875 = vor.u32 1.1754944e-38, %v4874
      %v4876 = vsel %vm4873, %v4875, %v4871
      %v4877 = vmul.f32 1.0, %v4876
      %v4878 = vrcp.pop %v4510
      %v4879 = vmul.f32 %v4510, %v4878
      %v4880 = vsub.f32 1.0, %v4879
      %v4881 = vmul.f32 %v4878, %v4880
      %v4882 = vadd.f32 %v4878, %v4881
      %vm4883 = vweird.f32 %v4510
      %vm4884 = vweird.f32 %v4878
      %vm4885 = vmor %vm4883, %vm4884
      %v4886 = vsel %vm4885, %v4878, %v4882
      %v4887 = vand.u32 2147483647, %v4510
      %vm4888 = vcmp.eq.f32.partialorder %v4887, 8.507059e+37
      %v4889 = vand.u32 %v4510, 2147483648
      %v4890 = vor.u32 1.1754944e-38, %v4889
      %v4891 = vsel %vm4888, %v4890, %v4886
      %v4892 = vmul.f32 1.0, %v4891
      %v4893 = vrcp.pop %v4511
      %v4894 = vmul.f32 %v4511, %v4893
      %v4895 = vsub.f32 1.0, %v4894
      %v4896 = vmul.f32 %v4893, %v4895
      %v4897 = vadd.f32 %v4893, %v4896
      %vm4898 = vweird.f32 %v4511
      %vm4899 = vweird.f32 %v4893
      %vm4900 = vmor %vm4898, %vm4899
      %v4901 = vsel %vm4900, %v4893, %v4897
      %v4902 = vand.u32 2147483647, %v4511
      %vm4903 = vcmp.eq.f32.partialorder %v4902, 8.507059e+37
      %v4904 = vand.u32 %v4511, 2147483648
      %v4905 = vor.u32 1.1754944e-38, %v4904
      %v4906 = vsel %vm4903, %v4905, %v4901
      %v4907 = vmul.f32 1.0, %v4906
      %v4908 = vrcp.pop %v4512
      %v4909 = vmul.f32 %v4512, %v4908
      %v4910 = vsub.f32 1.0, %v4909
      %v4911 = vmul.f32 %v4908, %v4910
      %v4912 = vadd.f32 %v4908, %v4911
      %vm4913 = vweird.f32 %v4512
      %vm4914 = vweird.f32 %v4908
      %vm4915 = vmor %vm4913, %vm4914
      %v4916 = vsel %vm4915, %v4908, %v4912
      %v4917 = vand.u32 2147483647, %v4512
      %vm4918 = vcmp.eq.f32.partialorder %v4917, 8.507059e+37
      %v4919 = vand.u32 %v4512, 2147483648
      %v4920 = vor.u32 1.1754944e-38, %v4919
      %v4921 = vsel %vm4918, %v4920, %v4916
      %v4922 = vmul.f32 1.0, %v4921
      %v4923 = vrcp.pop %v4513
      %v4924 = vmul.f32 %v4513, %v4923
      %v4925 = vsub.f32 1.0, %v4924
      %v4926 = vmul.f32 %v4923, %v4925
      %v4927 = vadd.f32 %v4923, %v4926
      %vm4928 = vweird.f32 %v4513
      %vm4929 = vweird.f32 %v4923
      %vm4930 = vmor %vm4928, %vm4929
      %v4931 = vsel %vm4930, %v4923, %v4927
      %v4932 = vand.u32 2147483647, %v4513
      %vm4933 = vcmp.eq.f32.partialorder %v4932, 8.507059e+37
      %v4934 = vand.u32 %v4513, 2147483648
      %v4935 = vor.u32 1.1754944e-38, %v4934
      %v4936 = vsel %vm4933, %v4935, %v4931
      %v4937 = vmul.f32 1.0, %v4936
      %v4938 = vrcp.pop %v4514
      %v4939 = vmul.f32 %v4514, %v4938
      %v4940 = vsub.f32 1.0, %v4939
      %v4941 = vmul.f32 %v4938, %v4940
      %v4942 = vadd.f32 %v4938, %v4941
      %vm4943 = vweird.f32 %v4514
      %vm4944 = vweird.f32 %v4938
      %vm4945 = vmor %vm4943, %vm4944
      %v4946 = vsel %vm4945, %v4938, %v4942
      %v4947 = vand.u32 2147483647, %v4514
      %vm4948 = vcmp.eq.f32.partialorder %v4947, 8.507059e+37
      %v4949 = vand.u32 %v4514, 2147483648
      %v4950 = vor.u32 1.1754944e-38, %v4949
      %v4951 = vsel %vm4948, %v4950, %v4946
      %v4952 = vmul.f32 1.0, %v4951
      %v4953 = vrcp.pop %v4515
      %v4954 = vmul.f32 %v4515, %v4953
      %v4955 = vsub.f32 1.0, %v4954
      %v4956 = vmul.f32 %v4953, %v4955
      %v4957 = vadd.f32 %v4953, %v4956
      %vm4958 = vweird.f32 %v4515
      %vm4959 = vweird.f32 %v4953
      %vm4960 = vmor %vm4958, %vm4959
      %v4961 = vsel %vm4960, %v4953, %v4957
      %v4962 = vand.u32 2147483647, %v4515
      %vm4963 = vcmp.eq.f32.partialorder %v4962, 8.507059e+37
      %v4964 = vand.u32 %v4515, 2147483648
      %v4965 = vor.u32 1.1754944e-38, %v4964
      %v4966 = vsel %vm4963, %v4965, %v4961
      %v4967 = vmul.f32 1.0, %v4966
      %v4968 = vrcp.pop %v4516
      %v4969 = vmul.f32 %v4516, %v4968
      %v4970 = vsub.f32 1.0, %v4969
      %v4971 = vmul.f32 %v4968, %v4970
      %v4972 = vadd.f32 %v4968, %v4971
      %vm4973 = vweird.f32 %v4516
      %vm4974 = vweird.f32 %v4968
      %vm4975 = vmor %vm4973, %vm4974
      %v4976 = vsel %vm4975, %v4968, %v4972
      %v4977 = vand.u32 2147483647, %v4516
      %vm4978 = vcmp.eq.f32.partialorder %v4977, 8.507059e+37
      %v4979 = vand.u32 %v4516, 2147483648
      %v4980 = vor.u32 1.1754944e-38, %v4979
      %v4981 = vsel %vm4978, %v4980, %v4976
      %v4982 = vmul.f32 1.0, %v4981
      %v4983 = vrcp.pop %v4517
      %v4984 = vmul.f32 %v4517, %v4983
      %v4985 = vsub.f32 1.0, %v4984
      %v4986 = vmul.f32 %v4983, %v4985
      %v4987 = vadd.f32 %v4983, %v4986
      %vm4988 = vweird.f32 %v4517
      %vm4989 = vweird.f32 %v4983
      %vm4990 = vmor %vm4988, %vm4989
      %v4991 = vsel %vm4990, %v4983, %v4987
      %v4992 = vand.u32 2147483647, %v4517
      %vm4993 = vcmp.eq.f32.partialorder %v4992, 8.507059e+37
      %v4994 = vand.u32 %v4517, 2147483648
      %v4995 = vor.u32 1.1754944e-38, %v4994
      %v4996 = vsel %vm4993, %v4995, %v4991
      %v4997 = vmul.f32 1.0, %v4996
      %v4998 = vtanh.pop %v3671
      %v4999 = vtanh.pop %v3673
      %v5000 = vtanh.pop %v3676
      %v5001 = vtanh.pop %v3678
      %v5002 = vtanh.pop %v3681
      %v5003 = vtanh.pop %v3683
      %v5004 = vtanh.pop %v3686
      %v5005 = vtanh.pop %v3688
      %v5006 = vtanh.pop %v3691
      %v5007 = vtanh.pop %v3693
      %v5008 = vtanh.pop %v3696
      %v5009 = vtanh.pop %v3698
      %v5010 = vtanh.pop %v3701
      %v5011 = vtanh.pop %v3703
      %v5012 = vtanh.pop %v3706
      %v5013 = vtanh.pop %v3708
      %v5014 = vtanh.pop %v3711
      %v5015 = vtanh.pop %v3713
      %v5016 = vtanh.pop %v3716
      %v5017 = vtanh.pop %v3718
      %v5018 = vtanh.pop %v3721
      %v5019 = vtanh.pop %v3723
      %v5020 = vtanh.pop %v3726
      %v5021 = vtanh.pop %v3728
      %v5022 = vtanh.pop %v3731
      %v5023 = vtanh.pop %v3733
      %v5024 = vtanh.pop %v3736
      %v5025 = vtanh.pop %v3738
      %v5026 = vtanh.pop %v3741
      %v5027 = vtanh.pop %v3743
      %v5028 = vtanh.pop %v3746
      %v5029 = vtanh.pop %v3748
      %v5030 = vld [vmem:[%s457] sm:$0xff]
      %v5031 = vld [vmem:[%s457 + $0x8] sm:$0xff]
      %v5032 = vld [vmem:[%s457 + $0x10] sm:$0xff]
      %v5033 = vld [vmem:[%s457 + $0x18] sm:$0xff]
      %v5034 = vld [vmem:[%s457 + $0x20] sm:$0xff]
      %v5035 = vld [vmem:[%s457 + $0x28] sm:$0xff]
      %v5036 = vld [vmem:[%s457 + $0x30] sm:$0xff]
      %v5037 = vld [vmem:[%s457 + $0x38] sm:$0xff]
      %v5038 = vld [vmem:[%s457 + $0x40] sm:$0xff]
      %v5039 = vld [vmem:[%s457 + $0x48] sm:$0xff]
      %v5040 = vld [vmem:[%s457 + $0x50] sm:$0xff]
      %v5041 = vld [vmem:[%s457 + $0x58] sm:$0xff]
      %v5042 = vld [vmem:[%s457 + $0x60] sm:$0xff]
      %v5043 = vld [vmem:[%s457 + $0x68] sm:$0xff]
      %v5044 = vld [vmem:[%s457 + $0x70] sm:$0xff]
      %v5045 = vld [vmem:[%s457 + $0x78] sm:$0xff]
      %v5046 = vld [vmem:[%s457 + $0x80] sm:$0xff]
      %v5047 = vld [vmem:[%s457 + $0x88] sm:$0xff]
      %v5048 = vld [vmem:[%s457 + $0x90] sm:$0xff]
      %v5049 = vld [vmem:[%s457 + $0x98] sm:$0xff]
      %v5050 = vld [vmem:[%s457 + $0xa0] sm:$0xff]
      %v5051 = vld [vmem:[%s457 + $0xa8] sm:$0xff]
      %v5052 = vld [vmem:[%s457 + $0xb0] sm:$0xff]
      %v5053 = vld [vmem:[%s457 + $0xb8] sm:$0xff]
      %v5054 = vld [vmem:[%s457 + $0xc0] sm:$0xff]
      %v5055 = vld [vmem:[%s457 + $0xc8] sm:$0xff]
      %v5056 = vld [vmem:[%s457 + $0xd0] sm:$0xff]
      %v5057 = vld [vmem:[%s457 + $0xd8] sm:$0xff]
      %v5058 = vld [vmem:[%s457 + $0xe0] sm:$0xff]
      %v5059 = vld [vmem:[%s457 + $0xe8] sm:$0xff]
      %v5060 = vld [vmem:[%s457 + $0xf0] sm:$0xff]
      %v5061 = vld [vmem:[%s457 + $0xf8] sm:$0xff]
      %5094 = vrot.lane.b32.xlu0 %v4358, 64
      %v5095 = vpop.permute.xlu0 %5094
      %5096 = vrot.lane.b32.xlu0 %v4359, 64
      %v5097 = vpop.permute.xlu0 %5096
      %5098 = vrot.lane.b32.xlu0 %v4360, 64
      %v5099 = vpop.permute.xlu0 %5098
      %5100 = vrot.lane.b32.xlu0 %v4361, 64
      %v5101 = vpop.permute.xlu0 %5100
      %5102 = vrot.lane.b32.xlu0 %v4362, 64
      %v5103 = vpop.permute.xlu0 %5102
      %5104 = vrot.lane.b32.xlu0 %v4363, 64
      %v5105 = vpop.permute.xlu0 %5104
      %5106 = vrot.lane.b32.xlu0 %v4364, 64
      %v5107 = vpop.permute.xlu0 %5106
      %5108 = vrot.lane.b32.xlu0 %v4365, 64
      %v5109 = vpop.permute.xlu0 %5108
      %5110 = vrot.lane.b32.xlu0 %v4366, 64
      %v5111 = vpop.permute.xlu0 %5110
      %5112 = vrot.lane.b32.xlu0 %v4367, 64
      %v5113 = vpop.permute.xlu0 %5112
      %5114 = vrot.lane.b32.xlu0 %v4368, 64
      %v5115 = vpop.permute.xlu0 %5114
      %5116 = vrot.lane.b32.xlu0 %v4369, 64
      %v5117 = vpop.permute.xlu0 %5116
      %5118 = vrot.lane.b32.xlu0 %v4370, 64
      %v5119 = vpop.permute.xlu0 %5118
      %5120 = vrot.lane.b32.xlu0 %v4371, 64
      %v5121 = vpop.permute.xlu0 %5120
      %5122 = vrot.lane.b32.xlu0 %v4372, 64
      %v5123 = vpop.permute.xlu0 %5122
      %5124 = vrot.lane.b32.xlu0 %v4373, 64
      %v5125 = vpop.permute.xlu0 %5124
      %5126 = vrot.lane.b32.xlu0 %v4374, 64
      %v5127 = vpop.permute.xlu0 %5126
      %5128 = vrot.lane.b32.xlu0 %v4375, 64
      %v5129 = vpop.permute.xlu0 %5128
      %5130 = vrot.lane.b32.xlu0 %v4376, 64
      %v5131 = vpop.permute.xlu0 %5130
      %5132 = vrot.lane.b32.xlu0 %v4377, 64
      %v5133 = vpop.permute.xlu0 %5132
      %5134 = vrot.lane.b32.xlu0 %v4378, 64
      %v5135 = vpop.permute.xlu0 %5134
      %5136 = vrot.lane.b32.xlu0 %v4379, 64
      %v5137 = vpop.permute.xlu0 %5136
      %5138 = vrot.lane.b32.xlu0 %v4380, 64
      %v5139 = vpop.permute.xlu0 %5138
      %5140 = vrot.lane.b32.xlu0 %v4381, 64
      %v5141 = vpop.permute.xlu0 %5140
      %5142 = vrot.lane.b32.xlu0 %v4382, 64
      %v5143 = vpop.permute.xlu0 %5142
      %5144 = vrot.lane.b32.xlu0 %v4383, 64
      %v5145 = vpop.permute.xlu0 %5144
      %5146 = vrot.lane.b32.xlu0 %v4384, 64
      %v5147 = vpop.permute.xlu0 %5146
      %5148 = vrot.lane.b32.xlu0 %v4385, 64
      %v5149 = vpop.permute.xlu0 %5148
      %5150 = vrot.lane.b32.xlu0 %v4386, 64
      %v5151 = vpop.permute.xlu0 %5150
      %5152 = vrot.lane.b32.xlu0 %v4387, 64
      %v5153 = vpop.permute.xlu0 %5152
      %5154 = vrot.lane.b32.xlu0 %v4388, 64
      %v5155 = vpop.permute.xlu0 %5154
      %5156 = vrot.lane.b32.xlu0 %v4389, 64
      %v5157 = vpop.permute.xlu0 %5156
      %v5190 = vmul.f32 %v3892, %v5095
      %v5191 = vmul.f32 %v3907, %v5097
      %v5192 = vmul.f32 %v3922, %v5099
      %v5193 = vmul.f32 %v3937, %v5101
      %v5194 = vmul.f32 %v3952, %v5103
      %v5195 = vmul.f32 %v3967, %v5105
      %v5196 = vmul.f32 %v3982, %v5107
      %v5197 = vmul.f32 %v3997, %v5109
      %v5198 = vmul.f32 %v4012, %v5111
      %v5199 = vmul.f32 %v4027, %v5113
      %v5200 = vmul.f32 %v4042, %v5115
      %v5201 = vmul.f32 %v4057, %v5117
      %v5202 = vmul.f32 %v4072, %v5119
      %v5203 = vmul.f32 %v4087, %v5121
      %v5204 = vmul.f32 %v4102, %v5123
      %v5205 = vmul.f32 %v4117, %v5125
      %v5206 = vmul.f32 %v4132, %v5127
      %v5207 = vmul.f32 %v4147, %v5129
      %v5208 = vmul.f32 %v4162, %v5131
      %v5209 = vmul.f32 %v4177, %v5133
      %v5210 = vmul.f32 %v4192, %v5135
      %v5211 = vmul.f32 %v4207, %v5137
      %v5212 = vmul.f32 %v4222, %v5139
      %v5213 = vmul.f32 %v4237, %v5141
      %v5214 = vmul.f32 %v4252, %v5143
      %v5215 = vmul.f32 %v4267, %v5145
      %v5216 = vmul.f32 %v4282, %v5147
      %v5217 = vmul.f32 %v4297, %v5149
      %v5218 = vmul.f32 %v4312, %v5151
      %v5219 = vmul.f32 %v4327, %v5153
      %v5220 = vmul.f32 %v4342, %v5155
      %v5221 = vmul.f32 %v4357, %v5157
      %5254 = vrot.lane.b32.xlu0 %v5030, 32
      %v5255 = vpop.permute.xlu0 %5254
      %5256 = vrot.lane.b32.xlu0 %v5031, 32
      %v5257 = vpop.permute.xlu0 %5256
      %5258 = vrot.lane.b32.xlu0 %v5032, 32
      %v5259 = vpop.permute.xlu0 %5258
      %5260 = vrot.lane.b32.xlu0 %v5033, 32
      %v5261 = vpop.permute.xlu0 %5260
      %5262 = vrot.lane.b32.xlu0 %v5034, 32
      %v5263 = vpop.permute.xlu0 %5262
      %5264 = vrot.lane.b32.xlu0 %v5035, 32
      %v5265 = vpop.permute.xlu0 %5264
      %5266 = vrot.lane.b32.xlu0 %v5036, 32
      %v5267 = vpop.permute.xlu0 %5266
      %5268 = vrot.lane.b32.xlu0 %v5037, 32
      %v5269 = vpop.permute.xlu0 %5268
      %5270 = vrot.lane.b32.xlu0 %v5038, 32
      %v5271 = vpop.permute.xlu0 %5270
      %5272 = vrot.lane.b32.xlu0 %v5039, 32
      %v5273 = vpop.permute.xlu0 %5272
      %5274 = vrot.lane.b32.xlu0 %v5040, 32
      %v5275 = vpop.permute.xlu0 %5274
      %5276 = vrot.lane.b32.xlu0 %v5041, 32
      %v5277 = vpop.permute.xlu0 %5276
      %5278 = vrot.lane.b32.xlu0 %v5042, 32
      %v5279 = vpop.permute.xlu0 %5278
      %5280 = vrot.lane.b32.xlu0 %v5043, 32
      %v5281 = vpop.permute.xlu0 %5280
      %5282 = vrot.lane.b32.xlu0 %v5044, 32
      %v5283 = vpop.permute.xlu0 %5282
      %5284 = vrot.lane.b32.xlu0 %v5045, 32
      %v5285 = vpop.permute.xlu0 %5284
      %5286 = vrot.lane.b32.xlu0 %v5046, 32
      %v5287 = vpop.permute.xlu0 %5286
      %5288 = vrot.lane.b32.xlu0 %v5047, 32
      %v5289 = vpop.permute.xlu0 %5288
      %5290 = vrot.lane.b32.xlu0 %v5048, 32
      %v5291 = vpop.permute.xlu0 %5290
      %5292 = vrot.lane.b32.xlu0 %v5049, 32
      %v5293 = vpop.permute.xlu0 %5292
      %5294 = vrot.lane.b32.xlu0 %v5050, 32
      %v5295 = vpop.permute.xlu0 %5294
      %5296 = vrot.lane.b32.xlu0 %v5051, 32
      %v5297 = vpop.permute.xlu0 %5296
      %5298 = vrot.lane.b32.xlu0 %v5052, 32
      %v5299 = vpop.permute.xlu0 %5298
      %5300 = vrot.lane.b32.xlu0 %v5053, 32
      %v5301 = vpop.permute.xlu0 %5300
      %5302 = vrot.lane.b32.xlu0 %v5054, 32
      %v5303 = vpop.permute.xlu0 %5302
      %5304 = vrot.lane.b32.xlu0 %v5055, 32
      %v5305 = vpop.permute.xlu0 %5304
      %5306 = vrot.lane.b32.xlu0 %v5056, 32
      %v5307 = vpop.permute.xlu0 %5306
      %5308 = vrot.lane.b32.xlu0 %v5057, 32
      %v5309 = vpop.permute.xlu0 %5308
      %5310 = vrot.lane.b32.xlu0 %v5058, 32
      %v5311 = vpop.permute.xlu0 %5310
      %5312 = vrot.lane.b32.xlu0 %v5059, 32
      %v5313 = vpop.permute.xlu0 %5312
      %5314 = vrot.lane.b32.xlu0 %v5060, 32
      %v5315 = vpop.permute.xlu0 %5314
      %5316 = vrot.lane.b32.xlu0 %v5061, 32
      %v5317 = vpop.permute.xlu0 %5316
      %v5350 = vmul.f32 %v3892, %v5255
      %v5351 = vmul.f32 %v3907, %v5257
      %v5352 = vmul.f32 %v3922, %v5259
      %v5353 = vmul.f32 %v3937, %v5261
      %v5354 = vmul.f32 %v3952, %v5263
      %v5355 = vmul.f32 %v3967, %v5265
      %v5356 = vmul.f32 %v3982, %v5267
      %v5357 = vmul.f32 %v3997, %v5269
      %v5358 = vmul.f32 %v4012, %v5271
      %v5359 = vmul.f32 %v4027, %v5273
      %v5360 = vmul.f32 %v4042, %v5275
      %v5361 = vmul.f32 %v4057, %v5277
      %v5362 = vmul.f32 %v4072, %v5279
      %v5363 = vmul.f32 %v4087, %v5281
      %v5364 = vmul.f32 %v4102, %v5283
      %v5365 = vmul.f32 %v4117, %v5285
      %v5366 = vmul.f32 %v4132, %v5287
      %v5367 = vmul.f32 %v4147, %v5289
      %v5368 = vmul.f32 %v4162, %v5291
      %v5369 = vmul.f32 %v4177, %v5293
      %v5370 = vmul.f32 %v4192, %v5295
      %v5371 = vmul.f32 %v4207, %v5297
      %v5372 = vmul.f32 %v4222, %v5299
      %v5373 = vmul.f32 %v4237, %v5301
      %v5374 = vmul.f32 %v4252, %v5303
      %v5375 = vmul.f32 %v4267, %v5305
      %v5376 = vmul.f32 %v4282, %v5307
      %v5377 = vmul.f32 %v4297, %v5309
      %v5378 = vmul.f32 %v4312, %v5311
      %v5379 = vmul.f32 %v4327, %v5313
      %v5380 = vmul.f32 %v4342, %v5315
      %v5381 = vmul.f32 %v4357, %v5317
      %5414 = vrot.lane.b32.xlu0 %v5190, 32
      %v5415 = vpop.permute.xlu0 %5414
      %5416 = vrot.lane.b32.xlu0 %v5191, 32
      %v5417 = vpop.permute.xlu0 %5416
      %5418 = vrot.lane.b32.xlu0 %v5192, 32
      %v5419 = vpop.permute.xlu0 %5418
      %5420 = vrot.lane.b32.xlu0 %v5193, 32
      %v5421 = vpop.permute.xlu0 %5420
      %5422 = vrot.lane.b32.xlu0 %v5194, 32
      %v5423 = vpop.permute.xlu0 %5422
      %5424 = vrot.lane.b32.xlu0 %v5195, 32
      %v5425 = vpop.permute.xlu0 %5424
      %5426 = vrot.lane.b32.xlu0 %v5196, 32
      %v5427 = vpop.permute.xlu0 %5426
      %5428 = vrot.lane.b32.xlu0 %v5197, 32
      %v5429 = vpop.permute.xlu0 %5428
      %5430 = vrot.lane.b32.xlu0 %v5198, 32
      %v5431 = vpop.permute.xlu0 %5430
      %5432 = vrot.lane.b32.xlu0 %v5199, 32
      %v5433 = vpop.permute.xlu0 %5432
      %5434 = vrot.lane.b32.xlu0 %v5200, 32
      %v5435 = vpop.permute.xlu0 %5434
      %5436 = vrot.lane.b32.xlu0 %v5201, 32
      %v5437 = vpop.permute.xlu0 %5436
      %5438 = vrot.lane.b32.xlu0 %v5202, 32
      %v5439 = vpop.permute.xlu0 %5438
      %5440 = vrot.lane.b32.xlu0 %v5203, 32
      %v5441 = vpop.permute.xlu0 %5440
      %5442 = vrot.lane.b32.xlu0 %v5204, 32
      %v5443 = vpop.permute.xlu0 %5442
      %5444 = vrot.lane.b32.xlu0 %v5205, 32
      %v5445 = vpop.permute.xlu0 %5444
      %5446 = vrot.lane.b32.xlu0 %v5206, 32
      %v5447 = vpop.permute.xlu0 %5446
      %5448 = vrot.lane.b32.xlu0 %v5207, 32
      %v5449 = vpop.permute.xlu0 %5448
      %5450 = vrot.lane.b32.xlu0 %v5208, 32
      %v5451 = vpop.permute.xlu0 %5450
      %5452 = vrot.lane.b32.xlu0 %v5209, 32
      %v5453 = vpop.permute.xlu0 %5452
      %5454 = vrot.lane.b32.xlu0 %v5210, 32
      %v5455 = vpop.permute.xlu0 %5454
      %5456 = vrot.lane.b32.xlu0 %v5211, 32
      %v5457 = vpop.permute.xlu0 %5456
      %5458 = vrot.lane.b32.xlu0 %v5212, 32
      %v5459 = vpop.permute.xlu0 %5458
      %5460 = vrot.lane.b32.xlu0 %v5213, 32
      %v5461 = vpop.permute.xlu0 %5460
      %5462 = vrot.lane.b32.xlu0 %v5214, 32
      %v5463 = vpop.permute.xlu0 %5462
      %5464 = vrot.lane.b32.xlu0 %v5215, 32
      %v5465 = vpop.permute.xlu0 %5464
      %5466 = vrot.lane.b32.xlu0 %v5216, 32
      %v5467 = vpop.permute.xlu0 %5466
      %5468 = vrot.lane.b32.xlu0 %v5217, 32
      %v5469 = vpop.permute.xlu0 %5468
      %5470 = vrot.lane.b32.xlu0 %v5218, 32
      %v5471 = vpop.permute.xlu0 %5470
      %5472 = vrot.lane.b32.xlu0 %v5219, 32
      %v5473 = vpop.permute.xlu0 %5472
      %5474 = vrot.lane.b32.xlu0 %v5220, 32
      %v5475 = vpop.permute.xlu0 %5474
      %5476 = vrot.lane.b32.xlu0 %v5221, 32
      %v5477 = vpop.permute.xlu0 %5476
      %v5510 = vadd.f32 %v5350, %v5415
      %v5511 = vadd.f32 %v5351, %v5417
      %v5512 = vadd.f32 %v5352, %v5419
      %v5513 = vadd.f32 %v5353, %v5421
      %v5514 = vadd.f32 %v5354, %v5423
      %v5515 = vadd.f32 %v5355, %v5425
      %v5516 = vadd.f32 %v5356, %v5427
      %v5517 = vadd.f32 %v5357, %v5429
      %v5518 = vadd.f32 %v5358, %v5431
      %v5519 = vadd.f32 %v5359, %v5433
      %v5520 = vadd.f32 %v5360, %v5435
      %v5521 = vadd.f32 %v5361, %v5437
      %v5522 = vadd.f32 %v5362, %v5439
      %v5523 = vadd.f32 %v5363, %v5441
      %v5524 = vadd.f32 %v5364, %v5443
      %v5525 = vadd.f32 %v5365, %v5445
      %v5526 = vadd.f32 %v5366, %v5447
      %v5527 = vadd.f32 %v5367, %v5449
      %v5528 = vadd.f32 %v5368, %v5451
      %v5529 = vadd.f32 %v5369, %v5453
      %v5530 = vadd.f32 %v5370, %v5455
      %v5531 = vadd.f32 %v5371, %v5457
      %v5532 = vadd.f32 %v5372, %v5459
      %v5533 = vadd.f32 %v5373, %v5461
      %v5534 = vadd.f32 %v5374, %v5463
      %v5535 = vadd.f32 %v5375, %v5465
      %v5536 = vadd.f32 %v5376, %v5467
      %v5537 = vadd.f32 %v5377, %v5469
      %v5538 = vadd.f32 %v5378, %v5471
      %v5539 = vadd.f32 %v5379, %v5473
      %v5540 = vadd.f32 %v5380, %v5475
      %v5541 = vadd.f32 %v5381, %v5477
      %5574 = vrot.lane.b32.xlu0 %v4998, 64
      %v5575 = vpop.permute.xlu0 %5574
      %5576 = vrot.lane.b32.xlu0 %v4999, 64
      %v5577 = vpop.permute.xlu0 %5576
      %5578 = vrot.lane.b32.xlu0 %v5000, 64
      %v5579 = vpop.permute.xlu0 %5578
      %5580 = vrot.lane.b32.xlu0 %v5001, 64
      %v5581 = vpop.permute.xlu0 %5580
      %5582 = vrot.lane.b32.xlu0 %v5002, 64
      %v5583 = vpop.permute.xlu0 %5582
      %5584 = vrot.lane.b32.xlu0 %v5003, 64
      %v5585 = vpop.permute.xlu0 %5584
      %5586 = vrot.lane.b32.xlu0 %v5004, 64
      %v5587 = vpop.permute.xlu0 %5586
      %5588 = vrot.lane.b32.xlu0 %v5005, 64
      %v5589 = vpop.permute.xlu0 %5588
      %5590 = vrot.lane.b32.xlu0 %v5006, 64
      %v5591 = vpop.permute.xlu0 %5590
      %5592 = vrot.lane.b32.xlu0 %v5007, 64
      %v5593 = vpop.permute.xlu0 %5592
      %5594 = vrot.lane.b32.xlu0 %v5008, 64
      %v5595 = vpop.permute.xlu0 %5594
      %5596 = vrot.lane.b32.xlu0 %v5009, 64
      %v5597 = vpop.permute.xlu0 %5596
      %5598 = vrot.lane.b32.xlu0 %v5010, 64
      %v5599 = vpop.permute.xlu0 %5598
      %5600 = vrot.lane.b32.xlu0 %v5011, 64
      %v5601 = vpop.permute.xlu0 %5600
      %5602 = vrot.lane.b32.xlu0 %v5012, 64
      %v5603 = vpop.permute.xlu0 %5602
      %5604 = vrot.lane.b32.xlu0 %v5013, 64
      %v5605 = vpop.permute.xlu0 %5604
      %5606 = vrot.lane.b32.xlu0 %v5014, 64
      %v5607 = vpop.permute.xlu0 %5606
      %5608 = vrot.lane.b32.xlu0 %v5015, 64
      %v5609 = vpop.permute.xlu0 %5608
      %5610 = vrot.lane.b32.xlu0 %v5016, 64
      %v5611 = vpop.permute.xlu0 %5610
      %5612 = vrot.lane.b32.xlu0 %v5017, 64
      %v5613 = vpop.permute.xlu0 %5612
      %5614 = vrot.lane.b32.xlu0 %v5018, 64
      %v5615 = vpop.permute.xlu0 %5614
      %5616 = vrot.lane.b32.xlu0 %v5019, 64
      %v5617 = vpop.permute.xlu0 %5616
      %5618 = vrot.lane.b32.xlu0 %v5020, 64
      %v5619 = vpop.permute.xlu0 %5618
      %5620 = vrot.lane.b32.xlu0 %v5021, 64
      %v5621 = vpop.permute.xlu0 %5620
      %5622 = vrot.lane.b32.xlu0 %v5022, 64
      %v5623 = vpop.permute.xlu0 %5622
      %5624 = vrot.lane.b32.xlu0 %v5023, 64
      %v5625 = vpop.permute.xlu0 %5624
      %5626 = vrot.lane.b32.xlu0 %v5024, 64
      %v5627 = vpop.permute.xlu0 %5626
      %5628 = vrot.lane.b32.xlu0 %v5025, 64
      %v5629 = vpop.permute.xlu0 %5628
      %5630 = vrot.lane.b32.xlu0 %v5026, 64
      %v5631 = vpop.permute.xlu0 %5630
      %5632 = vrot.lane.b32.xlu0 %v5027, 64
      %v5633 = vpop.permute.xlu0 %5632
      %5634 = vrot.lane.b32.xlu0 %v5028, 64
      %v5635 = vpop.permute.xlu0 %5634
      %5636 = vrot.lane.b32.xlu0 %v5029, 64
      %v5637 = vpop.permute.xlu0 %5636
      %v5670 = vmul.f32 %v4532, %v5575
      %v5671 = vmul.f32 %v4547, %v5577
      %v5672 = vmul.f32 %v4562, %v5579
      %v5673 = vmul.f32 %v4577, %v5581
      %v5674 = vmul.f32 %v4592, %v5583
      %v5675 = vmul.f32 %v4607, %v5585
      %v5676 = vmul.f32 %v4622, %v5587
      %v5677 = vmul.f32 %v4637, %v5589
      %v5678 = vmul.f32 %v4652, %v5591
      %v5679 = vmul.f32 %v4667, %v5593
      %v5680 = vmul.f32 %v4682, %v5595
      %v5681 = vmul.f32 %v4697, %v5597
      %v5682 = vmul.f32 %v4712, %v5599
      %v5683 = vmul.f32 %v4727, %v5601
      %v5684 = vmul.f32 %v4742, %v5603
      %v5685 = vmul.f32 %v4757, %v5605
      %v5686 = vmul.f32 %v4772, %v5607
      %v5687 = vmul.f32 %v4787, %v5609
      %v5688 = vmul.f32 %v4802, %v5611
      %v5689 = vmul.f32 %v4817, %v5613
      %v5690 = vmul.f32 %v4832, %v5615
      %v5691 = vmul.f32 %v4847, %v5617
      %v5692 = vmul.f32 %v4862, %v5619
      %v5693 = vmul.f32 %v4877, %v5621
      %v5694 = vmul.f32 %v4892, %v5623
      %v5695 = vmul.f32 %v4907, %v5625
      %v5696 = vmul.f32 %v4922, %v5627
      %v5697 = vmul.f32 %v4937, %v5629
      %v5698 = vmul.f32 %v4952, %v5631
      %v5699 = vmul.f32 %v4967, %v5633
      %v5700 = vmul.f32 %v4982, %v5635
      %v5701 = vmul.f32 %v4997, %v5637
      %5702 = vrot.lane.b32.xlu0 %v626, 32
      %v5703 = vpop.permute.xlu0 %5702
      %5704 = vrot.lane.b32.xlu0 %v628, 32
      %v5705 = vpop.permute.xlu0 %5704
      %5706 = vrot.lane.b32.xlu0 %v631, 32
      %v5707 = vpop.permute.xlu0 %5706
      %5708 = vrot.lane.b32.xlu0 %v633, 32
      %v5709 = vpop.permute.xlu0 %5708
      %5710 = vrot.lane.b32.xlu0 %v636, 32
      %v5711 = vpop.permute.xlu0 %5710
      %5712 = vrot.lane.b32.xlu0 %v638, 32
      %v5713 = vpop.permute.xlu0 %5712
      %5714 = vrot.lane.b32.xlu0 %v641, 32
      %v5715 = vpop.permute.xlu0 %5714
      %5716 = vrot.lane.b32.xlu0 %v643, 32
      %v5717 = vpop.permute.xlu0 %5716
      %5718 = vrot.lane.b32.xlu0 %v646, 32
      %v5719 = vpop.permute.xlu0 %5718
      %5720 = vrot.lane.b32.xlu0 %v648, 32
      %v5721 = vpop.permute.xlu0 %5720
      %5722 = vrot.lane.b32.xlu0 %v651, 32
      %v5723 = vpop.permute.xlu0 %5722
      %5724 = vrot.lane.b32.xlu0 %v653, 32
      %v5725 = vpop.permute.xlu0 %5724
      %5726 = vrot.lane.b32.xlu0 %v656, 32
      %v5727 = vpop.permute.xlu0 %5726
      %5728 = vrot.lane.b32.xlu0 %v658, 32
      %v5729 = vpop.permute.xlu0 %5728
      %5730 = vrot.lane.b32.xlu0 %v661, 32
      %v5731 = vpop.permute.xlu0 %5730
      %5732 = vrot.lane.b32.xlu0 %v663, 32
      %v5733 = vpop.permute.xlu0 %5732
      %5734 = vrot.lane.b32.xlu0 %v666, 32
      %v5735 = vpop.permute.xlu0 %5734
      %5736 = vrot.lane.b32.xlu0 %v668, 32
      %v5737 = vpop.permute.xlu0 %5736
      %5738 = vrot.lane.b32.xlu0 %v671, 32
      %v5739 = vpop.permute.xlu0 %5738
      %5740 = vrot.lane.b32.xlu0 %v673, 32
      %v5741 = vpop.permute.xlu0 %5740
      %5742 = vrot.lane.b32.xlu0 %v676, 32
      %v5743 = vpop.permute.xlu0 %5742
      %5744 = vrot.lane.b32.xlu0 %v678, 32
      %v5745 = vpop.permute.xlu0 %5744
      %5746 = vrot.lane.b32.xlu0 %v681, 32
      %v5747 = vpop.permute.xlu0 %5746
      %5748 = vrot.lane.b32.xlu0 %v683, 32
      %v5749 = vpop.permute.xlu0 %5748
      %5750 = vrot.lane.b32.xlu0 %v686, 32
      %v5751 = vpop.permute.xlu0 %5750
      %5752 = vrot.lane.b32.xlu0 %v688, 32
      %v5753 = vpop.permute.xlu0 %5752
      %5754 = vrot.lane.b32.xlu0 %v691, 32
      %v5755 = vpop.permute.xlu0 %5754
      %5756 = vrot.lane.b32.xlu0 %v693, 32
      %v5757 = vpop.permute.xlu0 %5756
      %5758 = vrot.lane.b32.xlu0 %v696, 32
      %v5759 = vpop.permute.xlu0 %5758
      %5760 = vrot.lane.b32.xlu0 %v698, 32
      %v5761 = vpop.permute.xlu0 %5760
      %5762 = vrot.lane.b32.xlu0 %v915, 32
      %v5763 = vpop.permute.xlu0 %5762
      %5764 = vrot.lane.b32.xlu0 %v917, 32
      %v5765 = vpop.permute.xlu0 %5764
      %v5798 = vmul.f32 %v4532, %v5703
      %v5799 = vmul.f32 %v4547, %v5705
      %v5800 = vmul.f32 %v4562, %v5707
      %v5801 = vmul.f32 %v4577, %v5709
      %v5802 = vmul.f32 %v4592, %v5711
      %v5803 = vmul.f32 %v4607, %v5713
      %v5804 = vmul.f32 %v4622, %v5715
      %v5805 = vmul.f32 %v4637, %v5717
      %v5806 = vmul.f32 %v4652, %v5719
      %v5807 = vmul.f32 %v4667, %v5721
      %v5808 = vmul.f32 %v4682, %v5723
      %v5809 = vmul.f32 %v4697, %v5725
      %v5810 = vmul.f32 %v4712, %v5727
      %v5811 = vmul.f32 %v4727, %v5729
      %v5812 = vmul.f32 %v4742, %v5731
      %v5813 = vmul.f32 %v4757, %v5733
      %v5814 = vmul.f32 %v4772, %v5735
      %v5815 = vmul.f32 %v4787, %v5737
      %v5816 = vmul.f32 %v4802, %v5739
      %v5817 = vmul.f32 %v4817, %v5741
      %v5818 = vmul.f32 %v4832, %v5743
      %v5819 = vmul.f32 %v4847, %v5745
      %v5820 = vmul.f32 %v4862, %v5747
      %v5821 = vmul.f32 %v4877, %v5749
      %v5822 = vmul.f32 %v4892, %v5751
      %v5823 = vmul.f32 %v4907, %v5753
      %v5824 = vmul.f32 %v4922, %v5755
      %v5825 = vmul.f32 %v4937, %v5757
      %v5826 = vmul.f32 %v4952, %v5759
      %v5827 = vmul.f32 %v4967, %v5761
      %v5828 = vmul.f32 %v4982, %v5763
      %v5829 = vmul.f32 %v4997, %v5765
      %5862 = vrot.lane.b32.xlu0 %v5670, 32
      %v5863 = vpop.permute.xlu0 %5862
      %5864 = vrot.lane.b32.xlu0 %v5671, 32
      %v5865 = vpop.permute.xlu0 %5864
      %5866 = vrot.lane.b32.xlu0 %v5672, 32
      %v5867 = vpop.permute.xlu0 %5866
      %5868 = vrot.lane.b32.xlu0 %v5673, 32
      %v5869 = vpop.permute.xlu0 %5868
      %5870 = vrot.lane.b32.xlu0 %v5674, 32
      %v5871 = vpop.permute.xlu0 %5870
      %5872 = vrot.lane.b32.xlu0 %v5675, 32
      %v5873 = vpop.permute.xlu0 %5872
      %5874 = vrot.lane.b32.xlu0 %v5676, 32
      %v5875 = vpop.permute.xlu0 %5874
      %5876 = vrot.lane.b32.xlu0 %v5677, 32
      %v5877 = vpop.permute.xlu0 %5876
      %5878 = vrot.lane.b32.xlu0 %v5678, 32
      %v5879 = vpop.permute.xlu0 %5878
      %5880 = vrot.lane.b32.xlu0 %v5679, 32
      %v5881 = vpop.permute.xlu0 %5880
      %5882 = vrot.lane.b32.xlu0 %v5680, 32
      %v5883 = vpop.permute.xlu0 %5882
      %5884 = vrot.lane.b32.xlu0 %v5681, 32
      %v5885 = vpop.permute.xlu0 %5884
      %5886 = vrot.lane.b32.xlu0 %v5682, 32
      %v5887 = vpop.permute.xlu0 %5886
      %5888 = vrot.lane.b32.xlu0 %v5683, 32
      %v5889 = vpop.permute.xlu0 %5888
      %5890 = vrot.lane.b32.xlu0 %v5684, 32
      %v5891 = vpop.permute.xlu0 %5890
      %5892 = vrot.lane.b32.xlu0 %v5685, 32
      %v5893 = vpop.permute.xlu0 %5892
      %5894 = vrot.lane.b32.xlu0 %v5686, 32
      %v5895 = vpop.permute.xlu0 %5894
      %5896 = vrot.lane.b32.xlu0 %v5687, 32
      %v5897 = vpop.permute.xlu0 %5896
      %5898 = vrot.lane.b32.xlu0 %v5688, 32
      %v5899 = vpop.permute.xlu0 %5898
      %5900 = vrot.lane.b32.xlu0 %v5689, 32
      %v5901 = vpop.permute.xlu0 %5900
      %5902 = vrot.lane.b32.xlu0 %v5690, 32
      %v5903 = vpop.permute.xlu0 %5902
      %5904 = vrot.lane.b32.xlu0 %v5691, 32
      %v5905 = vpop.permute.xlu0 %5904
      %5906 = vrot.lane.b32.xlu0 %v5692, 32
      %v5907 = vpop.permute.xlu0 %5906
      %5908 = vrot.lane.b32.xlu0 %v5693, 32
      %v5909 = vpop.permute.xlu0 %5908
      %5910 = vrot.lane.b32.xlu0 %v5694, 32
      %v5911 = vpop.permute.xlu0 %5910
      %5912 = vrot.lane.b32.xlu0 %v5695, 32
      %v5913 = vpop.permute.xlu0 %5912
      %5914 = vrot.lane.b32.xlu0 %v5696, 32
      %v5915 = vpop.permute.xlu0 %5914
      %5916 = vrot.lane.b32.xlu0 %v5697, 32
      %v5917 = vpop.permute.xlu0 %5916
      %5918 = vrot.lane.b32.xlu0 %v5698, 32
      %v5919 = vpop.permute.xlu0 %5918
      %5920 = vrot.lane.b32.xlu0 %v5699, 32
      %v5921 = vpop.permute.xlu0 %5920
      %5922 = vrot.lane.b32.xlu0 %v5700, 32
      %v5923 = vpop.permute.xlu0 %5922
      %5924 = vrot.lane.b32.xlu0 %v5701, 32
      %v5925 = vpop.permute.xlu0 %5924
      %v5958 = vadd.f32 %v5798, %v5863
      %v5959 = vadd.f32 %v5799, %v5865
      %v5960 = vadd.f32 %v5800, %v5867
      %v5961 = vadd.f32 %v5801, %v5869
      %v5962 = vadd.f32 %v5802, %v5871
      %v5963 = vadd.f32 %v5803, %v5873
      %v5964 = vadd.f32 %v5804, %v5875
      %v5965 = vadd.f32 %v5805, %v5877
      %v5966 = vadd.f32 %v5806, %v5879
      %v5967 = vadd.f32 %v5807, %v5881
      %v5968 = vadd.f32 %v5808, %v5883
      %v5969 = vadd.f32 %v5809, %v5885
      %v5970 = vadd.f32 %v5810, %v5887
      %v5971 = vadd.f32 %v5811, %v5889
      %v5972 = vadd.f32 %v5812, %v5891
      %v5973 = vadd.f32 %v5813, %v5893
      %v5974 = vadd.f32 %v5814, %v5895
      %v5975 = vadd.f32 %v5815, %v5897
      %v5976 = vadd.f32 %v5816, %v5899
      %v5977 = vadd.f32 %v5817, %v5901
      %v5978 = vadd.f32 %v5818, %v5903
      %v5979 = vadd.f32 %v5819, %v5905
      %v5980 = vadd.f32 %v5820, %v5907
      %v5981 = vadd.f32 %v5821, %v5909
      %v5982 = vadd.f32 %v5822, %v5911
      %v5983 = vadd.f32 %v5823, %v5913
      %v5984 = vadd.f32 %v5824, %v5915
      %v5985 = vadd.f32 %v5825, %v5917
      %v5986 = vadd.f32 %v5826, %v5919
      %v5987 = vadd.f32 %v5827, %v5921
      %v5988 = vadd.f32 %v5828, %v5923
      %v5989 = vadd.f32 %v5829, %v5925
      %v5990 = vpack.c.bf16 %v5511, %v5510
      %v5991 = vpack.c.bf16 %v5513, %v5512
      %v5992 = vpack.c.bf16 %v5515, %v5514
      %v5993 = vpack.c.bf16 %v5517, %v5516
      %v5994 = vpack.c.bf16 %v5519, %v5518
      %v5995 = vpack.c.bf16 %v5521, %v5520
      %v5996 = vpack.c.bf16 %v5523, %v5522
      %v5997 = vpack.c.bf16 %v5525, %v5524
      %v5998 = vpack.c.bf16 %v5527, %v5526
      %v5999 = vpack.c.bf16 %v5529, %v5528
      %v6000 = vpack.c.bf16 %v5531, %v5530
      %v6001 = vpack.c.bf16 %v5533, %v5532
      %v6002 = vpack.c.bf16 %v5535, %v5534
      %v6003 = vpack.c.bf16 %v5537, %v5536
      %v6004 = vpack.c.bf16 %v5539, %v5538
      %v6005 = vpack.c.bf16 %v5541, %v5540
      %v6006 = vld [vmem:[%s4] sm:$0xf]
      %v6007 = vld [vmem:[%s4 + $0x4] sm:$0xf]
      %v6008 = vld [vmem:[%s4 + $0x8] sm:$0xf]
      %v6009 = vld [vmem:[%s4 + $0xc] sm:$0xf]
      %v6010 = vpack.c.bf16 %v5959, %v5958
      %v6011 = vpack.c.bf16 %v5961, %v5960
      %v6012 = vpack.c.bf16 %v5963, %v5962
      %v6013 = vpack.c.bf16 %v5965, %v5964
      %v6014 = vpack.c.bf16 %v5967, %v5966
      %v6015 = vpack.c.bf16 %v5969, %v5968
      %v6016 = vpack.c.bf16 %v5971, %v5970
      %v6017 = vpack.c.bf16 %v5973, %v5972
      %v6018 = vpack.c.bf16 %v5975, %v5974
      %v6019 = vpack.c.bf16 %v5977, %v5976
      %v6020 = vpack.c.bf16 %v5979, %v5978
      %v6021 = vpack.c.bf16 %v5981, %v5980
      %v6022 = vpack.c.bf16 %v5983, %v5982
      %v6023 = vpack.c.bf16 %v5985, %v5984
      %v6024 = vpack.c.bf16 %v5987, %v5986
      %v6025 = vpack.c.bf16 %v5989, %v5988
      %v6026 = vld [vmem:[%s4 + $0x10] sm:$0xf]
      %v6027 = vld [vmem:[%s4 + $0x14] sm:$0xf]
      %v6028 = vld [vmem:[%s4 + $0x18] sm:$0xf]
      %v6029 = vld [vmem:[%s4 + $0x1c] sm:$0xf]
      %6046 = vrot.lane.b32.xlu0 %v6010, 96
      %v6047 = vpop.permute.xlu0 %6046
      %6048 = vrot.lane.b32.xlu0 %v6011, 96
      %v6049 = vpop.permute.xlu0 %6048
      %6050 = vrot.lane.b32.xlu0 %v6012, 96
      %v6051 = vpop.permute.xlu0 %6050
      %6052 = vrot.lane.b32.xlu0 %v6013, 96
      %v6053 = vpop.permute.xlu0 %6052
      %6054 = vrot.lane.b32.xlu0 %v6014, 96
      %v6055 = vpop.permute.xlu0 %6054
      %6056 = vrot.lane.b32.xlu0 %v6015, 96
      %v6057 = vpop.permute.xlu0 %6056
      %6058 = vrot.lane.b32.xlu0 %v6016, 96
      %v6059 = vpop.permute.xlu0 %6058
      %6060 = vrot.lane.b32.xlu0 %v6017, 96
      %v6061 = vpop.permute.xlu0 %6060
      %6062 = vrot.lane.b32.xlu0 %v6018, 96
      %v6063 = vpop.permute.xlu0 %6062
      %6064 = vrot.lane.b32.xlu0 %v6019, 96
      %v6065 = vpop.permute.xlu0 %6064
      %6066 = vrot.lane.b32.xlu0 %v6020, 96
      %v6067 = vpop.permute.xlu0 %6066
      %6068 = vrot.lane.b32.xlu0 %v6021, 96
      %v6069 = vpop.permute.xlu0 %6068
      %6070 = vrot.lane.b32.xlu0 %v6022, 96
      %v6071 = vpop.permute.xlu0 %6070
      %6072 = vrot.lane.b32.xlu0 %v6023, 96
      %v6073 = vpop.permute.xlu0 %6072
      %6074 = vrot.lane.b32.xlu0 %v6024, 96
      %v6075 = vpop.permute.xlu0 %6074
      %6076 = vrot.lane.b32.xlu0 %v6025, 96
      %v6077 = vpop.permute.xlu0 %6076
      %v6082 = vunpack.c.l.b16 %v6026
      %v6083 = vunpack.c.l.b16 %v6027
      %v6084 = vunpack.c.l.b16 %v6028
      %v6085 = vunpack.c.l.b16 %v6029
      %v6086 = vpack.c.b16 %v6083, %v6082
      %v6087 = vpack.c.b16 %v6085, %v6084
      %vm6090 = vcmask 261120
      %v6092 = vsel %vm6090, %v6047, 0
      %v6095 = vsel %vm6090, %v6049, 0
      %v6098 = vsel %vm6090, %v6051, 0
      %v6101 = vsel %vm6090, %v6053, 0
      %v6104 = vsel %vm6090, %v6055, 0
      %v6107 = vsel %vm6090, %v6057, 0
      %v6110 = vsel %vm6090, %v6059, 0
      %v6113 = vsel %vm6090, %v6061, 0
      %v6116 = vsel %vm6090, %v6063, 0
      %v6119 = vsel %vm6090, %v6065, 0
      %v6122 = vsel %vm6090, %v6067, 0
      %v6125 = vsel %vm6090, %v6069, 0
      %v6128 = vsel %vm6090, %v6071, 0
      %v6131 = vsel %vm6090, %v6073, 0
      %v6134 = vsel %vm6090, %v6075, 0
      %v6137 = vsel %vm6090, %v6077, 0
      %6139 = vmatpush.bf16.msra.mxu0 0
      %6140 = vmatpush.bf16.msra.mxu0 0
      %6141 = vmatpush.bf16.msra.mxu0 0
      %6142 = vmatpush.bf16.msra.mxu0 0
      %6143 = vmatpush.bf16.msra.mxu0 0
      %6144 = vmatpush.bf16.msra.mxu0 0
      %6145 = vmatpush.bf16.msra.mxu0 %v6087
      %6146 = vmatpush.bf16.msra.mxu0 %v6086
      %6147 = vmatmul.bf16.gmra.mxu0 %v6092
      %v6148 = vpop.f32.mrf.mxu0
      %v6149 = vadd.f32 0.0, %v6148
      %v6150 = vpop.f32.mrf.mxu0
      %v6151 = vadd.f32 0.0, %v6150
      %6152 = vmatmul.bf16.gmra.mxu0 %v6095
      %v6153 = vpop.f32.mrf.mxu0
      %v6154 = vadd.f32 0.0, %v6153
      %v6155 = vpop.f32.mrf.mxu0
      %v6156 = vadd.f32 0.0, %v6155
      %6157 = vmatmul.bf16.gmra.mxu0 %v6098
      %v6158 = vpop.f32.mrf.mxu0
      %v6159 = vadd.f32 0.0, %v6158
      %v6160 = vpop.f32.mrf.mxu0
      %v6161 = vadd.f32 0.0, %v6160
      %6162 = vmatmul.bf16.gmra.mxu0 %v6101
      %v6163 = vpop.f32.mrf.mxu0
      %v6164 = vadd.f32 0.0, %v6163
      %v6165 = vpop.f32.mrf.mxu0
      %v6166 = vadd.f32 0.0, %v6165
      %6167 = vmatmul.bf16.gmra.mxu0 %v6104
      %v6168 = vpop.f32.mrf.mxu0
      %v6169 = vadd.f32 0.0, %v6168
      %v6170 = vpop.f32.mrf.mxu0
      %v6171 = vadd.f32 0.0, %v6170
      %6172 = vmatmul.bf16.gmra.mxu0 %v6107
      %v6173 = vpop.f32.mrf.mxu0
      %v6174 = vadd.f32 0.0, %v6173
      %v6175 = vpop.f32.mrf.mxu0
      %v6176 = vadd.f32 0.0, %v6175
      %6177 = vmatmul.bf16.gmra.mxu0 %v6110
      %v6178 = vpop.f32.mrf.mxu0
      %v6179 = vadd.f32 0.0, %v6178
      %v6180 = vpop.f32.mrf.mxu0
      %v6181 = vadd.f32 0.0, %v6180
      %6182 = vmatmul.bf16.gmra.mxu0 %v6113
      %v6183 = vpop.f32.mrf.mxu0
      %v6184 = vadd.f32 0.0, %v6183
      %v6185 = vpop.f32.mrf.mxu0
      %v6186 = vadd.f32 0.0, %v6185
      %6187 = vmatmul.bf16.gmra.mxu0 %v6116
      %v6188 = vpop.f32.mrf.mxu0
      %v6189 = vadd.f32 0.0, %v6188
      %v6190 = vpop.f32.mrf.mxu0
      %v6191 = vadd.f32 0.0, %v6190
      %6192 = vmatmul.bf16.gmra.mxu0 %v6119
      %v6193 = vpop.f32.mrf.mxu0
      %v6194 = vadd.f32 0.0, %v6193
      %v6195 = vpop.f32.mrf.mxu0
      %v6196 = vadd.f32 0.0, %v6195
      %6197 = vmatmul.bf16.gmra.mxu0 %v6122
      %v6198 = vpop.f32.mrf.mxu0
      %v6199 = vadd.f32 0.0, %v6198
      %v6200 = vpop.f32.mrf.mxu0
      %v6201 = vadd.f32 0.0, %v6200
      %6202 = vmatmul.bf16.gmra.mxu0 %v6125
      %v6203 = vpop.f32.mrf.mxu0
      %v6204 = vadd.f32 0.0, %v6203
      %v6205 = vpop.f32.mrf.mxu0
      %v6206 = vadd.f32 0.0, %v6205
      %6207 = vmatmul.bf16.gmra.mxu0 %v6128
      %v6208 = vpop.f32.mrf.mxu0
      %v6209 = vadd.f32 0.0, %v6208
      %v6210 = vpop.f32.mrf.mxu0
      %v6211 = vadd.f32 0.0, %v6210
      %6212 = vmatmul.bf16.gmra.mxu0 %v6131
      %v6213 = vpop.f32.mrf.mxu0
      %v6214 = vadd.f32 0.0, %v6213
      %v6215 = vpop.f32.mrf.mxu0
      %v6216 = vadd.f32 0.0, %v6215
      %6217 = vmatmul.bf16.gmra.mxu0 %v6134
      %v6218 = vpop.f32.mrf.mxu0
      %v6219 = vadd.f32 0.0, %v6218
      %v6220 = vpop.f32.mrf.mxu0
      %v6221 = vadd.f32 0.0, %v6220
      %6222 = vmatmul.bf16.gmra.mxu0 %v6137
      %v6223 = vpop.f32.mrf.mxu0
      %v6224 = vadd.f32 0.0, %v6223
      %v6225 = vpop.f32.mrf.mxu0
      %v6226 = vadd.f32 0.0, %v6225
      %6227 = vdwg.mxu0
      %6244 = vrot.lane.b32.xlu0 %v5990, 96
      %v6245 = vpop.permute.xlu0 %6244
      %6246 = vrot.lane.b32.xlu0 %v5991, 96
      %v6247 = vpop.permute.xlu0 %6246
      %6248 = vrot.lane.b32.xlu0 %v5992, 96
      %v6249 = vpop.permute.xlu0 %6248
      %6250 = vrot.lane.b32.xlu0 %v5993, 96
      %v6251 = vpop.permute.xlu0 %6250
      %6252 = vrot.lane.b32.xlu0 %v5994, 96
      %v6253 = vpop.permute.xlu0 %6252
      %6254 = vrot.lane.b32.xlu0 %v5995, 96
      %v6255 = vpop.permute.xlu0 %6254
      %6256 = vrot.lane.b32.xlu0 %v5996, 96
      %v6257 = vpop.permute.xlu0 %6256
      %6258 = vrot.lane.b32.xlu0 %v5997, 96
      %v6259 = vpop.permute.xlu0 %6258
      %6260 = vrot.lane.b32.xlu0 %v5998, 96
      %v6261 = vpop.permute.xlu0 %6260
      %6262 = vrot.lane.b32.xlu0 %v5999, 96
      %v6263 = vpop.permute.xlu0 %6262
      %6264 = vrot.lane.b32.xlu0 %v6000, 96
      %v6265 = vpop.permute.xlu0 %6264
      %6266 = vrot.lane.b32.xlu0 %v6001, 96
      %v6267 = vpop.permute.xlu0 %6266
      %6268 = vrot.lane.b32.xlu0 %v6002, 96
      %v6269 = vpop.permute.xlu0 %6268
      %6270 = vrot.lane.b32.xlu0 %v6003, 96
      %v6271 = vpop.permute.xlu0 %6270
      %6272 = vrot.lane.b32.xlu0 %v6004, 96
      %v6273 = vpop.permute.xlu0 %6272
      %6274 = vrot.lane.b32.xlu0 %v6005, 96
      %v6275 = vpop.permute.xlu0 %6274
      %v6280 = vunpack.c.l.b16 %v6006
      %v6281 = vunpack.c.l.b16 %v6007
      %v6282 = vunpack.c.l.b16 %v6008
      %v6283 = vunpack.c.l.b16 %v6009
      %v6284 = vpack.c.b16 %v6281, %v6280
      %v6285 = vpack.c.b16 %v6283, %v6282
      %v6289 = vsel %vm6090, %v6245, 0
      %v6292 = vsel %vm6090, %v6247, 0
      %v6295 = vsel %vm6090, %v6249, 0
      %v6298 = vsel %vm6090, %v6251, 0
      %v6301 = vsel %vm6090, %v6253, 0
      %v6304 = vsel %vm6090, %v6255, 0
      %v6307 = vsel %vm6090, %v6257, 0
      %v6310 = vsel %vm6090, %v6259, 0
      %v6313 = vsel %vm6090, %v6261, 0
      %v6316 = vsel %vm6090, %v6263, 0
      %v6319 = vsel %vm6090, %v6265, 0
      %v6322 = vsel %vm6090, %v6267, 0
      %v6325 = vsel %vm6090, %v6269, 0
      %v6328 = vsel %vm6090, %v6271, 0
      %v6331 = vsel %vm6090, %v6273, 0
      %v6334 = vsel %vm6090, %v6275, 0
      %6336 = vmatpush.bf16.msra.mxu0 0
      %6337 = vmatpush.bf16.msra.mxu0 0
      %6338 = vmatpush.bf16.msra.mxu0 0
      %6339 = vmatpush.bf16.msra.mxu0 0
      %6340 = vmatpush.bf16.msra.mxu0 0
      %6341 = vmatpush.bf16.msra.mxu0 0
      %6342 = vmatpush.bf16.msra.mxu0 %v6285
      %6343 = vmatpush.bf16.msra.mxu0 %v6284
      %6344 = vmatmul.bf16.gmra.mxu0 %v6289
      %v6345 = vpop.f32.mrf.mxu0
      %v6346 = vadd.f32 %v6149, %v6345
      %v6347 = vpop.f32.mrf.mxu0
      %v6348 = vadd.f32 %v6151, %v6347
      %6349 = vmatmul.bf16.gmra.mxu0 %v6292
      %v6350 = vpop.f32.mrf.mxu0
      %v6351 = vadd.f32 %v6154, %v6350
      %v6352 = vpop.f32.mrf.mxu0
      %v6353 = vadd.f32 %v6156, %v6352
      %6354 = vmatmul.bf16.gmra.mxu0 %v6295
      %v6355 = vpop.f32.mrf.mxu0
      %v6356 = vadd.f32 %v6159, %v6355
      %v6357 = vpop.f32.mrf.mxu0
      %v6358 = vadd.f32 %v6161, %v6357
      %6359 = vmatmul.bf16.gmra.mxu0 %v6298
      %v6360 = vpop.f32.mrf.mxu0
      %v6361 = vadd.f32 %v6164, %v6360
      %v6362 = vpop.f32.mrf.mxu0
      %v6363 = vadd.f32 %v6166, %v6362
      %6364 = vmatmul.bf16.gmra.mxu0 %v6301
      %v6365 = vpop.f32.mrf.mxu0
      %v6366 = vadd.f32 %v6169, %v6365
      %v6367 = vpop.f32.mrf.mxu0
      %v6368 = vadd.f32 %v6171, %v6367
      %6369 = vmatmul.bf16.gmra.mxu0 %v6304
      %v6370 = vpop.f32.mrf.mxu0
      %v6371 = vadd.f32 %v6174, %v6370
      %v6372 = vpop.f32.mrf.mxu0
      %v6373 = vadd.f32 %v6176, %v6372
      %6374 = vmatmul.bf16.gmra.mxu0 %v6307
      %v6375 = vpop.f32.mrf.mxu0
      %v6376 = vadd.f32 %v6179, %v6375
      %v6377 = vpop.f32.mrf.mxu0
      %v6378 = vadd.f32 %v6181, %v6377
      %6379 = vmatmul.bf16.gmra.mxu0 %v6310
      %v6380 = vpop.f32.mrf.mxu0
      %v6381 = vadd.f32 %v6184, %v6380
      %v6382 = vpop.f32.mrf.mxu0
      %v6383 = vadd.f32 %v6186, %v6382
      %6384 = vmatmul.bf16.gmra.mxu0 %v6313
      %v6385 = vpop.f32.mrf.mxu0
      %v6386 = vadd.f32 %v6189, %v6385
      %v6387 = vpop.f32.mrf.mxu0
      %v6388 = vadd.f32 %v6191, %v6387
      %6389 = vmatmul.bf16.gmra.mxu0 %v6316
      %v6390 = vpop.f32.mrf.mxu0
      %v6391 = vadd.f32 %v6194, %v6390
      %v6392 = vpop.f32.mrf.mxu0
      %v6393 = vadd.f32 %v6196, %v6392
      %6394 = vmatmul.bf16.gmra.mxu0 %v6319
      %v6395 = vpop.f32.mrf.mxu0
      %v6396 = vadd.f32 %v6199, %v6395
      %v6397 = vpop.f32.mrf.mxu0
      %v6398 = vadd.f32 %v6201, %v6397
      %6399 = vmatmul.bf16.gmra.mxu0 %v6322
      %v6400 = vpop.f32.mrf.mxu0
      %v6401 = vadd.f32 %v6204, %v6400
      %v6402 = vpop.f32.mrf.mxu0
      %v6403 = vadd.f32 %v6206, %v6402
      %6404 = vmatmul.bf16.gmra.mxu0 %v6325
      %v6405 = vpop.f32.mrf.mxu0
      %v6406 = vadd.f32 %v6209, %v6405
      %v6407 = vpop.f32.mrf.mxu0
      %v6408 = vadd.f32 %v6211, %v6407
      %6409 = vmatmul.bf16.gmra.mxu0 %v6328
      %v6410 = vpop.f32.mrf.mxu0
      %v6411 = vadd.f32 %v6214, %v6410
      %v6412 = vpop.f32.mrf.mxu0
      %v6413 = vadd.f32 %v6216, %v6412
      %6414 = vmatmul.bf16.gmra.mxu0 %v6331
      %v6415 = vpop.f32.mrf.mxu0
      %v6416 = vadd.f32 %v6219, %v6415
      %v6417 = vpop.f32.mrf.mxu0
      %v6418 = vadd.f32 %v6221, %v6417
      %6419 = vmatmul.bf16.gmra.mxu0 %v6334
      %v6420 = vpop.f32.mrf.mxu0
      %v6421 = vadd.f32 %v6224, %v6420
      %v6422 = vpop.f32.mrf.mxu0
      %v6423 = vadd.f32 %v6226, %v6422
      %6424 = vdwg.mxu0
      %v6425 = vld [vmem:[%s5] sm:$0x1]
      %v6427 = vperm.slane %v6425, 0
      %v6429 = vadd.f32 %v6346, %v6427
      %v6430 = vadd.f32 %v6348, %v6427
      %v6431 = vadd.f32 %v6351, %v6427
      %v6432 = vadd.f32 %v6353, %v6427
      %v6433 = vadd.f32 %v6356, %v6427
      %v6434 = vadd.f32 %v6358, %v6427
      %v6435 = vadd.f32 %v6361, %v6427
      %v6436 = vadd.f32 %v6363, %v6427
      %v6437 = vadd.f32 %v6366, %v6427
      %v6438 = vadd.f32 %v6368, %v6427
      %v6439 = vadd.f32 %v6371, %v6427
      %v6440 = vadd.f32 %v6373, %v6427
      %v6441 = vadd.f32 %v6376, %v6427
      %v6442 = vadd.f32 %v6378, %v6427
      %v6443 = vadd.f32 %v6381, %v6427
      %v6444 = vadd.f32 %v6383, %v6427
      %v6445 = vadd.f32 %v6386, %v6427
      %v6446 = vadd.f32 %v6388, %v6427
      %v6447 = vadd.f32 %v6391, %v6427
      %v6448 = vadd.f32 %v6393, %v6427
      %v6449 = vadd.f32 %v6396, %v6427
      %v6450 = vadd.f32 %v6398, %v6427
      %v6451 = vadd.f32 %v6401, %v6427
      %v6452 = vadd.f32 %v6403, %v6427
      %v6453 = vadd.f32 %v6406, %v6427
      %v6454 = vadd.f32 %v6408, %v6427
      %v6455 = vadd.f32 %v6411, %v6427
      %v6456 = vadd.f32 %v6413, %v6427
      %v6457 = vadd.f32 %v6416, %v6427
      %v6458 = vadd.f32 %v6418, %v6427
      %v6459 = vadd.f32 %v6421, %v6427
      %v6460 = vadd.f32 %v6423, %v6427
      %6493 = vrot.lane.b32.xlu0 %v6429, 96
      %v6494 = vpop.permute.xlu0 %6493
      %6495 = vrot.lane.b32.xlu0 %v6430, 96
      %v6496 = vpop.permute.xlu0 %6495
      %6497 = vrot.lane.b32.xlu0 %v6431, 96
      %v6498 = vpop.permute.xlu0 %6497
      %6499 = vrot.lane.b32.xlu0 %v6432, 96
      %v6500 = vpop.permute.xlu0 %6499
      %6501 = vrot.lane.b32.xlu0 %v6433, 96
      %v6502 = vpop.permute.xlu0 %6501
      %6503 = vrot.lane.b32.xlu0 %v6434, 96
      %v6504 = vpop.permute.xlu0 %6503
      %6505 = vrot.lane.b32.xlu0 %v6435, 96
      %v6506 = vpop.permute.xlu0 %6505
      %6507 = vrot.lane.b32.xlu0 %v6436, 96
      %v6508 = vpop.permute.xlu0 %6507
      %6509 = vrot.lane.b32.xlu0 %v6437, 96
      %v6510 = vpop.permute.xlu0 %6509
      %6511 = vrot.lane.b32.xlu0 %v6438, 96
      %v6512 = vpop.permute.xlu0 %6511
      %6513 = vrot.lane.b32.xlu0 %v6439, 96
      %v6514 = vpop.permute.xlu0 %6513
      %6515 = vrot.lane.b32.xlu0 %v6440, 96
      %v6516 = vpop.permute.xlu0 %6515
      %6517 = vrot.lane.b32.xlu0 %v6441, 96
      %v6518 = vpop.permute.xlu0 %6517
      %6519 = vrot.lane.b32.xlu0 %v6442, 96
      %v6520 = vpop.permute.xlu0 %6519
      %6521 = vrot.lane.b32.xlu0 %v6443, 96
      %v6522 = vpop.permute.xlu0 %6521
      %6523 = vrot.lane.b32.xlu0 %v6444, 96
      %v6524 = vpop.permute.xlu0 %6523
      %6525 = vrot.lane.b32.xlu0 %v6445, 96
      %v6526 = vpop.permute.xlu0 %6525
      %6527 = vrot.lane.b32.xlu0 %v6446, 96
      %v6528 = vpop.permute.xlu0 %6527
      %6529 = vrot.lane.b32.xlu0 %v6447, 96
      %v6530 = vpop.permute.xlu0 %6529
      %6531 = vrot.lane.b32.xlu0 %v6448, 96
      %v6532 = vpop.permute.xlu0 %6531
      %6533 = vrot.lane.b32.xlu0 %v6449, 96
      %v6534 = vpop.permute.xlu0 %6533
      %6535 = vrot.lane.b32.xlu0 %v6450, 96
      %v6536 = vpop.permute.xlu0 %6535
      %6537 = vrot.lane.b32.xlu0 %v6451, 96
      %v6538 = vpop.permute.xlu0 %6537
      %6539 = vrot.lane.b32.xlu0 %v6452, 96
      %v6540 = vpop.permute.xlu0 %6539
      %6541 = vrot.lane.b32.xlu0 %v6453, 96
      %v6542 = vpop.permute.xlu0 %6541
      %6543 = vrot.lane.b32.xlu0 %v6454, 96
      %v6544 = vpop.permute.xlu0 %6543
      %6545 = vrot.lane.b32.xlu0 %v6455, 96
      %v6546 = vpop.permute.xlu0 %6545
      %6547 = vrot.lane.b32.xlu0 %v6456, 96
      %v6548 = vpop.permute.xlu0 %6547
      %6549 = vrot.lane.b32.xlu0 %v6457, 96
      %v6550 = vpop.permute.xlu0 %6549
      %6551 = vrot.lane.b32.xlu0 %v6458, 96
      %v6552 = vpop.permute.xlu0 %6551
      %6553 = vrot.lane.b32.xlu0 %v6459, 96
      %v6554 = vpop.permute.xlu0 %6553
      %6555 = vrot.lane.b32.xlu0 %v6460, 96
      %v6556 = vpop.permute.xlu0 %6555
      %v6589 = vadd.f32 %v2870, %v6494
      %v6590 = vadd.f32 %v2872, %v6496
      %v6591 = vadd.f32 %v2875, %v6498
      %v6592 = vadd.f32 %v2877, %v6500
      %v6593 = vadd.f32 %v2880, %v6502
      %v6594 = vadd.f32 %v2882, %v6504
      %v6595 = vadd.f32 %v2885, %v6506
      %v6596 = vadd.f32 %v2887, %v6508
      %v6597 = vadd.f32 %v2890, %v6510
      %v6598 = vadd.f32 %v2892, %v6512
      %v6599 = vadd.f32 %v2895, %v6514
      %v6600 = vadd.f32 %v2897, %v6516
      %v6601 = vadd.f32 %v2900, %v6518
      %v6602 = vadd.f32 %v2902, %v6520
      %v6603 = vadd.f32 %v2905, %v6522
      %v6604 = vadd.f32 %v2907, %v6524
      %v6605 = vadd.f32 %v2910, %v6526
      %v6606 = vadd.f32 %v2912, %v6528
      %v6607 = vadd.f32 %v2915, %v6530
      %v6608 = vadd.f32 %v2917, %v6532
      %v6609 = vadd.f32 %v2920, %v6534
      %v6610 = vadd.f32 %v2922, %v6536
      %v6611 = vadd.f32 %v2925, %v6538
      %v6612 = vadd.f32 %v2927, %v6540
      %v6613 = vadd.f32 %v2930, %v6542
      %v6614 = vadd.f32 %v2932, %v6544
      %v6615 = vadd.f32 %v2935, %v6546
      %v6616 = vadd.f32 %v2937, %v6548
      %v6617 = vadd.f32 %v2940, %v6550
      %v6618 = vadd.f32 %v2942, %v6552
      %v6619 = vadd.f32 %v2945, %v6554
      %v6620 = vadd.f32 %v2947, %v6556
      %v6621 = vxor.u32 %v6589, 2147483648
      %v6622 = vxor.u32 %v6590, 2147483648
      %v6623 = vxor.u32 %v6591, 2147483648
      %v6624 = vxor.u32 %v6592, 2147483648
      %v6625 = vxor.u32 %v6593, 2147483648
      %v6626 = vxor.u32 %v6594, 2147483648
      %v6627 = vxor.u32 %v6595, 2147483648
      %v6628 = vxor.u32 %v6596, 2147483648
      %v6629 = vxor.u32 %v6597, 2147483648
      %v6630 = vxor.u32 %v6598, 2147483648
      %v6631 = vxor.u32 %v6599, 2147483648
      %v6632 = vxor.u32 %v6600, 2147483648
      %v6633 = vxor.u32 %v6601, 2147483648
      %v6634 = vxor.u32 %v6602, 2147483648
      %v6635 = vxor.u32 %v6603, 2147483648
      %v6636 = vxor.u32 %v6604, 2147483648
      %v6637 = vxor.u32 %v6605, 2147483648
      %v6638 = vxor.u32 %v6606, 2147483648
      %v6639 = vxor.u32 %v6607, 2147483648
      %v6640 = vxor.u32 %v6608, 2147483648
      %v6641 = vxor.u32 %v6609, 2147483648
      %v6642 = vxor.u32 %v6610, 2147483648
      %v6643 = vxor.u32 %v6611, 2147483648
      %v6644 = vxor.u32 %v6612, 2147483648
      %v6645 = vxor.u32 %v6613, 2147483648
      %v6646 = vxor.u32 %v6614, 2147483648
      %v6647 = vxor.u32 %v6615, 2147483648
      %v6648 = vxor.u32 %v6616, 2147483648
      %v6649 = vxor.u32 %v6617, 2147483648
      %v6650 = vxor.u32 %v6618, 2147483648
      %v6651 = vxor.u32 %v6619, 2147483648
      %v6652 = vxor.u32 %v6620, 2147483648
      %v6653 = vmul.f32 %v6621, 1.442695
      %v6654 = vpow.pop %v6653
      %v6655 = vmul.f32 %v6622, 1.442695
      %v6656 = vpow.pop %v6655
      %v6657 = vmul.f32 %v6623, 1.442695
      %v6658 = vpow.pop %v6657
      %v6659 = vmul.f32 %v6624, 1.442695
      %v6660 = vpow.pop %v6659
      %v6661 = vmul.f32 %v6625, 1.442695
      %v6662 = vpow.pop %v6661
      %v6663 = vmul.f32 %v6626, 1.442695
      %v6664 = vpow.pop %v6663
      %v6665 = vmul.f32 %v6627, 1.442695
      %v6666 = vpow.pop %v6665
      %v6667 = vmul.f32 %v6628, 1.442695
      %v6668 = vpow.pop %v6667
      %v6669 = vmul.f32 %v6629, 1.442695
      %v6670 = vpow.pop %v6669
      %v6671 = vmul.f32 %v6630, 1.442695
      %v6672 = vpow.pop %v6671
      %v6673 = vmul.f32 %v6631, 1.442695
      %v6674 = vpow.pop %v6673
      %v6675 = vmul.f32 %v6632, 1.442695
      %v6676 = vpow.pop %v6675
      %v6677 = vmul.f32 %v6633, 1.442695
      %v6678 = vpow.pop %v6677
      %v6679 = vmul.f32 %v6634, 1.442695
      %v6680 = vpow.pop %v6679
      %v6681 = vmul.f32 %v6635, 1.442695
      %v6682 = vpow.pop %v6681
      %v6683 = vmul.f32 %v6636, 1.442695
      %v6684 = vpow.pop %v6683
      %v6685 = vmul.f32 %v6637, 1.442695
      %v6686 = vpow.pop %v6685
      %v6687 = vmul.f32 %v6638, 1.442695
      %v6688 = vpow.pop %v6687
      %v6689 = vmul.f32 %v6639, 1.442695
      %v6690 = vpow.pop %v6689
      %v6691 = vmul.f32 %v6640, 1.442695
      %v6692 = vpow.pop %v6691
      %v6693 = vmul.f32 %v6641, 1.442695
      %v6694 = vpow.pop %v6693
      %v6695 = vmul.f32 %v6642, 1.442695
      %v6696 = vpow.pop %v6695
      %v6697 = vmul.f32 %v6643, 1.442695
      %v6698 = vpow.pop %v6697
      %v6699 = vmul.f32 %v6644, 1.442695
      %v6700 = vpow.pop %v6699
      %v6701 = vmul.f32 %v6645, 1.442695
      %v6702 = vpow.pop %v6701
      %v6703 = vmul.f32 %v6646, 1.442695
      %v6704 = vpow.pop %v6703
      %v6705 = vmul.f32 %v6647, 1.442695
      %v6706 = vpow.pop %v6705
      %v6707 = vmul.f32 %v6648, 1.442695
      %v6708 = vpow.pop %v6707
      %v6709 = vmul.f32 %v6649, 1.442695
      %v6710 = vpow.pop %v6709
      %v6711 = vmul.f32 %v6650, 1.442695
      %v6712 = vpow.pop %v6711
      %v6713 = vmul.f32 %v6651, 1.442695
      %v6714 = vpow.pop %v6713
      %v6715 = vmul.f32 %v6652, 1.442695
      %v6716 = vpow.pop %v6715
      %v6717 = vadd.f32 %v6654, 1.0
      %v6718 = vadd.f32 %v6656, 1.0
      %v6719 = vadd.f32 %v6658, 1.0
      %v6720 = vadd.f32 %v6660, 1.0
      %v6721 = vadd.f32 %v6662, 1.0
      %v6722 = vadd.f32 %v6664, 1.0
      %v6723 = vadd.f32 %v6666, 1.0
      %v6724 = vadd.f32 %v6668, 1.0
      %v6725 = vadd.f32 %v6670, 1.0
      %v6726 = vadd.f32 %v6672, 1.0
      %v6727 = vadd.f32 %v6674, 1.0
      %v6728 = vadd.f32 %v6676, 1.0
      %v6729 = vadd.f32 %v6678, 1.0
      %v6730 = vadd.f32 %v6680, 1.0
      %v6731 = vadd.f32 %v6682, 1.0
      %v6732 = vadd.f32 %v6684, 1.0
      %v6733 = vadd.f32 %v6686, 1.0
      %v6734 = vadd.f32 %v6688, 1.0
      %v6735 = vadd.f32 %v6690, 1.0
      %v6736 = vadd.f32 %v6692, 1.0
      %v6737 = vadd.f32 %v6694, 1.0
      %v6738 = vadd.f32 %v6696, 1.0
      %v6739 = vadd.f32 %v6698, 1.0
      %v6740 = vadd.f32 %v6700, 1.0
      %v6741 = vadd.f32 %v6702, 1.0
      %v6742 = vadd.f32 %v6704, 1.0
      %v6743 = vadd.f32 %v6706, 1.0
      %v6744 = vadd.f32 %v6708, 1.0
      %v6745 = vadd.f32 %v6710, 1.0
      %v6746 = vadd.f32 %v6712, 1.0
      %v6747 = vadd.f32 %v6714, 1.0
      %v6748 = vadd.f32 %v6716, 1.0
      %v6749 = vrcp.pop %v6717
      %v6750 = vmul.f32 %v6717, %v6749
      %v6751 = vsub.f32 1.0, %v6750
      %v6752 = vmul.f32 %v6749, %v6751
      %v6753 = vadd.f32 %v6749, %v6752
      %vm6754 = vweird.f32 %v6717
      %vm6755 = vweird.f32 %v6749
      %vm6756 = vmor %vm6754, %vm6755
      %v6757 = vsel %vm6756, %v6749, %v6753
      %v6758 = vand.u32 2147483647, %v6717
      %vm6759 = vcmp.eq.f32.partialorder %v6758, 8.507059e+37
      %v6760 = vand.u32 %v6717, 2147483648
      %v6761 = vor.u32 1.1754944e-38, %v6760
      %v6762 = vsel %vm6759, %v6761, %v6757
      %v6763 = vmul.f32 1.0, %v6762
      %v6764 = vrcp.pop %v6718
      %v6765 = vmul.f32 %v6718, %v6764
      %v6766 = vsub.f32 1.0, %v6765
      %v6767 = vmul.f32 %v6764, %v6766
      %v6768 = vadd.f32 %v6764, %v6767
      %vm6769 = vweird.f32 %v6718
      %vm6770 = vweird.f32 %v6764
      %vm6771 = vmor %vm6769, %vm6770
      %v6772 = vsel %vm6771, %v6764, %v6768
      %v6773 = vand.u32 2147483647, %v6718
      %vm6774 = vcmp.eq.f32.partialorder %v6773, 8.507059e+37
      %v6775 = vand.u32 %v6718, 2147483648
      %v6776 = vor.u32 1.1754944e-38, %v6775
      %v6777 = vsel %vm6774, %v6776, %v6772
      %v6778 = vmul.f32 1.0, %v6777
      %v6779 = vrcp.pop %v6719
      %v6780 = vmul.f32 %v6719, %v6779
      %v6781 = vsub.f32 1.0, %v6780
      %v6782 = vmul.f32 %v6779, %v6781
      %v6783 = vadd.f32 %v6779, %v6782
      %vm6784 = vweird.f32 %v6719
      %vm6785 = vweird.f32 %v6779
      %vm6786 = vmor %vm6784, %vm6785
      %v6787 = vsel %vm6786, %v6779, %v6783
      %v6788 = vand.u32 2147483647, %v6719
      %vm6789 = vcmp.eq.f32.partialorder %v6788, 8.507059e+37
      %v6790 = vand.u32 %v6719, 2147483648
      %v6791 = vor.u32 1.1754944e-38, %v6790
      %v6792 = vsel %vm6789, %v6791, %v6787
      %v6793 = vmul.f32 1.0, %v6792
      %v6794 = vrcp.pop %v6720
      %v6795 = vmul.f32 %v6720, %v6794
      %v6796 = vsub.f32 1.0, %v6795
      %v6797 = vmul.f32 %v6794, %v6796
      %v6798 = vadd.f32 %v6794, %v6797
      %vm6799 = vweird.f32 %v6720
      %vm6800 = vweird.f32 %v6794
      %vm6801 = vmor %vm6799, %vm6800
      %v6802 = vsel %vm6801, %v6794, %v6798
      %v6803 = vand.u32 2147483647, %v6720
      %vm6804 = vcmp.eq.f32.partialorder %v6803, 8.507059e+37
      %v6805 = vand.u32 %v6720, 2147483648
      %v6806 = vor.u32 1.1754944e-38, %v6805
      %v6807 = vsel %vm6804, %v6806, %v6802
      %v6808 = vmul.f32 1.0, %v6807
      %v6809 = vrcp.pop %v6721
      %v6810 = vmul.f32 %v6721, %v6809
      %v6811 = vsub.f32 1.0, %v6810
      %v6812 = vmul.f32 %v6809, %v6811
      %v6813 = vadd.f32 %v6809, %v6812
      %vm6814 = vweird.f32 %v6721
      %vm6815 = vweird.f32 %v6809
      %vm6816 = vmor %vm6814, %vm6815
      %v6817 = vsel %vm6816, %v6809, %v6813
      %v6818 = vand.u32 2147483647, %v6721
      %vm6819 = vcmp.eq.f32.partialorder %v6818, 8.507059e+37
      %v6820 = vand.u32 %v6721, 2147483648
      %v6821 = vor.u32 1.1754944e-38, %v6820
      %v6822 = vsel %vm6819, %v6821, %v6817
      %v6823 = vmul.f32 1.0, %v6822
      %v6824 = vrcp.pop %v6722
      %v6825 = vmul.f32 %v6722, %v6824
      %v6826 = vsub.f32 1.0, %v6825
      %v6827 = vmul.f32 %v6824, %v6826
      %v6828 = vadd.f32 %v6824, %v6827
      %vm6829 = vweird.f32 %v6722
      %vm6830 = vweird.f32 %v6824
      %vm6831 = vmor %vm6829, %vm6830
      %v6832 = vsel %vm6831, %v6824, %v6828
      %v6833 = vand.u32 2147483647, %v6722
      %vm6834 = vcmp.eq.f32.partialorder %v6833, 8.507059e+37
      %v6835 = vand.u32 %v6722, 2147483648
      %v6836 = vor.u32 1.1754944e-38, %v6835
      %v6837 = vsel %vm6834, %v6836, %v6832
      %v6838 = vmul.f32 1.0, %v6837
      %v6839 = vrcp.pop %v6723
      %v6840 = vmul.f32 %v6723, %v6839
      %v6841 = vsub.f32 1.0, %v6840
      %v6842 = vmul.f32 %v6839, %v6841
      %v6843 = vadd.f32 %v6839, %v6842
      %vm6844 = vweird.f32 %v6723
      %vm6845 = vweird.f32 %v6839
      %vm6846 = vmor %vm6844, %vm6845
      %v6847 = vsel %vm6846, %v6839, %v6843
      %v6848 = vand.u32 2147483647, %v6723
      %vm6849 = vcmp.eq.f32.partialorder %v6848, 8.507059e+37
      %v6850 = vand.u32 %v6723, 2147483648
      %v6851 = vor.u32 1.1754944e-38, %v6850
      %v6852 = vsel %vm6849, %v6851, %v6847
      %v6853 = vmul.f32 1.0, %v6852
      %v6854 = vrcp.pop %v6724
      %v6855 = vmul.f32 %v6724, %v6854
      %v6856 = vsub.f32 1.0, %v6855
      %v6857 = vmul.f32 %v6854, %v6856
      %v6858 = vadd.f32 %v6854, %v6857
      %vm6859 = vweird.f32 %v6724
      %vm6860 = vweird.f32 %v6854
      %vm6861 = vmor %vm6859, %vm6860
      %v6862 = vsel %vm6861, %v6854, %v6858
      %v6863 = vand.u32 2147483647, %v6724
      %vm6864 = vcmp.eq.f32.partialorder %v6863, 8.507059e+37
      %v6865 = vand.u32 %v6724, 2147483648
      %v6866 = vor.u32 1.1754944e-38, %v6865
      %v6867 = vsel %vm6864, %v6866, %v6862
      %v6868 = vmul.f32 1.0, %v6867
      %v6869 = vrcp.pop %v6725
      %v6870 = vmul.f32 %v6725, %v6869
      %v6871 = vsub.f32 1.0, %v6870
      %v6872 = vmul.f32 %v6869, %v6871
      %v6873 = vadd.f32 %v6869, %v6872
      %vm6874 = vweird.f32 %v6725
      %vm6875 = vweird.f32 %v6869
      %vm6876 = vmor %vm6874, %vm6875
      %v6877 = vsel %vm6876, %v6869, %v6873
      %v6878 = vand.u32 2147483647, %v6725
      %vm6879 = vcmp.eq.f32.partialorder %v6878, 8.507059e+37
      %v6880 = vand.u32 %v6725, 2147483648
      %v6881 = vor.u32 1.1754944e-38, %v6880
      %v6882 = vsel %vm6879, %v6881, %v6877
      %v6883 = vmul.f32 1.0, %v6882
      %v6884 = vrcp.pop %v6726
      %v6885 = vmul.f32 %v6726, %v6884
      %v6886 = vsub.f32 1.0, %v6885
      %v6887 = vmul.f32 %v6884, %v6886
      %v6888 = vadd.f32 %v6884, %v6887
      %vm6889 = vweird.f32 %v6726
      %vm6890 = vweird.f32 %v6884
      %vm6891 = vmor %vm6889, %vm6890
      %v6892 = vsel %vm6891, %v6884, %v6888
      %v6893 = vand.u32 2147483647, %v6726
      %vm6894 = vcmp.eq.f32.partialorder %v6893, 8.507059e+37
      %v6895 = vand.u32 %v6726, 2147483648
      %v6896 = vor.u32 1.1754944e-38, %v6895
      %v6897 = vsel %vm6894, %v6896, %v6892
      %v6898 = vmul.f32 1.0, %v6897
      %v6899 = vrcp.pop %v6727
      %v6900 = vmul.f32 %v6727, %v6899
      %v6901 = vsub.f32 1.0, %v6900
      %v6902 = vmul.f32 %v6899, %v6901
      %v6903 = vadd.f32 %v6899, %v6902
      %vm6904 = vweird.f32 %v6727
      %vm6905 = vweird.f32 %v6899
      %vm6906 = vmor %vm6904, %vm6905
      %v6907 = vsel %vm6906, %v6899, %v6903
      %v6908 = vand.u32 2147483647, %v6727
      %vm6909 = vcmp.eq.f32.partialorder %v6908, 8.507059e+37
      %v6910 = vand.u32 %v6727, 2147483648
      %v6911 = vor.u32 1.1754944e-38, %v6910
      %v6912 = vsel %vm6909, %v6911, %v6907
      %v6913 = vmul.f32 1.0, %v6912
      %v6914 = vrcp.pop %v6728
      %v6915 = vmul.f32 %v6728, %v6914
      %v6916 = vsub.f32 1.0, %v6915
      %v6917 = vmul.f32 %v6914, %v6916
      %v6918 = vadd.f32 %v6914, %v6917
      %vm6919 = vweird.f32 %v6728
      %vm6920 = vweird.f32 %v6914
      %vm6921 = vmor %vm6919, %vm6920
      %v6922 = vsel %vm6921, %v6914, %v6918
      %v6923 = vand.u32 2147483647, %v6728
      %vm6924 = vcmp.eq.f32.partialorder %v6923, 8.507059e+37
      %v6925 = vand.u32 %v6728, 2147483648
      %v6926 = vor.u32 1.1754944e-38, %v6925
      %v6927 = vsel %vm6924, %v6926, %v6922
      %v6928 = vmul.f32 1.0, %v6927
      %v6929 = vrcp.pop %v6729
      %v6930 = vmul.f32 %v6729, %v6929
      %v6931 = vsub.f32 1.0, %v6930
      %v6932 = vmul.f32 %v6929, %v6931
      %v6933 = vadd.f32 %v6929, %v6932
      %vm6934 = vweird.f32 %v6729
      %vm6935 = vweird.f32 %v6929
      %vm6936 = vmor %vm6934, %vm6935
      %v6937 = vsel %vm6936, %v6929, %v6933
      %v6938 = vand.u32 2147483647, %v6729
      %vm6939 = vcmp.eq.f32.partialorder %v6938, 8.507059e+37
      %v6940 = vand.u32 %v6729, 2147483648
      %v6941 = vor.u32 1.1754944e-38, %v6940
      %v6942 = vsel %vm6939, %v6941, %v6937
      %v6943 = vmul.f32 1.0, %v6942
      %v6944 = vrcp.pop %v6730
      %v6945 = vmul.f32 %v6730, %v6944
      %v6946 = vsub.f32 1.0, %v6945
      %v6947 = vmul.f32 %v6944, %v6946
      %v6948 = vadd.f32 %v6944, %v6947
      %vm6949 = vweird.f32 %v6730
      %vm6950 = vweird.f32 %v6944
      %vm6951 = vmor %vm6949, %vm6950
      %v6952 = vsel %vm6951, %v6944, %v6948
      %v6953 = vand.u32 2147483647, %v6730
      %vm6954 = vcmp.eq.f32.partialorder %v6953, 8.507059e+37
      %v6955 = vand.u32 %v6730, 2147483648
      %v6956 = vor.u32 1.1754944e-38, %v6955
      %v6957 = vsel %vm6954, %v6956, %v6952
      %v6958 = vmul.f32 1.0, %v6957
      %v6959 = vrcp.pop %v6731
      %v6960 = vmul.f32 %v6731, %v6959
      %v6961 = vsub.f32 1.0, %v6960
      %v6962 = vmul.f32 %v6959, %v6961
      %v6963 = vadd.f32 %v6959, %v6962
      %vm6964 = vweird.f32 %v6731
      %vm6965 = vweird.f32 %v6959
      %vm6966 = vmor %vm6964, %vm6965
      %v6967 = vsel %vm6966, %v6959, %v6963
      %v6968 = vand.u32 2147483647, %v6731
      %vm6969 = vcmp.eq.f32.partialorder %v6968, 8.507059e+37
      %v6970 = vand.u32 %v6731, 2147483648
      %v6971 = vor.u32 1.1754944e-38, %v6970
      %v6972 = vsel %vm6969, %v6971, %v6967
      %v6973 = vmul.f32 1.0, %v6972
      %v6974 = vrcp.pop %v6732
      %v6975 = vmul.f32 %v6732, %v6974
      %v6976 = vsub.f32 1.0, %v6975
      %v6977 = vmul.f32 %v6974, %v6976
      %v6978 = vadd.f32 %v6974, %v6977
      %vm6979 = vweird.f32 %v6732
      %vm6980 = vweird.f32 %v6974
      %vm6981 = vmor %vm6979, %vm6980
      %v6982 = vsel %vm6981, %v6974, %v6978
      %v6983 = vand.u32 2147483647, %v6732
      %vm6984 = vcmp.eq.f32.partialorder %v6983, 8.507059e+37
      %v6985 = vand.u32 %v6732, 2147483648
      %v6986 = vor.u32 1.1754944e-38, %v6985
      %v6987 = vsel %vm6984, %v6986, %v6982
      %v6988 = vmul.f32 1.0, %v6987
      %v6989 = vrcp.pop %v6733
      %v6990 = vmul.f32 %v6733, %v6989
      %v6991 = vsub.f32 1.0, %v6990
      %v6992 = vmul.f32 %v6989, %v6991
      %v6993 = vadd.f32 %v6989, %v6992
      %vm6994 = vweird.f32 %v6733
      %vm6995 = vweird.f32 %v6989
      %vm6996 = vmor %vm6994, %vm6995
      %v6997 = vsel %vm6996, %v6989, %v6993
      %v6998 = vand.u32 2147483647, %v6733
      %vm6999 = vcmp.eq.f32.partialorder %v6998, 8.507059e+37
      %v7000 = vand.u32 %v6733, 2147483648
      %v7001 = vor.u32 1.1754944e-38, %v7000
      %v7002 = vsel %vm6999, %v7001, %v6997
      %v7003 = vmul.f32 1.0, %v7002
      %v7004 = vrcp.pop %v6734
      %v7005 = vmul.f32 %v6734, %v7004
      %v7006 = vsub.f32 1.0, %v7005
      %v7007 = vmul.f32 %v7004, %v7006
      %v7008 = vadd.f32 %v7004, %v7007
      %vm7009 = vweird.f32 %v6734
      %vm7010 = vweird.f32 %v7004
      %vm7011 = vmor %vm7009, %vm7010
      %v7012 = vsel %vm7011, %v7004, %v7008
      %v7013 = vand.u32 2147483647, %v6734
      %vm7014 = vcmp.eq.f32.partialorder %v7013, 8.507059e+37
      %v7015 = vand.u32 %v6734, 2147483648
      %v7016 = vor.u32 1.1754944e-38, %v7015
      %v7017 = vsel %vm7014, %v7016, %v7012
      %v7018 = vmul.f32 1.0, %v7017
      %v7019 = vrcp.pop %v6735
      %v7020 = vmul.f32 %v6735, %v7019
      %v7021 = vsub.f32 1.0, %v7020
      %v7022 = vmul.f32 %v7019, %v7021
      %v7023 = vadd.f32 %v7019, %v7022
      %vm7024 = vweird.f32 %v6735
      %vm7025 = vweird.f32 %v7019
      %vm7026 = vmor %vm7024, %vm7025
      %v7027 = vsel %vm7026, %v7019, %v7023
      %v7028 = vand.u32 2147483647, %v6735
      %vm7029 = vcmp.eq.f32.partialorder %v7028, 8.507059e+37
      %v7030 = vand.u32 %v6735, 2147483648
      %v7031 = vor.u32 1.1754944e-38, %v7030
      %v7032 = vsel %vm7029, %v7031, %v7027
      %v7033 = vmul.f32 1.0, %v7032
      %v7034 = vrcp.pop %v6736
      %v7035 = vmul.f32 %v6736, %v7034
      %v7036 = vsub.f32 1.0, %v7035
      %v7037 = vmul.f32 %v7034, %v7036
      %v7038 = vadd.f32 %v7034, %v7037
      %vm7039 = vweird.f32 %v6736
      %vm7040 = vweird.f32 %v7034
      %vm7041 = vmor %vm7039, %vm7040
      %v7042 = vsel %vm7041, %v7034, %v7038
      %v7043 = vand.u32 2147483647, %v6736
      %vm7044 = vcmp.eq.f32.partialorder %v7043, 8.507059e+37
      %v7045 = vand.u32 %v6736, 2147483648
      %v7046 = vor.u32 1.1754944e-38, %v7045
      %v7047 = vsel %vm7044, %v7046, %v7042
      %v7048 = vmul.f32 1.0, %v7047
      %v7049 = vrcp.pop %v6737
      %v7050 = vmul.f32 %v6737, %v7049
      %v7051 = vsub.f32 1.0, %v7050
      %v7052 = vmul.f32 %v7049, %v7051
      %v7053 = vadd.f32 %v7049, %v7052
      %vm7054 = vweird.f32 %v6737
      %vm7055 = vweird.f32 %v7049
      %vm7056 = vmor %vm7054, %vm7055
      %v7057 = vsel %vm7056, %v7049, %v7053
      %v7058 = vand.u32 2147483647, %v6737
      %vm7059 = vcmp.eq.f32.partialorder %v7058, 8.507059e+37
      %v7060 = vand.u32 %v6737, 2147483648
      %v7061 = vor.u32 1.1754944e-38, %v7060
      %v7062 = vsel %vm7059, %v7061, %v7057
      %v7063 = vmul.f32 1.0, %v7062
      %v7064 = vrcp.pop %v6738
      %v7065 = vmul.f32 %v6738, %v7064
      %v7066 = vsub.f32 1.0, %v7065
      %v7067 = vmul.f32 %v7064, %v7066
      %v7068 = vadd.f32 %v7064, %v7067
      %vm7069 = vweird.f32 %v6738
      %vm7070 = vweird.f32 %v7064
      %vm7071 = vmor %vm7069, %vm7070
      %v7072 = vsel %vm7071, %v7064, %v7068
      %v7073 = vand.u32 2147483647, %v6738
      %vm7074 = vcmp.eq.f32.partialorder %v7073, 8.507059e+37
      %v7075 = vand.u32 %v6738, 2147483648
      %v7076 = vor.u32 1.1754944e-38, %v7075
      %v7077 = vsel %vm7074, %v7076, %v7072
      %v7078 = vmul.f32 1.0, %v7077
      %v7079 = vrcp.pop %v6739
      %v7080 = vmul.f32 %v6739, %v7079
      %v7081 = vsub.f32 1.0, %v7080
      %v7082 = vmul.f32 %v7079, %v7081
      %v7083 = vadd.f32 %v7079, %v7082
      %vm7084 = vweird.f32 %v6739
      %vm7085 = vweird.f32 %v7079
      %vm7086 = vmor %vm7084, %vm7085
      %v7087 = vsel %vm7086, %v7079, %v7083
      %v7088 = vand.u32 2147483647, %v6739
      %vm7089 = vcmp.eq.f32.partialorder %v7088, 8.507059e+37
      %v7090 = vand.u32 %v6739, 2147483648
      %v7091 = vor.u32 1.1754944e-38, %v7090
      %v7092 = vsel %vm7089, %v7091, %v7087
      %v7093 = vmul.f32 1.0, %v7092
      %v7094 = vrcp.pop %v6740
      %v7095 = vmul.f32 %v6740, %v7094
      %v7096 = vsub.f32 1.0, %v7095
      %v7097 = vmul.f32 %v7094, %v7096
      %v7098 = vadd.f32 %v7094, %v7097
      %vm7099 = vweird.f32 %v6740
      %vm7100 = vweird.f32 %v7094
      %vm7101 = vmor %vm7099, %vm7100
      %v7102 = vsel %vm7101, %v7094, %v7098
      %v7103 = vand.u32 2147483647, %v6740
      %vm7104 = vcmp.eq.f32.partialorder %v7103, 8.507059e+37
      %v7105 = vand.u32 %v6740, 2147483648
      %v7106 = vor.u32 1.1754944e-38, %v7105
      %v7107 = vsel %vm7104, %v7106, %v7102
      %v7108 = vmul.f32 1.0, %v7107
      %v7109 = vrcp.pop %v6741
      %v7110 = vmul.f32 %v6741, %v7109
      %v7111 = vsub.f32 1.0, %v7110
      %v7112 = vmul.f32 %v7109, %v7111
      %v7113 = vadd.f32 %v7109, %v7112
      %vm7114 = vweird.f32 %v6741
      %vm7115 = vweird.f32 %v7109
      %vm7116 = vmor %vm7114, %vm7115
      %v7117 = vsel %vm7116, %v7109, %v7113
      %v7118 = vand.u32 2147483647, %v6741
      %vm7119 = vcmp.eq.f32.partialorder %v7118, 8.507059e+37
      %v7120 = vand.u32 %v6741, 2147483648
      %v7121 = vor.u32 1.1754944e-38, %v7120
      %v7122 = vsel %vm7119, %v7121, %v7117
      %v7123 = vmul.f32 1.0, %v7122
      %v7124 = vrcp.pop %v6742
      %v7125 = vmul.f32 %v6742, %v7124
      %v7126 = vsub.f32 1.0, %v7125
      %v7127 = vmul.f32 %v7124, %v7126
      %v7128 = vadd.f32 %v7124, %v7127
      %vm7129 = vweird.f32 %v6742
      %vm7130 = vweird.f32 %v7124
      %vm7131 = vmor %vm7129, %vm7130
      %v7132 = vsel %vm7131, %v7124, %v7128
      %v7133 = vand.u32 2147483647, %v6742
      %vm7134 = vcmp.eq.f32.partialorder %v7133, 8.507059e+37
      %v7135 = vand.u32 %v6742, 2147483648
      %v7136 = vor.u32 1.1754944e-38, %v7135
      %v7137 = vsel %vm7134, %v7136, %v7132
      %v7138 = vmul.f32 1.0, %v7137
      %v7139 = vrcp.pop %v6743
      %v7140 = vmul.f32 %v6743, %v7139
      %v7141 = vsub.f32 1.0, %v7140
      %v7142 = vmul.f32 %v7139, %v7141
      %v7143 = vadd.f32 %v7139, %v7142
      %vm7144 = vweird.f32 %v6743
      %vm7145 = vweird.f32 %v7139
      %vm7146 = vmor %vm7144, %vm7145
      %v7147 = vsel %vm7146, %v7139, %v7143
      %v7148 = vand.u32 2147483647, %v6743
      %vm7149 = vcmp.eq.f32.partialorder %v7148, 8.507059e+37
      %v7150 = vand.u32 %v6743, 2147483648
      %v7151 = vor.u32 1.1754944e-38, %v7150
      %v7152 = vsel %vm7149, %v7151, %v7147
      %v7153 = vmul.f32 1.0, %v7152
      %v7154 = vrcp.pop %v6744
      %v7155 = vmul.f32 %v6744, %v7154
      %v7156 = vsub.f32 1.0, %v7155
      %v7157 = vmul.f32 %v7154, %v7156
      %v7158 = vadd.f32 %v7154, %v7157
      %vm7159 = vweird.f32 %v6744
      %vm7160 = vweird.f32 %v7154
      %vm7161 = vmor %vm7159, %vm7160
      %v7162 = vsel %vm7161, %v7154, %v7158
      %v7163 = vand.u32 2147483647, %v6744
      %vm7164 = vcmp.eq.f32.partialorder %v7163, 8.507059e+37
      %v7165 = vand.u32 %v6744, 2147483648
      %v7166 = vor.u32 1.1754944e-38, %v7165
      %v7167 = vsel %vm7164, %v7166, %v7162
      %v7168 = vmul.f32 1.0, %v7167
      %v7169 = vrcp.pop %v6745
      %v7170 = vmul.f32 %v6745, %v7169
      %v7171 = vsub.f32 1.0, %v7170
      %v7172 = vmul.f32 %v7169, %v7171
      %v7173 = vadd.f32 %v7169, %v7172
      %vm7174 = vweird.f32 %v6745
      %vm7175 = vweird.f32 %v7169
      %vm7176 = vmor %vm7174, %vm7175
      %v7177 = vsel %vm7176, %v7169, %v7173
      %v7178 = vand.u32 2147483647, %v6745
      %vm7179 = vcmp.eq.f32.partialorder %v7178, 8.507059e+37
      %v7180 = vand.u32 %v6745, 2147483648
      %v7181 = vor.u32 1.1754944e-38, %v7180
      %v7182 = vsel %vm7179, %v7181, %v7177
      %v7183 = vmul.f32 1.0, %v7182
      %v7184 = vrcp.pop %v6746
      %v7185 = vmul.f32 %v6746, %v7184
      %v7186 = vsub.f32 1.0, %v7185
      %v7187 = vmul.f32 %v7184, %v7186
      %v7188 = vadd.f32 %v7184, %v7187
      %vm7189 = vweird.f32 %v6746
      %vm7190 = vweird.f32 %v7184
      %vm7191 = vmor %vm7189, %vm7190
      %v7192 = vsel %vm7191, %v7184, %v7188
      %v7193 = vand.u32 2147483647, %v6746
      %vm7194 = vcmp.eq.f32.partialorder %v7193, 8.507059e+37
      %v7195 = vand.u32 %v6746, 2147483648
      %v7196 = vor.u32 1.1754944e-38, %v7195
      %v7197 = vsel %vm7194, %v7196, %v7192
      %v7198 = vmul.f32 1.0, %v7197
      %v7199 = vrcp.pop %v6747
      %v7200 = vmul.f32 %v6747, %v7199
      %v7201 = vsub.f32 1.0, %v7200
      %v7202 = vmul.f32 %v7199, %v7201
      %v7203 = vadd.f32 %v7199, %v7202
      %vm7204 = vweird.f32 %v6747
      %vm7205 = vweird.f32 %v7199
      %vm7206 = vmor %vm7204, %vm7205
      %v7207 = vsel %vm7206, %v7199, %v7203
      %v7208 = vand.u32 2147483647, %v6747
      %vm7209 = vcmp.eq.f32.partialorder %v7208, 8.507059e+37
      %v7210 = vand.u32 %v6747, 2147483648
      %v7211 = vor.u32 1.1754944e-38, %v7210
      %v7212 = vsel %vm7209, %v7211, %v7207
      %v7213 = vmul.f32 1.0, %v7212
      %v7214 = vrcp.pop %v6748
      %v7215 = vmul.f32 %v6748, %v7214
      %v7216 = vsub.f32 1.0, %v7215
      %v7217 = vmul.f32 %v7214, %v7216
      %v7218 = vadd.f32 %v7214, %v7217
      %vm7219 = vweird.f32 %v6748
      %vm7220 = vweird.f32 %v7214
      %vm7221 = vmor %vm7219, %vm7220
      %v7222 = vsel %vm7221, %v7214, %v7218
      %v7223 = vand.u32 2147483647, %v6748
      %vm7224 = vcmp.eq.f32.partialorder %v7223, 8.507059e+37
      %v7225 = vand.u32 %v6748, 2147483648
      %v7226 = vor.u32 1.1754944e-38, %v7225
      %v7227 = vsel %vm7224, %v7226, %v7222
      %v7228 = vmul.f32 1.0, %v7227
      %v7229 = vadd.f32 %v5510, %v5958
      %v7230 = vadd.f32 %v5511, %v5959
      %v7231 = vadd.f32 %v5512, %v5960
      %v7232 = vadd.f32 %v5513, %v5961
      %v7233 = vadd.f32 %v5514, %v5962
      %v7234 = vadd.f32 %v5515, %v5963
      %v7235 = vadd.f32 %v5516, %v5964
      %v7236 = vadd.f32 %v5517, %v5965
      %v7237 = vadd.f32 %v5518, %v5966
      %v7238 = vadd.f32 %v5519, %v5967
      %v7239 = vadd.f32 %v5520, %v5968
      %v7240 = vadd.f32 %v5521, %v5969
      %v7241 = vadd.f32 %v5522, %v5970
      %v7242 = vadd.f32 %v5523, %v5971
      %v7243 = vadd.f32 %v5524, %v5972
      %v7244 = vadd.f32 %v5525, %v5973
      %v7245 = vadd.f32 %v5526, %v5974
      %v7246 = vadd.f32 %v5527, %v5975
      %v7247 = vadd.f32 %v5528, %v5976
      %v7248 = vadd.f32 %v5529, %v5977
      %v7249 = vadd.f32 %v5530, %v5978
      %v7250 = vadd.f32 %v5531, %v5979
      %v7251 = vadd.f32 %v5532, %v5980
      %v7252 = vadd.f32 %v5533, %v5981
      %v7253 = vadd.f32 %v5534, %v5982
      %v7254 = vadd.f32 %v5535, %v5983
      %v7255 = vadd.f32 %v5536, %v5984
      %v7256 = vadd.f32 %v5537, %v5985
      %v7257 = vadd.f32 %v5538, %v5986
      %v7258 = vadd.f32 %v5539, %v5987
      %v7259 = vadd.f32 %v5540, %v5988
      %v7260 = vadd.f32 %v5541, %v5989
      %7293 = vrot.lane.b32.xlu0 %v7229, 96
      %v7294 = vpop.permute.xlu0 %7293
      %7295 = vrot.lane.b32.xlu0 %v7230, 96
      %v7296 = vpop.permute.xlu0 %7295
      %7297 = vrot.lane.b32.xlu0 %v7231, 96
      %v7298 = vpop.permute.xlu0 %7297
      %7299 = vrot.lane.b32.xlu0 %v7232, 96
      %v7300 = vpop.permute.xlu0 %7299
      %7301 = vrot.lane.b32.xlu0 %v7233, 96
      %v7302 = vpop.permute.xlu0 %7301
      %7303 = vrot.lane.b32.xlu0 %v7234, 96
      %v7304 = vpop.permute.xlu0 %7303
      %7305 = vrot.lane.b32.xlu0 %v7235, 96
      %v7306 = vpop.permute.xlu0 %7305
      %7307 = vrot.lane.b32.xlu0 %v7236, 96
      %v7308 = vpop.permute.xlu0 %7307
      %7309 = vrot.lane.b32.xlu0 %v7237, 96
      %v7310 = vpop.permute.xlu0 %7309
      %7311 = vrot.lane.b32.xlu0 %v7238, 96
      %v7312 = vpop.permute.xlu0 %7311
      %7313 = vrot.lane.b32.xlu0 %v7239, 96
      %v7314 = vpop.permute.xlu0 %7313
      %7315 = vrot.lane.b32.xlu0 %v7240, 96
      %v7316 = vpop.permute.xlu0 %7315
      %7317 = vrot.lane.b32.xlu0 %v7241, 96
      %v7318 = vpop.permute.xlu0 %7317
      %7319 = vrot.lane.b32.xlu0 %v7242, 96
      %v7320 = vpop.permute.xlu0 %7319
      %7321 = vrot.lane.b32.xlu0 %v7243, 96
      %v7322 = vpop.permute.xlu0 %7321
      %7323 = vrot.lane.b32.xlu0 %v7244, 96
      %v7324 = vpop.permute.xlu0 %7323
      %7325 = vrot.lane.b32.xlu0 %v7245, 96
      %v7326 = vpop.permute.xlu0 %7325
      %7327 = vrot.lane.b32.xlu0 %v7246, 96
      %v7328 = vpop.permute.xlu0 %7327
      %7329 = vrot.lane.b32.xlu0 %v7247, 96
      %v7330 = vpop.permute.xlu0 %7329
      %7331 = vrot.lane.b32.xlu0 %v7248, 96
      %v7332 = vpop.permute.xlu0 %7331
      %7333 = vrot.lane.b32.xlu0 %v7249, 96
      %v7334 = vpop.permute.xlu0 %7333
      %7335 = vrot.lane.b32.xlu0 %v7250, 96
      %v7336 = vpop.permute.xlu0 %7335
      %7337 = vrot.lane.b32.xlu0 %v7251, 96
      %v7338 = vpop.permute.xlu0 %7337
      %7339 = vrot.lane.b32.xlu0 %v7252, 96
      %v7340 = vpop.permute.xlu0 %7339
      %7341 = vrot.lane.b32.xlu0 %v7253, 96
      %v7342 = vpop.permute.xlu0 %7341
      %7343 = vrot.lane.b32.xlu0 %v7254, 96
      %v7344 = vpop.permute.xlu0 %7343
      %7345 = vrot.lane.b32.xlu0 %v7255, 96
      %v7346 = vpop.permute.xlu0 %7345
      %7347 = vrot.lane.b32.xlu0 %v7256, 96
      %v7348 = vpop.permute.xlu0 %7347
      %7349 = vrot.lane.b32.xlu0 %v7257, 96
      %v7350 = vpop.permute.xlu0 %7349
      %7351 = vrot.lane.b32.xlu0 %v7258, 96
      %v7352 = vpop.permute.xlu0 %7351
      %7353 = vrot.lane.b32.xlu0 %v7259, 96
      %v7354 = vpop.permute.xlu0 %7353
      %7355 = vrot.lane.b32.xlu0 %v7260, 96
      %v7356 = vpop.permute.xlu0 %7355
      %v7389 = vsel %vm6090, %v7294, 0.0
      %v7390 = vsel %vm6090, %v7296, 0.0
      %v7391 = vadd.f32 %v7389, %v7390
      %v7392 = vsel %vm6090, %v7298, 0.0
      %v7393 = vadd.f32 %v7391, %v7392
      %v7394 = vsel %vm6090, %v7300, 0.0
      %v7395 = vadd.f32 %v7393, %v7394
      %v7396 = vsel %vm6090, %v7302, 0.0
      %v7397 = vadd.f32 %v7395, %v7396
      %v7398 = vsel %vm6090, %v7304, 0.0
      %v7399 = vadd.f32 %v7397, %v7398
      %v7400 = vsel %vm6090, %v7306, 0.0
      %v7401 = vadd.f32 %v7399, %v7400
      %v7402 = vsel %vm6090, %v7308, 0.0
      %v7403 = vadd.f32 %v7401, %v7402
      %v7404 = vsel %vm6090, %v7310, 0.0
      %v7405 = vadd.f32 %v7403, %v7404
      %v7406 = vsel %vm6090, %v7312, 0.0
      %v7407 = vadd.f32 %v7405, %v7406
      %v7408 = vsel %vm6090, %v7314, 0.0
      %v7409 = vadd.f32 %v7407, %v7408
      %v7410 = vsel %vm6090, %v7316, 0.0
      %v7411 = vadd.f32 %v7409, %v7410
      %v7412 = vsel %vm6090, %v7318, 0.0
      %v7413 = vadd.f32 %v7411, %v7412
      %v7414 = vsel %vm6090, %v7320, 0.0
      %v7415 = vadd.f32 %v7413, %v7414
      %v7416 = vsel %vm6090, %v7322, 0.0
      %v7417 = vadd.f32 %v7415, %v7416
      %v7418 = vsel %vm6090, %v7324, 0.0
      %v7419 = vadd.f32 %v7417, %v7418
      %v7420 = vsel %vm6090, %v7326, 0.0
      %v7421 = vadd.f32 %v7419, %v7420
      %v7422 = vsel %vm6090, %v7328, 0.0
      %v7423 = vadd.f32 %v7421, %v7422
      %v7424 = vsel %vm6090, %v7330, 0.0
      %v7425 = vadd.f32 %v7423, %v7424
      %v7426 = vsel %vm6090, %v7332, 0.0
      %v7427 = vadd.f32 %v7425, %v7426
      %v7428 = vsel %vm6090, %v7334, 0.0
      %v7429 = vadd.f32 %v7427, %v7428
      %v7430 = vsel %vm6090, %v7336, 0.0
      %v7431 = vadd.f32 %v7429, %v7430
      %v7432 = vsel %vm6090, %v7338, 0.0
      %v7433 = vadd.f32 %v7431, %v7432
      %v7434 = vsel %vm6090, %v7340, 0.0
      %v7435 = vadd.f32 %v7433, %v7434
      %v7436 = vsel %vm6090, %v7342, 0.0
      %v7437 = vadd.f32 %v7435, %v7436
      %v7438 = vsel %vm6090, %v7344, 0.0
      %v7439 = vadd.f32 %v7437, %v7438
      %v7440 = vsel %vm6090, %v7346, 0.0
      %v7441 = vadd.f32 %v7439, %v7440
      %v7442 = vsel %vm6090, %v7348, 0.0
      %v7443 = vadd.f32 %v7441, %v7442
      %v7444 = vsel %vm6090, %v7350, 0.0
      %v7445 = vadd.f32 %v7443, %v7444
      %v7446 = vsel %vm6090, %v7352, 0.0
      %v7447 = vadd.f32 %v7445, %v7446
      %v7448 = vsel %vm6090, %v7354, 0.0
      %v7449 = vadd.f32 %v7447, %v7448
      %v7450 = vsel %vm6090, %v7356, 0.0
      %v7451 = vadd.f32 %v7449, %v7450
      %7452 = vadd.xlane.f32.xlu0 %v7451
      %v7453 = vpop.xlane.xlu0 %7452
      %v7454 = vrot.slane %v7453, 4
      %v7455 = vadd.f32 %v7453, %v7454
      %v7456 = vrot.slane %v7455, 2
      %v7457 = vadd.f32 %v7455, %v7456
      %v7458 = vrot.slane %v7457, 1
      %v7459 = vadd.f32 %v7457, %v7458
      %v7460 = vrcp.pop 8192.0
      %v7461 = vmul.f32 8192.0, %v7460
      %v7462 = vsub.f32 1.0, %v7461
      %v7463 = vmul.f32 %v7460, %v7462
      %v7464 = vadd.f32 %v7460, %v7463
      %vm7465 = vweird.f32 %v7460
      %v7466 = vsel %vm7465, %v7460, %v7464
      %v7467 = vmul.f32 %v7459, %v7466
      %v7468 = vsub.f32 %v7229, %v7467
      %v7469 = vsub.f32 %v7230, %v7467
      %v7470 = vsub.f32 %v7231, %v7467
      %v7471 = vsub.f32 %v7232, %v7467
      %v7472 = vsub.f32 %v7233, %v7467
      %v7473 = vsub.f32 %v7234, %v7467
      %v7474 = vsub.f32 %v7235, %v7467
      %v7475 = vsub.f32 %v7236, %v7467
      %v7476 = vsub.f32 %v7237, %v7467
      %v7477 = vsub.f32 %v7238, %v7467
      %v7478 = vsub.f32 %v7239, %v7467
      %v7479 = vsub.f32 %v7240, %v7467
      %v7480 = vsub.f32 %v7241, %v7467
      %v7481 = vsub.f32 %v7242, %v7467
      %v7482 = vsub.f32 %v7243, %v7467
      %v7483 = vsub.f32 %v7244, %v7467
      %v7484 = vsub.f32 %v7245, %v7467
      %v7485 = vsub.f32 %v7246, %v7467
      %v7486 = vsub.f32 %v7247, %v7467
      %v7487 = vsub.f32 %v7248, %v7467
      %v7488 = vsub.f32 %v7249, %v7467
      %v7489 = vsub.f32 %v7250, %v7467
      %v7490 = vsub.f32 %v7251, %v7467
      %v7491 = vsub.f32 %v7252, %v7467
      %v7492 = vsub.f32 %v7253, %v7467
      %v7493 = vsub.f32 %v7254, %v7467
      %v7494 = vsub.f32 %v7255, %v7467
      %v7495 = vsub.f32 %v7256, %v7467
      %v7496 = vsub.f32 %v7257, %v7467
      %v7497 = vsub.f32 %v7258, %v7467
      %v7498 = vsub.f32 %v7259, %v7467
      %v7499 = vsub.f32 %v7260, %v7467
      %v7500 = vmul.f32 %v7468, %v7468
      %v7501 = vmul.f32 %v7469, %v7469
      %v7502 = vmul.f32 %v7470, %v7470
      %v7503 = vmul.f32 %v7471, %v7471
      %v7504 = vmul.f32 %v7472, %v7472
      %v7505 = vmul.f32 %v7473, %v7473
      %v7506 = vmul.f32 %v7474, %v7474
      %v7507 = vmul.f32 %v7475, %v7475
      %v7508 = vmul.f32 %v7476, %v7476
      %v7509 = vmul.f32 %v7477, %v7477
      %v7510 = vmul.f32 %v7478, %v7478
      %v7511 = vmul.f32 %v7479, %v7479
      %v7512 = vmul.f32 %v7480, %v7480
      %v7513 = vmul.f32 %v7481, %v7481
      %v7514 = vmul.f32 %v7482, %v7482
      %v7515 = vmul.f32 %v7483, %v7483
      %v7516 = vmul.f32 %v7484, %v7484
      %v7517 = vmul.f32 %v7485, %v7485
      %v7518 = vmul.f32 %v7486, %v7486
      %v7519 = vmul.f32 %v7487, %v7487
      %v7520 = vmul.f32 %v7488, %v7488
      %v7521 = vmul.f32 %v7489, %v7489
      %v7522 = vmul.f32 %v7490, %v7490
      %v7523 = vmul.f32 %v7491, %v7491
      %v7524 = vmul.f32 %v7492, %v7492
      %v7525 = vmul.f32 %v7493, %v7493
      %v7526 = vmul.f32 %v7494, %v7494
      %v7527 = vmul.f32 %v7495, %v7495
      %v7528 = vmul.f32 %v7496, %v7496
      %v7529 = vmul.f32 %v7497, %v7497
      %v7530 = vmul.f32 %v7498, %v7498
      %v7531 = vmul.f32 %v7499, %v7499
      %7564 = vrot.lane.b32.xlu0 %v7500, 96
      %v7565 = vpop.permute.xlu0 %7564
      %7566 = vrot.lane.b32.xlu0 %v7501, 96
      %v7567 = vpop.permute.xlu0 %7566
      %7568 = vrot.lane.b32.xlu0 %v7502, 96
      %v7569 = vpop.permute.xlu0 %7568
      %7570 = vrot.lane.b32.xlu0 %v7503, 96
      %v7571 = vpop.permute.xlu0 %7570
      %7572 = vrot.lane.b32.xlu0 %v7504, 96
      %v7573 = vpop.permute.xlu0 %7572
      %7574 = vrot.lane.b32.xlu0 %v7505, 96
      %v7575 = vpop.permute.xlu0 %7574
      %7576 = vrot.lane.b32.xlu0 %v7506, 96
      %v7577 = vpop.permute.xlu0 %7576
      %7578 = vrot.lane.b32.xlu0 %v7507, 96
      %v7579 = vpop.permute.xlu0 %7578
      %7580 = vrot.lane.b32.xlu0 %v7508, 96
      %v7581 = vpop.permute.xlu0 %7580
      %7582 = vrot.lane.b32.xlu0 %v7509, 96
      %v7583 = vpop.permute.xlu0 %7582
      %7584 = vrot.lane.b32.xlu0 %v7510, 96
      %v7585 = vpop.permute.xlu0 %7584
      %7586 = vrot.lane.b32.xlu0 %v7511, 96
      %v7587 = vpop.permute.xlu0 %7586
      %7588 = vrot.lane.b32.xlu0 %v7512, 96
      %v7589 = vpop.permute.xlu0 %7588
      %7590 = vrot.lane.b32.xlu0 %v7513, 96
      %v7591 = vpop.permute.xlu0 %7590
      %7592 = vrot.lane.b32.xlu0 %v7514, 96
      %v7593 = vpop.permute.xlu0 %7592
      %7594 = vrot.lane.b32.xlu0 %v7515, 96
      %v7595 = vpop.permute.xlu0 %7594
      %7596 = vrot.lane.b32.xlu0 %v7516, 96
      %v7597 = vpop.permute.xlu0 %7596
      %7598 = vrot.lane.b32.xlu0 %v7517, 96
      %v7599 = vpop.permute.xlu0 %7598
      %7600 = vrot.lane.b32.xlu0 %v7518, 96
      %v7601 = vpop.permute.xlu0 %7600
      %7602 = vrot.lane.b32.xlu0 %v7519, 96
      %v7603 = vpop.permute.xlu0 %7602
      %7604 = vrot.lane.b32.xlu0 %v7520, 96
      %v7605 = vpop.permute.xlu0 %7604
      %7606 = vrot.lane.b32.xlu0 %v7521, 96
      %v7607 = vpop.permute.xlu0 %7606
      %7608 = vrot.lane.b32.xlu0 %v7522, 96
      %v7609 = vpop.permute.xlu0 %7608
      %7610 = vrot.lane.b32.xlu0 %v7523, 96
      %v7611 = vpop.permute.xlu0 %7610
      %7612 = vrot.lane.b32.xlu0 %v7524, 96
      %v7613 = vpop.permute.xlu0 %7612
      %7614 = vrot.lane.b32.xlu0 %v7525, 96
      %v7615 = vpop.permute.xlu0 %7614
      %7616 = vrot.lane.b32.xlu0 %v7526, 96
      %v7617 = vpop.permute.xlu0 %7616
      %7618 = vrot.lane.b32.xlu0 %v7527, 96
      %v7619 = vpop.permute.xlu0 %7618
      %7620 = vrot.lane.b32.xlu0 %v7528, 96
      %v7621 = vpop.permute.xlu0 %7620
      %7622 = vrot.lane.b32.xlu0 %v7529, 96
      %v7623 = vpop.permute.xlu0 %7622
      %7624 = vrot.lane.b32.xlu0 %v7530, 96
      %v7625 = vpop.permute.xlu0 %7624
      %7626 = vrot.lane.b32.xlu0 %v7531, 96
      %v7627 = vpop.permute.xlu0 %7626
      %v7660 = vsel %vm6090, %v7565, 0.0
      %v7661 = vsel %vm6090, %v7567, 0.0
      %v7662 = vadd.f32 %v7660, %v7661
      %v7663 = vsel %vm6090, %v7569, 0.0
      %v7664 = vadd.f32 %v7662, %v7663
      %v7665 = vsel %vm6090, %v7571, 0.0
      %v7666 = vadd.f32 %v7664, %v7665
      %v7667 = vsel %vm6090, %v7573, 0.0
      %v7668 = vadd.f32 %v7666, %v7667
      %v7669 = vsel %vm6090, %v7575, 0.0
      %v7670 = vadd.f32 %v7668, %v7669
      %v7671 = vsel %vm6090, %v7577, 0.0
      %v7672 = vadd.f32 %v7670, %v7671
      %v7673 = vsel %vm6090, %v7579, 0.0
      %v7674 = vadd.f32 %v7672, %v7673
      %v7675 = vsel %vm6090, %v7581, 0.0
      %v7676 = vadd.f32 %v7674, %v7675
      %v7677 = vsel %vm6090, %v7583, 0.0
      %v7678 = vadd.f32 %v7676, %v7677
      %v7679 = vsel %vm6090, %v7585, 0.0
      %v7680 = vadd.f32 %v7678, %v7679
      %v7681 = vsel %vm6090, %v7587, 0.0
      %v7682 = vadd.f32 %v7680, %v7681
      %v7683 = vsel %vm6090, %v7589, 0.0
      %v7684 = vadd.f32 %v7682, %v7683
      %v7685 = vsel %vm6090, %v7591, 0.0
      %v7686 = vadd.f32 %v7684, %v7685
      %v7687 = vsel %vm6090, %v7593, 0.0
      %v7688 = vadd.f32 %v7686, %v7687
      %v7689 = vsel %vm6090, %v7595, 0.0
      %v7690 = vadd.f32 %v7688, %v7689
      %v7691 = vsel %vm6090, %v7597, 0.0
      %v7692 = vadd.f32 %v7690, %v7691
      %v7693 = vsel %vm6090, %v7599, 0.0
      %v7694 = vadd.f32 %v7692, %v7693
      %v7695 = vsel %vm6090, %v7601, 0.0
      %v7696 = vadd.f32 %v7694, %v7695
      %v7697 = vsel %vm6090, %v7603, 0.0
      %v7698 = vadd.f32 %v7696, %v7697
      %v7699 = vsel %vm6090, %v7605, 0.0
      %v7700 = vadd.f32 %v7698, %v7699
      %v7701 = vsel %vm6090, %v7607, 0.0
      %v7702 = vadd.f32 %v7700, %v7701
      %v7703 = vsel %vm6090, %v7609, 0.0
      %v7704 = vadd.f32 %v7702, %v7703
      %v7705 = vsel %vm6090, %v7611, 0.0
      %v7706 = vadd.f32 %v7704, %v7705
      %v7707 = vsel %vm6090, %v7613, 0.0
      %v7708 = vadd.f32 %v7706, %v7707
      %v7709 = vsel %vm6090, %v7615, 0.0
      %v7710 = vadd.f32 %v7708, %v7709
      %v7711 = vsel %vm6090, %v7617, 0.0
      %v7712 = vadd.f32 %v7710, %v7711
      %v7713 = vsel %vm6090, %v7619, 0.0
      %v7714 = vadd.f32 %v7712, %v7713
      %v7715 = vsel %vm6090, %v7621, 0.0
      %v7716 = vadd.f32 %v7714, %v7715
      %v7717 = vsel %vm6090, %v7623, 0.0
      %v7718 = vadd.f32 %v7716, %v7717
      %v7719 = vsel %vm6090, %v7625, 0.0
      %v7720 = vadd.f32 %v7718, %v7719
      %v7721 = vsel %vm6090, %v7627, 0.0
      %v7722 = vadd.f32 %v7720, %v7721
      %7723 = vadd.xlane.f32.xlu0 %v7722
      %v7724 = vpop.xlane.xlu0 %7723
      %v7725 = vrot.slane %v7724, 4
      %v7726 = vadd.f32 %v7724, %v7725
      %v7727 = vrot.slane %v7726, 2
      %v7728 = vadd.f32 %v7726, %v7727
      %v7729 = vrot.slane %v7728, 1
      %v7730 = vadd.f32 %v7728, %v7729
      %v7731 = vmul.f32 %v7730, %v7466
      %v7732 = vadd.f32 %v7731, 1e-05
      %v7733 = vrsqrt.pop %v7732
      %v7734 = vmul.f32 %v7733, %v7732
      %v7735 = vmul.f32 %v7734, %v7733
      %v7736 = vmul.f32 0.5, %v7735
      %v7737 = vsub.f32 1.5, %v7736
      %v7738 = vmul.f32 %v7733, %v7737
      %vm7739 = vweird.f32 %v7732
      %vm7740 = vweird.f32 %v7733
      %vm7741 = vmor %vm7739, %vm7740
      %v7742 = vsel %vm7741, %v7733, %v7738
      %v7743 = vmul.f32 %v7468, %v7742
      %v7744 = vmul.f32 %v7469, %v7742
      %v7745 = vmul.f32 %v7470, %v7742
      %v7746 = vmul.f32 %v7471, %v7742
      %v7747 = vmul.f32 %v7472, %v7742
      %v7748 = vmul.f32 %v7473, %v7742
      %v7749 = vmul.f32 %v7474, %v7742
      %v7750 = vmul.f32 %v7475, %v7742
      %v7751 = vmul.f32 %v7476, %v7742
      %v7752 = vmul.f32 %v7477, %v7742
      %v7753 = vmul.f32 %v7478, %v7742
      %v7754 = vmul.f32 %v7479, %v7742
      %v7755 = vmul.f32 %v7480, %v7742
      %v7756 = vmul.f32 %v7481, %v7742
      %v7757 = vmul.f32 %v7482, %v7742
      %v7758 = vmul.f32 %v7483, %v7742
      %v7759 = vmul.f32 %v7484, %v7742
      %v7760 = vmul.f32 %v7485, %v7742
      %v7761 = vmul.f32 %v7486, %v7742
      %v7762 = vmul.f32 %v7487, %v7742
      %v7763 = vmul.f32 %v7488, %v7742
      %v7764 = vmul.f32 %v7489, %v7742
      %v7765 = vmul.f32 %v7490, %v7742
      %v7766 = vmul.f32 %v7491, %v7742
      %v7767 = vmul.f32 %v7492, %v7742
      %v7768 = vmul.f32 %v7493, %v7742
      %v7769 = vmul.f32 %v7494, %v7742
      %v7770 = vmul.f32 %v7495, %v7742
      %v7771 = vmul.f32 %v7496, %v7742
      %v7772 = vmul.f32 %v7497, %v7742
      %v7773 = vmul.f32 %v7498, %v7742
      %v7774 = vmul.f32 %v7499, %v7742
      %v7775 = vld [vmem:[%s6] sm:$0xff]
      %v7776 = vld [vmem:[%s6 + $0x8] sm:$0xff]
      %v7777 = vld [vmem:[%s6 + $0x10] sm:$0xff]
      %v7778 = vld [vmem:[%s6 + $0x18] sm:$0xff]
      %v7779 = vld [vmem:[%s6 + $0x20] sm:$0xff]
      %v7780 = vld [vmem:[%s6 + $0x28] sm:$0xff]
      %v7781 = vld [vmem:[%s6 + $0x30] sm:$0xff]
      %v7782 = vld [vmem:[%s6 + $0x38] sm:$0xff]
      %v7783 = vld [vmem:[%s6 + $0x40] sm:$0xff]
      %v7784 = vld [vmem:[%s6 + $0x48] sm:$0xff]
      %v7785 = vld [vmem:[%s6 + $0x50] sm:$0xff]
      %v7786 = vld [vmem:[%s6 + $0x58] sm:$0xff]
      %v7787 = vld [vmem:[%s6 + $0x60] sm:$0xff]
      %v7788 = vld [vmem:[%s6 + $0x68] sm:$0xff]
      %v7789 = vld [vmem:[%s6 + $0x70] sm:$0xff]
      %v7790 = vld [vmem:[%s6 + $0x78] sm:$0xff]
      %v7791 = vld [vmem:[%s6 + $0x80] sm:$0xff]
      %v7792 = vld [vmem:[%s6 + $0x88] sm:$0xff]
      %v7793 = vld [vmem:[%s6 + $0x90] sm:$0xff]
      %v7794 = vld [vmem:[%s6 + $0x98] sm:$0xff]
      %v7795 = vld [vmem:[%s6 + $0xa0] sm:$0xff]
      %v7796 = vld [vmem:[%s6 + $0xa8] sm:$0xff]
      %v7797 = vld [vmem:[%s6 + $0xb0] sm:$0xff]
      %v7798 = vld [vmem:[%s6 + $0xb8] sm:$0xff]
      %v7799 = vld [vmem:[%s6 + $0xc0] sm:$0xff]
      %v7800 = vld [vmem:[%s6 + $0xc8] sm:$0xff]
      %v7801 = vld [vmem:[%s6 + $0xd0] sm:$0xff]
      %v7802 = vld [vmem:[%s6 + $0xd8] sm:$0xff]
      %v7803 = vld [vmem:[%s6 + $0xe0] sm:$0xff]
      %v7804 = vld [vmem:[%s6 + $0xe8] sm:$0xff]
      %v7805 = vld [vmem:[%s6 + $0xf0] sm:$0xff]
      %v7806 = vld [vmem:[%s6 + $0xf8] sm:$0xff]
      %7839 = vrot.lane.b32.xlu0 %v7775, 32
      %v7840 = vpop.permute.xlu0 %7839
      %7841 = vrot.lane.b32.xlu0 %v7776, 32
      %v7842 = vpop.permute.xlu0 %7841
      %7843 = vrot.lane.b32.xlu0 %v7777, 32
      %v7844 = vpop.permute.xlu0 %7843
      %7845 = vrot.lane.b32.xlu0 %v7778, 32
      %v7846 = vpop.permute.xlu0 %7845
      %7847 = vrot.lane.b32.xlu0 %v7779, 32
      %v7848 = vpop.permute.xlu0 %7847
      %7849 = vrot.lane.b32.xlu0 %v7780, 32
      %v7850 = vpop.permute.xlu0 %7849
      %7851 = vrot.lane.b32.xlu0 %v7781, 32
      %v7852 = vpop.permute.xlu0 %7851
      %7853 = vrot.lane.b32.xlu0 %v7782, 32
      %v7854 = vpop.permute.xlu0 %7853
      %7855 = vrot.lane.b32.xlu0 %v7783, 32
      %v7856 = vpop.permute.xlu0 %7855
      %7857 = vrot.lane.b32.xlu0 %v7784, 32
      %v7858 = vpop.permute.xlu0 %7857
      %7859 = vrot.lane.b32.xlu0 %v7785, 32
      %v7860 = vpop.permute.xlu0 %7859
      %7861 = vrot.lane.b32.xlu0 %v7786, 32
      %v7862 = vpop.permute.xlu0 %7861
      %7863 = vrot.lane.b32.xlu0 %v7787, 32
      %v7864 = vpop.permute.xlu0 %7863
      %7865 = vrot.lane.b32.xlu0 %v7788, 32
      %v7866 = vpop.permute.xlu0 %7865
      %7867 = vrot.lane.b32.xlu0 %v7789, 32
      %v7868 = vpop.permute.xlu0 %7867
      %7869 = vrot.lane.b32.xlu0 %v7790, 32
      %v7870 = vpop.permute.xlu0 %7869
      %7871 = vrot.lane.b32.xlu0 %v7791, 32
      %v7872 = vpop.permute.xlu0 %7871
      %7873 = vrot.lane.b32.xlu0 %v7792, 32
      %v7874 = vpop.permute.xlu0 %7873
      %7875 = vrot.lane.b32.xlu0 %v7793, 32
      %v7876 = vpop.permute.xlu0 %7875
      %7877 = vrot.lane.b32.xlu0 %v7794, 32
      %v7878 = vpop.permute.xlu0 %7877
      %7879 = vrot.lane.b32.xlu0 %v7795, 32
      %v7880 = vpop.permute.xlu0 %7879
      %7881 = vrot.lane.b32.xlu0 %v7796, 32
      %v7882 = vpop.permute.xlu0 %7881
      %7883 = vrot.lane.b32.xlu0 %v7797, 32
      %v7884 = vpop.permute.xlu0 %7883
      %7885 = vrot.lane.b32.xlu0 %v7798, 32
      %v7886 = vpop.permute.xlu0 %7885
      %7887 = vrot.lane.b32.xlu0 %v7799, 32
      %v7888 = vpop.permute.xlu0 %7887
      %7889 = vrot.lane.b32.xlu0 %v7800, 32
      %v7890 = vpop.permute.xlu0 %7889
      %7891 = vrot.lane.b32.xlu0 %v7801, 32
      %v7892 = vpop.permute.xlu0 %7891
      %7893 = vrot.lane.b32.xlu0 %v7802, 32
      %v7894 = vpop.permute.xlu0 %7893
      %7895 = vrot.lane.b32.xlu0 %v7803, 32
      %v7896 = vpop.permute.xlu0 %7895
      %7897 = vrot.lane.b32.xlu0 %v7804, 32
      %v7898 = vpop.permute.xlu0 %7897
      %7899 = vrot.lane.b32.xlu0 %v7805, 32
      %v7900 = vpop.permute.xlu0 %7899
      %7901 = vrot.lane.b32.xlu0 %v7806, 32
      %v7902 = vpop.permute.xlu0 %7901
      %v7935 = vmul.f32 %v7743, %v7840
      %v7936 = vmul.f32 %v7744, %v7842
      %v7937 = vmul.f32 %v7745, %v7844
      %v7938 = vmul.f32 %v7746, %v7846
      %v7939 = vmul.f32 %v7747, %v7848
      %v7940 = vmul.f32 %v7748, %v7850
      %v7941 = vmul.f32 %v7749, %v7852
      %v7942 = vmul.f32 %v7750, %v7854
      %v7943 = vmul.f32 %v7751, %v7856
      %v7944 = vmul.f32 %v7752, %v7858
      %v7945 = vmul.f32 %v7753, %v7860
      %v7946 = vmul.f32 %v7754, %v7862
      %v7947 = vmul.f32 %v7755, %v7864
      %v7948 = vmul.f32 %v7756, %v7866
      %v7949 = vmul.f32 %v7757, %v7868
      %v7950 = vmul.f32 %v7758, %v7870
      %v7951 = vmul.f32 %v7759, %v7872
      %v7952 = vmul.f32 %v7760, %v7874
      %v7953 = vmul.f32 %v7761, %v7876
      %v7954 = vmul.f32 %v7762, %v7878
      %v7955 = vmul.f32 %v7763, %v7880
      %v7956 = vmul.f32 %v7764, %v7882
      %v7957 = vmul.f32 %v7765, %v7884
      %v7958 = vmul.f32 %v7766, %v7886
      %v7959 = vmul.f32 %v7767, %v7888
      %v7960 = vmul.f32 %v7768, %v7890
      %v7961 = vmul.f32 %v7769, %v7892
      %v7962 = vmul.f32 %v7770, %v7894
      %v7963 = vmul.f32 %v7771, %v7896
      %v7964 = vmul.f32 %v7772, %v7898
      %v7965 = vmul.f32 %v7773, %v7900
      %v7966 = vmul.f32 %v7774, %v7902
      %v7967 = vld [vmem:[%s7] sm:$0xff]
      %v7968 = vld [vmem:[%s7 + $0x8] sm:$0xff]
      %v7969 = vld [vmem:[%s7 + $0x10] sm:$0xff]
      %v7970 = vld [vmem:[%s7 + $0x18] sm:$0xff]
      %v7971 = vld [vmem:[%s7 + $0x20] sm:$0xff]
      %v7972 = vld [vmem:[%s7 + $0x28] sm:$0xff]
      %v7973 = vld [vmem:[%s7 + $0x30] sm:$0xff]
      %v7974 = vld [vmem:[%s7 + $0x38] sm:$0xff]
      %v7975 = vld [vmem:[%s7 + $0x40] sm:$0xff]
      %v7976 = vld [vmem:[%s7 + $0x48] sm:$0xff]
      %v7977 = vld [vmem:[%s7 + $0x50] sm:$0xff]
      %v7978 = vld [vmem:[%s7 + $0x58] sm:$0xff]
      %v7979 = vld [vmem:[%s7 + $0x60] sm:$0xff]
      %v7980 = vld [vmem:[%s7 + $0x68] sm:$0xff]
      %v7981 = vld [vmem:[%s7 + $0x70] sm:$0xff]
      %v7982 = vld [vmem:[%s7 + $0x78] sm:$0xff]
      %v7983 = vld [vmem:[%s7 + $0x80] sm:$0xff]
      %v7984 = vld [vmem:[%s7 + $0x88] sm:$0xff]
      %v7985 = vld [vmem:[%s7 + $0x90] sm:$0xff]
      %v7986 = vld [vmem:[%s7 + $0x98] sm:$0xff]
      %v7987 = vld [vmem:[%s7 + $0xa0] sm:$0xff]
      %v7988 = vld [vmem:[%s7 + $0xa8] sm:$0xff]
      %v7989 = vld [vmem:[%s7 + $0xb0] sm:$0xff]
      %v7990 = vld [vmem:[%s7 + $0xb8] sm:$0xff]
      %v7991 = vld [vmem:[%s7 + $0xc0] sm:$0xff]
      %v7992 = vld [vmem:[%s7 + $0xc8] sm:$0xff]
      %v7993 = vld [vmem:[%s7 + $0xd0] sm:$0xff]
      %v7994 = vld [vmem:[%s7 + $0xd8] sm:$0xff]
      %v7995 = vld [vmem:[%s7 + $0xe0] sm:$0xff]
      %v7996 = vld [vmem:[%s7 + $0xe8] sm:$0xff]
      %v7997 = vld [vmem:[%s7 + $0xf0] sm:$0xff]
      %v7998 = vld [vmem:[%s7 + $0xf8] sm:$0xff]
      %8031 = vrot.lane.b32.xlu0 %v7967, 32
      %v8032 = vpop.permute.xlu0 %8031
      %8033 = vrot.lane.b32.xlu0 %v7968, 32
      %v8034 = vpop.permute.xlu0 %8033
      %8035 = vrot.lane.b32.xlu0 %v7969, 32
      %v8036 = vpop.permute.xlu0 %8035
      %8037 = vrot.lane.b32.xlu0 %v7970, 32
      %v8038 = vpop.permute.xlu0 %8037
      %8039 = vrot.lane.b32.xlu0 %v7971, 32
      %v8040 = vpop.permute.xlu0 %8039
      %8041 = vrot.lane.b32.xlu0 %v7972, 32
      %v8042 = vpop.permute.xlu0 %8041
      %8043 = vrot.lane.b32.xlu0 %v7973, 32
      %v8044 = vpop.permute.xlu0 %8043
      %8045 = vrot.lane.b32.xlu0 %v7974, 32
      %v8046 = vpop.permute.xlu0 %8045
      %8047 = vrot.lane.b32.xlu0 %v7975, 32
      %v8048 = vpop.permute.xlu0 %8047
      %8049 = vrot.lane.b32.xlu0 %v7976, 32
      %v8050 = vpop.permute.xlu0 %8049
      %8051 = vrot.lane.b32.xlu0 %v7977, 32
      %v8052 = vpop.permute.xlu0 %8051
      %8053 = vrot.lane.b32.xlu0 %v7978, 32
      %v8054 = vpop.permute.xlu0 %8053
      %8055 = vrot.lane.b32.xlu0 %v7979, 32
      %v8056 = vpop.permute.xlu0 %8055
      %8057 = vrot.lane.b32.xlu0 %v7980, 32
      %v8058 = vpop.permute.xlu0 %8057
      %8059 = vrot.lane.b32.xlu0 %v7981, 32
      %v8060 = vpop.permute.xlu0 %8059
      %8061 = vrot.lane.b32.xlu0 %v7982, 32
      %v8062 = vpop.permute.xlu0 %8061
      %8063 = vrot.lane.b32.xlu0 %v7983, 32
      %v8064 = vpop.permute.xlu0 %8063
      %8065 = vrot.lane.b32.xlu0 %v7984, 32
      %v8066 = vpop.permute.xlu0 %8065
      %8067 = vrot.lane.b32.xlu0 %v7985, 32
      %v8068 = vpop.permute.xlu0 %8067
      %8069 = vrot.lane.b32.xlu0 %v7986, 32
      %v8070 = vpop.permute.xlu0 %8069
      %8071 = vrot.lane.b32.xlu0 %v7987, 32
      %v8072 = vpop.permute.xlu0 %8071
      %8073 = vrot.lane.b32.xlu0 %v7988, 32
      %v8074 = vpop.permute.xlu0 %8073
      %8075 = vrot.lane.b32.xlu0 %v7989, 32
      %v8076 = vpop.permute.xlu0 %8075
      %8077 = vrot.lane.b32.xlu0 %v7990, 32
      %v8078 = vpop.permute.xlu0 %8077
      %8079 = vrot.lane.b32.xlu0 %v7991, 32
      %v8080 = vpop.permute.xlu0 %8079
      %8081 = vrot.lane.b32.xlu0 %v7992, 32
      %v8082 = vpop.permute.xlu0 %8081
      %8083 = vrot.lane.b32.xlu0 %v7993, 32
      %v8084 = vpop.permute.xlu0 %8083
      %8085 = vrot.lane.b32.xlu0 %v7994, 32
      %v8086 = vpop.permute.xlu0 %8085
      %8087 = vrot.lane.b32.xlu0 %v7995, 32
      %v8088 = vpop.permute.xlu0 %8087
      %8089 = vrot.lane.b32.xlu0 %v7996, 32
      %v8090 = vpop.permute.xlu0 %8089
      %8091 = vrot.lane.b32.xlu0 %v7997, 32
      %v8092 = vpop.permute.xlu0 %8091
      %8093 = vrot.lane.b32.xlu0 %v7998, 32
      %v8094 = vpop.permute.xlu0 %8093
      %v8127 = vadd.f32 %v7935, %v8032
      %v8128 = vadd.f32 %v7936, %v8034
      %v8129 = vadd.f32 %v7937, %v8036
      %v8130 = vadd.f32 %v7938, %v8038
      %v8131 = vadd.f32 %v7939, %v8040
      %v8132 = vadd.f32 %v7940, %v8042
      %v8133 = vadd.f32 %v7941, %v8044
      %v8134 = vadd.f32 %v7942, %v8046
      %v8135 = vadd.f32 %v7943, %v8048
      %v8136 = vadd.f32 %v7944, %v8050
      %v8137 = vadd.f32 %v7945, %v8052
      %v8138 = vadd.f32 %v7946, %v8054
      %v8139 = vadd.f32 %v7947, %v8056
      %v8140 = vadd.f32 %v7948, %v8058
      %v8141 = vadd.f32 %v7949, %v8060
      %v8142 = vadd.f32 %v7950, %v8062
      %v8143 = vadd.f32 %v7951, %v8064
      %v8144 = vadd.f32 %v7952, %v8066
      %v8145 = vadd.f32 %v7953, %v8068
      %v8146 = vadd.f32 %v7954, %v8070
      %v8147 = vadd.f32 %v7955, %v8072
      %v8148 = vadd.f32 %v7956, %v8074
      %v8149 = vadd.f32 %v7957, %v8076
      %v8150 = vadd.f32 %v7958, %v8078
      %v8151 = vadd.f32 %v7959, %v8080
      %v8152 = vadd.f32 %v7960, %v8082
      %v8153 = vadd.f32 %v7961, %v8084
      %v8154 = vadd.f32 %v7962, %v8086
      %v8155 = vadd.f32 %v7963, %v8088
      %v8156 = vadd.f32 %v7964, %v8090
      %v8157 = vadd.f32 %v7965, %v8092
      %v8158 = vadd.f32 %v7966, %v8094
      %v8159 = vtanh.pop %v8127
      %v8160 = vtanh.pop %v8128
      %v8161 = vtanh.pop %v8129
      %v8162 = vtanh.pop %v8130
      %v8163 = vtanh.pop %v8131
      %v8164 = vtanh.pop %v8132
      %v8165 = vtanh.pop %v8133
      %v8166 = vtanh.pop %v8134
      %v8167 = vtanh.pop %v8135
      %v8168 = vtanh.pop %v8136
      %v8169 = vtanh.pop %v8137
      %v8170 = vtanh.pop %v8138
      %v8171 = vtanh.pop %v8139
      %v8172 = vtanh.pop %v8140
      %v8173 = vtanh.pop %v8141
      %v8174 = vtanh.pop %v8142
      %v8175 = vtanh.pop %v8143
      %v8176 = vtanh.pop %v8144
      %v8177 = vtanh.pop %v8145
      %v8178 = vtanh.pop %v8146
      %v8179 = vtanh.pop %v8147
      %v8180 = vtanh.pop %v8148
      %v8181 = vtanh.pop %v8149
      %v8182 = vtanh.pop %v8150
      %v8183 = vtanh.pop %v8151
      %v8184 = vtanh.pop %v8152
      %v8185 = vtanh.pop %v8153
      %v8186 = vtanh.pop %v8154
      %v8187 = vtanh.pop %v8155
      %v8188 = vtanh.pop %v8156
      %v8189 = vtanh.pop %v8157
      %v8190 = vtanh.pop %v8158
      %8223 = vrot.lane.b32.xlu0 %v8159, 64
      %v8224 = vpop.permute.xlu0 %8223
      %8225 = vrot.lane.b32.xlu0 %v8160, 64
      %v8226 = vpop.permute.xlu0 %8225
      %8227 = vrot.lane.b32.xlu0 %v8161, 64
      %v8228 = vpop.permute.xlu0 %8227
      %8229 = vrot.lane.b32.xlu0 %v8162, 64
      %v8230 = vpop.permute.xlu0 %8229
      %8231 = vrot.lane.b32.xlu0 %v8163, 64
      %v8232 = vpop.permute.xlu0 %8231
      %8233 = vrot.lane.b32.xlu0 %v8164, 64
      %v8234 = vpop.permute.xlu0 %8233
      %8235 = vrot.lane.b32.xlu0 %v8165, 64
      %v8236 = vpop.permute.xlu0 %8235
      %8237 = vrot.lane.b32.xlu0 %v8166, 64
      %v8238 = vpop.permute.xlu0 %8237
      %8239 = vrot.lane.b32.xlu0 %v8167, 64
      %v8240 = vpop.permute.xlu0 %8239
      %8241 = vrot.lane.b32.xlu0 %v8168, 64
      %v8242 = vpop.permute.xlu0 %8241
      %8243 = vrot.lane.b32.xlu0 %v8169, 64
      %v8244 = vpop.permute.xlu0 %8243
      %8245 = vrot.lane.b32.xlu0 %v8170, 64
      %v8246 = vpop.permute.xlu0 %8245
      %8247 = vrot.lane.b32.xlu0 %v8171, 64
      %v8248 = vpop.permute.xlu0 %8247
      %8249 = vrot.lane.b32.xlu0 %v8172, 64
      %v8250 = vpop.permute.xlu0 %8249
      %8251 = vrot.lane.b32.xlu0 %v8173, 64
      %v8252 = vpop.permute.xlu0 %8251
      %8253 = vrot.lane.b32.xlu0 %v8174, 64
      %v8254 = vpop.permute.xlu0 %8253
      %8255 = vrot.lane.b32.xlu0 %v8175, 64
      %v8256 = vpop.permute.xlu0 %8255
      %8257 = vrot.lane.b32.xlu0 %v8176, 64
      %v8258 = vpop.permute.xlu0 %8257
      %8259 = vrot.lane.b32.xlu0 %v8177, 64
      %v8260 = vpop.permute.xlu0 %8259
      %8261 = vrot.lane.b32.xlu0 %v8178, 64
      %v8262 = vpop.permute.xlu0 %8261
      %8263 = vrot.lane.b32.xlu0 %v8179, 64
      %v8264 = vpop.permute.xlu0 %8263
      %8265 = vrot.lane.b32.xlu0 %v8180, 64
      %v8266 = vpop.permute.xlu0 %8265
      %8267 = vrot.lane.b32.xlu0 %v8181, 64
      %v8268 = vpop.permute.xlu0 %8267
      %8269 = vrot.lane.b32.xlu0 %v8182, 64
      %v8270 = vpop.permute.xlu0 %8269
      %8271 = vrot.lane.b32.xlu0 %v8183, 64
      %v8272 = vpop.permute.xlu0 %8271
      %8273 = vrot.lane.b32.xlu0 %v8184, 64
      %v8274 = vpop.permute.xlu0 %8273
      %8275 = vrot.lane.b32.xlu0 %v8185, 64
      %v8276 = vpop.permute.xlu0 %8275
      %8277 = vrot.lane.b32.xlu0 %v8186, 64
      %v8278 = vpop.permute.xlu0 %8277
      %8279 = vrot.lane.b32.xlu0 %v8187, 64
      %v8280 = vpop.permute.xlu0 %8279
      %8281 = vrot.lane.b32.xlu0 %v8188, 64
      %v8282 = vpop.permute.xlu0 %8281
      %8283 = vrot.lane.b32.xlu0 %v8189, 64
      %v8284 = vpop.permute.xlu0 %8283
      %8285 = vrot.lane.b32.xlu0 %v8190, 64
      %v8286 = vpop.permute.xlu0 %8285
      %v8319 = vmul.f32 %v6763, %v8224
      %v8320 = vmul.f32 %v6778, %v8226
      %v8321 = vmul.f32 %v6793, %v8228
      %v8322 = vmul.f32 %v6808, %v8230
      %v8323 = vmul.f32 %v6823, %v8232
      %v8324 = vmul.f32 %v6838, %v8234
      %v8325 = vmul.f32 %v6853, %v8236
      %v8326 = vmul.f32 %v6868, %v8238
      %v8327 = vmul.f32 %v6883, %v8240
      %v8328 = vmul.f32 %v6898, %v8242
      %v8329 = vmul.f32 %v6913, %v8244
      %v8330 = vmul.f32 %v6928, %v8246
      %v8331 = vmul.f32 %v6943, %v8248
      %v8332 = vmul.f32 %v6958, %v8250
      %v8333 = vmul.f32 %v6973, %v8252
      %v8334 = vmul.f32 %v6988, %v8254
      %v8335 = vmul.f32 %v7003, %v8256
      %v8336 = vmul.f32 %v7018, %v8258
      %v8337 = vmul.f32 %v7033, %v8260
      %v8338 = vmul.f32 %v7048, %v8262
      %v8339 = vmul.f32 %v7063, %v8264
      %v8340 = vmul.f32 %v7078, %v8266
      %v8341 = vmul.f32 %v7093, %v8268
      %v8342 = vmul.f32 %v7108, %v8270
      %v8343 = vmul.f32 %v7123, %v8272
      %v8344 = vmul.f32 %v7138, %v8274
      %v8345 = vmul.f32 %v7153, %v8276
      %v8346 = vmul.f32 %v7168, %v8278
      %v8347 = vmul.f32 %v7183, %v8280
      %v8348 = vmul.f32 %v7198, %v8282
      %v8349 = vmul.f32 %v7213, %v8284
      %v8350 = vmul.f32 %v7228, %v8286
      %8359 = vrot.lane.b32.xlu0 %v8319, 32
      %v8360 = vpop.permute.xlu0 %8359
      %8361 = vrot.lane.b32.xlu0 %v8320, 32
      %v8362 = vpop.permute.xlu0 %8361
      %8363 = vrot.lane.b32.xlu0 %v8321, 32
      %v8364 = vpop.permute.xlu0 %8363
      %8365 = vrot.lane.b32.xlu0 %v8322, 32
      %v8366 = vpop.permute.xlu0 %8365
      %8367 = vrot.lane.b32.xlu0 %v8323, 32
      %v8368 = vpop.permute.xlu0 %8367
      %8369 = vrot.lane.b32.xlu0 %v8324, 32
      %v8370 = vpop.permute.xlu0 %8369
      %8371 = vrot.lane.b32.xlu0 %v8325, 32
      %v8372 = vpop.permute.xlu0 %8371
      %8373 = vrot.lane.b32.xlu0 %v8326, 32
      %v8374 = vpop.permute.xlu0 %8373
      %8391 = vrot.lane.b32.xlu0 %v8327, 64
      %v8392 = vpop.permute.xlu0 %8391
      %8393 = vrot.lane.b32.xlu0 %v8328, 64
      %v8394 = vpop.permute.xlu0 %8393
      %8395 = vrot.lane.b32.xlu0 %v8329, 64
      %v8396 = vpop.permute.xlu0 %8395
      %8397 = vrot.lane.b32.xlu0 %v8330, 64
      %v8398 = vpop.permute.xlu0 %8397
      %8399 = vrot.lane.b32.xlu0 %v8331, 64
      %v8400 = vpop.permute.xlu0 %8399
      %8401 = vrot.lane.b32.xlu0 %v8332, 64
      %v8402 = vpop.permute.xlu0 %8401
      %8403 = vrot.lane.b32.xlu0 %v8333, 64
      %v8404 = vpop.permute.xlu0 %8403
      %8405 = vrot.lane.b32.xlu0 %v8334, 64
      %v8406 = vpop.permute.xlu0 %8405
      %8423 = vrot.lane.b32.xlu0 %v8335, 96
      %v8424 = vpop.permute.xlu0 %8423
      %8425 = vrot.lane.b32.xlu0 %v8336, 96
      %v8426 = vpop.permute.xlu0 %8425
      %8427 = vrot.lane.b32.xlu0 %v8337, 96
      %v8428 = vpop.permute.xlu0 %8427
      %8429 = vrot.lane.b32.xlu0 %v8338, 96
      %v8430 = vpop.permute.xlu0 %8429
      %8431 = vrot.lane.b32.xlu0 %v8339, 96
      %v8432 = vpop.permute.xlu0 %8431
      %8433 = vrot.lane.b32.xlu0 %v8340, 96
      %v8434 = vpop.permute.xlu0 %8433
      %8435 = vrot.lane.b32.xlu0 %v8341, 96
      %v8436 = vpop.permute.xlu0 %8435
      %8437 = vrot.lane.b32.xlu0 %v8342, 96
      %v8438 = vpop.permute.xlu0 %8437
      %v8447 = vsel %vm6090, %v8360, %v8392
      %v8448 = vsel %vm6090, %v8362, %v8394
      %v8449 = vsel %vm6090, %v8364, %v8396
      %v8450 = vsel %vm6090, %v8366, %v8398
      %v8451 = vsel %vm6090, %v8368, %v8400
      %v8452 = vsel %vm6090, %v8370, %v8402
      %v8453 = vsel %vm6090, %v8372, %v8404
      %v8454 = vsel %vm6090, %v8374, %v8406
      %vm8455 = vcmask 523264
      %v8456 = vsel %vm8455, %v8447, %v8424
      %v8457 = vsel %vm8455, %v8448, %v8426
      %v8458 = vsel %vm8455, %v8449, %v8428
      %v8459 = vsel %vm8455, %v8450, %v8430
      %v8460 = vsel %vm8455, %v8451, %v8432
      %v8461 = vsel %vm8455, %v8452, %v8434
      %v8462 = vsel %vm8455, %v8453, %v8436
      %v8463 = vsel %vm8455, %v8454, %v8438
      %vm8464 = vcmask 785408
      %v8465 = vsel %vm8464, %v8456, %v8343
      %v8466 = vsel %vm8464, %v8457, %v8344
      %v8467 = vsel %vm8464, %v8458, %v8345
      %v8468 = vsel %vm8464, %v8459, %v8346
      %v8469 = vsel %vm8464, %v8460, %v8347
      %v8470 = vsel %vm8464, %v8461, %v8348
      %v8471 = vsel %vm8464, %v8462, %v8349
      %v8472 = vsel %vm8464, %v8463, %v8350
      %8473 = vst [vmem:[%s462] sm:$0xff] %v8465
      %8474 = vst [vmem:[%s462 + $0x8] sm:$0xff] %v8466
      %8475 = vst [vmem:[%s462 + $0x10] sm:$0xff] %v8467
      %8476 = vst [vmem:[%s462 + $0x18] sm:$0xff] %v8468
      %8477 = vst [vmem:[%s462 + $0x20] sm:$0xff] %v8469
      %8478 = vst [vmem:[%s462 + $0x28] sm:$0xff] %v8470
      %8479 = vst [vmem:[%s462 + $0x30] sm:$0xff] %v8471
      %8480 = vst [vmem:[%s462 + $0x38] sm:$0xff] %v8472
      %8489 = vrot.lane.b32.xlu0 %v5510, 96
      %v8490 = vpop.permute.xlu0 %8489
      %8491 = vrot.lane.b32.xlu0 %v5511, 96
      %v8492 = vpop.permute.xlu0 %8491
      %8493 = vrot.lane.b32.xlu0 %v5512, 96
      %v8494 = vpop.permute.xlu0 %8493
      %8495 = vrot.lane.b32.xlu0 %v5513, 96
      %v8496 = vpop.permute.xlu0 %8495
      %8497 = vrot.lane.b32.xlu0 %v5514, 96
      %v8498 = vpop.permute.xlu0 %8497
      %8499 = vrot.lane.b32.xlu0 %v5515, 96
      %v8500 = vpop.permute.xlu0 %8499
      %8501 = vrot.lane.b32.xlu0 %v5516, 96
      %v8502 = vpop.permute.xlu0 %8501
      %8503 = vrot.lane.b32.xlu0 %v5517, 96
      %v8504 = vpop.permute.xlu0 %8503
      %8521 = vrot.lane.b32.xlu0 %v5526, 32
      %v8522 = vpop.permute.xlu0 %8521
      %8523 = vrot.lane.b32.xlu0 %v5527, 32
      %v8524 = vpop.permute.xlu0 %8523
      %8525 = vrot.lane.b32.xlu0 %v5528, 32
      %v8526 = vpop.permute.xlu0 %8525
      %8527 = vrot.lane.b32.xlu0 %v5529, 32
      %v8528 = vpop.permute.xlu0 %8527
      %8529 = vrot.lane.b32.xlu0 %v5530, 32
      %v8530 = vpop.permute.xlu0 %8529
      %8531 = vrot.lane.b32.xlu0 %v5531, 32
      %v8532 = vpop.permute.xlu0 %8531
      %8533 = vrot.lane.b32.xlu0 %v5532, 32
      %v8534 = vpop.permute.xlu0 %8533
      %8535 = vrot.lane.b32.xlu0 %v5533, 32
      %v8536 = vpop.permute.xlu0 %8535
      %8553 = vrot.lane.b32.xlu0 %v5534, 64
      %v8554 = vpop.permute.xlu0 %8553
      %8555 = vrot.lane.b32.xlu0 %v5535, 64
      %v8556 = vpop.permute.xlu0 %8555
      %8557 = vrot.lane.b32.xlu0 %v5536, 64
      %v8558 = vpop.permute.xlu0 %8557
      %8559 = vrot.lane.b32.xlu0 %v5537, 64
      %v8560 = vpop.permute.xlu0 %8559
      %8561 = vrot.lane.b32.xlu0 %v5538, 64
      %v8562 = vpop.permute.xlu0 %8561
      %8563 = vrot.lane.b32.xlu0 %v5539, 64
      %v8564 = vpop.permute.xlu0 %8563
      %8565 = vrot.lane.b32.xlu0 %v5540, 64
      %v8566 = vpop.permute.xlu0 %8565
      %8567 = vrot.lane.b32.xlu0 %v5541, 64
      %v8568 = vpop.permute.xlu0 %8567
      %v8577 = vsel %vm6090, %v8490, %v5518
      %v8578 = vsel %vm6090, %v8492, %v5519
      %v8579 = vsel %vm6090, %v8494, %v5520
      %v8580 = vsel %vm6090, %v8496, %v5521
      %v8581 = vsel %vm6090, %v8498, %v5522
      %v8582 = vsel %vm6090, %v8500, %v5523
      %v8583 = vsel %vm6090, %v8502, %v5524
      %v8584 = vsel %vm6090, %v8504, %v5525
      %v8585 = vsel %vm8455, %v8577, %v8522
      %v8586 = vsel %vm8455, %v8578, %v8524
      %v8587 = vsel %vm8455, %v8579, %v8526
      %v8588 = vsel %vm8455, %v8580, %v8528
      %v8589 = vsel %vm8455, %v8581, %v8530
      %v8590 = vsel %vm8455, %v8582, %v8532
      %v8591 = vsel %vm8455, %v8583, %v8534
      %v8592 = vsel %vm8455, %v8584, %v8536
      %v8593 = vsel %vm8464, %v8585, %v8554
      %v8594 = vsel %vm8464, %v8586, %v8556
      %v8595 = vsel %vm8464, %v8587, %v8558
      %v8596 = vsel %vm8464, %v8588, %v8560
      %v8597 = vsel %vm8464, %v8589, %v8562
      %v8598 = vsel %vm8464, %v8590, %v8564
      %v8599 = vsel %vm8464, %v8591, %v8566
      %v8600 = vsel %vm8464, %v8592, %v8568
      %8601 = vst [vmem:[%s467] sm:$0xff] %v8593
      %8602 = vst [vmem:[%s467 + $0x8] sm:$0xff] %v8594
      %8603 = vst [vmem:[%s467 + $0x10] sm:$0xff] %v8595
      %8604 = vst [vmem:[%s467 + $0x18] sm:$0xff] %v8596
      %8605 = vst [vmem:[%s467 + $0x20] sm:$0xff] %v8597
      %8606 = vst [vmem:[%s467 + $0x28] sm:$0xff] %v8598
      %8607 = vst [vmem:[%s467 + $0x30] sm:$0xff] %v8599
      %8608 = vst [vmem:[%s467 + $0x38] sm:$0xff] %v8600
      %8617 = vrot.lane.b32.xlu0 %v5958, 96
      %v8618 = vpop.permute.xlu0 %8617
      %8619 = vrot.lane.b32.xlu0 %v5959, 96
      %v8620 = vpop.permute.xlu0 %8619
      %8621 = vrot.lane.b32.xlu0 %v5960, 96
      %v8622 = vpop.permute.xlu0 %8621
      %8623 = vrot.lane.b32.xlu0 %v5961, 96
      %v8624 = vpop.permute.xlu0 %8623
      %8625 = vrot.lane.b32.xlu0 %v5962, 96
      %v8626 = vpop.permute.xlu0 %8625
      %8627 = vrot.lane.b32.xlu0 %v5963, 96
      %v8628 = vpop.permute.xlu0 %8627
      %8629 = vrot.lane.b32.xlu0 %v5964, 96
      %v8630 = vpop.permute.xlu0 %8629
      %8631 = vrot.lane.b32.xlu0 %v5965, 96
      %v8632 = vpop.permute.xlu0 %8631
      %8649 = vrot.lane.b32.xlu0 %v5974, 32
      %v8650 = vpop.permute.xlu0 %8649
      %8651 = vrot.lane.b32.xlu0 %v5975, 32
      %v8652 = vpop.permute.xlu0 %8651
      %8653 = vrot.lane.b32.xlu0 %v5976, 32
      %v8654 = vpop.permute.xlu0 %8653
      %8655 = vrot.lane.b32.xlu0 %v5977, 32
      %v8656 = vpop.permute.xlu0 %8655
      %8657 = vrot.lane.b32.xlu0 %v5978, 32
      %v8658 = vpop.permute.xlu0 %8657
      %8659 = vrot.lane.b32.xlu0 %v5979, 32
      %v8660 = vpop.permute.xlu0 %8659
      %8661 = vrot.lane.b32.xlu0 %v5980, 32
      %v8662 = vpop.permute.xlu0 %8661
      %8663 = vrot.lane.b32.xlu0 %v5981, 32
      %v8664 = vpop.permute.xlu0 %8663
      %8681 = vrot.lane.b32.xlu0 %v5982, 64
      %v8682 = vpop.permute.xlu0 %8681
      %8683 = vrot.lane.b32.xlu0 %v5983, 64
      %v8684 = vpop.permute.xlu0 %8683
      %8685 = vrot.lane.b32.xlu0 %v5984, 64
      %v8686 = vpop.permute.xlu0 %8685
      %8687 = vrot.lane.b32.xlu0 %v5985, 64
      %v8688 = vpop.permute.xlu0 %8687
      %8689 = vrot.lane.b32.xlu0 %v5986, 64
      %v8690 = vpop.permute.xlu0 %8689
      %8691 = vrot.lane.b32.xlu0 %v5987, 64
      %v8692 = vpop.permute.xlu0 %8691
      %8693 = vrot.lane.b32.xlu0 %v5988, 64
      %v8694 = vpop.permute.xlu0 %8693
      %8695 = vrot.lane.b32.xlu0 %v5989, 64
      %v8696 = vpop.permute.xlu0 %8695
      %v8705 = vsel %vm6090, %v8618, %v5966
      %v8706 = vsel %vm6090, %v8620, %v5967
      %v8707 = vsel %vm6090, %v8622, %v5968
      %v8708 = vsel %vm6090, %v8624, %v5969
      %v8709 = vsel %vm6090, %v8626, %v5970
      %v8710 = vsel %vm6090, %v8628, %v5971
      %v8711 = vsel %vm6090, %v8630, %v5972
      %v8712 = vsel %vm6090, %v8632, %v5973
      %v8713 = vsel %vm8455, %v8705, %v8650
      %v8714 = vsel %vm8455, %v8706, %v8652
      %v8715 = vsel %vm8455, %v8707, %v8654
      %v8716 = vsel %vm8455, %v8708, %v8656
      %v8717 = vsel %vm8455, %v8709, %v8658
      %v8718 = vsel %vm8455, %v8710, %v8660
      %v8719 = vsel %vm8455, %v8711, %v8662
      %v8720 = vsel %vm8455, %v8712, %v8664
      %v8721 = vsel %vm8464, %v8713, %v8682
      %v8722 = vsel %vm8464, %v8714, %v8684
      %v8723 = vsel %vm8464, %v8715, %v8686
      %v8724 = vsel %vm8464, %v8716, %v8688
      %v8725 = vsel %vm8464, %v8717, %v8690
      %v8726 = vsel %vm8464, %v8718, %v8692
      %v8727 = vsel %vm8464, %v8719, %v8694
      %v8728 = vsel %vm8464, %v8720, %v8696
      %8729 = vst [vmem:[%s472] sm:$0xff] %v8721
      %8730 = vst [vmem:[%s472 + $0x8] sm:$0xff] %v8722
      %8731 = vst [vmem:[%s472 + $0x10] sm:$0xff] %v8723
      %8732 = vst [vmem:[%s472 + $0x18] sm:$0xff] %v8724
      %8733 = vst [vmem:[%s472 + $0x20] sm:$0xff] %v8725
      %8734 = vst [vmem:[%s472 + $0x28] sm:$0xff] %v8726
      %8735 = vst [vmem:[%s472 + $0x30] sm:$0xff] %v8727
      %8736 = vst [vmem:[%s472 + $0x38] sm:$0xff] %v8728
      %8737 = vrot.lane.b32.xlu0 %v5206, 64
      %v8738 = vpop.permute.xlu0 %8737
      %8739 = vrot.lane.b32.xlu0 %v5207, 64
      %v8740 = vpop.permute.xlu0 %8739
      %8741 = vrot.lane.b32.xlu0 %v5208, 64
      %v8742 = vpop.permute.xlu0 %8741
      %8743 = vrot.lane.b32.xlu0 %v5209, 64
      %v8744 = vpop.permute.xlu0 %8743
      %8745 = vrot.lane.b32.xlu0 %v5210, 64
      %v8746 = vpop.permute.xlu0 %8745
      %8747 = vrot.lane.b32.xlu0 %v5211, 64
      %v8748 = vpop.permute.xlu0 %8747
      %8749 = vrot.lane.b32.xlu0 %v5212, 64
      %v8750 = vpop.permute.xlu0 %8749
      %8751 = vrot.lane.b32.xlu0 %v5213, 64
      %v8752 = vpop.permute.xlu0 %8751
      %8761 = vrot.lane.b32.xlu0 %v5214, 96
      %v8762 = vpop.permute.xlu0 %8761
      %8763 = vrot.lane.b32.xlu0 %v5215, 96
      %v8764 = vpop.permute.xlu0 %8763
      %8765 = vrot.lane.b32.xlu0 %v5216, 96
      %v8766 = vpop.permute.xlu0 %8765
      %8767 = vrot.lane.b32.xlu0 %v5217, 96
      %v8768 = vpop.permute.xlu0 %8767
      %8769 = vrot.lane.b32.xlu0 %v5218, 96
      %v8770 = vpop.permute.xlu0 %8769
      %8771 = vrot.lane.b32.xlu0 %v5219, 96
      %v8772 = vpop.permute.xlu0 %8771
      %8773 = vrot.lane.b32.xlu0 %v5220, 96
      %v8774 = vpop.permute.xlu0 %8773
      %8775 = vrot.lane.b32.xlu0 %v5221, 96
      %v8776 = vpop.permute.xlu0 %8775
      %v8785 = vsel %vm6090, %v5190, %v5431
      %v8786 = vsel %vm6090, %v5191, %v5433
      %v8787 = vsel %vm6090, %v5192, %v5435
      %v8788 = vsel %vm6090, %v5193, %v5437
      %v8789 = vsel %vm6090, %v5194, %v5439
      %v8790 = vsel %vm6090, %v5195, %v5441
      %v8791 = vsel %vm6090, %v5196, %v5443
      %v8792 = vsel %vm6090, %v5197, %v5445
      %v8793 = vsel %vm8455, %v8785, %v8738
      %v8794 = vsel %vm8455, %v8786, %v8740
      %v8795 = vsel %vm8455, %v8787, %v8742
      %v8796 = vsel %vm8455, %v8788, %v8744
      %v8797 = vsel %vm8455, %v8789, %v8746
      %v8798 = vsel %vm8455, %v8790, %v8748
      %v8799 = vsel %vm8455, %v8791, %v8750
      %v8800 = vsel %vm8455, %v8792, %v8752
      %v8801 = vsel %vm8464, %v8793, %v8762
      %v8802 = vsel %vm8464, %v8794, %v8764
      %v8803 = vsel %vm8464, %v8795, %v8766
      %v8804 = vsel %vm8464, %v8796, %v8768
      %v8805 = vsel %vm8464, %v8797, %v8770
      %v8806 = vsel %vm8464, %v8798, %v8772
      %v8807 = vsel %vm8464, %v8799, %v8774
      %v8808 = vsel %vm8464, %v8800, %v8776
      %8809 = vst [vmem:[%s477] sm:$0xff] %v8801
      %8810 = vst [vmem:[%s477 + $0x8] sm:$0xff] %v8802
      %8811 = vst [vmem:[%s477 + $0x10] sm:$0xff] %v8803
      %8812 = vst [vmem:[%s477 + $0x18] sm:$0xff] %v8804
      %8813 = vst [vmem:[%s477 + $0x20] sm:$0xff] %v8805
      %8814 = vst [vmem:[%s477 + $0x28] sm:$0xff] %v8806
      %8815 = vst [vmem:[%s477 + $0x30] sm:$0xff] %v8807
      %8816 = vst [vmem:[%s477 + $0x38] sm:$0xff] %v8808
      %8817 = vrot.lane.b32.xlu0 %v5686, 64
      %v8818 = vpop.permute.xlu0 %8817
      %8819 = vrot.lane.b32.xlu0 %v5687, 64
      %v8820 = vpop.permute.xlu0 %8819
      %8821 = vrot.lane.b32.xlu0 %v5688, 64
      %v8822 = vpop.permute.xlu0 %8821
      %8823 = vrot.lane.b32.xlu0 %v5689, 64
      %v8824 = vpop.permute.xlu0 %8823
      %8825 = vrot.lane.b32.xlu0 %v5690, 64
      %v8826 = vpop.permute.xlu0 %8825
      %8827 = vrot.lane.b32.xlu0 %v5691, 64
      %v8828 = vpop.permute.xlu0 %8827
      %8829 = vrot.lane.b32.xlu0 %v5692, 64
      %v8830 = vpop.permute.xlu0 %8829
      %8831 = vrot.lane.b32.xlu0 %v5693, 64
      %v8832 = vpop.permute.xlu0 %8831
      %8841 = vrot.lane.b32.xlu0 %v5694, 96
      %v8842 = vpop.permute.xlu0 %8841
      %8843 = vrot.lane.b32.xlu0 %v5695, 96
      %v8844 = vpop.permute.xlu0 %8843
      %8845 = vrot.lane.b32.xlu0 %v5696, 96
      %v8846 = vpop.permute.xlu0 %8845
      %8847 = vrot.lane.b32.xlu0 %v5697, 96
      %v8848 = vpop.permute.xlu0 %8847
      %8849 = vrot.lane.b32.xlu0 %v5698, 96
      %v8850 = vpop.permute.xlu0 %8849
      %8851 = vrot.lane.b32.xlu0 %v5699, 96
      %v8852 = vpop.permute.xlu0 %8851
      %8853 = vrot.lane.b32.xlu0 %v5700, 96
      %v8854 = vpop.permute.xlu0 %8853
      %8855 = vrot.lane.b32.xlu0 %v5701, 96
      %v8856 = vpop.permute.xlu0 %8855
      %v8865 = vsel %vm6090, %v5670, %v5879
      %v8866 = vsel %vm6090, %v5671, %v5881
      %v8867 = vsel %vm6090, %v5672, %v5883
      %v8868 = vsel %vm6090, %v5673, %v5885
      %v8869 = vsel %vm6090, %v5674, %v5887
      %v8870 = vsel %vm6090, %v5675, %v5889
      %v8871 = vsel %vm6090, %v5676, %v5891
      %v8872 = vsel %vm6090, %v5677, %v5893
      %v8873 = vsel %vm8455, %v8865, %v8818
      %v8874 = vsel %vm8455, %v8866, %v8820
      %v8875 = vsel %vm8455, %v8867, %v8822
      %v8876 = vsel %vm8455, %v8868, %v8824
      %v8877 = vsel %vm8455, %v8869, %v8826
      %v8878 = vsel %vm8455, %v8870, %v8828
      %v8879 = vsel %vm8455, %v8871, %v8830
      %v8880 = vsel %vm8455, %v8872, %v8832
      %v8881 = vsel %vm8464, %v8873, %v8842
      %v8882 = vsel %vm8464, %v8874, %v8844
      %v8883 = vsel %vm8464, %v8875, %v8846
      %v8884 = vsel %vm8464, %v8876, %v8848
      %v8885 = vsel %vm8464, %v8877, %v8850
      %v8886 = vsel %vm8464, %v8878, %v8852
      %v8887 = vsel %vm8464, %v8879, %v8854
      %v8888 = vsel %vm8464, %v8880, %v8856
      %8889 = vst [vmem:[%s482] sm:$0xff] %v8881
      %8890 = vst [vmem:[%s482 + $0x8] sm:$0xff] %v8882
      %8891 = vst [vmem:[%s482 + $0x10] sm:$0xff] %v8883
      %8892 = vst [vmem:[%s482 + $0x18] sm:$0xff] %v8884
      %8893 = vst [vmem:[%s482 + $0x20] sm:$0xff] %v8885
      %8894 = vst [vmem:[%s482 + $0x28] sm:$0xff] %v8886
      %8895 = vst [vmem:[%s482 + $0x30] sm:$0xff] %v8887
      %8896 = vst [vmem:[%s482 + $0x38] sm:$0xff] %v8888
      %p8897 = scmp.lt.s32.totalorder %s24, 1
      %s8898 = scalar_select %p8897, %s24, 1
      %s8899 = smul.addr %s8898, 8
      %s8900 = smul.addr %s8899, 8
      %s8901 = scalar_lea.vmem %s8, %s8900
      %p8902 = scmp.lt.s32.totalorder %s24, 1
      %s8903 = scalar_select %p8902, %s24, 1
      %s8904 = smul.addr %s8903, 8
      %s8905 = smul.addr %s8904, 8
      %s8906 = scalar_lea.vmem %s9, %s8905
      %p8907 = scmp.lt.s32.totalorder %s24, 1
      %s8908 = scalar_select %p8907, %s24, 1
      %s8909 = smul.addr %s8908, 8
      %s8910 = smul.addr %s8909, 8
      %s8911 = scalar_lea.vmem %s10, %s8910
      %p8912 = scmp.lt.s32.totalorder %s24, 1
      %s8913 = scalar_select %p8912, %s24, 1
      %s8914 = smul.addr %s8913, 8
      %s8915 = smul.addr %s8914, 8
      %s8916 = scalar_lea.vmem %s11, %s8915
      %p8917 = scmp.lt.s32.totalorder %s24, 1
      %s8918 = scalar_select %p8917, %s24, 1
      %s8919 = smul.addr %s8918, 8
      %s8920 = smul.addr %s8919, 8
      %s8921 = scalar_lea.vmem %s12, %s8920
      // Predicated region
      $region53: #{causal_lstm_cell.1} parent=51 // pred_check
        %p8922 = pneg %p220
      $region54: #{causal_lstm_cell.1} parent=51 // pred_check_branch
        %8924 = sbr.rel (%p8922) target = $region56
      $region55: #{causal_lstm_cell.1} parent=51 // pred_region
        _
      $region56: #{causal_lstm_cell.1} parent=51 // pred_fallthru
        _
      // Predicated region
      $region57: #{causal_lstm_cell.1} parent=51 // pred_check
        %p8925 = pneg %p246
      $region58: #{causal_lstm_cell.1} parent=51 // pred_check_branch
        %8927 = sbr.rel (%p8925) target = $region60
      $region59: #{causal_lstm_cell.1} parent=51 // pred_region
        _
      $region60: #{causal_lstm_cell.1} parent=51 // pred_fallthru
        _
      // Predicated region
      $region61: #{causal_lstm_cell.1} parent=51 // pred_check
        %p8928 = pneg %p272
      $region62: #{causal_lstm_cell.1} parent=51 // pred_check_branch
        %8930 = sbr.rel (%p8928) target = $region64
      $region63: #{causal_lstm_cell.1} parent=51 // pred_region
        _
      $region64: #{causal_lstm_cell.1} parent=51 // pred_fallthru
        _
      // Predicated region
      $region65: #{causal_lstm_cell.1} parent=51 // pred_check
        %p8931 = pneg %p298
      $region66: #{causal_lstm_cell.1} parent=51 // pred_check_branch
        %8933 = sbr.rel (%p8931) target = $region68
      $region67: #{causal_lstm_cell.1} parent=51 // pred_region
        _
      $region68: #{causal_lstm_cell.1} parent=51 // pred_fallthru
        _
      // Predicated region
      $region69: #{causal_lstm_cell.1} parent=51 // pred_check
        %p8934 = pneg %p324
      $region70: #{causal_lstm_cell.1} parent=51 // pred_check_branch
        %8936 = sbr.rel (%p8934) target = $region72
      $region71: #{causal_lstm_cell.1} parent=51 // pred_region
        _
      $region72: #{causal_lstm_cell.1} parent=51 // pred_fallthru
        _
    $region52: #{causal_lstm_cell.1} parent=5 // pred_fallthru
      _
    %p8937 = scmp.le.s32.totalorder 2, %s19
    // Predicated region
    $region73: #{causal_lstm_cell.1} parent=5 // pred_check
      %p8938 = pneg %p8937
    $region74: #{causal_lstm_cell.1} parent=5 // pred_check_branch
      %8940 = sbr.rel (%p8938) target = $region76
    $region75: #{causal_lstm_cell.1} parent=5 // pred_region
      %s8941 = ssub.s32 %s19, 2
      // Predicated region
      $region77: #{causal_lstm_cell.1} parent=75 // pred_check
        %p8942 = pneg %p226
      $region78: #{causal_lstm_cell.1} parent=75 // pred_check_branch
        %8944 = sbr.rel (%p8942) target = $region80
      $region79: #{causal_lstm_cell.1} parent=75 // pred_region
        %p8945 = scmp.lt.s32.totalorder %s25, 1
        %s8946 = scalar_select %p8945, %s25, 1
        %s8947 = smul.addr %s8946, 8
        %s8948 = smul.addr %s8947, 8
        %s8949 = scalar_lea.vmem %s8, %s8948
      $region80: #{causal_lstm_cell.1} parent=75 // pred_fallthru
        _
      // Predicated region
      $region81: #{causal_lstm_cell.1} parent=75 // pred_check
        %p8950 = pneg %p252
      $region82: #{causal_lstm_cell.1} parent=75 // pred_check_branch
        %8952 = sbr.rel (%p8950) target = $region84
      $region83: #{causal_lstm_cell.1} parent=75 // pred_region
        %p8953 = scmp.lt.s32.totalorder %s25, 1
        %s8954 = scalar_select %p8953, %s25, 1
        %s8955 = smul.addr %s8954, 8
        %s8956 = smul.addr %s8955, 8
        %s8957 = scalar_lea.vmem %s9, %s8956
      $region84: #{causal_lstm_cell.1} parent=75 // pred_fallthru
        _
      // Predicated region
      $region85: #{causal_lstm_cell.1} parent=75 // pred_check
        %p8958 = pneg %p278
      $region86: #{causal_lstm_cell.1} parent=75 // pred_check_branch
        %8960 = sbr.rel (%p8958) target = $region88
      $region87: #{causal_lstm_cell.1} parent=75 // pred_region
        %p8961 = scmp.lt.s32.totalorder %s25, 1
        %s8962 = scalar_select %p8961, %s25, 1
        %s8963 = smul.addr %s8962, 8
        %s8964 = smul.addr %s8963, 8
        %s8965 = scalar_lea.vmem %s10, %s8964
      $region88: #{causal_lstm_cell.1} parent=75 // pred_fallthru
        _
      // Predicated region
      $region89: #{causal_lstm_cell.1} parent=75 // pred_check
        %p8966 = pneg %p304
      $region90: #{causal_lstm_cell.1} parent=75 // pred_check_branch
        %8968 = sbr.rel (%p8966) target = $region92
      $region91: #{causal_lstm_cell.1} parent=75 // pred_region
        %p8969 = scmp.lt.s32.totalorder %s25, 1
        %s8970 = scalar_select %p8969, %s25, 1
        %s8971 = smul.addr %s8970, 8
        %s8972 = smul.addr %s8971, 8
        %s8973 = scalar_lea.vmem %s11, %s8972
      $region92: #{causal_lstm_cell.1} parent=75 // pred_fallthru
        _
      // Predicated region
      $region93: #{causal_lstm_cell.1} parent=75 // pred_check
        %p8974 = pneg %p330
      $region94: #{causal_lstm_cell.1} parent=75 // pred_check_branch
        %8976 = sbr.rel (%p8974) target = $region96
      $region95: #{causal_lstm_cell.1} parent=75 // pred_region
        %p8977 = scmp.lt.s32.totalorder %s25, 1
        %s8978 = scalar_select %p8977, %s25, 1
        %s8979 = smul.addr %s8978, 8
        %s8980 = smul.addr %s8979, 8
        %s8981 = scalar_lea.vmem %s12, %s8980
      $region96: #{causal_lstm_cell.1} parent=75 // pred_fallthru
        _
    $region76: #{causal_lstm_cell.1} parent=5 // pred_fallthru
      _
  $region6: #{causal_lstm_cell.1} parent=0 // loop_footer
    %s23 = sadd.s32 1, %s19
  $region7: #{causal_lstm_cell.1} parent=0 // loop_footer_branch
    %18 = sbr.rel target = $region3
  $region8: #{causal_lstm_cell.1} parent=0 // loop_exit
    _

</llo_original>
